<compile_context>
chip_gen: v7x
topology: tpu7x:2x2x1
jax: 0.10.0
libtpu: 0.0.40
codegen_flags: <defaults>
</compile_context>

<pallas_src>
import functools

import jax
import jax.numpy as jnp
from jax.experimental import pallas as pl
from jax.experimental.pallas import tpu as pltpu


# ----------------------------------------------------------------------------
# Model dimensions (synthetic, lane-dense — see TODO above)
# ----------------------------------------------------------------------------
C0 = 128             # stem / block channels
CEXP = 256           # MBConv expansion channels
SE_R = 32            # squeeze-excite reduced channels
NUM_FEATURES = 1280  # efficientnet_b0 num_features
OUT_DIM = 1          # cfg.output_dim
NUM_BLOCKS = 2

_VMEM_LIMIT = 48 * 1024 * 1024  # fits v5e/v6e (128 MiB) and v7x (64 MiB) VMEM
_VMEM = pl.BlockSpec(memory_space=pltpu.MemorySpace.VMEM)


# ----------------------------------------------------------------------------
# Pallas kernels
# ----------------------------------------------------------------------------

def _gemm_bias_act_kernel(a_ref, w_ref, b_ref, o_ref, *, act):
    """out = act(a @ w + b); w has the inference-BatchNorm scale pre-folded."""
    y = jnp.dot(a_ref[...], w_ref[...], preferred_element_type=jnp.float32)
    y = y + b_ref[...]
    if act == "silu":
        y = y * jax.nn.sigmoid(y)
    o_ref[...] = y.astype(o_ref.dtype)


def _mbconv_kernel(x_ref, we_ref, be_ref, wd_ref, bd_ref,
                   ws1_ref, bs1_ref, ws2_ref, bs2_ref,
                   wp_ref, bp_ref, o_ref, hpad_ref, *, H, W):
    """One fused MBConv block for a single batch sample.

    expand 1x1 (+BN, SiLU) -> depthwise 3x3 (+BN, SiLU) -> squeeze-excite ->
    project 1x1 (+BN) -> residual.  The expanded activation lives entirely in
    the VMEM scratch `hpad_ref`; no intermediate touches HBM.
    """
    C = x_ref.shape[-1]
    E = we_ref.shape[-1]

    x2 = x_ref[...].reshape(H * W, C)                       # bf16 (H*W, C)

    # --- expand 1x1 conv (+ folded BN) + SiLU --------------------------------
    h = jnp.dot(x2, we_ref[...], preferred_element_type=jnp.float32)
    h = h + be_ref[...]
    h = h * jax.nn.sigmoid(h)                               # (H*W, E) f32

    # --- depthwise 3x3 (+ folded BN) + SiLU via zero-padded VMEM scratch -----
    hpad_ref[...] = jnp.zeros_like(hpad_ref)
    hpad_ref[pl.ds(1, H), pl.ds(1, W), :] = h.reshape(H, W, E)
    wd = wd_ref[...]                                        # (9, E) f32
    acc = jnp.zeros((H, W, E), jnp.float32)
    for kh in range(3):
        for kw in range(3):
            tap = hpad_ref[pl.ds(kh, H), pl.ds(kw, W), :]
            acc = acc + tap * wd[kh * 3 + kw].reshape(1, 1, E)
    g = acc + bd_ref[...].reshape(1, 1, E)
    g = g * jax.nn.sigmoid(g)
    g2 = g.reshape(H * W, E)

    # --- squeeze-excite: only the pooled (1, E) vector goes through the FCs --
    pooled = jnp.mean(g2, axis=0, keepdims=True)            # (1, E)
    s = jnp.dot(pooled, ws1_ref[...], preferred_element_type=jnp.float32) + bs1_ref[...]
    s = s * jax.nn.sigmoid(s)
    s = jnp.dot(s, ws2_ref[...], preferred_element_type=jnp.float32) + bs2_ref[...]
    gate = jax.nn.sigmoid(s)                                # (1, E)

    # --- gated projection 1x1 conv (+ folded BN) + residual (no activation) --
    gg = (g2 * gate).astype(jnp.bfloat16)
    y = jnp.dot(gg, wp_ref[...], preferred_element_type=jnp.float32) + bp_ref[...]
    y = y + x2.astype(jnp.float32)
    o_ref[...] = y.reshape(1, H, W, C).astype(o_ref.dtype)


def _gap_fc_kernel(x_ref, w_ref, b_ref, emb_ref, out_ref):
    """Global average pool over (H, W) fused with the fc Linear head."""
    x = x_ref[...].astype(jnp.float32)                      # (N, H, W, F)
    emb = jnp.mean(x, axis=(1, 2))                          # (N, F)
    emb_ref[...] = emb
    out_ref[...] = (jnp.dot(emb, w_ref[...], preferred_element_type=jnp.float32)
                    + b_ref[...])


# ----------------------------------------------------------------------------
# Pallas wrappers
# ----------------------------------------------------------------------------

def gemm_bias_act(a, w, bias, act="none", out_dtype=jnp.bfloat16, tm=128):
    """Tiled conv-as-GEMM / linear: act(a @ w + b).  bf16 operands, f32 accum."""
    M, K = a.shape
    Cout = w.shape[1]
    # Always cdiv-grid (no tm=M fallback).  A padded last tile is safe: rows are
    # independent and out-of-bounds output rows are clipped on the store.
    grid_m = pl.cdiv(M, tm)
    kernel = functools.partial(_gemm_bias_act_kernel, act=act)
    return pl.pallas_call(
        kernel,
        grid=(grid_m,),
        in_specs=[
            pl.BlockSpec((tm, K), lambda i: (i, 0)),
            pl.BlockSpec((K, Cout), lambda i: (0, 0)),
            pl.BlockSpec((1, Cout), lambda i: (0, 0)),
        ],
        out_specs=pl.BlockSpec((tm, Cout), lambda i: (i, 0)),
        out_shape=jax.ShapeDtypeStruct((M, Cout), out_dtype),
        compiler_params=pltpu.CompilerParams(
            dimension_semantics=("parallel",),
            vmem_limit_bytes=_VMEM_LIMIT),
    )(a.astype(jnp.bfloat16), w, bias)


def mbconv_block(x, p):
    """One fused MBConv block; grid over the batch (parallel -> both v7x TCs)."""
    N, H, W, C = x.shape
    E = p["w_exp"].shape[1]
    r = p["w_se1"].shape[1]
    kernel = functools.partial(_mbconv_kernel, H=H, W=W)

    def full2d(shape):
        return pl.BlockSpec(shape, lambda n: (0, 0))

    return pl.pallas_call(
        kernel,
        grid=(N,),
        in_specs=[
            pl.BlockSpec((1, H, W, C), lambda n: (n, 0, 0, 0)),
            full2d((C, E)), full2d((1, E)),        # expand
            full2d((9, E)), full2d((1, E)),        # depthwise 3x3
            full2d((E, r)), full2d((1, r)),        # SE reduce
            full2d((r, E)), full2d((1, E)),        # SE expand
            full2d((E, C)), full2d((1, C)),        # project
        ],
        out_specs=pl.BlockSpec((1, H, W, C), lambda n: (n, 0, 0, 0)),
        out_shape=jax.ShapeDtypeStruct((N, H, W, C), jnp.bfloat16),
        scratch_shapes=[pltpu.VMEM((H + 2, W + 2, E), jnp.float32)],
        compiler_params=pltpu.CompilerParams(
            dimension_semantics=("parallel",),
            vmem_limit_bytes=_VMEM_LIMIT),
    )(x, p["w_exp"], p["b_exp"], p["w_dw"], p["b_dw"],
      p["w_se1"], p["b_se1"], p["w_se2"], p["b_se2"],
      p["w_proj"], p["b_proj"])


def gap_fc(x, w, b):
    """Fused global-average-pool + fc Linear head (single tiny kernel)."""
    # TODO(synk): at real image sizes, tile the pool over spatial blocks with a
    # scratch accumulator instead of one full-VMEM block.
    N, H, W, F = x.shape
    out_dim = w.shape[1]
    emb, logits = pl.pallas_call(
        _gap_fc_kernel,
        in_specs=[_VMEM, _VMEM, _VMEM],
        out_specs=(_VMEM, _VMEM),
        out_shape=(jax.ShapeDtypeStruct((N, F), jnp.float32),
                   jax.ShapeDtypeStruct((N, out_dim), jnp.float32)),
        compiler_params=pltpu.CompilerParams(vmem_limit_bytes=_VMEM_LIMIT),
    )(x, w, b)
    return logits, emb


# ----------------------------------------------------------------------------
# Glue (layout plumbing): space-to-depth for the 3-channel stem only
# ----------------------------------------------------------------------------

def space_to_depth_3x3_s2(x):
    """3x3 / stride-2 / pad-1 patch extraction for the stem input.

    Only wrapper-side patch extraction left: the stem input has 3 channels and
    is a few KB, and packing (kh, kw, cin) -> 27 lanes turns the stride-2 conv
    into one lane-dense GEMM.  Flatten order is (kh, kw, cin); real OIHW
    checkpoints would need the matching reshape of their stem weight.
    """
    N, H, W, _ = x.shape
    xp = jnp.pad(x, ((0, 0), (1, 1), (1, 1), (0, 0)))
    Ho, Wo = H // 2, W // 2
    cols = [xp[:, kh:kh + 2 * Ho:2, kw:kw + 2 * Wo:2, :]
            for kh in range(3) for kw in range(3)]
    return jnp.concatenate(cols, axis=-1), Ho, Wo             # (N, Ho, Wo, 27)


# ----------------------------------------------------------------------------
# Model: parameters + forward
# ----------------------------------------------------------------------------

def init_params(key):
    ks = iter(jax.random.split(key, 64))

    def rnd(shape, fan_in):
        return jax.random.normal(next(ks), shape, jnp.float32) / jnp.sqrt(fan_in)

    def bn(c):
        # inference BatchNorm: scale ~ 1, bias ~ 0
        scale = 1.0 + 0.05 * jax.random.normal(next(ks), (c,), jnp.float32)
        bias = 0.05 * jax.random.normal(next(ks), (c,), jnp.float32)
        return scale, bias

    def conv_bn(shape, fan_in, dtype=jnp.bfloat16):
        """Conv-as-GEMM weight with the BN scale folded in once at init."""
        cout = shape[-1]
        scale, bias = bn(cout)
        w = (rnd(shape, fan_in) * scale[None, :]).astype(dtype)
        return w, bias.reshape(1, cout).astype(jnp.float32)

    def mbconv_params():
        w_exp, b_exp = conv_bn((C0, CEXP), C0)
        # depthwise conv runs as VPU broadcast-FMA; keep f32 (v5e VPU has no bf16)
        w_dw, b_dw = conv_bn((9, CEXP), 9.0, dtype=jnp.float32)
        w_proj, b_proj = conv_bn((CEXP, C0), CEXP)
        return dict(
            w_exp=w_exp, b_exp=b_exp,
            w_dw=w_dw, b_dw=b_dw,
            w_se1=rnd((CEXP, SE_R), CEXP), b_se1=jnp.zeros((1, SE_R), jnp.float32),
            w_se2=rnd((SE_R, CEXP), SE_R), b_se2=jnp.zeros((1, CEXP), jnp.float32),
            w_proj=w_proj, b_proj=b_proj)

    p = {}
    w, b = conv_bn((27, C0), 27.0)
    p["stem"] = dict(w=w, b=b)
    for i in range(NUM_BLOCKS):
        p[f"block{i + 1}"] = mbconv_params()
    w, b = conv_bn((C0, NUM_FEATURES), C0)
    p["head"] = dict(w=w, b=b)
    p["fc"] = dict(w=rnd((NUM_FEATURES, OUT_DIM), NUM_FEATURES),
                   b=jnp.zeros((1, OUT_DIM), jnp.float32))
    return p


def efficientnet_forward(params, x_nchw, return_embeds=False):
    # NCHW (PyTorch convention) -> NHWC so channels ride the 128-lane axis.
    x = jnp.transpose(x_nchw, (0, 2, 3, 1)).astype(jnp.bfloat16)
    N = x.shape[0]

    # --- stem: 3x3 s2 conv + folded BN + SiLU (one lane-dense GEMM) ----------
    cols, Ho, Wo = space_to_depth_3x3_s2(x)
    p = params["stem"]
    x = gemm_bias_act(cols.reshape(N * Ho * Wo, 27), p["w"], p["b"], act="silu")
    x = x.reshape(N, Ho, Wo, C0)

    # --- MBConv blocks: each one is a single fused pallas_call ---------------
    for i in range(NUM_BLOCKS):
        x = mbconv_block(x, params[f"block{i + 1}"])

    # --- head 1x1 conv to num_features (=1280) + folded BN + SiLU ------------
    p = params["head"]
    feats = gemm_bias_act(x.reshape(N * Ho * Wo, C0), p["w"], p["b"], act="silu")
    feats = feats.reshape(N, Ho, Wo, NUM_FEATURES)

    # --- fused global-average-pool + fc (Linear(num_features, output_dim)) ---
    logits, embeddings = gap_fc(feats, params["fc"]["w"], params["fc"]["b"])
    if return_embeds:
        return logits, embeddings
    return logits


if __name__ == "__main__":
    key = jax.random.PRNGKey(0)
    pkey, xkey = jax.random.split(key)
    params = init_params(pkey)
    x = jax.random.normal(xkey, (2, 3, 16, 16), jnp.float32)  # NCHW like PyTorch

    fwd = jax.jit(functools.partial(efficientnet_forward, params))
    out = jax.block_until_ready(fwd(x))
    assert out.shape == (2, OUT_DIM), out.shape
    assert bool(jnp.all(jnp.isfinite(out)))
    print("KERNEL_OK")
</pallas_src>

<mosaic_0001>
module attributes {stable_mosaic.version = 11 : i64} {
  func.func @_gemm_bias_act_kernel(%arg0: i32, %arg1: memref<128x27xbf16, #tpu.memory_space<vmem>>, %arg2: memref<27x128xbf16, #tpu.memory_space<vmem>>, %arg3: memref<1x128xf32, #tpu.memory_space<vmem>>, %arg4: memref<128x128xbf16, #tpu.memory_space<vmem>>) attributes {dimension_semantics = [#tpu.dimension_semantics<parallel>], iteration_bounds = array<i64: 1>, scalar_prefetch = 0 : i64, scratch_operands = 0 : i64, tpu.core_type = #tpu.core_type<tc>, window_params = [{transform_indices = @transform_0, window_bounds = array<i64: 128, 27>}, {pipeline_mode = #tpu.pipeline_mode<synchronous>, transform_indices = @transform_1, window_bounds = array<i64: 27, 128>}, {pipeline_mode = #tpu.pipeline_mode<synchronous>, transform_indices = @transform_2, window_bounds = array<i64: 1, 128>}, {transform_indices = @transform_3, window_bounds = array<i64: 128, 128>}]} {
    %c0 = arith.constant 0 : index
    %c0_0 = arith.constant 0 : index
    %0 = vector.load %arg1[%c0, %c0_0] : memref<128x27xbf16, #tpu.memory_space<vmem>>, vector<128x27xbf16>
    %c0_1 = arith.constant 0 : index
    %c0_2 = arith.constant 0 : index
    %1 = vector.load %arg2[%c0_1, %c0_2] : memref<27x128xbf16, #tpu.memory_space<vmem>>, vector<27x128xbf16>
    %cst = arith.constant dense<0.000000e+00> : vector<128x128xf32>
    %2 = tpu.matmul %0, %1, %cst {dimension_numbers = #tpu.dot_dimension_numbers<[1], [0], [0], [1], [0, 0, 1, 1], [], []>} : vector<128x27xbf16>, vector<27x128xbf16>, vector<128x128xf32> -> vector<128x128xf32>
    %c0_3 = arith.constant 0 : index
    %c0_4 = arith.constant 0 : index
    %3 = vector.load %arg3[%c0_3, %c0_4] : memref<1x128xf32, #tpu.memory_space<vmem>>, vector<1x128xf32>
    %4 = vector.broadcast %3 : vector<1x128xf32> to vector<128x128xf32>
    %5 = arith.addf %2, %4 : vector<128x128xf32>
    %6 = arith.negf %5 : vector<128x128xf32>
    %7 = math.exp %6 : vector<128x128xf32>
    %cst_5 = arith.constant 1.000000e+00 : f32
    %8 = vector.broadcast %cst_5 : f32 to vector<128x128xf32>
    %9 = arith.addf %8, %7 : vector<128x128xf32>
    %10 = arith.divf %8, %9 : vector<128x128xf32>
    %11 = arith.mulf %5, %10 : vector<128x128xf32>
    %12 = arith.truncf %11 : vector<128x128xf32> to vector<128x128xbf16>
    %c0_6 = arith.constant 0 : index
    %c0_7 = arith.constant 0 : index
    %13 = vector.load %arg4[%c0_6, %c0_7] : memref<128x128xbf16, #tpu.memory_space<vmem>>, vector<128x128xbf16>
    tpu.vector_store %arg4[%c0_6, %c0_7], %12 {strides = array<i32>} : memref<128x128xbf16, #tpu.memory_space<vmem>>, vector<128x128xbf16>,
    return
  }
  func.func @transform_0(%arg0: i32) -> (i32, i32) {
    %c0_i32 = arith.constant 0 : i32
    %c0_i32_0 = arith.constant 0 : i32
    return %arg0, %c0_i32 : i32, i32
  }
  func.func @transform_1(%arg0: i32) -> (i32, i32) {
    %c0_i32 = arith.constant 0 : i32
    %c0_i32_0 = arith.constant 0 : i32
    %c0_i32_1 = arith.constant 0 : i32
    return %c0_i32, %c0_i32_0 : i32, i32
  }
  func.func @transform_2(%arg0: i32) -> (i32, i32) {
    %c0_i32 = arith.constant 0 : i32
    %c0_i32_0 = arith.constant 0 : i32
    %c0_i32_1 = arith.constant 0 : i32
    return %c0_i32, %c0_i32_0 : i32, i32
  }
  func.func @transform_3(%arg0: i32) -> (i32, i32) {
    %c0_i32 = arith.constant 0 : i32
    %c0_i32_0 = arith.constant 0 : i32
    return %arg0, %c0_i32 : i32, i32
  }
}

module attributes {stable_mosaic.version = 11 : i64} {
  func.func @_mbconv_kernel(%arg0: i32, %arg1: memref<1x8x8x128xbf16, #tpu.memory_space<vmem>>, %arg2: memref<128x256xbf16, #tpu.memory_space<vmem>>, %arg3: memref<1x256xf32, #tpu.memory_space<vmem>>, %arg4: memref<9x256xf32, #tpu.memory_space<vmem>>, %arg5: memref<1x256xf32, #tpu.memory_space<vmem>>, %arg6: memref<256x32xf32, #tpu.memory_space<vmem>>, %arg7: memref<1x32xf32, #tpu.memory_space<vmem>>, %arg8: memref<32x256xf32, #tpu.memory_space<vmem>>, %arg9: memref<1x256xf32, #tpu.memory_space<vmem>>, %arg10: memref<256x128xbf16, #tpu.memory_space<vmem>>, %arg11: memref<1x128xf32, #tpu.memory_space<vmem>>, %arg12: memref<1x8x8x128xbf16, #tpu.memory_space<vmem>>, %arg13: memref<10x10x256xf32, #tpu.memory_space<vmem>>) attributes {dimension_semantics = [#tpu.dimension_semantics<parallel>], iteration_bounds = array<i64: 2>, scalar_prefetch = 0 : i64, scratch_operands = 1 : i64, tpu.core_type = #tpu.core_type<tc>, window_params = [{transform_indices = @transform_0, window_bounds = array<i64: 1, 8, 8, 128>}, {pipeline_mode = #tpu.pipeline_mode<synchronous>, transform_indices = @transform_1, window_bounds = array<i64: 128, 256>}, {pipeline_mode = #tpu.pipeline_mode<synchronous>, transform_indices = @transform_2, window_bounds = array<i64: 1, 256>}, {pipeline_mode = #tpu.pipeline_mode<synchronous>, transform_indices = @transform_3, window_bounds = array<i64: 9, 256>}, {pipeline_mode = #tpu.pipeline_mode<synchronous>, transform_indices = @transform_4, window_bounds = array<i64: 1, 256>}, {pipeline_mode = #tpu.pipeline_mode<synchronous>, transform_indices = @transform_5, window_bounds = array<i64: 256, 32>}, {pipeline_mode = #tpu.pipeline_mode<synchronous>, transform_indices = @transform_6, window_bounds = array<i64: 1, 32>}, {pipeline_mode = #tpu.pipeline_mode<synchronous>, transform_indices = @transform_7, window_bounds = array<i64: 32, 256>}, {pipeline_mode = #tpu.pipeline_mode<synchronous>, transform_indices = @transform_8, window_bounds = array<i64: 1, 256>}, {pipeline_mode = #tpu.pipeline_mode<synchronous>, transform_indices = @transform_9, window_bounds = array<i64: 256, 128>}, {pipeline_mode = #tpu.pipeline_mode<synchronous>, transform_indices = @transform_10, window_bounds = array<i64: 1, 128>}, {transform_indices = @transform_11, window_bounds = array<i64: 1, 8, 8, 128>}]} {
    %c0 = arith.constant 0 : index
    %c0_0 = arith.constant 0 : index
    %c0_1 = arith.constant 0 : index
    %c0_2 = arith.constant 0 : index
    %0 = vector.load %arg1[%c0, %c0_0, %c0_1, %c0_2] : memref<1x8x8x128xbf16, #tpu.memory_space<vmem>>, vector<1x8x8x128xbf16>
    %1 = vector.shape_cast %0 : vector<1x8x8x128xbf16> to vector<64x128xbf16>
    %c0_3 = arith.constant 0 : index
    %c0_4 = arith.constant 0 : index
    %2 = vector.load %arg2[%c0_3, %c0_4] : memref<128x256xbf16, #tpu.memory_space<vmem>>, vector<128x256xbf16>
    %cst = arith.constant dense<0.000000e+00> : vector<64x256xf32>
    %3 = tpu.matmul %1, %2, %cst {dimension_numbers = #tpu.dot_dimension_numbers<[1], [0], [0], [1], [0, 0, 1, 1], [], []>} : vector<64x128xbf16>, vector<128x256xbf16>, vector<64x256xf32> -> vector<64x256xf32>
    %c0_5 = arith.constant 0 : index
    %c0_6 = arith.constant 0 : index
    %4 = vector.load %arg3[%c0_5, %c0_6] : memref<1x256xf32, #tpu.memory_space<vmem>>, vector<1x256xf32>
    %5 = vector.broadcast %4 : vector<1x256xf32> to vector<64x256xf32>
    %6 = arith.addf %3, %5 : vector<64x256xf32>
    %7 = arith.negf %6 : vector<64x256xf32>
    %8 = math.exp %7 : vector<64x256xf32>
    %cst_7 = arith.constant 1.000000e+00 : f32
    %9 = vector.broadcast %cst_7 : f32 to vector<64x256xf32>
    %10 = arith.addf %9, %8 : vector<64x256xf32>
    %11 = arith.divf %9, %10 : vector<64x256xf32>
    %12 = arith.mulf %6, %11 : vector<64x256xf32>
    %cst_8 = arith.constant 0.000000e+00 : f32
    %13 = vector.broadcast %cst_8 : f32 to vector<10x10x256xf32>
    %c0_9 = arith.constant 0 : index
    %c0_10 = arith.constant 0 : index
    %c0_11 = arith.constant 0 : index
    %14 = vector.load %arg13[%c0_9, %c0_10, %c0_11] : memref<10x10x256xf32, #tpu.memory_space<vmem>>, vector<10x10x256xf32>
    tpu.vector_store %arg13[%c0_9, %c0_10, %c0_11], %13 {strides = array<i32>} : memref<10x10x256xf32, #tpu.memory_space<vmem>>, vector<10x10x256xf32>,
    %15 = vector.shape_cast %12 : vector<64x256xf32> to vector<8x8x256xf32>
    %c1 = arith.constant 1 : index
    %c1_12 = arith.constant 1 : index
    %c0_13 = arith.constant 0 : index
    %16 = vector.load %arg13[%c1, %c1_12, %c0_13] : memref<10x10x256xf32, #tpu.memory_space<vmem>>, vector<8x8x256xf32>
    tpu.vector_store %arg13[%c1, %c1_12, %c0_13], %15 {strides = array<i32>} : memref<10x10x256xf32, #tpu.memory_space<vmem>>, vector<8x8x256xf32>,
    %c0_14 = arith.constant 0 : index
    %c0_15 = arith.constant 0 : index
    %17 = vector.load %arg4[%c0_14, %c0_15] : memref<9x256xf32, #tpu.memory_space<vmem>>, vector<9x256xf32>
    %cst_16 = arith.constant 0.000000e+00 : f32
    %18 = vector.broadcast %cst_16 : f32 to vector<8x8x256xf32>
    %c0_17 = arith.constant 0 : index
    %c0_18 = arith.constant 0 : index
    %c0_19 = arith.constant 0 : index
    %19 = vector.load %arg13[%c0_17, %c0_18, %c0_19] : memref<10x10x256xf32, #tpu.memory_space<vmem>>, vector<8x8x256xf32>
    %20 = vector.extract_strided_slice %17 {offsets = [0, 0], sizes = [1, 256], strides = [1, 1]} : vector<9x256xf32> to vector<1x256xf32>
    %21 = vector.shape_cast %20 : vector<1x256xf32> to vector<256xf32>
    %22 = vector.shape_cast %21 : vector<256xf32> to vector<1x1x256xf32>
    %23 = vector.broadcast %22 : vector<1x1x256xf32> to vector<8x8x256xf32>
    %24 = arith.mulf %19, %23 : vector<8x8x256xf32>
    %25 = arith.addf %18, %24 : vector<8x8x256xf32>
    %c0_20 = arith.constant 0 : index
    %c1_21 = arith.constant 1 : index
    %c0_22 = arith.constant 0 : index
    %26 = vector.load %arg13[%c0_20, %c1_21, %c0_22] : memref<10x10x256xf32, #tpu.memory_space<vmem>>, vector<8x8x256xf32>
    %27 = vector.extract_strided_slice %17 {offsets = [1, 0], sizes = [1, 256], strides = [1, 1]} : vector<9x256xf32> to vector<1x256xf32>
    %28 = vector.shape_cast %27 : vector<1x256xf32> to vector<256xf32>
    %29 = vector.shape_cast %28 : vector<256xf32> to vector<1x1x256xf32>
    %30 = vector.broadcast %29 : vector<1x1x256xf32> to vector<8x8x256xf32>
    %31 = arith.mulf %26, %30 : vector<8x8x256xf32>
    %32 = arith.addf %25, %31 : vector<8x8x256xf32>
    %c0_23 = arith.constant 0 : index
    %c2 = arith.constant 2 : index
    %c0_24 = arith.constant 0 : index
    %33 = vector.load %arg13[%c0_23, %c2, %c0_24] : memref<10x10x256xf32, #tpu.memory_space<vmem>>, vector<8x8x256xf32>
    %34 = vector.extract_strided_slice %17 {offsets = [2, 0], sizes = [1, 256], strides = [1, 1]} : vector<9x256xf32> to vector<1x256xf32>
    %35 = vector.shape_cast %34 : vector<1x256xf32> to vector<256xf32>
    %36 = vector.shape_cast %35 : vector<256xf32> to vector<1x1x256xf32>
    %37 = vector.broadcast %36 : vector<1x1x256xf32> to vector<8x8x256xf32>
    %38 = arith.mulf %33, %37 : vector<8x8x256xf32>
    %39 = arith.addf %32, %38 : vector<8x8x256xf32>
    %c1_25 = arith.constant 1 : index
    %c0_26 = arith.constant 0 : index
    %c0_27 = arith.constant 0 : index
    %40 = vector.load %arg13[%c1_25, %c0_26, %c0_27] : memref<10x10x256xf32, #tpu.memory_space<vmem>>, vector<8x8x256xf32>
    %41 = vector.extract_strided_slice %17 {offsets = [3, 0], sizes = [1, 256], strides = [1, 1]} : vector<9x256xf32> to vector<1x256xf32>
    %42 = vector.shape_cast %41 : vector<1x256xf32> to vector<256xf32>
    %43 = vector.shape_cast %42 : vector<256xf32> to vector<1x1x256xf32>
    %44 = vector.broadcast %43 : vector<1x1x256xf32> to vector<8x8x256xf32>
    %45 = arith.mulf %40, %44 : vector<8x8x256xf32>
    %46 = arith.addf %39, %45 : vector<8x8x256xf32>
    %c1_28 = arith.constant 1 : index
    %c1_29 = arith.constant 1 : index
    %c0_30 = arith.constant 0 : index
    %47 = vector.load %arg13[%c1_28, %c1_29, %c0_30] : memref<10x10x256xf32, #tpu.memory_space<vmem>>, vector<8x8x256xf32>
    %48 = vector.extract_strided_slice %17 {offsets = [4, 0], sizes = [1, 256], strides = [1, 1]} : vector<9x256xf32> to vector<1x256xf32>
    %49 = vector.shape_cast %48 : vector<1x256xf32> to vector<256xf32>
    %50 = vector.shape_cast %49 : vector<256xf32> to vector<1x1x256xf32>
    %51 = vector.broadcast %50 : vector<1x1x256xf32> to vector<8x8x256xf32>
    %52 = arith.mulf %47, %51 : vector<8x8x256xf32>
    %53 = arith.addf %46, %52 : vector<8x8x256xf32>
    %c1_31 = arith.constant 1 : index
    %c2_32 = arith.constant 2 : index
    %c0_33 = arith.constant 0 : index
    %54 = vector.load %arg13[%c1_31, %c2_32, %c0_33] : memref<10x10x256xf32, #tpu.memory_space<vmem>>, vector<8x8x256xf32>
    %55 = vector.extract_strided_slice %17 {offsets = [5, 0], sizes = [1, 256], strides = [1, 1]} : vector<9x256xf32> to vector<1x256xf32>
    %56 = vector.shape_cast %55 : vector<1x256xf32> to vector<256xf32>
    %57 = vector.shape_cast %56 : vector<256xf32> to vector<1x1x256xf32>
    %58 = vector.broadcast %57 : vector<1x1x256xf32> to vector<8x8x256xf32>
    %59 = arith.mulf %54, %58 : vector<8x8x256xf32>
    %60 = arith.addf %53, %59 : vector<8x8x256xf32>
    %c2_34 = arith.constant 2 : index
    %c0_35 = arith.constant 0 : index
    %c0_36 = arith.constant 0 : index
    %61 = vector.load %arg13[%c2_34, %c0_35, %c0_36] : memref<10x10x256xf32, #tpu.memory_space<vmem>>, vector<8x8x256xf32>
    %62 = vector.extract_strided_slice %17 {offsets = [6, 0], sizes = [1, 256], strides = [1, 1]} : vector<9x256xf32> to vector<1x256xf32>
    %63 = vector.shape_cast %62 : vector<1x256xf32> to vector<256xf32>
    %64 = vector.shape_cast %63 : vector<256xf32> to vector<1x1x256xf32>
    %65 = vector.broadcast %64 : vector<1x1x256xf32> to vector<8x8x256xf32>
    %66 = arith.mulf %61, %65 : vector<8x8x256xf32>
    %67 = arith.addf %60, %66 : vector<8x8x256xf32>
    %c2_37 = arith.constant 2 : index
    %c1_38 = arith.constant 1 : index
    %c0_39 = arith.constant 0 : index
    %68 = vector.load %arg13[%c2_37, %c1_38, %c0_39] : memref<10x10x256xf32, #tpu.memory_space<vmem>>, vector<8x8x256xf32>
    %69 = vector.extract_strided_slice %17 {offsets = [7, 0], sizes = [1, 256], strides = [1, 1]} : vector<9x256xf32> to vector<1x256xf32>
    %70 = vector.shape_cast %69 : vector<1x256xf32> to vector<256xf32>
    %71 = vector.shape_cast %70 : vector<256xf32> to vector<1x1x256xf32>
    %72 = vector.broadcast %71 : vector<1x1x256xf32> to vector<8x8x256xf32>
    %73 = arith.mulf %68, %72 : vector<8x8x256xf32>
    %74 = arith.addf %67, %73 : vector<8x8x256xf32>
    %c2_40 = arith.constant 2 : index
    %c2_41 = arith.constant 2 : index
    %c0_42 = arith.constant 0 : index
    %75 = vector.load %arg13[%c2_40, %c2_41, %c0_42] : memref<10x10x256xf32, #tpu.memory_space<vmem>>, vector<8x8x256xf32>
    %76 = vector.extract_strided_slice %17 {offsets = [8, 0], sizes = [1, 256], strides = [1, 1]} : vector<9x256xf32> to vector<1x256xf32>
    %77 = vector.shape_cast %76 : vector<1x256xf32> to vector<256xf32>
    %78 = vector.shape_cast %77 : vector<256xf32> to vector<1x1x256xf32>
    %79 = vector.broadcast %78 : vector<1x1x256xf32> to vector<8x8x256xf32>
    %80 = arith.mulf %75, %79 : vector<8x8x256xf32>
    %81 = arith.addf %74, %80 : vector<8x8x256xf32>
    %c0_43 = arith.constant 0 : index
    %c0_44 = arith.constant 0 : index
    %82 = vector.load %arg5[%c0_43, %c0_44] : memref<1x256xf32, #tpu.memory_space<vmem>>, vector<1x256xf32>
    %83 = vector.shape_cast %82 : vector<1x256xf32> to vector<1x1x256xf32>
    %84 = vector.broadcast %83 : vector<1x1x256xf32> to vector<8x8x256xf32>
    %85 = arith.addf %81, %84 : vector<8x8x256xf32>
    %86 = arith.negf %85 : vector<8x8x256xf32>
    %87 = math.exp %86 : vector<8x8x256xf32>
    %cst_45 = arith.constant 1.000000e+00 : f32
    %88 = vector.broadcast %cst_45 : f32 to vector<8x8x256xf32>
    %89 = arith.addf %88, %87 : vector<8x8x256xf32>
    %90 = arith.divf %88, %89 : vector<8x8x256xf32>
    %91 = arith.mulf %85, %90 : vector<8x8x256xf32>
    %92 = vector.shape_cast %91 : vector<8x8x256xf32> to vector<64x256xf32>
    %cst_46 = arith.constant dense<0.000000e+00> : vector<256xf32>
    %93 = vector.multi_reduction <add>, %92, %cst_46 [0] : vector<64x256xf32> to vector<256xf32>
    %94 = vector.shape_cast %93 : vector<256xf32> to vector<1x256xf32>
    %cst_47 = arith.constant 6.400000e+01 : f32
    %95 = vector.broadcast %cst_47 : f32 to vector<1x256xf32>
    %96 = arith.divf %94, %95 : vector<1x256xf32>
    %c0_48 = arith.constant 0 : index
    %c0_49 = arith.constant 0 : index
    %97 = vector.load %arg6[%c0_48, %c0_49] : memref<256x32xf32, #tpu.memory_space<vmem>>, vector<256x32xf32>
    %cst_50 = arith.constant dense<0.000000e+00> : vector<1x32xf32>
    %98 = tpu.matmul %96, %97, %cst_50 {dimension_numbers = #tpu.dot_dimension_numbers<[1], [0], [0], [1], [0, 0, 1, 1], [], []>} : vector<1x256xf32>, vector<256x32xf32>, vector<1x32xf32> -> vector<1x32xf32>
    %c0_51 = arith.constant 0 : index
    %c0_52 = arith.constant 0 : index
    %99 = vector.load %arg7[%c0_51, %c0_52] : memref<1x32xf32, #tpu.memory_space<vmem>>, vector<1x32xf32>
    %100 = arith.addf %98, %99 : vector<1x32xf32>
    %101 = arith.negf %100 : vector<1x32xf32>
    %102 = math.exp %101 : vector<1x32xf32>
    %cst_53 = arith.constant 1.000000e+00 : f32
    %103 = vector.broadcast %cst_53 : f32 to vector<1x32xf32>
    %104 = arith.addf %103, %102 : vector<1x32xf32>
    %105 = arith.divf %103, %104 : vector<1x32xf32>
    %106 = arith.mulf %100, %105 : vector<1x32xf32>
    %c0_54 = arith.constant 0 : index
    %c0_55 = arith.constant 0 : index
    %107 = vector.load %arg8[%c0_54, %c0_55] : memref<32x256xf32, #tpu.memory_space<vmem>>, vector<32x256xf32>
    %cst_56 = arith.constant dense<0.000000e+00> : vector<1x256xf32>
    %108 = tpu.matmul %106, %107, %cst_56 {dimension_numbers = #tpu.dot_dimension_numbers<[1], [0], [0], [1], [0, 0, 1, 1], [], []>} : vector<1x32xf32>, vector<32x256xf32>, vector<1x256xf32> -> vector<1x256xf32>
    %c0_57 = arith.constant 0 : index
    %c0_58 = arith.constant 0 : index
    %109 = vector.load %arg9[%c0_57, %c0_58] : memref<1x256xf32, #tpu.memory_space<vmem>>, vector<1x256xf32>
    %110 = arith.addf %108, %109 : vector<1x256xf32>
    %111 = arith.negf %110 : vector<1x256xf32>
    %112 = math.exp %111 : vector<1x256xf32>
    %cst_59 = arith.constant 1.000000e+00 : f32
    %113 = vector.broadcast %cst_59 : f32 to vector<1x256xf32>
    %114 = arith.addf %113, %112 : vector<1x256xf32>
    %115 = arith.divf %113, %114 : vector<1x256xf32>
    %116 = vector.broadcast %115 : vector<1x256xf32> to vector<64x256xf32>
    %117 = arith.mulf %92, %116 : vector<64x256xf32>
    %118 = arith.truncf %117 : vector<64x256xf32> to vector<64x256xbf16>
    %c0_60 = arith.constant 0 : index
    %c0_61 = arith.constant 0 : index
    %119 = vector.load %arg10[%c0_60, %c0_61] : memref<256x128xbf16, #tpu.memory_space<vmem>>, vector<256x128xbf16>
    %cst_62 = arith.constant dense<0.000000e+00> : vector<64x128xf32>
    %120 = tpu.matmul %118, %119, %cst_62 {dimension_numbers = #tpu.dot_dimension_numbers<[1], [0], [0], [1], [0, 0, 1, 1], [], []>} : vector<64x256xbf16>, vector<256x128xbf16>, vector<64x128xf32> -> vector<64x128xf32>
    %c0_63 = arith.constant 0 : index
    %c0_64 = arith.constant 0 : index
    %121 = vector.load %arg11[%c0_63, %c0_64] : memref<1x128xf32, #tpu.memory_space<vmem>>, vector<1x128xf32>
    %122 = vector.broadcast %121 : vector<1x128xf32> to vector<64x128xf32>
    %123 = arith.addf %120, %122 : vector<64x128xf32>
    %124 = arith.extf %1 : vector<64x128xbf16> to vector<64x128xf32>
    %125 = arith.addf %123, %124 : vector<64x128xf32>
    %126 = vector.shape_cast %125 : vector<64x128xf32> to vector<1x8x8x128xf32>
    %127 = arith.truncf %126 : vector<1x8x8x128xf32> to vector<1x8x8x128xbf16>
    %c0_65 = arith.constant 0 : index
    %c0_66 = arith.constant 0 : index
    %c0_67 = arith.constant 0 : index
    %c0_68 = arith.constant 0 : index
    %128 = vector.load %arg12[%c0_65, %c0_66, %c0_67, %c0_68] : memref<1x8x8x128xbf16, #tpu.memory_space<vmem>>, vector<1x8x8x128xbf16>
    tpu.vector_store %arg12[%c0_65, %c0_66, %c0_67, %c0_68], %127 {strides = array<i32>} : memref<1x8x8x128xbf16, #tpu.memory_space<vmem>>, vector<1x8x8x128xbf16>,
    return
  }
  func.func @transform_0(%arg0: i32) -> (i32, i32, i32, i32) {
    %c0_i32 = arith.constant 0 : i32
    %c0_i32_0 = arith.constant 0 : i32
    %c0_i32_1 = arith.constant 0 : i32
    %c0_i32_2 = arith.constant 0 : i32
    return %arg0, %c0_i32, %c0_i32_0, %c0_i32_1 : i32, i32, i32, i32
  }
  func.func @transform_1(%arg0: i32) -> (i32, i32) {
    %c0_i32 = arith.constant 0 : i32
    %c0_i32_0 = arith.constant 0 : i32
    %c0_i32_1 = arith.constant 0 : i32
    return %c0_i32, %c0_i32_0 : i32, i32
  }
  func.func @transform_2(%arg0: i32) -> (i32, i32) {
    %c0_i32 = arith.constant 0 : i32
    %c0_i32_0 = arith.constant 0 : i32
    %c0_i32_1 = arith.constant 0 : i32
    return %c0_i32, %c0_i32_0 : i32, i32
  }
  func.func @transform_3(%arg0: i32) -> (i32, i32) {
    %c0_i32 = arith.constant 0 : i32
    %c0_i32_0 = arith.constant 0 : i32
    %c0_i32_1 = arith.constant 0 : i32
    return %c0_i32, %c0_i32_0 : i32, i32
  }
  func.func @transform_4(%arg0: i32) -> (i32, i32) {
    %c0_i32 = arith.constant 0 : i32
    %c0_i32_0 = arith.constant 0 : i32
    %c0_i32_1 = arith.constant 0 : i32
    return %c0_i32, %c0_i32_0 : i32, i32
  }
  func.func @transform_5(%arg0: i32) -> (i32, i32) {
    %c0_i32 = arith.constant 0 : i32
    %c0_i32_0 = arith.constant 0 : i32
    %c0_i32_1 = arith.constant 0 : i32
    return %c0_i32, %c0_i32_0 : i32, i32
  }
  func.func @transform_6(%arg0: i32) -> (i32, i32) {
    %c0_i32 = arith.constant 0 : i32
    %c0_i32_0 = arith.constant 0 : i32
    %c0_i32_1 = arith.constant 0 : i32
    return %c0_i32, %c0_i32_0 : i32, i32
  }
  func.func @transform_7(%arg0: i32) -> (i32, i32) {
    %c0_i32 = arith.constant 0 : i32
    %c0_i32_0 = arith.constant 0 : i32
    %c0_i32_1 = arith.constant 0 : i32
    return %c0_i32, %c0_i32_0 : i32, i32
  }
  func.func @transform_8(%arg0: i32) -> (i32, i32) {
    %c0_i32 = arith.constant 0 : i32
    %c0_i32_0 = arith.constant 0 : i32
    %c0_i32_1 = arith.constant 0 : i32
    return %c0_i32, %c0_i32_0 : i32, i32
  }
  func.func @transform_9(%arg0: i32) -> (i32, i32) {
    %c0_i32 = arith.constant 0 : i32
    %c0_i32_0 = arith.constant 0 : i32
    %c0_i32_1 = arith.constant 0 : i32
    return %c0_i32, %c0_i32_0 : i32, i32
  }
  func.func @transform_10(%arg0: i32) -> (i32, i32) {
    %c0_i32 = arith.constant 0 : i32
    %c0_i32_0 = arith.constant 0 : i32
    %c0_i32_1 = arith.constant 0 : i32
    return %c0_i32, %c0_i32_0 : i32, i32
  }
  func.func @transform_11(%arg0: i32) -> (i32, i32, i32, i32) {
    %c0_i32 = arith.constant 0 : i32
    %c0_i32_0 = arith.constant 0 : i32
    %c0_i32_1 = arith.constant 0 : i32
    %c0_i32_2 = arith.constant 0 : i32
    return %arg0, %c0_i32, %c0_i32_0, %c0_i32_1 : i32, i32, i32, i32
  }
}

module attributes {stable_mosaic.version = 11 : i64} {
  func.func @_gap_fc_kernel(%arg0: memref<2x8x8x1280xbf16, #tpu.memory_space<vmem>>, %arg1: memref<1280x1xf32, #tpu.memory_space<vmem>>, %arg2: memref<1x1xf32, #tpu.memory_space<vmem>>, %arg3: memref<2x1280xf32, #tpu.memory_space<vmem>>, %arg4: memref<2x1xf32, #tpu.memory_space<vmem>>) attributes {dimension_semantics = [], scalar_prefetch = 0 : i64, scratch_operands = 0 : i64, tpu.core_type = #tpu.core_type<tc>} {
    %c0 = arith.constant 0 : index
    %c0_0 = arith.constant 0 : index
    %c0_1 = arith.constant 0 : index
    %c0_2 = arith.constant 0 : index
    %0 = vector.load %arg0[%c0, %c0_0, %c0_1, %c0_2] : memref<2x8x8x1280xbf16, #tpu.memory_space<vmem>>, vector<2x8x8x1280xbf16>
    %1 = arith.extf %0 : vector<2x8x8x1280xbf16> to vector<2x8x8x1280xf32>
    %cst = arith.constant dense<0.000000e+00> : vector<2x1280xf32>
    %2 = vector.multi_reduction <add>, %1, %cst [1, 2] : vector<2x8x8x1280xf32> to vector<2x1280xf32>
    %cst_3 = arith.constant 6.400000e+01 : f32
    %3 = vector.broadcast %cst_3 : f32 to vector<2x1280xf32>
    %4 = arith.divf %2, %3 : vector<2x1280xf32>
    %c0_4 = arith.constant 0 : index
    %c0_5 = arith.constant 0 : index
    %5 = vector.load %arg3[%c0_4, %c0_5] : memref<2x1280xf32, #tpu.memory_space<vmem>>, vector<2x1280xf32>
    tpu.vector_store %arg3[%c0_4, %c0_5], %4 {strides = array<i32>} : memref<2x1280xf32, #tpu.memory_space<vmem>>, vector<2x1280xf32>,
    %c0_6 = arith.constant 0 : index
    %c0_7 = arith.constant 0 : index
    %6 = vector.load %arg1[%c0_6, %c0_7] : memref<1280x1xf32, #tpu.memory_space<vmem>>, vector<1280x1xf32>
    %cst_8 = arith.constant dense<0.000000e+00> : vector<2x1xf32>
    %7 = tpu.matmul %4, %6, %cst_8 {dimension_numbers = #tpu.dot_dimension_numbers<[1], [0], [0], [1], [0, 0, 1, 1], [], []>} : vector<2x1280xf32>, vector<1280x1xf32>, vector<2x1xf32> -> vector<2x1xf32>
    %c0_9 = arith.constant 0 : index
    %c0_10 = arith.constant 0 : index
    %8 = vector.load %arg2[%c0_9, %c0_10] : memref<1x1xf32, #tpu.memory_space<vmem>>, vector<1x1xf32>
    %9 = vector.broadcast %8 : vector<1x1xf32> to vector<2x1xf32>
    %10 = arith.addf %7, %9 : vector<2x1xf32>
    %c0_11 = arith.constant 0 : index
    %c0_12 = arith.constant 0 : index
    %11 = vector.load %arg4[%c0_11, %c0_12] : memref<2x1xf32, #tpu.memory_space<vmem>>, vector<2x1xf32>
    tpu.vector_store %arg4[%c0_11, %c0_12], %10 {strides = array<i32>} : memref<2x1xf32, #tpu.memory_space<vmem>>, vector<2x1xf32>,
    return
  }
}

module attributes {stable_mosaic.version = 11 : i64} {
  func.func @_gemm_bias_act_kernel(%arg0: i32, %arg1: memref<128x128xbf16, #tpu.memory_space<vmem>>, %arg2: memref<128x1280xbf16, #tpu.memory_space<vmem>>, %arg3: memref<1x1280xf32, #tpu.memory_space<vmem>>, %arg4: memref<128x1280xbf16, #tpu.memory_space<vmem>>) attributes {dimension_semantics = [#tpu.dimension_semantics<parallel>], iteration_bounds = array<i64: 1>, scalar_prefetch = 0 : i64, scratch_operands = 0 : i64, tpu.core_type = #tpu.core_type<tc>, window_params = [{transform_indices = @transform_0, window_bounds = array<i64: 128, 128>}, {pipeline_mode = #tpu.pipeline_mode<synchronous>, transform_indices = @transform_1, window_bounds = array<i64: 128, 1280>}, {pipeline_mode = #tpu.pipeline_mode<synchronous>, transform_indices = @transform_2, window_bounds = array<i64: 1, 1280>}, {transform_indices = @transform_3, window_bounds = array<i64: 128, 1280>}]} {
    %c0 = arith.constant 0 : index
    %c0_0 = arith.constant 0 : index
    %0 = vector.load %arg1[%c0, %c0_0] : memref<128x128xbf16, #tpu.memory_space<vmem>>, vector<128x128xbf16>
    %c0_1 = arith.constant 0 : index
    %c0_2 = arith.constant 0 : index
    %1 = vector.load %arg2[%c0_1, %c0_2] : memref<128x1280xbf16, #tpu.memory_space<vmem>>, vector<128x1280xbf16>
    %cst = arith.constant dense<0.000000e+00> : vector<128x1280xf32>
    %2 = tpu.matmul %0, %1, %cst {dimension_numbers = #tpu.dot_dimension_numbers<[1], [0], [0], [1], [0, 0, 1, 1], [], []>} : vector<128x128xbf16>, vector<128x1280xbf16>, vector<128x1280xf32> -> vector<128x1280xf32>
    %c0_3 = arith.constant 0 : index
    %c0_4 = arith.constant 0 : index
    %3 = vector.load %arg3[%c0_3, %c0_4] : memref<1x1280xf32, #tpu.memory_space<vmem>>, vector<1x1280xf32>
    %4 = vector.broadcast %3 : vector<1x1280xf32> to vector<128x1280xf32>
    %5 = arith.addf %2, %4 : vector<128x1280xf32>
    %6 = arith.negf %5 : vector<128x1280xf32>
    %7 = math.exp %6 : vector<128x1280xf32>
    %cst_5 = arith.constant 1.000000e+00 : f32
    %8 = vector.broadcast %cst_5 : f32 to vector<128x1280xf32>
    %9 = arith.addf %8, %7 : vector<128x1280xf32>
    %10 = arith.divf %8, %9 : vector<128x1280xf32>
    %11 = arith.mulf %5, %10 : vector<128x1280xf32>
    %12 = arith.truncf %11 : vector<128x1280xf32> to vector<128x1280xbf16>
    %c0_6 = arith.constant 0 : index
    %c0_7 = arith.constant 0 : index
    %13 = vector.load %arg4[%c0_6, %c0_7] : memref<128x1280xbf16, #tpu.memory_space<vmem>>, vector<128x1280xbf16>
    tpu.vector_store %arg4[%c0_6, %c0_7], %12 {strides = array<i32>} : memref<128x1280xbf16, #tpu.memory_space<vmem>>, vector<128x1280xbf16>,
    return
  }
  func.func @transform_0(%arg0: i32) -> (i32, i32) {
    %c0_i32 = arith.constant 0 : i32
    %c0_i32_0 = arith.constant 0 : i32
    return %arg0, %c0_i32 : i32, i32
  }
  func.func @transform_1(%arg0: i32) -> (i32, i32) {
    %c0_i32 = arith.constant 0 : i32
    %c0_i32_0 = arith.constant 0 : i32
    %c0_i32_1 = arith.constant 0 : i32
    return %c0_i32, %c0_i32_0 : i32, i32
  }
  func.func @transform_2(%arg0: i32) -> (i32, i32) {
    %c0_i32 = arith.constant 0 : i32
    %c0_i32_0 = arith.constant 0 : i32
    %c0_i32_1 = arith.constant 0 : i32
    return %c0_i32, %c0_i32_0 : i32, i32
  }
  func.func @transform_3(%arg0: i32) -> (i32, i32) {
    %c0_i32 = arith.constant 0 : i32
    %c0_i32_0 = arith.constant 0 : i32
    return %arg0, %c0_i32 : i32, i32
  }
}

</mosaic_0001>

<llo_original>
// kernel: efficientnet_forward.5
$region0: #{efficientnet_forward.5}
  #allocation0 [shape = 'u32[]', space=smem, size = 0x4, offset = 0x4, fixed_abs, tag = 'smem constant byte address 0x4 - core index']
  #allocation1 [shape = 'u32[144,128]{1,0:T(1,128)}', space=vmem, size = 0x12000, scoped, tag = 'internal scratch']
  %s0 = inlined_call_operand.vmem [shape: bf16[128,27], index: 0, kind: input, shape index: {}]
  %s1 = inlined_call_operand.vmem [shape: bf16[27,128], index: 1, kind: input, shape index: {}]
  %s2 = inlined_call_operand.vmem [shape: f32[1,128], index: 2, kind: input, shape index: {}]
  %s3 = inlined_call_operand.vmem [shape: bf16[128,128], index: 3, kind: output, shape index: {}]
  %s4 = sld [smem:[#allocation0]]
  $region22: #{efficientnet_forward.5} parent=0
    _
  %s6 = ssub.s32 1, %s4
  %s7 = scalar_select 0, %s6, %s4
  // Predicated region
  $region2: #{efficientnet_forward.5} parent=0 // pred_check
    _
  $region3: #{efficientnet_forward.5} parent=0 // pred_check_branch
    %9 = sbr.rel (0) target = $region5
  $region4: #{efficientnet_forward.5} parent=0 // pred_region
    _
  $region5: #{efficientnet_forward.5} parent=0 // pred_fallthru
    _
  // Predicated region
  $region6: #{efficientnet_forward.5} parent=0 // pred_check
    _
  $region7: #{efficientnet_forward.5} parent=0 // pred_check_branch
    %11 = sbr.rel (0) target = $region9
  $region8: #{efficientnet_forward.5} parent=0 // pred_region
    _
  $region9: #{efficientnet_forward.5} parent=0 // pred_fallthru
    _
  // Predicated region
  $region10: #{efficientnet_forward.5} parent=0 // pred_check
    _
  $region11: #{efficientnet_forward.5} parent=0 // pred_check_branch
    %13 = sbr.rel (0) target = $region13
  $region12: #{efficientnet_forward.5} parent=0 // pred_region
    _
  $region13: #{efficientnet_forward.5} parent=0 // pred_fallthru
    _
  %v15 = vld [vmem:[%s0] sm:$0xf]
  %v16 = vld [vmem:[%s0 + $0x4] sm:$0xf]
  %v17 = vld [vmem:[%s0 + $0x8] sm:$0xf]
  %v18 = vld [vmem:[%s0 + $0xc] sm:$0xf]
  %v19 = vld [vmem:[%s0 + $0x10] sm:$0xf]
  %v20 = vld [vmem:[%s0 + $0x14] sm:$0xf]
  %v21 = vld [vmem:[%s0 + $0x18] sm:$0xf]
  %v22 = vld [vmem:[%s0 + $0x1c] sm:$0xf]
  %v23 = vld [vmem:[%s0 + $0x20] sm:$0xf]
  %v24 = vld [vmem:[%s0 + $0x24] sm:$0xf]
  %v25 = vld [vmem:[%s0 + $0x28] sm:$0xf]
  %v26 = vld [vmem:[%s0 + $0x2c] sm:$0xf]
  %v27 = vld [vmem:[%s0 + $0x30] sm:$0xf]
  %v28 = vld [vmem:[%s0 + $0x34] sm:$0xf]
  %v29 = vld [vmem:[%s0 + $0x38] sm:$0xf]
  %v30 = vld [vmem:[%s0 + $0x3c] sm:$0xf]
  %v31 = vld [vmem:[%s1] sm:$0xf]
  %v32 = vld [vmem:[%s1 + $0x4] sm:$0xf]
  %v33 = vld [vmem:[%s1 + $0x8] sm:$0xf]
  %v34 = vld [vmem:[%s1 + $0xc] sm:$0x3]
  %v35 = vld [vmem:[%s2] sm:$0x1]
  %v37 = vlaneseq
  %v38 = vshrl.u32 %v37, 7
  %v39 = vsub.s32 0, %v38
  %v40 = vrot.slane %v35, %v39
  %v58 = vunpack.c.l.b16 %v15
  %v59 = vunpack.c.l.b16 %v16
  %v60 = vunpack.c.l.b16 %v17
  %v61 = vunpack.c.l.b16 %v18
  %v62 = vunpack.c.l.b16 %v19
  %v63 = vunpack.c.l.b16 %v20
  %v64 = vunpack.c.l.b16 %v21
  %v65 = vunpack.c.l.b16 %v22
  %v66 = vunpack.c.l.b16 %v23
  %v67 = vunpack.c.l.b16 %v24
  %v68 = vunpack.c.l.b16 %v25
  %v69 = vunpack.c.l.b16 %v26
  %v70 = vunpack.c.l.b16 %v27
  %v71 = vunpack.c.l.b16 %v28
  %v72 = vunpack.c.l.b16 %v29
  %v73 = vunpack.c.l.b16 %v30
  %v74 = vpack.c.b16 %v59, %v58
  %v75 = vpack.c.b16 %v61, %v60
  %v76 = vpack.c.b16 %v63, %v62
  %v77 = vpack.c.b16 %v65, %v64
  %v78 = vpack.c.b16 %v67, %v66
  %v79 = vpack.c.b16 %v69, %v68
  %v80 = vpack.c.b16 %v71, %v70
  %v81 = vpack.c.b16 %v73, %v72
  %v86 = vunpack.c.l.b16 %v31
  %v87 = vunpack.c.l.b16 %v32
  %v88 = vunpack.c.l.b16 %v33
  %v89 = vunpack.c.l.b16 %v34
  %v90 = vpack.c.b16 %v87, %v86
  %v91 = vpack.c.b16 %v89, %v88
  %vm93 = vcmask 220160
  %v95 = vsel %vm93, %v74, 0
  %v98 = vsel %vm93, %v75, 0
  %v101 = vsel %vm93, %v76, 0
  %v104 = vsel %vm93, %v77, 0
  %v107 = vsel %vm93, %v78, 0
  %v110 = vsel %vm93, %v79, 0
  %v113 = vsel %vm93, %v80, 0
  %v116 = vsel %vm93, %v81, 0
  %vm118 = vcmask 1044480
  %vm119 = vcmask 1045504
  %v120 = vsel %vm118, 4294967295, 65535
  %v121 = vsel %vm119, %v120, 0
  %v123 = vand.u32 %v91, %v121
  %125 = vmatprep.subr.bf16.mxu0 0
  %126 = vmatpush1.bf16.msra.mxu0 %v90
  %127 = vmatprep.subr.bf16.mxu0 0
  %128 = vmatpush1.bf16.msra.mxu0 %v123
  %129 = vmatprep.subr.bf16.mxu0 0
  %130 = vmatpush1.bf16.msra.mxu0 0
  %131 = vmatprep.subr.bf16.mxu0 0
  %132 = vmatpush1.bf16.msra.mxu0 0
  %133 = vmatprep.subr.bf16.mxu0 0
  %134 = vmatpush1.bf16.msra.mxu0 0
  %135 = vmatprep.subr.bf16.mxu0 0
  %136 = vmatpush1.bf16.msra.mxu0 0
  %137 = vmatprep.subr.bf16.mxu0 0
  %138 = vmatpush1.bf16.msra.mxu0 0
  %139 = vmatprep.subr.bf16.mxu0 0
  %140 = vmatpush1.bf16.msra.mxu0 0
  %141 = vmatprep.subr.bf16.mxu0 0
  %142 = vmatpush1.bf16.msra.mxu0 0
  %143 = vmatprep.subr.bf16.mxu0 0
  %144 = vmatpush1.bf16.msra.mxu0 0
  %145 = vmatprep.subr.bf16.mxu0 0
  %146 = vmatpush1.bf16.msra.mxu0 0
  %147 = vmatprep.subr.bf16.mxu0 0
  %148 = vmatpush1.bf16.msra.mxu0 0
  %149 = vmatprep.subr.bf16.mxu0 0
  %150 = vmatpush1.bf16.msra.mxu0 0
  %151 = vmatprep.subr.bf16.mxu0 0
  %152 = vmatpush1.bf16.msra.mxu0 0
  %153 = vmatprep.subr.bf16.mxu0 0
  %154 = vmatpush1.bf16.msra.mxu0 0
  %155 = vmatprep.subr.bf16.mxu0 0
  %156 = vmatpush1.bf16.msra.mxu0 0
  %157 = vmatprep.mubr.bf16.mxu0 0
  %158 = vmatmul.mubr.bf16.gmra.mrb[0].mxu0 %v95
  %v159 = vpop.f32.mrb[0].mxu0
  %v160 = vadd.f32 %v40, %v159
  %v161 = vpop.f32.mrb[0].mxu0
  %v162 = vpop.f32.mrb[0].mxu0
  %v163 = vadd.f32 %v40, %v162
  %v164 = vpop.f32.mrb[0].mxu0
  %165 = vmatprep.mubr.bf16.mxu0 0
  %166 = vmatmul.mubr.bf16.gmra.mrb[0].mxu0 %v98
  %v167 = vpop.f32.mrb[0].mxu0
  %v168 = vadd.f32 %v40, %v167
  %v169 = vpop.f32.mrb[0].mxu0
  %v170 = vpop.f32.mrb[0].mxu0
  %v171 = vadd.f32 %v40, %v170
  %v172 = vpop.f32.mrb[0].mxu0
  %173 = vmatprep.mubr.bf16.mxu0 0
  %174 = vmatmul.mubr.bf16.gmra.mrb[0].mxu0 %v101
  %v175 = vpop.f32.mrb[0].mxu0
  %v176 = vadd.f32 %v40, %v175
  %v177 = vpop.f32.mrb[0].mxu0
  %v178 = vpop.f32.mrb[0].mxu0
  %v179 = vadd.f32 %v40, %v178
  %v180 = vpop.f32.mrb[0].mxu0
  %181 = vmatprep.mubr.bf16.mxu0 0
  %182 = vmatmul.mubr.bf16.gmra.mrb[0].mxu0 %v104
  %v183 = vpop.f32.mrb[0].mxu0
  %v184 = vadd.f32 %v40, %v183
  %v185 = vpop.f32.mrb[0].mxu0
  %v186 = vpop.f32.mrb[0].mxu0
  %v187 = vadd.f32 %v40, %v186
  %v188 = vpop.f32.mrb[0].mxu0
  %189 = vmatprep.mubr.bf16.mxu0 0
  %190 = vmatmul.mubr.bf16.gmra.mrb[0].mxu0 %v107
  %v191 = vpop.f32.mrb[0].mxu0
  %v192 = vadd.f32 %v40, %v191
  %v193 = vpop.f32.mrb[0].mxu0
  %v194 = vpop.f32.mrb[0].mxu0
  %v195 = vadd.f32 %v40, %v194
  %v196 = vpop.f32.mrb[0].mxu0
  %197 = vmatprep.mubr.bf16.mxu0 0
  %198 = vmatmul.mubr.bf16.gmra.mrb[0].mxu0 %v110
  %v199 = vpop.f32.mrb[0].mxu0
  %v200 = vadd.f32 %v40, %v199
  %v201 = vpop.f32.mrb[0].mxu0
  %v202 = vpop.f32.mrb[0].mxu0
  %v203 = vadd.f32 %v40, %v202
  %v204 = vpop.f32.mrb[0].mxu0
  %205 = vmatprep.mubr.bf16.mxu0 0
  %206 = vmatmul.mubr.bf16.gmra.mrb[0].mxu0 %v113
  %v207 = vpop.f32.mrb[0].mxu0
  %v208 = vadd.f32 %v40, %v207
  %v209 = vpop.f32.mrb[0].mxu0
  %v210 = vpop.f32.mrb[0].mxu0
  %v211 = vadd.f32 %v40, %v210
  %v212 = vpop.f32.mrb[0].mxu0
  %213 = vmatprep.mubr.bf16.mxu0 0
  %214 = vmatmul.mubr.bf16.gmra.mrb[0].mxu0 %v116
  %v215 = vpop.f32.mrb[0].mxu0
  %v216 = vadd.f32 %v40, %v215
  %v217 = vpop.f32.mrb[0].mxu0
  %v218 = vpop.f32.mrb[0].mxu0
  %v219 = vadd.f32 %v40, %v218
  %v220 = vpop.f32.mrb[0].mxu0
  %221 = vdwg.mxu0
  %v222 = vxor.u32 %v160, 2147483648
  %v223 = vxor.u32 %v163, 2147483648
  %v224 = vxor.u32 %v168, 2147483648
  %v225 = vxor.u32 %v171, 2147483648
  %v226 = vxor.u32 %v176, 2147483648
  %v227 = vxor.u32 %v179, 2147483648
  %v228 = vxor.u32 %v184, 2147483648
  %v229 = vxor.u32 %v187, 2147483648
  %v230 = vxor.u32 %v192, 2147483648
  %v231 = vxor.u32 %v195, 2147483648
  %v232 = vxor.u32 %v200, 2147483648
  %v233 = vxor.u32 %v203, 2147483648
  %v234 = vxor.u32 %v208, 2147483648
  %v235 = vxor.u32 %v211, 2147483648
  %v236 = vxor.u32 %v216, 2147483648
  %v237 = vxor.u32 %v219, 2147483648
  %v238 = vmul.f32 %v222, 1.442695
  %v239 = vpow.pop %v238
  %v240 = vmul.f32 %v223, 1.442695
  %v241 = vpow.pop %v240
  %v242 = vmul.f32 %v224, 1.442695
  %v243 = vpow.pop %v242
  %v244 = vmul.f32 %v225, 1.442695
  %v245 = vpow.pop %v244
  %v246 = vmul.f32 %v226, 1.442695
  %v247 = vpow.pop %v246
  %v248 = vmul.f32 %v227, 1.442695
  %v249 = vpow.pop %v248
  %v250 = vmul.f32 %v228, 1.442695
  %v251 = vpow.pop %v250
  %v252 = vmul.f32 %v229, 1.442695
  %v253 = vpow.pop %v252
  %v254 = vmul.f32 %v230, 1.442695
  %v255 = vpow.pop %v254
  %v256 = vmul.f32 %v231, 1.442695
  %v257 = vpow.pop %v256
  %v258 = vmul.f32 %v232, 1.442695
  %v259 = vpow.pop %v258
  %v260 = vmul.f32 %v233, 1.442695
  %v261 = vpow.pop %v260
  %v262 = vmul.f32 %v234, 1.442695
  %v263 = vpow.pop %v262
  %v264 = vmul.f32 %v235, 1.442695
  %v265 = vpow.pop %v264
  %v266 = vmul.f32 %v236, 1.442695
  %v267 = vpow.pop %v266
  %v268 = vmul.f32 %v237, 1.442695
  %v269 = vpow.pop %v268
  %v270 = vadd.f32 %v239, 1.0
  %v271 = vadd.f32 %v241, 1.0
  %v272 = vadd.f32 %v243, 1.0
  %v273 = vadd.f32 %v245, 1.0
  %v274 = vadd.f32 %v247, 1.0
  %v275 = vadd.f32 %v249, 1.0
  %v276 = vadd.f32 %v251, 1.0
  %v277 = vadd.f32 %v253, 1.0
  %v278 = vadd.f32 %v255, 1.0
  %v279 = vadd.f32 %v257, 1.0
  %v280 = vadd.f32 %v259, 1.0
  %v281 = vadd.f32 %v261, 1.0
  %v282 = vadd.f32 %v263, 1.0
  %v283 = vadd.f32 %v265, 1.0
  %v284 = vadd.f32 %v267, 1.0
  %v285 = vadd.f32 %v269, 1.0
  %v286 = vrcp.pop %v270
  %v287 = vmul.f32 1.0, %v286
  %v288 = vrcp.pop %v271
  %v289 = vmul.f32 1.0, %v288
  %v290 = vrcp.pop %v272
  %v291 = vmul.f32 1.0, %v290
  %v292 = vrcp.pop %v273
  %v293 = vmul.f32 1.0, %v292
  %v294 = vrcp.pop %v274
  %v295 = vmul.f32 1.0, %v294
  %v296 = vrcp.pop %v275
  %v297 = vmul.f32 1.0, %v296
  %v298 = vrcp.pop %v276
  %v299 = vmul.f32 1.0, %v298
  %v300 = vrcp.pop %v277
  %v301 = vmul.f32 1.0, %v300
  %v302 = vrcp.pop %v278
  %v303 = vmul.f32 1.0, %v302
  %v304 = vrcp.pop %v279
  %v305 = vmul.f32 1.0, %v304
  %v306 = vrcp.pop %v280
  %v307 = vmul.f32 1.0, %v306
  %v308 = vrcp.pop %v281
  %v309 = vmul.f32 1.0, %v308
  %v310 = vrcp.pop %v282
  %v311 = vmul.f32 1.0, %v310
  %v312 = vrcp.pop %v283
  %v313 = vmul.f32 1.0, %v312
  %v314 = vrcp.pop %v284
  %v315 = vmul.f32 1.0, %v314
  %v316 = vrcp.pop %v285
  %v317 = vmul.f32 1.0, %v316
  %v318 = vmul.f32 %v160, %v287
  %v319 = vmul.f32 %v163, %v289
  %v320 = vmul.f32 %v168, %v291
  %v321 = vmul.f32 %v171, %v293
  %v322 = vmul.f32 %v176, %v295
  %v323 = vmul.f32 %v179, %v297
  %v324 = vmul.f32 %v184, %v299
  %v325 = vmul.f32 %v187, %v301
  %v326 = vmul.f32 %v192, %v303
  %v327 = vmul.f32 %v195, %v305
  %v328 = vmul.f32 %v200, %v307
  %v329 = vmul.f32 %v203, %v309
  %v330 = vmul.f32 %v208, %v311
  %v331 = vmul.f32 %v211, %v313
  %v332 = vmul.f32 %v216, %v315
  %v333 = vmul.f32 %v219, %v317
  %v334 = vpack.c.bf16 %v319, %v318
  %v335 = vpack.c.bf16 %v321, %v320
  %v336 = vpack.c.bf16 %v323, %v322
  %v337 = vpack.c.bf16 %v325, %v324
  %v338 = vpack.c.bf16 %v327, %v326
  %v339 = vpack.c.bf16 %v329, %v328
  %v340 = vpack.c.bf16 %v331, %v330
  %v341 = vpack.c.bf16 %v333, %v332
  %v350 = vunpack.c.l.b16 %v334
  %v351 = vunpack.c.h.b16 %v334
  %v352 = vunpack.c.l.b16 %v335
  %v353 = vunpack.c.h.b16 %v335
  %v354 = vunpack.c.l.b16 %v336
  %v355 = vunpack.c.h.b16 %v336
  %v356 = vunpack.c.l.b16 %v337
  %v357 = vunpack.c.h.b16 %v337
  %v358 = vunpack.c.l.b16 %v338
  %v359 = vunpack.c.h.b16 %v338
  %v360 = vunpack.c.l.b16 %v339
  %v361 = vunpack.c.h.b16 %v339
  %v362 = vunpack.c.l.b16 %v340
  %v363 = vunpack.c.h.b16 %v340
  %v364 = vunpack.c.l.b16 %v341
  %v365 = vunpack.c.h.b16 %v341
  %v366 = vpack.c.b16 %v350, %v350
  %v367 = vpack.c.b16 %v351, %v351
  %v368 = vpack.c.b16 %v352, %v352
  %v369 = vpack.c.b16 %v353, %v353
  %v370 = vpack.c.b16 %v354, %v354
  %v371 = vpack.c.b16 %v355, %v355
  %v372 = vpack.c.b16 %v356, %v356
  %v373 = vpack.c.b16 %v357, %v357
  %v374 = vpack.c.b16 %v358, %v358
  %v375 = vpack.c.b16 %v359, %v359
  %v376 = vpack.c.b16 %v360, %v360
  %v377 = vpack.c.b16 %v361, %v361
  %v378 = vpack.c.b16 %v362, %v362
  %v379 = vpack.c.b16 %v363, %v363
  %v380 = vpack.c.b16 %v364, %v364
  %v381 = vpack.c.b16 %v365, %v365
  %398 = vst [vmem:[%s3] sm:$0xf] %v366
  %399 = vst [vmem:[%s3 + $0x4] sm:$0xf] %v367
  %400 = vst [vmem:[%s3 + $0x8] sm:$0xf] %v368
  %401 = vst [vmem:[%s3 + $0xc] sm:$0xf] %v369
  %402 = vst [vmem:[%s3 + $0x10] sm:$0xf] %v370
  %403 = vst [vmem:[%s3 + $0x14] sm:$0xf] %v371
  %404 = vst [vmem:[%s3 + $0x18] sm:$0xf] %v372
  %405 = vst [vmem:[%s3 + $0x1c] sm:$0xf] %v373
  %406 = vst [vmem:[%s3 + $0x20] sm:$0xf] %v374
  %407 = vst [vmem:[%s3 + $0x24] sm:$0xf] %v375
  %408 = vst [vmem:[%s3 + $0x28] sm:$0xf] %v376
  %409 = vst [vmem:[%s3 + $0x2c] sm:$0xf] %v377
  %410 = vst [vmem:[%s3 + $0x30] sm:$0xf] %v378
  %411 = vst [vmem:[%s3 + $0x34] sm:$0xf] %v379
  %412 = vst [vmem:[%s3 + $0x38] sm:$0xf] %v380
  %413 = vst [vmem:[%s3 + $0x3c] sm:$0xf] %v381
  // Predicated region
  $region14: #{efficientnet_forward.5} parent=0 // pred_check
    _
  $region15: #{efficientnet_forward.5} parent=0 // pred_check_branch
    %415 = sbr.rel (0) target = $region17
  $region16: #{efficientnet_forward.5} parent=0 // pred_region
    _
  $region17: #{efficientnet_forward.5} parent=0 // pred_fallthru
    _
  // Predicated region
  $region18: #{efficientnet_forward.5} parent=0 // pred_check
    _
  $region19: #{efficientnet_forward.5} parent=0 // pred_check_branch
    %417 = sbr.rel (0) target = $region21
  $region20: #{efficientnet_forward.5} parent=0 // pred_region
    _
  $region21: #{efficientnet_forward.5} parent=0 // pred_fallthru
    _

// kernel: efficientnet_forward.9
$region0: #{efficientnet_forward.9}
  #allocation0 [shape = 'u32[]', space=smem, size = 0x4, offset = 0x4, fixed_abs, tag = 'smem constant byte address 0x4 - core index']
  #allocation1 [shape = 'u32[144,128]{1,0:T(1,128)}', space=vmem, size = 0x12000, scoped, tag = 'internal scratch']
  #allocation2 [shape = 'f32[1,1]{1,0:T(1,128)S(1)}', space=vmem, size = 0x200, scoped, tag = 'scoped memory for efficientnet_forward.9']
  %s0 = inlined_call_operand.vmem [shape: bf16[2,8,8,1280], index: 0, kind: input, shape index: {}]
  %s1 = inlined_call_operand.vmem [shape: f32[1280,1], index: 1, kind: input, shape index: {}]
  %s2 = inlined_call_operand.<no memory space> [shape: f32[1,1], index: 2, kind: input, shape index: {}]
  %s3 = inlined_call_operand.hbm [shape: f32[2,1280], index: 3, kind: output, shape index: {0}]
  %s4 = inlined_call_operand.vmem [shape: f32[2,1], index: 4, kind: output, shape index: {1}]
  %5 = xla_tuple %s3, %s4
  %s6 = sld [smem:[#allocation0]]
  $region30: #{efficientnet_forward.9} parent=0
    _
  %s8 = ssub.s32 1, %s6
  %s9 = scalar_select 0, %s8, %s6
  %v10 = vstv %s2
  %11 = vst [vmem:[#allocation2] sm:$0x1] %v10
  $region1: #{efficientnet_forward.9} parent=0
    #allocation3 [shape = 'u8[10240]{0}', space=vmem, size = 0x2800, scoped, tag = 'output window, operand 0, single buffered']
    #allocation4 [shape = 's32[1]{0}', space=sflag, size = 0x4, scoped, tag = 'scoped memory for efficientnet_forward.9']
    %12 = vsyncpa [#allocation4], 0
    // Predicated region
    $region2: #{efficientnet_forward.9} parent=1 // pred_check
      _
    $region3: #{efficientnet_forward.9} parent=1 // pred_check_branch
      %14 = sbr.rel (0) target = $region5
    $region4: #{efficientnet_forward.9} parent=1 // pred_region
      _
    $region5: #{efficientnet_forward.9} parent=1 // pred_fallthru
      _
    // Predicated region
    $region6: #{efficientnet_forward.9} parent=1 // pred_check
      _
    $region7: #{efficientnet_forward.9} parent=1 // pred_check_branch
      %16 = sbr.rel (0) target = $region9
    $region8: #{efficientnet_forward.9} parent=1 // pred_region
      _
    $region9: #{efficientnet_forward.9} parent=1 // pred_fallthru
      _
    // Predicated region
    $region10: #{efficientnet_forward.9} parent=1 // pred_check
      _
    $region11: #{efficientnet_forward.9} parent=1 // pred_check_branch
      %18 = sbr.rel (0) target = $region13
    $region12: #{efficientnet_forward.9} parent=1 // pred_region
      _
    $region13: #{efficientnet_forward.9} parent=1 // pred_fallthru
      _
    %v19 = vld [vmem:[%s0] sm:$0xff]
    %v20 = vld [vmem:[%s0 + $0x8] sm:$0xff]
    %v21 = vld [vmem:[%s0 + $0x10] sm:$0xff]
    %v22 = vld [vmem:[%s0 + $0x18] sm:$0xff]
    %v23 = vld [vmem:[%s0 + $0x20] sm:$0xff]
    %v24 = vld [vmem:[%s0 + $0x28] sm:$0xff]
    %v25 = vld [vmem:[%s0 + $0x30] sm:$0xff]
    %v26 = vld [vmem:[%s0 + $0x38] sm:$0xff]
    %v27 = vld [vmem:[%s0 + $0x40] sm:$0xff]
    %v28 = vld [vmem:[%s0 + $0x48] sm:$0xff]
    %v29 = vld [vmem:[%s0 + $0x50] sm:$0xff]
    %v30 = vld [vmem:[%s0 + $0x58] sm:$0xff]
    %v31 = vld [vmem:[%s0 + $0x60] sm:$0xff]
    %v32 = vld [vmem:[%s0 + $0x68] sm:$0xff]
    %v33 = vld [vmem:[%s0 + $0x70] sm:$0xff]
    %v34 = vld [vmem:[%s0 + $0x78] sm:$0xff]
    %v35 = vld [vmem:[%s0 + $0x80] sm:$0xff]
    %v36 = vld [vmem:[%s0 + $0x88] sm:$0xff]
    %v37 = vld [vmem:[%s0 + $0x90] sm:$0xff]
    %v38 = vld [vmem:[%s0 + $0x98] sm:$0xff]
    %v39 = vld [vmem:[%s0 + $0xa0] sm:$0xff]
    %v40 = vld [vmem:[%s0 + $0xa8] sm:$0xff]
    %v41 = vld [vmem:[%s0 + $0xb0] sm:$0xff]
    %v42 = vld [vmem:[%s0 + $0xb8] sm:$0xff]
    %v43 = vld [vmem:[%s0 + $0xc0] sm:$0xff]
    %v44 = vld [vmem:[%s0 + $0xc8] sm:$0xff]
    %v45 = vld [vmem:[%s0 + $0xd0] sm:$0xff]
    %v46 = vld [vmem:[%s0 + $0xd8] sm:$0xff]
    %v47 = vld [vmem:[%s0 + $0xe0] sm:$0xff]
    %v48 = vld [vmem:[%s0 + $0xe8] sm:$0xff]
    %v49 = vld [vmem:[%s0 + $0xf0] sm:$0xff]
    %v50 = vld [vmem:[%s0 + $0xf8] sm:$0xff]
    %v51 = vld [vmem:[%s0 + $0x100] sm:$0xff]
    %v52 = vld [vmem:[%s0 + $0x108] sm:$0xff]
    %v53 = vld [vmem:[%s0 + $0x110] sm:$0xff]
    %v54 = vld [vmem:[%s0 + $0x118] sm:$0xff]
    %v55 = vld [vmem:[%s0 + $0x120] sm:$0xff]
    %v56 = vld [vmem:[%s0 + $0x128] sm:$0xff]
    %v57 = vld [vmem:[%s0 + $0x130] sm:$0xff]
    %v58 = vld [vmem:[%s0 + $0x138] sm:$0xff]
    %v59 = vld [vmem:[%s0 + $0x140] sm:$0xff]
    %v60 = vld [vmem:[%s0 + $0x148] sm:$0xff]
    %v61 = vld [vmem:[%s0 + $0x150] sm:$0xff]
    %v62 = vld [vmem:[%s0 + $0x158] sm:$0xff]
    %v63 = vld [vmem:[%s0 + $0x160] sm:$0xff]
    %v64 = vld [vmem:[%s0 + $0x168] sm:$0xff]
    %v65 = vld [vmem:[%s0 + $0x170] sm:$0xff]
    %v66 = vld [vmem:[%s0 + $0x178] sm:$0xff]
    %v67 = vld [vmem:[%s0 + $0x180] sm:$0xff]
    %v68 = vld [vmem:[%s0 + $0x188] sm:$0xff]
    %v69 = vld [vmem:[%s0 + $0x190] sm:$0xff]
    %v70 = vld [vmem:[%s0 + $0x198] sm:$0xff]
    %v71 = vld [vmem:[%s0 + $0x1a0] sm:$0xff]
    %v72 = vld [vmem:[%s0 + $0x1a8] sm:$0xff]
    %v73 = vld [vmem:[%s0 + $0x1b0] sm:$0xff]
    %v74 = vld [vmem:[%s0 + $0x1b8] sm:$0xff]
    %v75 = vld [vmem:[%s0 + $0x1c0] sm:$0xff]
    %v76 = vld [vmem:[%s0 + $0x1c8] sm:$0xff]
    %v77 = vld [vmem:[%s0 + $0x1d0] sm:$0xff]
    %v78 = vld [vmem:[%s0 + $0x1d8] sm:$0xff]
    %v79 = vld [vmem:[%s0 + $0x1e0] sm:$0xff]
    %v80 = vld [vmem:[%s0 + $0x1e8] sm:$0xff]
    %v81 = vld [vmem:[%s0 + $0x1f0] sm:$0xff]
    %v82 = vld [vmem:[%s0 + $0x1f8] sm:$0xff]
    %v83 = vld [vmem:[%s0 + $0x200] sm:$0xff]
    %v84 = vld [vmem:[%s0 + $0x208] sm:$0xff]
    %v85 = vld [vmem:[%s0 + $0x210] sm:$0xff]
    %v86 = vld [vmem:[%s0 + $0x218] sm:$0xff]
    %v87 = vld [vmem:[%s0 + $0x220] sm:$0xff]
    %v88 = vld [vmem:[%s0 + $0x228] sm:$0xff]
    %v89 = vld [vmem:[%s0 + $0x230] sm:$0xff]
    %v90 = vld [vmem:[%s0 + $0x238] sm:$0xff]
    %v91 = vld [vmem:[%s0 + $0x240] sm:$0xff]
    %v92 = vld [vmem:[%s0 + $0x248] sm:$0xff]
    %v93 = vld [vmem:[%s0 + $0x250] sm:$0xff]
    %v94 = vld [vmem:[%s0 + $0x258] sm:$0xff]
    %v95 = vld [vmem:[%s0 + $0x260] sm:$0xff]
    %v96 = vld [vmem:[%s0 + $0x268] sm:$0xff]
    %v97 = vld [vmem:[%s0 + $0x270] sm:$0xff]
    %v98 = vld [vmem:[%s0 + $0x278] sm:$0xff]
    %v99 = vunpack.c.l.bf16 %v19
    %v100 = vunpack.c.h.bf16 %v19
    %v101 = vunpack.c.l.bf16 %v20
    %v102 = vunpack.c.h.bf16 %v20
    %v103 = vunpack.c.l.bf16 %v21
    %v104 = vunpack.c.h.bf16 %v21
    %v105 = vunpack.c.l.bf16 %v22
    %v106 = vunpack.c.h.bf16 %v22
    %v107 = vunpack.c.l.bf16 %v23
    %v108 = vunpack.c.h.bf16 %v23
    %v109 = vunpack.c.l.bf16 %v24
    %v110 = vunpack.c.h.bf16 %v24
    %v111 = vunpack.c.l.bf16 %v25
    %v112 = vunpack.c.h.bf16 %v25
    %v113 = vunpack.c.l.bf16 %v26
    %v114 = vunpack.c.h.bf16 %v26
    %v115 = vunpack.c.l.bf16 %v27
    %v116 = vunpack.c.h.bf16 %v27
    %v117 = vunpack.c.l.bf16 %v28
    %v118 = vunpack.c.h.bf16 %v28
    %v119 = vunpack.c.l.bf16 %v29
    %v120 = vunpack.c.h.bf16 %v29
    %v121 = vunpack.c.l.bf16 %v30
    %v122 = vunpack.c.h.bf16 %v30
    %v123 = vunpack.c.l.bf16 %v31
    %v124 = vunpack.c.h.bf16 %v31
    %v125 = vunpack.c.l.bf16 %v32
    %v126 = vunpack.c.h.bf16 %v32
    %v127 = vunpack.c.l.bf16 %v33
    %v128 = vunpack.c.h.bf16 %v33
    %v129 = vunpack.c.l.bf16 %v34
    %v130 = vunpack.c.h.bf16 %v34
    %v131 = vunpack.c.l.bf16 %v35
    %v132 = vunpack.c.h.bf16 %v35
    %v133 = vunpack.c.l.bf16 %v36
    %v134 = vunpack.c.h.bf16 %v36
    %v135 = vunpack.c.l.bf16 %v37
    %v136 = vunpack.c.h.bf16 %v37
    %v137 = vunpack.c.l.bf16 %v38
    %v138 = vunpack.c.h.bf16 %v38
    %v139 = vunpack.c.l.bf16 %v39
    %v140 = vunpack.c.h.bf16 %v39
    %v141 = vunpack.c.l.bf16 %v40
    %v142 = vunpack.c.h.bf16 %v40
    %v143 = vunpack.c.l.bf16 %v41
    %v144 = vunpack.c.h.bf16 %v41
    %v145 = vunpack.c.l.bf16 %v42
    %v146 = vunpack.c.h.bf16 %v42
    %v147 = vunpack.c.l.bf16 %v43
    %v148 = vunpack.c.h.bf16 %v43
    %v149 = vunpack.c.l.bf16 %v44
    %v150 = vunpack.c.h.bf16 %v44
    %v151 = vunpack.c.l.bf16 %v45
    %v152 = vunpack.c.h.bf16 %v45
    %v153 = vunpack.c.l.bf16 %v46
    %v154 = vunpack.c.h.bf16 %v46
    %v155 = vunpack.c.l.bf16 %v47
    %v156 = vunpack.c.h.bf16 %v47
    %v157 = vunpack.c.l.bf16 %v48
    %v158 = vunpack.c.h.bf16 %v48
    %v159 = vunpack.c.l.bf16 %v49
    %v160 = vunpack.c.h.bf16 %v49
    %v161 = vunpack.c.l.bf16 %v50
    %v162 = vunpack.c.h.bf16 %v50
    %v163 = vunpack.c.l.bf16 %v51
    %v164 = vunpack.c.h.bf16 %v51
    %v165 = vunpack.c.l.bf16 %v52
    %v166 = vunpack.c.h.bf16 %v52
    %v167 = vunpack.c.l.bf16 %v53
    %v168 = vunpack.c.h.bf16 %v53
    %v169 = vunpack.c.l.bf16 %v54
    %v170 = vunpack.c.h.bf16 %v54
    %v171 = vunpack.c.l.bf16 %v55
    %v172 = vunpack.c.h.bf16 %v55
    %v173 = vunpack.c.l.bf16 %v56
    %v174 = vunpack.c.h.bf16 %v56
    %v175 = vunpack.c.l.bf16 %v57
    %v176 = vunpack.c.h.bf16 %v57
    %v177 = vunpack.c.l.bf16 %v58
    %v178 = vunpack.c.h.bf16 %v58
    %v179 = vunpack.c.l.bf16 %v59
    %v180 = vunpack.c.h.bf16 %v59
    %v181 = vunpack.c.l.bf16 %v60
    %v182 = vunpack.c.h.bf16 %v60
    %v183 = vunpack.c.l.bf16 %v61
    %v184 = vunpack.c.h.bf16 %v61
    %v185 = vunpack.c.l.bf16 %v62
    %v186 = vunpack.c.h.bf16 %v62
    %v187 = vunpack.c.l.bf16 %v63
    %v188 = vunpack.c.h.bf16 %v63
    %v189 = vunpack.c.l.bf16 %v64
    %v190 = vunpack.c.h.bf16 %v64
    %v191 = vunpack.c.l.bf16 %v65
    %v192 = vunpack.c.h.bf16 %v65
    %v193 = vunpack.c.l.bf16 %v66
    %v194 = vunpack.c.h.bf16 %v66
    %v195 = vunpack.c.l.bf16 %v67
    %v196 = vunpack.c.h.bf16 %v67
    %v197 = vunpack.c.l.bf16 %v68
    %v198 = vunpack.c.h.bf16 %v68
    %v199 = vunpack.c.l.bf16 %v69
    %v200 = vunpack.c.h.bf16 %v69
    %v201 = vunpack.c.l.bf16 %v70
    %v202 = vunpack.c.h.bf16 %v70
    %v203 = vunpack.c.l.bf16 %v71
    %v204 = vunpack.c.h.bf16 %v71
    %v205 = vunpack.c.l.bf16 %v72
    %v206 = vunpack.c.h.bf16 %v72
    %v207 = vunpack.c.l.bf16 %v73
    %v208 = vunpack.c.h.bf16 %v73
    %v209 = vunpack.c.l.bf16 %v74
    %v210 = vunpack.c.h.bf16 %v74
    %v211 = vunpack.c.l.bf16 %v75
    %v212 = vunpack.c.h.bf16 %v75
    %v213 = vunpack.c.l.bf16 %v76
    %v214 = vunpack.c.h.bf16 %v76
    %v215 = vunpack.c.l.bf16 %v77
    %v216 = vunpack.c.h.bf16 %v77
    %v217 = vunpack.c.l.bf16 %v78
    %v218 = vunpack.c.h.bf16 %v78
    %v219 = vunpack.c.l.bf16 %v79
    %v220 = vunpack.c.h.bf16 %v79
    %v221 = vunpack.c.l.bf16 %v80
    %v222 = vunpack.c.h.bf16 %v80
    %v223 = vunpack.c.l.bf16 %v81
    %v224 = vunpack.c.h.bf16 %v81
    %v225 = vunpack.c.l.bf16 %v82
    %v226 = vunpack.c.h.bf16 %v82
    %v227 = vunpack.c.l.bf16 %v83
    %v228 = vunpack.c.h.bf16 %v83
    %v229 = vunpack.c.l.bf16 %v84
    %v230 = vunpack.c.h.bf16 %v84
    %v231 = vunpack.c.l.bf16 %v85
    %v232 = vunpack.c.h.bf16 %v85
    %v233 = vunpack.c.l.bf16 %v86
    %v234 = vunpack.c.h.bf16 %v86
    %v235 = vunpack.c.l.bf16 %v87
    %v236 = vunpack.c.h.bf16 %v87
    %v237 = vunpack.c.l.bf16 %v88
    %v238 = vunpack.c.h.bf16 %v88
    %v239 = vunpack.c.l.bf16 %v89
    %v240 = vunpack.c.h.bf16 %v89
    %v241 = vunpack.c.l.bf16 %v90
    %v242 = vunpack.c.h.bf16 %v90
    %v243 = vunpack.c.l.bf16 %v91
    %v244 = vunpack.c.h.bf16 %v91
    %v245 = vunpack.c.l.bf16 %v92
    %v246 = vunpack.c.h.bf16 %v92
    %v247 = vunpack.c.l.bf16 %v93
    %v248 = vunpack.c.h.bf16 %v93
    %v249 = vunpack.c.l.bf16 %v94
    %v250 = vunpack.c.h.bf16 %v94
    %v251 = vunpack.c.l.bf16 %v95
    %v252 = vunpack.c.h.bf16 %v95
    %v253 = vunpack.c.l.bf16 %v96
    %v254 = vunpack.c.h.bf16 %v96
    %v255 = vunpack.c.l.bf16 %v97
    %v256 = vunpack.c.h.bf16 %v97
    %v257 = vunpack.c.l.bf16 %v98
    %v258 = vunpack.c.h.bf16 %v98
    %v259 = vadd.f32 %v99, %v109
    %v260 = vadd.f32 %v259, %v119
    %v261 = vadd.f32 %v260, %v129
    %v262 = vadd.f32 %v261, %v139
    %v263 = vadd.f32 %v262, %v149
    %v264 = vadd.f32 %v263, %v159
    %v265 = vadd.f32 %v264, %v169
    %v266 = vrot.slane %v265, 4
    %v267 = vadd.f32 %v265, %v266
    %v268 = vrot.slane %v267, 2
    %v269 = vadd.f32 %v267, %v268
    %v270 = vrot.slane %v269, 1
    %v271 = vadd.f32 %v269, %v270
    %v272 = vadd.f32 %v100, %v110
    %v273 = vadd.f32 %v272, %v120
    %v274 = vadd.f32 %v273, %v130
    %v275 = vadd.f32 %v274, %v140
    %v276 = vadd.f32 %v275, %v150
    %v277 = vadd.f32 %v276, %v160
    %v278 = vadd.f32 %v277, %v170
    %v279 = vrot.slane %v278, 4
    %v280 = vadd.f32 %v278, %v279
    %v281 = vrot.slane %v280, 2
    %v282 = vadd.f32 %v280, %v281
    %v283 = vrot.slane %v282, 1
    %v284 = vadd.f32 %v282, %v283
    %v285 = vadd.f32 %v101, %v111
    %v286 = vadd.f32 %v285, %v121
    %v287 = vadd.f32 %v286, %v131
    %v288 = vadd.f32 %v287, %v141
    %v289 = vadd.f32 %v288, %v151
    %v290 = vadd.f32 %v289, %v161
    %v291 = vadd.f32 %v290, %v171
    %v292 = vrot.slane %v291, 4
    %v293 = vadd.f32 %v291, %v292
    %v294 = vrot.slane %v293, 2
    %v295 = vadd.f32 %v293, %v294
    %v296 = vrot.slane %v295, 1
    %v297 = vadd.f32 %v295, %v296
    %v298 = vadd.f32 %v102, %v112
    %v299 = vadd.f32 %v298, %v122
    %v300 = vadd.f32 %v299, %v132
    %v301 = vadd.f32 %v300, %v142
    %v302 = vadd.f32 %v301, %v152
    %v303 = vadd.f32 %v302, %v162
    %v304 = vadd.f32 %v303, %v172
    %v305 = vrot.slane %v304, 4
    %v306 = vadd.f32 %v304, %v305
    %v307 = vrot.slane %v306, 2
    %v308 = vadd.f32 %v306, %v307
    %v309 = vrot.slane %v308, 1
    %v310 = vadd.f32 %v308, %v309
    %v311 = vadd.f32 %v103, %v113
    %v312 = vadd.f32 %v311, %v123
    %v313 = vadd.f32 %v312, %v133
    %v314 = vadd.f32 %v313, %v143
    %v315 = vadd.f32 %v314, %v153
    %v316 = vadd.f32 %v315, %v163
    %v317 = vadd.f32 %v316, %v173
    %v318 = vrot.slane %v317, 4
    %v319 = vadd.f32 %v317, %v318
    %v320 = vrot.slane %v319, 2
    %v321 = vadd.f32 %v319, %v320
    %v322 = vrot.slane %v321, 1
    %v323 = vadd.f32 %v321, %v322
    %v324 = vadd.f32 %v104, %v114
    %v325 = vadd.f32 %v324, %v124
    %v326 = vadd.f32 %v325, %v134
    %v327 = vadd.f32 %v326, %v144
    %v328 = vadd.f32 %v327, %v154
    %v329 = vadd.f32 %v328, %v164
    %v330 = vadd.f32 %v329, %v174
    %v331 = vrot.slane %v330, 4
    %v332 = vadd.f32 %v330, %v331
    %v333 = vrot.slane %v332, 2
    %v334 = vadd.f32 %v332, %v333
    %v335 = vrot.slane %v334, 1
    %v336 = vadd.f32 %v334, %v335
    %v337 = vadd.f32 %v105, %v115
    %v338 = vadd.f32 %v337, %v125
    %v339 = vadd.f32 %v338, %v135
    %v340 = vadd.f32 %v339, %v145
    %v341 = vadd.f32 %v340, %v155
    %v342 = vadd.f32 %v341, %v165
    %v343 = vadd.f32 %v342, %v175
    %v344 = vrot.slane %v343, 4
    %v345 = vadd.f32 %v343, %v344
    %v346 = vrot.slane %v345, 2
    %v347 = vadd.f32 %v345, %v346
    %v348 = vrot.slane %v347, 1
    %v349 = vadd.f32 %v347, %v348
    %v350 = vadd.f32 %v106, %v116
    %v351 = vadd.f32 %v350, %v126
    %v352 = vadd.f32 %v351, %v136
    %v353 = vadd.f32 %v352, %v146
    %v354 = vadd.f32 %v353, %v156
    %v355 = vadd.f32 %v354, %v166
    %v356 = vadd.f32 %v355, %v176
    %v357 = vrot.slane %v356, 4
    %v358 = vadd.f32 %v356, %v357
    %v359 = vrot.slane %v358, 2
    %v360 = vadd.f32 %v358, %v359
    %v361 = vrot.slane %v360, 1
    %v362 = vadd.f32 %v360, %v361
    %v363 = vadd.f32 %v107, %v117
    %v364 = vadd.f32 %v363, %v127
    %v365 = vadd.f32 %v364, %v137
    %v366 = vadd.f32 %v365, %v147
    %v367 = vadd.f32 %v366, %v157
    %v368 = vadd.f32 %v367, %v167
    %v369 = vadd.f32 %v368, %v177
    %v370 = vrot.slane %v369, 4
    %v371 = vadd.f32 %v369, %v370
    %v372 = vrot.slane %v371, 2
    %v373 = vadd.f32 %v371, %v372
    %v374 = vrot.slane %v373, 1
    %v375 = vadd.f32 %v373, %v374
    %v376 = vadd.f32 %v108, %v118
    %v377 = vadd.f32 %v376, %v128
    %v378 = vadd.f32 %v377, %v138
    %v379 = vadd.f32 %v378, %v148
    %v380 = vadd.f32 %v379, %v158
    %v381 = vadd.f32 %v380, %v168
    %v382 = vadd.f32 %v381, %v178
    %v383 = vrot.slane %v382, 4
    %v384 = vadd.f32 %v382, %v383
    %v385 = vrot.slane %v384, 2
    %v386 = vadd.f32 %v384, %v385
    %v387 = vrot.slane %v386, 1
    %v388 = vadd.f32 %v386, %v387
    %v389 = vadd.f32 %v179, %v189
    %v390 = vadd.f32 %v389, %v199
    %v391 = vadd.f32 %v390, %v209
    %v392 = vadd.f32 %v391, %v219
    %v393 = vadd.f32 %v392, %v229
    %v394 = vadd.f32 %v393, %v239
    %v395 = vadd.f32 %v394, %v249
    %v396 = vrot.slane %v395, 4
    %v397 = vadd.f32 %v395, %v396
    %v398 = vrot.slane %v397, 2
    %v399 = vadd.f32 %v397, %v398
    %v400 = vrot.slane %v399, 1
    %v401 = vadd.f32 %v399, %v400
    %v402 = vadd.f32 %v180, %v190
    %v403 = vadd.f32 %v402, %v200
    %v404 = vadd.f32 %v403, %v210
    %v405 = vadd.f32 %v404, %v220
    %v406 = vadd.f32 %v405, %v230
    %v407 = vadd.f32 %v406, %v240
    %v408 = vadd.f32 %v407, %v250
    %v409 = vrot.slane %v408, 4
    %v410 = vadd.f32 %v408, %v409
    %v411 = vrot.slane %v410, 2
    %v412 = vadd.f32 %v410, %v411
    %v413 = vrot.slane %v412, 1
    %v414 = vadd.f32 %v412, %v413
    %v415 = vadd.f32 %v181, %v191
    %v416 = vadd.f32 %v415, %v201
    %v417 = vadd.f32 %v416, %v211
    %v418 = vadd.f32 %v417, %v221
    %v419 = vadd.f32 %v418, %v231
    %v420 = vadd.f32 %v419, %v241
    %v421 = vadd.f32 %v420, %v251
    %v422 = vrot.slane %v421, 4
    %v423 = vadd.f32 %v421, %v422
    %v424 = vrot.slane %v423, 2
    %v425 = vadd.f32 %v423, %v424
    %v426 = vrot.slane %v425, 1
    %v427 = vadd.f32 %v425, %v426
    %v428 = vadd.f32 %v182, %v192
    %v429 = vadd.f32 %v428, %v202
    %v430 = vadd.f32 %v429, %v212
    %v431 = vadd.f32 %v430, %v222
    %v432 = vadd.f32 %v431, %v232
    %v433 = vadd.f32 %v432, %v242
    %v434 = vadd.f32 %v433, %v252
    %v435 = vrot.slane %v434, 4
    %v436 = vadd.f32 %v434, %v435
    %v437 = vrot.slane %v436, 2
    %v438 = vadd.f32 %v436, %v437
    %v439 = vrot.slane %v438, 1
    %v440 = vadd.f32 %v438, %v439
    %v441 = vadd.f32 %v183, %v193
    %v442 = vadd.f32 %v441, %v203
    %v443 = vadd.f32 %v442, %v213
    %v444 = vadd.f32 %v443, %v223
    %v445 = vadd.f32 %v444, %v233
    %v446 = vadd.f32 %v445, %v243
    %v447 = vadd.f32 %v446, %v253
    %v448 = vrot.slane %v447, 4
    %v449 = vadd.f32 %v447, %v448
    %v450 = vrot.slane %v449, 2
    %v451 = vadd.f32 %v449, %v450
    %v452 = vrot.slane %v451, 1
    %v453 = vadd.f32 %v451, %v452
    %v454 = vadd.f32 %v184, %v194
    %v455 = vadd.f32 %v454, %v204
    %v456 = vadd.f32 %v455, %v214
    %v457 = vadd.f32 %v456, %v224
    %v458 = vadd.f32 %v457, %v234
    %v459 = vadd.f32 %v458, %v244
    %v460 = vadd.f32 %v459, %v254
    %v461 = vrot.slane %v460, 4
    %v462 = vadd.f32 %v460, %v461
    %v463 = vrot.slane %v462, 2
    %v464 = vadd.f32 %v462, %v463
    %v465 = vrot.slane %v464, 1
    %v466 = vadd.f32 %v464, %v465
    %v467 = vadd.f32 %v185, %v195
    %v468 = vadd.f32 %v467, %v205
    %v469 = vadd.f32 %v468, %v215
    %v470 = vadd.f32 %v469, %v225
    %v471 = vadd.f32 %v470, %v235
    %v472 = vadd.f32 %v471, %v245
    %v473 = vadd.f32 %v472, %v255
    %v474 = vrot.slane %v473, 4
    %v475 = vadd.f32 %v473, %v474
    %v476 = vrot.slane %v475, 2
    %v477 = vadd.f32 %v475, %v476
    %v478 = vrot.slane %v477, 1
    %v479 = vadd.f32 %v477, %v478
    %v480 = vadd.f32 %v186, %v196
    %v481 = vadd.f32 %v480, %v206
    %v482 = vadd.f32 %v481, %v216
    %v483 = vadd.f32 %v482, %v226
    %v484 = vadd.f32 %v483, %v236
    %v485 = vadd.f32 %v484, %v246
    %v486 = vadd.f32 %v485, %v256
    %v487 = vrot.slane %v486, 4
    %v488 = vadd.f32 %v486, %v487
    %v489 = vrot.slane %v488, 2
    %v490 = vadd.f32 %v488, %v489
    %v491 = vrot.slane %v490, 1
    %v492 = vadd.f32 %v490, %v491
    %v493 = vadd.f32 %v187, %v197
    %v494 = vadd.f32 %v493, %v207
    %v495 = vadd.f32 %v494, %v217
    %v496 = vadd.f32 %v495, %v227
    %v497 = vadd.f32 %v496, %v237
    %v498 = vadd.f32 %v497, %v247
    %v499 = vadd.f32 %v498, %v257
    %v500 = vrot.slane %v499, 4
    %v501 = vadd.f32 %v499, %v500
    %v502 = vrot.slane %v501, 2
    %v503 = vadd.f32 %v501, %v502
    %v504 = vrot.slane %v503, 1
    %v505 = vadd.f32 %v503, %v504
    %v506 = vadd.f32 %v188, %v198
    %v507 = vadd.f32 %v506, %v208
    %v508 = vadd.f32 %v507, %v218
    %v509 = vadd.f32 %v508, %v228
    %v510 = vadd.f32 %v509, %v238
    %v511 = vadd.f32 %v510, %v248
    %v512 = vadd.f32 %v511, %v258
    %v513 = vrot.slane %v512, 4
    %v514 = vadd.f32 %v512, %v513
    %v515 = vrot.slane %v514, 2
    %v516 = vadd.f32 %v514, %v515
    %v517 = vrot.slane %v516, 1
    %v518 = vadd.f32 %v516, %v517
    %v519 = vrcp.pop 64.0
    %v520 = vmul.f32 %v271, %v519
    %v521 = vmul.f32 %v284, %v519
    %v522 = vmul.f32 %v297, %v519
    %v523 = vmul.f32 %v310, %v519
    %v524 = vmul.f32 %v323, %v519
    %v525 = vmul.f32 %v336, %v519
    %v526 = vmul.f32 %v349, %v519
    %v527 = vmul.f32 %v362, %v519
    %v528 = vmul.f32 %v375, %v519
    %v529 = vmul.f32 %v388, %v519
    %v530 = vmul.f32 %v401, %v519
    %v531 = vmul.f32 %v414, %v519
    %v532 = vmul.f32 %v427, %v519
    %v533 = vmul.f32 %v440, %v519
    %v534 = vmul.f32 %v453, %v519
    %v535 = vmul.f32 %v466, %v519
    %v536 = vmul.f32 %v479, %v519
    %v537 = vmul.f32 %v492, %v519
    %v538 = vmul.f32 %v505, %v519
    %v539 = vmul.f32 %v518, %v519
    %v560 = vcombine.low %v520, %v521
    %v561 = vcombine.low %v522, %v523
    %v563 = vunpack.c.l.s4 1983009808
    %v564 = vunpack.c.0.s8 %v563
    %v565 = vlaneseq
    %v566 = vshrl.u32 %v565, 7
    %v567 = vsub.s32 %v564, %v566
    %v568 = vrot.slane %v560, %v567
    %v570 = vunpack.c.l.s4 1983009808
    %v571 = vunpack.c.0.s8 %v570
    %v572 = vlaneseq
    %v573 = vshrl.u32 %v572, 7
    %v574 = vsub.s32 %v571, %v573
    %v575 = vrot.slane %v561, %v574
    %v576 = vcombine.low %v568, %v575
    %v577 = vcombine.low %v524, %v525
    %v578 = vcombine.low %v526, %v527
    %v580 = vunpack.c.l.s4 1983009808
    %v581 = vunpack.c.0.s8 %v580
    %v582 = vlaneseq
    %v583 = vshrl.u32 %v582, 7
    %v584 = vsub.s32 %v581, %v583
    %v585 = vrot.slane %v577, %v584
    %v587 = vunpack.c.l.s4 1983009808
    %v588 = vunpack.c.0.s8 %v587
    %v589 = vlaneseq
    %v590 = vshrl.u32 %v589, 7
    %v591 = vsub.s32 %v588, %v590
    %v592 = vrot.slane %v578, %v591
    %v593 = vcombine.low %v585, %v592
    %v594 = vcombine.low %v528, %v529
    %v596 = vunpack.c.l.s4 1983009808
    %v597 = vunpack.c.0.s8 %v596
    %v598 = vlaneseq
    %v599 = vshrl.u32 %v598, 7
    %v600 = vsub.s32 %v597, %v599
    %v601 = vrot.slane %v594, %v600
    %v602 = vcombine.low %v530, %v531
    %v603 = vcombine.low %v532, %v533
    %v605 = vunpack.c.l.s4 1983009808
    %v606 = vunpack.c.0.s8 %v605
    %v607 = vlaneseq
    %v608 = vshrl.u32 %v607, 7
    %v609 = vsub.s32 %v606, %v608
    %v610 = vrot.slane %v602, %v609
    %v612 = vunpack.c.l.s4 1983009808
    %v613 = vunpack.c.0.s8 %v612
    %v614 = vlaneseq
    %v615 = vshrl.u32 %v614, 7
    %v616 = vsub.s32 %v613, %v615
    %v617 = vrot.slane %v603, %v616
    %v618 = vcombine.low %v610, %v617
    %v619 = vcombine.low %v534, %v535
    %v620 = vcombine.low %v536, %v537
    %v622 = vunpack.c.l.s4 1983009808
    %v623 = vunpack.c.0.s8 %v622
    %v624 = vlaneseq
    %v625 = vshrl.u32 %v624, 7
    %v626 = vsub.s32 %v623, %v625
    %v627 = vrot.slane %v619, %v626
    %v629 = vunpack.c.l.s4 1983009808
    %v630 = vunpack.c.0.s8 %v629
    %v631 = vlaneseq
    %v632 = vshrl.u32 %v631, 7
    %v633 = vsub.s32 %v630, %v632
    %v634 = vrot.slane %v620, %v633
    %v635 = vcombine.low %v627, %v634
    %v636 = vcombine.low %v538, %v539
    %v638 = vunpack.c.l.s4 1983009808
    %v639 = vunpack.c.0.s8 %v638
    %v640 = vlaneseq
    %v641 = vshrl.u32 %v640, 7
    %v642 = vsub.s32 %v639, %v641
    %v643 = vrot.slane %v636, %v642
    %vm644 = vcmask 1044484
    %v645 = vsel %vm644, %v576, %v576
    %vm646 = vcmask 1046534
    %v647 = vsel %vm646, %v576, %v645
    %v648 = vrot.slane %v618, 7
    %vm649 = vcmask 1041409
    %v650 = vsel %vm649, %v648, %v647
    %vm651 = vcmask 1043459
    %v652 = vsel %vm651, %v648, %v650
    %vm653 = vcmask 1045509
    %v654 = vsel %vm653, %v648, %v652
    %vm655 = vcmask 1047559
    %v656 = vsel %vm655, %v648, %v654
    %v657 = vsel %vm644, %v593, %v593
    %v658 = vsel %vm646, %v593, %v657
    %v659 = vrot.slane %v635, 7
    %v660 = vsel %vm649, %v659, %v658
    %v661 = vsel %vm651, %v659, %v660
    %v662 = vsel %vm653, %v659, %v661
    %v663 = vsel %vm655, %v659, %v662
    %v664 = vsel %vm644, %v601, %v601
    %v665 = vsel %vm646, %v601, %v664
    %v666 = vrot.slane %v643, 7
    %v667 = vsel %vm649, %v666, %v665
    %v668 = vsel %vm651, %v666, %v667
    %v669 = vsel %vm653, %v666, %v668
    %v670 = vsel %vm655, %v666, %v669
    %674 = vst [vmem:[#allocation3] sm:$0xff] %v656
    %675 = vst [vmem:[#allocation3 + $0x8] sm:$0xff] %v663
    %676 = vst [vmem:[#allocation3 + $0x10] sm:$0xf] %v670
    %v677 = vld [vmem:[%s1] sm:$0xff]
    %v678 = vld [vmem:[%s1 + $0x8] sm:$0xff]
    %v679 = vld [vmem:[%s1 + $0x10] sm:$0xff]
    %v680 = vld [vmem:[%s1 + $0x18] sm:$0xff]
    %v681 = vld [vmem:[%s1 + $0x20] sm:$0xff]
    %v682 = vld [vmem:[%s1 + $0x28] sm:$0xff]
    %v683 = vld [vmem:[%s1 + $0x30] sm:$0xff]
    %v684 = vld [vmem:[%s1 + $0x38] sm:$0xff]
    %v685 = vld [vmem:[%s1 + $0x40] sm:$0xff]
    %v686 = vld [vmem:[%s1 + $0x48] sm:$0xff]
    %v687 = vld [vmem:[%s1 + $0x50] sm:$0xff]
    %v688 = vld [vmem:[%s1 + $0x58] sm:$0xff]
    %v689 = vld [vmem:[%s1 + $0x60] sm:$0xff]
    %v690 = vld [vmem:[%s1 + $0x68] sm:$0xff]
    %v691 = vld [vmem:[%s1 + $0x70] sm:$0xff]
    %v692 = vld [vmem:[%s1 + $0x78] sm:$0xff]
    %v693 = vld [vmem:[%s1 + $0x80] sm:$0xff]
    %v694 = vld [vmem:[%s1 + $0x88] sm:$0xff]
    %v695 = vld [vmem:[%s1 + $0x90] sm:$0xff]
    %v696 = vld [vmem:[%s1 + $0x98] sm:$0xff]
    %v697 = vld [vmem:[%s1 + $0xa0] sm:$0xff]
    %v698 = vld [vmem:[%s1 + $0xa8] sm:$0xff]
    %v699 = vld [vmem:[%s1 + $0xb0] sm:$0xff]
    %v700 = vld [vmem:[%s1 + $0xb8] sm:$0xff]
    %v701 = vld [vmem:[%s1 + $0xc0] sm:$0xff]
    %v702 = vld [vmem:[%s1 + $0xc8] sm:$0xff]
    %v703 = vld [vmem:[%s1 + $0xd0] sm:$0xff]
    %v704 = vld [vmem:[%s1 + $0xd8] sm:$0xff]
    %v705 = vld [vmem:[%s1 + $0xe0] sm:$0xff]
    %v706 = vld [vmem:[%s1 + $0xe8] sm:$0xff]
    %v707 = vld [vmem:[%s1 + $0xf0] sm:$0xff]
    %v708 = vld [vmem:[%s1 + $0xf8] sm:$0xff]
    %v709 = vld [vmem:[%s1 + $0x100] sm:$0xff]
    %v710 = vld [vmem:[%s1 + $0x108] sm:$0xff]
    %v711 = vld [vmem:[%s1 + $0x110] sm:$0xff]
    %v712 = vld [vmem:[%s1 + $0x118] sm:$0xff]
    %v713 = vld [vmem:[%s1 + $0x120] sm:$0xff]
    %v714 = vld [vmem:[%s1 + $0x128] sm:$0xff]
    %v715 = vld [vmem:[%s1 + $0x130] sm:$0xff]
    %v716 = vld [vmem:[%s1 + $0x138] sm:$0xff]
    %v717 = vld [vmem:[%s1 + $0x140] sm:$0xff]
    %v718 = vld [vmem:[%s1 + $0x148] sm:$0xff]
    %v719 = vld [vmem:[%s1 + $0x150] sm:$0xff]
    %v720 = vld [vmem:[%s1 + $0x158] sm:$0xff]
    %v721 = vld [vmem:[%s1 + $0x160] sm:$0xff]
    %v722 = vld [vmem:[%s1 + $0x168] sm:$0xff]
    %v723 = vld [vmem:[%s1 + $0x170] sm:$0xff]
    %v724 = vld [vmem:[%s1 + $0x178] sm:$0xff]
    %v725 = vld [vmem:[%s1 + $0x180] sm:$0xff]
    %v726 = vld [vmem:[%s1 + $0x188] sm:$0xff]
    %v727 = vld [vmem:[%s1 + $0x190] sm:$0xff]
    %v728 = vld [vmem:[%s1 + $0x198] sm:$0xff]
    %v729 = vld [vmem:[%s1 + $0x1a0] sm:$0xff]
    %v730 = vld [vmem:[%s1 + $0x1a8] sm:$0xff]
    %v731 = vld [vmem:[%s1 + $0x1b0] sm:$0xff]
    %v732 = vld [vmem:[%s1 + $0x1b8] sm:$0xff]
    %v733 = vld [vmem:[%s1 + $0x1c0] sm:$0xff]
    %v734 = vld [vmem:[%s1 + $0x1c8] sm:$0xff]
    %v735 = vld [vmem:[%s1 + $0x1d0] sm:$0xff]
    %v736 = vld [vmem:[%s1 + $0x1d8] sm:$0xff]
    %v737 = vld [vmem:[%s1 + $0x1e0] sm:$0xff]
    %v738 = vld [vmem:[%s1 + $0x1e8] sm:$0xff]
    %v739 = vld [vmem:[%s1 + $0x1f0] sm:$0xff]
    %v740 = vld [vmem:[%s1 + $0x1f8] sm:$0xff]
    %v741 = vld [vmem:[%s1 + $0x200] sm:$0xff]
    %v742 = vld [vmem:[%s1 + $0x208] sm:$0xff]
    %v743 = vld [vmem:[%s1 + $0x210] sm:$0xff]
    %v744 = vld [vmem:[%s1 + $0x218] sm:$0xff]
    %v745 = vld [vmem:[%s1 + $0x220] sm:$0xff]
    %v746 = vld [vmem:[%s1 + $0x228] sm:$0xff]
    %v747 = vld [vmem:[%s1 + $0x230] sm:$0xff]
    %v748 = vld [vmem:[%s1 + $0x238] sm:$0xff]
    %v749 = vld [vmem:[%s1 + $0x240] sm:$0xff]
    %v750 = vld [vmem:[%s1 + $0x248] sm:$0xff]
    %v751 = vld [vmem:[%s1 + $0x250] sm:$0xff]
    %v752 = vld [vmem:[%s1 + $0x258] sm:$0xff]
    %v753 = vld [vmem:[%s1 + $0x260] sm:$0xff]
    %v754 = vld [vmem:[%s1 + $0x268] sm:$0xff]
    %v755 = vld [vmem:[%s1 + $0x270] sm:$0xff]
    %v756 = vld [vmem:[%s1 + $0x278] sm:$0xff]
    %v757 = vld [vmem:[%s1 + $0x280] sm:$0xff]
    %v758 = vld [vmem:[%s1 + $0x288] sm:$0xff]
    %v759 = vld [vmem:[%s1 + $0x290] sm:$0xff]
    %v760 = vld [vmem:[%s1 + $0x298] sm:$0xff]
    %v761 = vld [vmem:[%s1 + $0x2a0] sm:$0xff]
    %v762 = vld [vmem:[%s1 + $0x2a8] sm:$0xff]
    %v763 = vld [vmem:[%s1 + $0x2b0] sm:$0xff]
    %v764 = vld [vmem:[%s1 + $0x2b8] sm:$0xff]
    %v765 = vld [vmem:[%s1 + $0x2c0] sm:$0xff]
    %v766 = vld [vmem:[%s1 + $0x2c8] sm:$0xff]
    %v767 = vld [vmem:[%s1 + $0x2d0] sm:$0xff]
    %v768 = vld [vmem:[%s1 + $0x2d8] sm:$0xff]
    %v769 = vld [vmem:[%s1 + $0x2e0] sm:$0xff]
    %v770 = vld [vmem:[%s1 + $0x2e8] sm:$0xff]
    %v771 = vld [vmem:[%s1 + $0x2f0] sm:$0xff]
    %v772 = vld [vmem:[%s1 + $0x2f8] sm:$0xff]
    %v773 = vld [vmem:[%s1 + $0x300] sm:$0xff]
    %v774 = vld [vmem:[%s1 + $0x308] sm:$0xff]
    %v775 = vld [vmem:[%s1 + $0x310] sm:$0xff]
    %v776 = vld [vmem:[%s1 + $0x318] sm:$0xff]
    %v777 = vld [vmem:[%s1 + $0x320] sm:$0xff]
    %v778 = vld [vmem:[%s1 + $0x328] sm:$0xff]
    %v779 = vld [vmem:[%s1 + $0x330] sm:$0xff]
    %v780 = vld [vmem:[%s1 + $0x338] sm:$0xff]
    %v781 = vld [vmem:[%s1 + $0x340] sm:$0xff]
    %v782 = vld [vmem:[%s1 + $0x348] sm:$0xff]
    %v783 = vld [vmem:[%s1 + $0x350] sm:$0xff]
    %v784 = vld [vmem:[%s1 + $0x358] sm:$0xff]
    %v785 = vld [vmem:[%s1 + $0x360] sm:$0xff]
    %v786 = vld [vmem:[%s1 + $0x368] sm:$0xff]
    %v787 = vld [vmem:[%s1 + $0x370] sm:$0xff]
    %v788 = vld [vmem:[%s1 + $0x378] sm:$0xff]
    %v789 = vld [vmem:[%s1 + $0x380] sm:$0xff]
    %v790 = vld [vmem:[%s1 + $0x388] sm:$0xff]
    %v791 = vld [vmem:[%s1 + $0x390] sm:$0xff]
    %v792 = vld [vmem:[%s1 + $0x398] sm:$0xff]
    %v793 = vld [vmem:[%s1 + $0x3a0] sm:$0xff]
    %v794 = vld [vmem:[%s1 + $0x3a8] sm:$0xff]
    %v795 = vld [vmem:[%s1 + $0x3b0] sm:$0xff]
    %v796 = vld [vmem:[%s1 + $0x3b8] sm:$0xff]
    %v797 = vld [vmem:[%s1 + $0x3c0] sm:$0xff]
    %v798 = vld [vmem:[%s1 + $0x3c8] sm:$0xff]
    %v799 = vld [vmem:[%s1 + $0x3d0] sm:$0xff]
    %v800 = vld [vmem:[%s1 + $0x3d8] sm:$0xff]
    %v801 = vld [vmem:[%s1 + $0x3e0] sm:$0xff]
    %v802 = vld [vmem:[%s1 + $0x3e8] sm:$0xff]
    %v803 = vld [vmem:[%s1 + $0x3f0] sm:$0xff]
    %v804 = vld [vmem:[%s1 + $0x3f8] sm:$0xff]
    %v805 = vld [vmem:[%s1 + $0x400] sm:$0xff]
    %v806 = vld [vmem:[%s1 + $0x408] sm:$0xff]
    %v807 = vld [vmem:[%s1 + $0x410] sm:$0xff]
    %v808 = vld [vmem:[%s1 + $0x418] sm:$0xff]
    %v809 = vld [vmem:[%s1 + $0x420] sm:$0xff]
    %v810 = vld [vmem:[%s1 + $0x428] sm:$0xff]
    %v811 = vld [vmem:[%s1 + $0x430] sm:$0xff]
    %v812 = vld [vmem:[%s1 + $0x438] sm:$0xff]
    %v813 = vld [vmem:[%s1 + $0x440] sm:$0xff]
    %v814 = vld [vmem:[%s1 + $0x448] sm:$0xff]
    %v815 = vld [vmem:[%s1 + $0x450] sm:$0xff]
    %v816 = vld [vmem:[%s1 + $0x458] sm:$0xff]
    %v817 = vld [vmem:[%s1 + $0x460] sm:$0xff]
    %v818 = vld [vmem:[%s1 + $0x468] sm:$0xff]
    %v819 = vld [vmem:[%s1 + $0x470] sm:$0xff]
    %v820 = vld [vmem:[%s1 + $0x478] sm:$0xff]
    %v821 = vld [vmem:[%s1 + $0x480] sm:$0xff]
    %v822 = vld [vmem:[%s1 + $0x488] sm:$0xff]
    %v823 = vld [vmem:[%s1 + $0x490] sm:$0xff]
    %v824 = vld [vmem:[%s1 + $0x498] sm:$0xff]
    %v825 = vld [vmem:[%s1 + $0x4a0] sm:$0xff]
    %v826 = vld [vmem:[%s1 + $0x4a8] sm:$0xff]
    %v827 = vld [vmem:[%s1 + $0x4b0] sm:$0xff]
    %v828 = vld [vmem:[%s1 + $0x4b8] sm:$0xff]
    %v829 = vld [vmem:[%s1 + $0x4c0] sm:$0xff]
    %v830 = vld [vmem:[%s1 + $0x4c8] sm:$0xff]
    %v831 = vld [vmem:[%s1 + $0x4d0] sm:$0xff]
    %v832 = vld [vmem:[%s1 + $0x4d8] sm:$0xff]
    %v833 = vld [vmem:[%s1 + $0x4e0] sm:$0xff]
    %v834 = vld [vmem:[%s1 + $0x4e8] sm:$0xff]
    %v835 = vld [vmem:[%s1 + $0x4f0] sm:$0xff]
    %v836 = vld [vmem:[%s1 + $0x4f8] sm:$0xff]
    %v837 = vld [vmem:[#allocation2] sm:$0x1]
    %v839 = vlaneseq
    %v840 = vshrl.u32 %v839, 7
    %v841 = vsub.s32 0, %v840
    %v842 = vrot.slane %v837, %v841
    %v844 = vsel %vm649, %v530, %v520
    %v845 = vsel %vm649, %v531, %v521
    %v846 = vsel %vm649, %v532, %v522
    %v847 = vsel %vm649, %v533, %v523
    %v848 = vsel %vm649, %v534, %v524
    %v849 = vsel %vm649, %v535, %v525
    %v850 = vsel %vm649, %v536, %v526
    %v851 = vsel %vm649, %v537, %v527
    %v852 = vsel %vm649, %v538, %v528
    %v853 = vsel %vm649, %v539, %v529
    %864 = vmatprep.subr.mxu0 0.0
    %865 = vmatpush1.msra.mxu0 %v677
    %866 = vmatprep.subr.mxu0 0.0
    %867 = vmatpush1.msra.mxu0 %v678
    %868 = vmatprep.subr.mxu0 0.0
    %869 = vmatpush1.msra.mxu0 %v679
    %870 = vmatprep.subr.mxu0 0.0
    %871 = vmatpush1.msra.mxu0 %v680
    %872 = vmatprep.subr.mxu0 0.0
    %873 = vmatpush1.msra.mxu0 %v681
    %874 = vmatprep.subr.mxu0 0.0
    %875 = vmatpush1.msra.mxu0 %v682
    %876 = vmatprep.subr.mxu0 0.0
    %877 = vmatpush1.msra.mxu0 %v683
    %878 = vmatprep.subr.mxu0 0.0
    %879 = vmatpush1.msra.mxu0 %v684
    %880 = vmatprep.subr.mxu0 0.0
    %881 = vmatpush1.msra.mxu0 %v685
    %882 = vmatprep.subr.mxu0 0.0
    %883 = vmatpush1.msra.mxu0 %v686
    %884 = vmatprep.subr.mxu0 0.0
    %885 = vmatpush1.msra.mxu0 %v687
    %886 = vmatprep.subr.mxu0 0.0
    %887 = vmatpush1.msra.mxu0 %v688
    %888 = vmatprep.subr.mxu0 0.0
    %889 = vmatpush1.msra.mxu0 %v689
    %890 = vmatprep.subr.mxu0 0.0
    %891 = vmatpush1.msra.mxu0 %v690
    %892 = vmatprep.subr.mxu0 0.0
    %893 = vmatpush1.msra.mxu0 %v691
    %894 = vmatprep.subr.mxu0 0.0
    %895 = vmatpush1.msra.mxu0 %v692
    %896 = vmatprep.subr.mxu0 0.0
    %897 = vmatpush1.msra.mxu0 %v693
    %898 = vmatprep.subr.mxu0 0.0
    %899 = vmatpush1.msra.mxu0 %v694
    %900 = vmatprep.subr.mxu0 0.0
    %901 = vmatpush1.msra.mxu0 %v695
    %902 = vmatprep.subr.mxu0 0.0
    %903 = vmatpush1.msra.mxu0 %v696
    %904 = vmatprep.subr.mxu0 0.0
    %905 = vmatpush1.msra.mxu0 %v697
    %906 = vmatprep.subr.mxu0 0.0
    %907 = vmatpush1.msra.mxu0 %v698
    %908 = vmatprep.subr.mxu0 0.0
    %909 = vmatpush1.msra.mxu0 %v699
    %910 = vmatprep.subr.mxu0 0.0
    %911 = vmatpush1.msra.mxu0 %v700
    %912 = vmatprep.subr.mxu0 0.0
    %913 = vmatpush1.msra.mxu0 %v701
    %914 = vmatprep.subr.mxu0 0.0
    %915 = vmatpush1.msra.mxu0 %v702
    %916 = vmatprep.subr.mxu0 0.0
    %917 = vmatpush1.msra.mxu0 %v703
    %918 = vmatprep.subr.mxu0 0.0
    %919 = vmatpush1.msra.mxu0 %v704
    %920 = vmatprep.subr.mxu0 0.0
    %921 = vmatpush1.msra.mxu0 %v705
    %922 = vmatprep.subr.mxu0 0.0
    %923 = vmatpush1.msra.mxu0 %v706
    %924 = vmatprep.subr.mxu0 0.0
    %925 = vmatpush1.msra.mxu0 %v707
    %926 = vmatprep.subr.mxu0 0.0
    %927 = vmatpush1.msra.mxu0 %v708
    %928 = vmatprep.mubr.f32.mxu0 %v845
    %929 = vmatmul.mubr.f32.gmra.mrb[0].mxu0 %v844
    %v930 = vpop.f32.mrb[0].mxu0
    %v931 = vadd.f32 %v842, %v930
    %v932 = vpop.f32.mrb[0].mxu0
    %933 = vdwg.mxu0
    %934 = vmatprep.subr.mxu0 0.0
    %935 = vmatpush1.msra.mxu0 %v709
    %936 = vmatprep.subr.mxu0 0.0
    %937 = vmatpush1.msra.mxu0 %v710
    %938 = vmatprep.subr.mxu0 0.0
    %939 = vmatpush1.msra.mxu0 %v711
    %940 = vmatprep.subr.mxu0 0.0
    %941 = vmatpush1.msra.mxu0 %v712
    %942 = vmatprep.subr.mxu0 0.0
    %943 = vmatpush1.msra.mxu0 %v713
    %944 = vmatprep.subr.mxu0 0.0
    %945 = vmatpush1.msra.mxu0 %v714
    %946 = vmatprep.subr.mxu0 0.0
    %947 = vmatpush1.msra.mxu0 %v715
    %948 = vmatprep.subr.mxu0 0.0
    %949 = vmatpush1.msra.mxu0 %v716
    %950 = vmatprep.subr.mxu0 0.0
    %951 = vmatpush1.msra.mxu0 %v717
    %952 = vmatprep.subr.mxu0 0.0
    %953 = vmatpush1.msra.mxu0 %v718
    %954 = vmatprep.subr.mxu0 0.0
    %955 = vmatpush1.msra.mxu0 %v719
    %956 = vmatprep.subr.mxu0 0.0
    %957 = vmatpush1.msra.mxu0 %v720
    %958 = vmatprep.subr.mxu0 0.0
    %959 = vmatpush1.msra.mxu0 %v721
    %960 = vmatprep.subr.mxu0 0.0
    %961 = vmatpush1.msra.mxu0 %v722
    %962 = vmatprep.subr.mxu0 0.0
    %963 = vmatpush1.msra.mxu0 %v723
    %964 = vmatprep.subr.mxu0 0.0
    %965 = vmatpush1.msra.mxu0 %v724
    %966 = vmatprep.subr.mxu0 0.0
    %967 = vmatpush1.msra.mxu0 %v725
    %968 = vmatprep.subr.mxu0 0.0
    %969 = vmatpush1.msra.mxu0 %v726
    %970 = vmatprep.subr.mxu0 0.0
    %971 = vmatpush1.msra.mxu0 %v727
    %972 = vmatprep.subr.mxu0 0.0
    %973 = vmatpush1.msra.mxu0 %v728
    %974 = vmatprep.subr.mxu0 0.0
    %975 = vmatpush1.msra.mxu0 %v729
    %976 = vmatprep.subr.mxu0 0.0
    %977 = vmatpush1.msra.mxu0 %v730
    %978 = vmatprep.subr.mxu0 0.0
    %979 = vmatpush1.msra.mxu0 %v731
    %980 = vmatprep.subr.mxu0 0.0
    %981 = vmatpush1.msra.mxu0 %v732
    %982 = vmatprep.subr.mxu0 0.0
    %983 = vmatpush1.msra.mxu0 %v733
    %984 = vmatprep.subr.mxu0 0.0
    %985 = vmatpush1.msra.mxu0 %v734
    %986 = vmatprep.subr.mxu0 0.0
    %987 = vmatpush1.msra.mxu0 %v735
    %988 = vmatprep.subr.mxu0 0.0
    %989 = vmatpush1.msra.mxu0 %v736
    %990 = vmatprep.subr.mxu0 0.0
    %991 = vmatpush1.msra.mxu0 %v737
    %992 = vmatprep.subr.mxu0 0.0
    %993 = vmatpush1.msra.mxu0 %v738
    %994 = vmatprep.subr.mxu0 0.0
    %995 = vmatpush1.msra.mxu0 %v739
    %996 = vmatprep.subr.mxu0 0.0
    %997 = vmatpush1.msra.mxu0 %v740
    %998 = vmatprep.mubr.f32.mxu0 %v847
    %999 = vmatmul.mubr.f32.gmra.mrb[0].mxu0 %v846
    %v1000 = vpop.f32.mrb[0].mxu0
    %v1001 = vadd.f32 %v931, %v1000
    %v1002 = vpop.f32.mrb[0].mxu0
    %1003 = vdwg.mxu0
    %1004 = vmatprep.subr.mxu0 0.0
    %1005 = vmatpush1.msra.mxu0 %v741
    %1006 = vmatprep.subr.mxu0 0.0
    %1007 = vmatpush1.msra.mxu0 %v742
    %1008 = vmatprep.subr.mxu0 0.0
    %1009 = vmatpush1.msra.mxu0 %v743
    %1010 = vmatprep.subr.mxu0 0.0
    %1011 = vmatpush1.msra.mxu0 %v744
    %1012 = vmatprep.subr.mxu0 0.0
    %1013 = vmatpush1.msra.mxu0 %v745
    %1014 = vmatprep.subr.mxu0 0.0
    %1015 = vmatpush1.msra.mxu0 %v746
    %1016 = vmatprep.subr.mxu0 0.0
    %1017 = vmatpush1.msra.mxu0 %v747
    %1018 = vmatprep.subr.mxu0 0.0
    %1019 = vmatpush1.msra.mxu0 %v748
    %1020 = vmatprep.subr.mxu0 0.0
    %1021 = vmatpush1.msra.mxu0 %v749
    %1022 = vmatprep.subr.mxu0 0.0
    %1023 = vmatpush1.msra.mxu0 %v750
    %1024 = vmatprep.subr.mxu0 0.0
    %1025 = vmatpush1.msra.mxu0 %v751
    %1026 = vmatprep.subr.mxu0 0.0
    %1027 = vmatpush1.msra.mxu0 %v752
    %1028 = vmatprep.subr.mxu0 0.0
    %1029 = vmatpush1.msra.mxu0 %v753
    %1030 = vmatprep.subr.mxu0 0.0
    %1031 = vmatpush1.msra.mxu0 %v754
    %1032 = vmatprep.subr.mxu0 0.0
    %1033 = vmatpush1.msra.mxu0 %v755
    %1034 = vmatprep.subr.mxu0 0.0
    %1035 = vmatpush1.msra.mxu0 %v756
    %1036 = vmatprep.subr.mxu0 0.0
    %1037 = vmatpush1.msra.mxu0 %v757
    %1038 = vmatprep.subr.mxu0 0.0
    %1039 = vmatpush1.msra.mxu0 %v758
    %1040 = vmatprep.subr.mxu0 0.0
    %1041 = vmatpush1.msra.mxu0 %v759
    %1042 = vmatprep.subr.mxu0 0.0
    %1043 = vmatpush1.msra.mxu0 %v760
    %1044 = vmatprep.subr.mxu0 0.0
    %1045 = vmatpush1.msra.mxu0 %v761
    %1046 = vmatprep.subr.mxu0 0.0
    %1047 = vmatpush1.msra.mxu0 %v762
    %1048 = vmatprep.subr.mxu0 0.0
    %1049 = vmatpush1.msra.mxu0 %v763
    %1050 = vmatprep.subr.mxu0 0.0
    %1051 = vmatpush1.msra.mxu0 %v764
    %1052 = vmatprep.subr.mxu0 0.0
    %1053 = vmatpush1.msra.mxu0 %v765
    %1054 = vmatprep.subr.mxu0 0.0
    %1055 = vmatpush1.msra.mxu0 %v766
    %1056 = vmatprep.subr.mxu0 0.0
    %1057 = vmatpush1.msra.mxu0 %v767
    %1058 = vmatprep.subr.mxu0 0.0
    %1059 = vmatpush1.msra.mxu0 %v768
    %1060 = vmatprep.subr.mxu0 0.0
    %1061 = vmatpush1.msra.mxu0 %v769
    %1062 = vmatprep.subr.mxu0 0.0
    %1063 = vmatpush1.msra.mxu0 %v770
    %1064 = vmatprep.subr.mxu0 0.0
    %1065 = vmatpush1.msra.mxu0 %v771
    %1066 = vmatprep.subr.mxu0 0.0
    %1067 = vmatpush1.msra.mxu0 %v772
    %1068 = vmatprep.mubr.f32.mxu0 %v849
    %1069 = vmatmul.mubr.f32.gmra.mrb[0].mxu0 %v848
    %v1070 = vpop.f32.mrb[0].mxu0
    %v1071 = vadd.f32 %v1001, %v1070
    %v1072 = vpop.f32.mrb[0].mxu0
    %1073 = vdwg.mxu0
    %1074 = vmatprep.subr.mxu0 0.0
    %1075 = vmatpush1.msra.mxu0 %v773
    %1076 = vmatprep.subr.mxu0 0.0
    %1077 = vmatpush1.msra.mxu0 %v774
    %1078 = vmatprep.subr.mxu0 0.0
    %1079 = vmatpush1.msra.mxu0 %v775
    %1080 = vmatprep.subr.mxu0 0.0
    %1081 = vmatpush1.msra.mxu0 %v776
    %1082 = vmatprep.subr.mxu0 0.0
    %1083 = vmatpush1.msra.mxu0 %v777
    %1084 = vmatprep.subr.mxu0 0.0
    %1085 = vmatpush1.msra.mxu0 %v778
    %1086 = vmatprep.subr.mxu0 0.0
    %1087 = vmatpush1.msra.mxu0 %v779
    %1088 = vmatprep.subr.mxu0 0.0
    %1089 = vmatpush1.msra.mxu0 %v780
    %1090 = vmatprep.subr.mxu0 0.0
    %1091 = vmatpush1.msra.mxu0 %v781
    %1092 = vmatprep.subr.mxu0 0.0
    %1093 = vmatpush1.msra.mxu0 %v782
    %1094 = vmatprep.subr.mxu0 0.0
    %1095 = vmatpush1.msra.mxu0 %v783
    %1096 = vmatprep.subr.mxu0 0.0
    %1097 = vmatpush1.msra.mxu0 %v784
    %1098 = vmatprep.subr.mxu0 0.0
    %1099 = vmatpush1.msra.mxu0 %v785
    %1100 = vmatprep.subr.mxu0 0.0
    %1101 = vmatpush1.msra.mxu0 %v786
    %1102 = vmatprep.subr.mxu0 0.0
    %1103 = vmatpush1.msra.mxu0 %v787
    %1104 = vmatprep.subr.mxu0 0.0
    %1105 = vmatpush1.msra.mxu0 %v788
    %1106 = vmatprep.subr.mxu0 0.0
    %1107 = vmatpush1.msra.mxu0 %v789
    %1108 = vmatprep.subr.mxu0 0.0
    %1109 = vmatpush1.msra.mxu0 %v790
    %1110 = vmatprep.subr.mxu0 0.0
    %1111 = vmatpush1.msra.mxu0 %v791
    %1112 = vmatprep.subr.mxu0 0.0
    %1113 = vmatpush1.msra.mxu0 %v792
    %1114 = vmatprep.subr.mxu0 0.0
    %1115 = vmatpush1.msra.mxu0 %v793
    %1116 = vmatprep.subr.mxu0 0.0
    %1117 = vmatpush1.msra.mxu0 %v794
    %1118 = vmatprep.subr.mxu0 0.0
    %1119 = vmatpush1.msra.mxu0 %v795
    %1120 = vmatprep.subr.mxu0 0.0
    %1121 = vmatpush1.msra.mxu0 %v796
    %1122 = vmatprep.subr.mxu0 0.0
    %1123 = vmatpush1.msra.mxu0 %v797
    %1124 = vmatprep.subr.mxu0 0.0
    %1125 = vmatpush1.msra.mxu0 %v798
    %1126 = vmatprep.subr.mxu0 0.0
    %1127 = vmatpush1.msra.mxu0 %v799
    %1128 = vmatprep.subr.mxu0 0.0
    %1129 = vmatpush1.msra.mxu0 %v800
    %1130 = vmatprep.subr.mxu0 0.0
    %1131 = vmatpush1.msra.mxu0 %v801
    %1132 = vmatprep.subr.mxu0 0.0
    %1133 = vmatpush1.msra.mxu0 %v802
    %1134 = vmatprep.subr.mxu0 0.0
    %1135 = vmatpush1.msra.mxu0 %v803
    %1136 = vmatprep.subr.mxu0 0.0
    %1137 = vmatpush1.msra.mxu0 %v804
    %1138 = vmatprep.mubr.f32.mxu0 %v851
    %1139 = vmatmul.mubr.f32.gmra.mrb[0].mxu0 %v850
    %v1140 = vpop.f32.mrb[0].mxu0
    %v1141 = vadd.f32 %v1071, %v1140
    %v1142 = vpop.f32.mrb[0].mxu0
    %1143 = vdwg.mxu0
    %1144 = vmatprep.subr.mxu0 0.0
    %1145 = vmatpush1.msra.mxu0 %v805
    %1146 = vmatprep.subr.mxu0 0.0
    %1147 = vmatpush1.msra.mxu0 %v806
    %1148 = vmatprep.subr.mxu0 0.0
    %1149 = vmatpush1.msra.mxu0 %v807
    %1150 = vmatprep.subr.mxu0 0.0
    %1151 = vmatpush1.msra.mxu0 %v808
    %1152 = vmatprep.subr.mxu0 0.0
    %1153 = vmatpush1.msra.mxu0 %v809
    %1154 = vmatprep.subr.mxu0 0.0
    %1155 = vmatpush1.msra.mxu0 %v810
    %1156 = vmatprep.subr.mxu0 0.0
    %1157 = vmatpush1.msra.mxu0 %v811
    %1158 = vmatprep.subr.mxu0 0.0
    %1159 = vmatpush1.msra.mxu0 %v812
    %1160 = vmatprep.subr.mxu0 0.0
    %1161 = vmatpush1.msra.mxu0 %v813
    %1162 = vmatprep.subr.mxu0 0.0
    %1163 = vmatpush1.msra.mxu0 %v814
    %1164 = vmatprep.subr.mxu0 0.0
    %1165 = vmatpush1.msra.mxu0 %v815
    %1166 = vmatprep.subr.mxu0 0.0
    %1167 = vmatpush1.msra.mxu0 %v816
    %1168 = vmatprep.subr.mxu0 0.0
    %1169 = vmatpush1.msra.mxu0 %v817
    %1170 = vmatprep.subr.mxu0 0.0
    %1171 = vmatpush1.msra.mxu0 %v818
    %1172 = vmatprep.subr.mxu0 0.0
    %1173 = vmatpush1.msra.mxu0 %v819
    %1174 = vmatprep.subr.mxu0 0.0
    %1175 = vmatpush1.msra.mxu0 %v820
    %1176 = vmatprep.subr.mxu0 0.0
    %1177 = vmatpush1.msra.mxu0 %v821
    %1178 = vmatprep.subr.mxu0 0.0
    %1179 = vmatpush1.msra.mxu0 %v822
    %1180 = vmatprep.subr.mxu0 0.0
    %1181 = vmatpush1.msra.mxu0 %v823
    %1182 = vmatprep.subr.mxu0 0.0
    %1183 = vmatpush1.msra.mxu0 %v824
    %1184 = vmatprep.subr.mxu0 0.0
    %1185 = vmatpush1.msra.mxu0 %v825
    %1186 = vmatprep.subr.mxu0 0.0
    %1187 = vmatpush1.msra.mxu0 %v826
    %1188 = vmatprep.subr.mxu0 0.0
    %1189 = vmatpush1.msra.mxu0 %v827
    %1190 = vmatprep.subr.mxu0 0.0
    %1191 = vmatpush1.msra.mxu0 %v828
    %1192 = vmatprep.subr.mxu0 0.0
    %1193 = vmatpush1.msra.mxu0 %v829
    %1194 = vmatprep.subr.mxu0 0.0
    %1195 = vmatpush1.msra.mxu0 %v830
    %1196 = vmatprep.subr.mxu0 0.0
    %1197 = vmatpush1.msra.mxu0 %v831
    %1198 = vmatprep.subr.mxu0 0.0
    %1199 = vmatpush1.msra.mxu0 %v832
    %1200 = vmatprep.subr.mxu0 0.0
    %1201 = vmatpush1.msra.mxu0 %v833
    %1202 = vmatprep.subr.mxu0 0.0
    %1203 = vmatpush1.msra.mxu0 %v834
    %1204 = vmatprep.subr.mxu0 0.0
    %1205 = vmatpush1.msra.mxu0 %v835
    %1206 = vmatprep.subr.mxu0 0.0
    %1207 = vmatpush1.msra.mxu0 %v836
    %1208 = vmatprep.mubr.f32.mxu0 %v853
    %1209 = vmatmul.mubr.f32.gmra.mrb[0].mxu0 %v852
    %v1210 = vpop.f32.mrb[0].mxu0
    %v1211 = vadd.f32 %v1141, %v1210
    %v1212 = vpop.f32.mrb[0].mxu0
    %1213 = vdwg.mxu0
    %vm1214 = vcmask 1024
    %1215 = vst.msk [vmem:[%s4] sm:$0x3] %vm1214, %v1211
    // Predicated region
    $region14: #{efficientnet_forward.9} parent=1 // pred_check
      _
    $region15: #{efficientnet_forward.9} parent=1 // pred_check_branch
      %1217 = sbr.rel (0) target = $region17
    $region16: #{efficientnet_forward.9} parent=1 // pred_region
      %s1219 = ssub.s32 320, 320
      %1220 = vsyncadd [#allocation4], %s1219
      %s1222 = sshll.u32 [#allocation3], 4
      %s1223 = int_to_ptr.vmem [resolvable:$true] %s1222
      %1225 = dma.vmem_to_hbm [thread:$0]  %s1223, 320, %s3, [#allocation4]
    $region17: #{efficientnet_forward.9} parent=1 // pred_fallthru
      _
    // Predicated region
    $region18: #{efficientnet_forward.9} parent=1 // pred_check
      _
    $region19: #{efficientnet_forward.9} parent=1 // pred_check_branch
      %1227 = sbr.rel (0) target = $region21
    $region20: #{efficientnet_forward.9} parent=1 // pred_region
      _
    $region21: #{efficientnet_forward.9} parent=1 // pred_fallthru
      _
    // Predicated region
    $region22: #{efficientnet_forward.9} parent=1 // pred_check
      _
    $region23: #{efficientnet_forward.9} parent=1 // pred_check_branch
      %1229 = sbr.rel (0) target = $region25
    $region24: #{efficientnet_forward.9} parent=1 // pred_region
      %1230 = dma.done [#allocation4], 320
    $region25: #{efficientnet_forward.9} parent=1 // pred_fallthru
      _
    // Predicated region
    $region26: #{efficientnet_forward.9} parent=1 // pred_check
      _
    $region27: #{efficientnet_forward.9} parent=1 // pred_check_branch
      %1232 = sbr.rel (0) target = $region29
    $region28: #{efficientnet_forward.9} parent=1 // pred_region
      _
    $region29: #{efficientnet_forward.9} parent=1 // pred_fallthru
      _
    %1233 = vsyncpa [#allocation4], 1

// kernel: efficientnet_forward.6
$region0: #{efficientnet_forward.6}
  #allocation0 [shape = 'u32[]', space=smem, size = 0x4, offset = 0x4, fixed_abs, tag = 'smem constant byte address 0x4 - core index']
  #allocation1 [shape = 'u32[144,128]{1,0:T(1,128)}', space=vmem, size = 0x12000, scoped, tag = 'internal scratch']
  #allocation2 [shape = 'f32[10,10,256]{2,1,0:T(8,128)}', space=vmem, size = 0x28000, scoped, tag = 'scratch operand']
  %s0 = inlined_call_operand.vmem [shape: bf16[2,8,8,128], index: 0, kind: input, shape index: {}]
  %s1 = inlined_call_operand.vmem [shape: bf16[128,256], index: 1, kind: input, shape index: {}]
  %s2 = inlined_call_operand.vmem [shape: f32[1,256], index: 2, kind: input, shape index: {}]
  %s3 = inlined_call_operand.vmem [shape: f32[9,256], index: 3, kind: input, shape index: {}]
  %s4 = inlined_call_operand.vmem [shape: f32[1,256], index: 4, kind: input, shape index: {}]
  %s5 = inlined_call_operand.vmem [shape: f32[256,32], index: 5, kind: input, shape index: {}]
  %s6 = inlined_call_operand.vmem [shape: f32[1,32], index: 6, kind: input, shape index: {}]
  %s7 = inlined_call_operand.vmem [shape: f32[32,256], index: 7, kind: input, shape index: {}]
  %s8 = inlined_call_operand.vmem [shape: f32[1,256], index: 8, kind: input, shape index: {}]
  %s9 = inlined_call_operand.vmem [shape: bf16[256,128], index: 9, kind: input, shape index: {}]
  %s10 = inlined_call_operand.vmem [shape: f32[1,128], index: 10, kind: input, shape index: {}]
  %s11 = inlined_call_operand.vmem [shape: bf16[2,8,8,128], index: 11, kind: output, shape index: {}]
  %s12 = sld [smem:[#allocation0]]
  $region77: #{efficientnet_forward.6} parent=0
    _
  %s14 = ssub.s32 1, %s12
  %s15 = scalar_select 0, %s14, %s12
  loop: start=0, step=1, limit=4
  $region2: #{efficientnet_forward.6} parent=0 // loop_pre_header
    _
  $region3: #{efficientnet_forward.6} parent=0 // loop_header
    %s17 = sphi 0, %s21
    %p18 = scmp.ge.s32.totalorder %s17, 4
    %s27 = sphi 0, %s29
    %s30 = sphi 0, %s27
    %s31 = sphi 0, %s30
    %s47 = sphi 0, %s31
    %s51 = sphi 0, %s51
    %s53 = sphi 0, %s51
    %s54 = sphi 0, %s53
    %s68 = sphi 0, %s54
    %s72 = sphi 0, %s72
    %s74 = sphi 0, %s72
    %s75 = sphi 0, %s74
    %s89 = sphi 0, %s75
    %s93 = sphi 0, %s93
    %s95 = sphi 0, %s93
    %s96 = sphi 0, %s95
    %s110 = sphi 0, %s96
    %s114 = sphi 0, %s114
    %s116 = sphi 0, %s114
    %s117 = sphi 0, %s116
    %s131 = sphi 0, %s117
    %s135 = sphi 0, %s135
    %s137 = sphi 0, %s135
    %s138 = sphi 0, %s137
    %s152 = sphi 0, %s138
    %s156 = sphi 0, %s156
    %s158 = sphi 0, %s156
    %s159 = sphi 0, %s158
    %s173 = sphi 0, %s159
    %s177 = sphi 0, %s177
    %s179 = sphi 0, %s177
    %s180 = sphi 0, %s179
    %s194 = sphi 0, %s180
    %s198 = sphi 0, %s198
    %s200 = sphi 0, %s198
    %s201 = sphi 0, %s200
    %s215 = sphi 0, %s201
    %s219 = sphi 0, %s219
    %s221 = sphi 0, %s219
    %s222 = sphi 0, %s221
    %s236 = sphi 0, %s222
    %s240 = sphi 0, %s240
    %s242 = sphi 0, %s240
    %s243 = sphi 0, %s242
    %s257 = sphi 0, %s243
    %s263 = sphi 0, %s265
    %s266 = sphi 0, %s263
    %s267 = sphi 0, %s266
    %s283 = sphi 0, %s267
  $region4: #{efficientnet_forward.6} parent=0 // loop_header_branch
    %20 = sbr.rel (%p18) target = $region8
  $region5: #{efficientnet_forward.6} parent=0 // loop_body
    %s22 = ssub.s32 %s17, 1
    %s23 = ssub.s32 %s17, 2
    %s24 = sadd.s32 %s17, 1
    %s25 = ssub.s32 %s17, %s24
    %p26 = scmp.eq.s32.totalorder %s25, 0
    %s28 = sadd.s32 %s27, 1
    %s29 = scalar_select %p26, %s27, %s28
    %p32 = pneg %p26
    %p33 = scmp.eq.s32.totalorder %s17, 1
    %p34 = por %p32, %p33
    %p35 = scmp.ne.s32.totalorder %s27, %s30
    %p36 = scmp.eq.s32.totalorder %s17, 0
    %p37 = por %p35, %p36
    %p38 = scmp.ne.s32.totalorder %s27, %s30
    %p39 = scmp.eq.s32.totalorder %s22, 1
    %p40 = por %p38, %p39
    %p41 = scmp.ne.s32.totalorder %s30, %s31
    %p42 = scmp.eq.s32.totalorder %s22, 0
    %p43 = por %p41, %p42
    %p44 = scmp.ne.s32.totalorder %s30, %s31
    %p45 = scmp.eq.s32.totalorder %s23, 1
    %p46 = por %p44, %p45
    %p48 = scmp.ne.s32.totalorder %s31, %s47
    %p49 = scmp.eq.s32.totalorder %s23, 0
    %p50 = por %p48, %p49
    %s52 = sadd.s32 %s51, 1
    %p55 = scmp.eq.s32.totalorder %s17, 1
    %p56 = scmp.ne.s32.totalorder %s51, %s53
    %p57 = scmp.eq.s32.totalorder %s17, 0
    %p58 = por %p56, %p57
    %p59 = scmp.ne.s32.totalorder %s51, %s53
    %p60 = scmp.eq.s32.totalorder %s22, 1
    %p61 = por %p59, %p60
    %p62 = scmp.ne.s32.totalorder %s53, %s54
    %p63 = scmp.eq.s32.totalorder %s22, 0
    %p64 = por %p62, %p63
    %p65 = scmp.ne.s32.totalorder %s53, %s54
    %p66 = scmp.eq.s32.totalorder %s23, 1
    %p67 = por %p65, %p66
    %p69 = scmp.ne.s32.totalorder %s54, %s68
    %p70 = scmp.eq.s32.totalorder %s23, 0
    %p71 = por %p69, %p70
    %s73 = sadd.s32 %s72, 1
    %p76 = scmp.eq.s32.totalorder %s17, 1
    %p77 = scmp.ne.s32.totalorder %s72, %s74
    %p78 = scmp.eq.s32.totalorder %s17, 0
    %p79 = por %p77, %p78
    %p80 = scmp.ne.s32.totalorder %s72, %s74
    %p81 = scmp.eq.s32.totalorder %s22, 1
    %p82 = por %p80, %p81
    %p83 = scmp.ne.s32.totalorder %s74, %s75
    %p84 = scmp.eq.s32.totalorder %s22, 0
    %p85 = por %p83, %p84
    %p86 = scmp.ne.s32.totalorder %s74, %s75
    %p87 = scmp.eq.s32.totalorder %s23, 1
    %p88 = por %p86, %p87
    %p90 = scmp.ne.s32.totalorder %s75, %s89
    %p91 = scmp.eq.s32.totalorder %s23, 0
    %p92 = por %p90, %p91
    %s94 = sadd.s32 %s93, 1
    %p97 = scmp.eq.s32.totalorder %s17, 1
    %p98 = scmp.ne.s32.totalorder %s93, %s95
    %p99 = scmp.eq.s32.totalorder %s17, 0
    %p100 = por %p98, %p99
    %p101 = scmp.ne.s32.totalorder %s93, %s95
    %p102 = scmp.eq.s32.totalorder %s22, 1
    %p103 = por %p101, %p102
    %p104 = scmp.ne.s32.totalorder %s95, %s96
    %p105 = scmp.eq.s32.totalorder %s22, 0
    %p106 = por %p104, %p105
    %p107 = scmp.ne.s32.totalorder %s95, %s96
    %p108 = scmp.eq.s32.totalorder %s23, 1
    %p109 = por %p107, %p108
    %p111 = scmp.ne.s32.totalorder %s96, %s110
    %p112 = scmp.eq.s32.totalorder %s23, 0
    %p113 = por %p111, %p112
    %s115 = sadd.s32 %s114, 1
    %p118 = scmp.eq.s32.totalorder %s17, 1
    %p119 = scmp.ne.s32.totalorder %s114, %s116
    %p120 = scmp.eq.s32.totalorder %s17, 0
    %p121 = por %p119, %p120
    %p122 = scmp.ne.s32.totalorder %s114, %s116
    %p123 = scmp.eq.s32.totalorder %s22, 1
    %p124 = por %p122, %p123
    %p125 = scmp.ne.s32.totalorder %s116, %s117
    %p126 = scmp.eq.s32.totalorder %s22, 0
    %p127 = por %p125, %p126
    %p128 = scmp.ne.s32.totalorder %s116, %s117
    %p129 = scmp.eq.s32.totalorder %s23, 1
    %p130 = por %p128, %p129
    %p132 = scmp.ne.s32.totalorder %s117, %s131
    %p133 = scmp.eq.s32.totalorder %s23, 0
    %p134 = por %p132, %p133
    %s136 = sadd.s32 %s135, 1
    %p139 = scmp.eq.s32.totalorder %s17, 1
    %p140 = scmp.ne.s32.totalorder %s135, %s137
    %p141 = scmp.eq.s32.totalorder %s17, 0
    %p142 = por %p140, %p141
    %p143 = scmp.ne.s32.totalorder %s135, %s137
    %p144 = scmp.eq.s32.totalorder %s22, 1
    %p145 = por %p143, %p144
    %p146 = scmp.ne.s32.totalorder %s137, %s138
    %p147 = scmp.eq.s32.totalorder %s22, 0
    %p148 = por %p146, %p147
    %p149 = scmp.ne.s32.totalorder %s137, %s138
    %p150 = scmp.eq.s32.totalorder %s23, 1
    %p151 = por %p149, %p150
    %p153 = scmp.ne.s32.totalorder %s138, %s152
    %p154 = scmp.eq.s32.totalorder %s23, 0
    %p155 = por %p153, %p154
    %s157 = sadd.s32 %s156, 1
    %p160 = scmp.eq.s32.totalorder %s17, 1
    %p161 = scmp.ne.s32.totalorder %s156, %s158
    %p162 = scmp.eq.s32.totalorder %s17, 0
    %p163 = por %p161, %p162
    %p164 = scmp.ne.s32.totalorder %s156, %s158
    %p165 = scmp.eq.s32.totalorder %s22, 1
    %p166 = por %p164, %p165
    %p167 = scmp.ne.s32.totalorder %s158, %s159
    %p168 = scmp.eq.s32.totalorder %s22, 0
    %p169 = por %p167, %p168
    %p170 = scmp.ne.s32.totalorder %s158, %s159
    %p171 = scmp.eq.s32.totalorder %s23, 1
    %p172 = por %p170, %p171
    %p174 = scmp.ne.s32.totalorder %s159, %s173
    %p175 = scmp.eq.s32.totalorder %s23, 0
    %p176 = por %p174, %p175
    %s178 = sadd.s32 %s177, 1
    %p181 = scmp.eq.s32.totalorder %s17, 1
    %p182 = scmp.ne.s32.totalorder %s177, %s179
    %p183 = scmp.eq.s32.totalorder %s17, 0
    %p184 = por %p182, %p183
    %p185 = scmp.ne.s32.totalorder %s177, %s179
    %p186 = scmp.eq.s32.totalorder %s22, 1
    %p187 = por %p185, %p186
    %p188 = scmp.ne.s32.totalorder %s179, %s180
    %p189 = scmp.eq.s32.totalorder %s22, 0
    %p190 = por %p188, %p189
    %p191 = scmp.ne.s32.totalorder %s179, %s180
    %p192 = scmp.eq.s32.totalorder %s23, 1
    %p193 = por %p191, %p192
    %p195 = scmp.ne.s32.totalorder %s180, %s194
    %p196 = scmp.eq.s32.totalorder %s23, 0
    %p197 = por %p195, %p196
    %s199 = sadd.s32 %s198, 1
    %p202 = scmp.eq.s32.totalorder %s17, 1
    %p203 = scmp.ne.s32.totalorder %s198, %s200
    %p204 = scmp.eq.s32.totalorder %s17, 0
    %p205 = por %p203, %p204
    %p206 = scmp.ne.s32.totalorder %s198, %s200
    %p207 = scmp.eq.s32.totalorder %s22, 1
    %p208 = por %p206, %p207
    %p209 = scmp.ne.s32.totalorder %s200, %s201
    %p210 = scmp.eq.s32.totalorder %s22, 0
    %p211 = por %p209, %p210
    %p212 = scmp.ne.s32.totalorder %s200, %s201
    %p213 = scmp.eq.s32.totalorder %s23, 1
    %p214 = por %p212, %p213
    %p216 = scmp.ne.s32.totalorder %s201, %s215
    %p217 = scmp.eq.s32.totalorder %s23, 0
    %p218 = por %p216, %p217
    %s220 = sadd.s32 %s219, 1
    %p223 = scmp.eq.s32.totalorder %s17, 1
    %p224 = scmp.ne.s32.totalorder %s219, %s221
    %p225 = scmp.eq.s32.totalorder %s17, 0
    %p226 = por %p224, %p225
    %p227 = scmp.ne.s32.totalorder %s219, %s221
    %p228 = scmp.eq.s32.totalorder %s22, 1
    %p229 = por %p227, %p228
    %p230 = scmp.ne.s32.totalorder %s221, %s222
    %p231 = scmp.eq.s32.totalorder %s22, 0
    %p232 = por %p230, %p231
    %p233 = scmp.ne.s32.totalorder %s221, %s222
    %p234 = scmp.eq.s32.totalorder %s23, 1
    %p235 = por %p233, %p234
    %p237 = scmp.ne.s32.totalorder %s222, %s236
    %p238 = scmp.eq.s32.totalorder %s23, 0
    %p239 = por %p237, %p238
    %s241 = sadd.s32 %s240, 1
    %p244 = scmp.eq.s32.totalorder %s17, 1
    %p245 = scmp.ne.s32.totalorder %s240, %s242
    %p246 = scmp.eq.s32.totalorder %s17, 0
    %p247 = por %p245, %p246
    %p248 = scmp.ne.s32.totalorder %s240, %s242
    %p249 = scmp.eq.s32.totalorder %s22, 1
    %p250 = por %p248, %p249
    %p251 = scmp.ne.s32.totalorder %s242, %s243
    %p252 = scmp.eq.s32.totalorder %s22, 0
    %p253 = por %p251, %p252
    %p254 = scmp.ne.s32.totalorder %s242, %s243
    %p255 = scmp.eq.s32.totalorder %s23, 1
    %p256 = por %p254, %p255
    %p258 = scmp.ne.s32.totalorder %s243, %s257
    %p259 = scmp.eq.s32.totalorder %s23, 0
    %p260 = por %p258, %p259
    %s261 = ssub.s32 %s17, %s24
    %p262 = scmp.eq.s32.totalorder %s261, 0
    %s264 = sadd.s32 %s263, 1
    %s265 = scalar_select %p262, %s263, %s264
    %p268 = pneg %p262
    %p269 = scmp.eq.s32.totalorder %s17, 1
    %p270 = por %p268, %p269
    %p271 = scmp.ne.s32.totalorder %s263, %s266
    %p272 = scmp.eq.s32.totalorder %s17, 0
    %p273 = por %p271, %p272
    %p274 = scmp.ne.s32.totalorder %s263, %s266
    %p275 = scmp.eq.s32.totalorder %s22, 1
    %p276 = por %p274, %p275
    %p277 = scmp.ne.s32.totalorder %s266, %s267
    %p278 = scmp.eq.s32.totalorder %s22, 0
    %p279 = por %p277, %p278
    %p280 = scmp.ne.s32.totalorder %s266, %s267
    %p281 = scmp.eq.s32.totalorder %s23, 1
    %p282 = por %p280, %p281
    %p284 = scmp.ne.s32.totalorder %s267, %s283
    %p285 = scmp.eq.s32.totalorder %s23, 0
    %p286 = por %p284, %p285
    %p287 = scmp.le.s32.totalorder 1, %s17
    %p288 = scmp.lt.s32.totalorder %s17, 3
    %p289 = pnand %p287, %p288
    %p290 = pneg %p289
    // Predicated region
    $region9: #{efficientnet_forward.6} parent=5 // pred_check
      _
    $region10: #{efficientnet_forward.6} parent=5 // pred_check_branch
      %292 = sbr.rel (%p289) target = $region12
    $region11: #{efficientnet_forward.6} parent=5 // pred_region
      %s293 = ssub.s32 %s17, 1
      // Predicated region
      $region13: #{efficientnet_forward.6} parent=11 // pred_check
        %p294 = pneg %p64
      $region14: #{efficientnet_forward.6} parent=11 // pred_check_branch
        %296 = sbr.rel (%p294) target = $region16
      $region15: #{efficientnet_forward.6} parent=11 // pred_region
        _
      $region16: #{efficientnet_forward.6} parent=11 // pred_fallthru
        _
      // Predicated region
      $region17: #{efficientnet_forward.6} parent=11 // pred_check
        %p297 = pneg %p85
      $region18: #{efficientnet_forward.6} parent=11 // pred_check_branch
        %299 = sbr.rel (%p297) target = $region20
      $region19: #{efficientnet_forward.6} parent=11 // pred_region
        _
      $region20: #{efficientnet_forward.6} parent=11 // pred_fallthru
        _
      // Predicated region
      $region21: #{efficientnet_forward.6} parent=11 // pred_check
        %p300 = pneg %p106
      $region22: #{efficientnet_forward.6} parent=11 // pred_check_branch
        %302 = sbr.rel (%p300) target = $region24
      $region23: #{efficientnet_forward.6} parent=11 // pred_region
        _
      $region24: #{efficientnet_forward.6} parent=11 // pred_fallthru
        _
      // Predicated region
      $region25: #{efficientnet_forward.6} parent=11 // pred_check
        %p303 = pneg %p127
      $region26: #{efficientnet_forward.6} parent=11 // pred_check_branch
        %305 = sbr.rel (%p303) target = $region28
      $region27: #{efficientnet_forward.6} parent=11 // pred_region
        _
      $region28: #{efficientnet_forward.6} parent=11 // pred_fallthru
        _
      // Predicated region
      $region29: #{efficientnet_forward.6} parent=11 // pred_check
        %p306 = pneg %p148
      $region30: #{efficientnet_forward.6} parent=11 // pred_check_branch
        %308 = sbr.rel (%p306) target = $region32
      $region31: #{efficientnet_forward.6} parent=11 // pred_region
        _
      $region32: #{efficientnet_forward.6} parent=11 // pred_fallthru
        _
      // Predicated region
      $region33: #{efficientnet_forward.6} parent=11 // pred_check
        %p309 = pneg %p169
      $region34: #{efficientnet_forward.6} parent=11 // pred_check_branch
        %311 = sbr.rel (%p309) target = $region36
      $region35: #{efficientnet_forward.6} parent=11 // pred_region
        _
      $region36: #{efficientnet_forward.6} parent=11 // pred_fallthru
        _
      // Predicated region
      $region37: #{efficientnet_forward.6} parent=11 // pred_check
        %p312 = pneg %p190
      $region38: #{efficientnet_forward.6} parent=11 // pred_check_branch
        %314 = sbr.rel (%p312) target = $region40
      $region39: #{efficientnet_forward.6} parent=11 // pred_region
        _
      $region40: #{efficientnet_forward.6} parent=11 // pred_fallthru
        _
      // Predicated region
      $region41: #{efficientnet_forward.6} parent=11 // pred_check
        %p315 = pneg %p211
      $region42: #{efficientnet_forward.6} parent=11 // pred_check_branch
        %317 = sbr.rel (%p315) target = $region44
      $region43: #{efficientnet_forward.6} parent=11 // pred_region
        _
      $region44: #{efficientnet_forward.6} parent=11 // pred_fallthru
        _
      // Predicated region
      $region45: #{efficientnet_forward.6} parent=11 // pred_check
        %p318 = pneg %p232
      $region46: #{efficientnet_forward.6} parent=11 // pred_check_branch
        %320 = sbr.rel (%p318) target = $region48
      $region47: #{efficientnet_forward.6} parent=11 // pred_region
        _
      $region48: #{efficientnet_forward.6} parent=11 // pred_fallthru
        _
      // Predicated region
      $region49: #{efficientnet_forward.6} parent=11 // pred_check
        %p321 = pneg %p253
      $region50: #{efficientnet_forward.6} parent=11 // pred_check_branch
        %323 = sbr.rel (%p321) target = $region52
      $region51: #{efficientnet_forward.6} parent=11 // pred_region
        _
      $region52: #{efficientnet_forward.6} parent=11 // pred_fallthru
        _
    $region12: #{efficientnet_forward.6} parent=5 // pred_fallthru
      _
    %p324 = scmp.lt.s32.totalorder %s17, 2
    // Predicated region
    $region53: #{efficientnet_forward.6} parent=5 // pred_check
      %p325 = pneg %p324
    $region54: #{efficientnet_forward.6} parent=5 // pred_check_branch
      %327 = sbr.rel (%p325) target = $region56
    $region55: #{efficientnet_forward.6} parent=5 // pred_region
      // Predicated region
      $region57: #{efficientnet_forward.6} parent=55 // pred_check
        %p328 = pneg %p37
      $region58: #{efficientnet_forward.6} parent=55 // pred_check_branch
        %330 = sbr.rel (%p328) target = $region60
      $region59: #{efficientnet_forward.6} parent=55 // pred_region
        %p331 = scmp.lt.s32.totalorder %s17, 1
        %s332 = scalar_select %p331, %s17, 1
        %s333 = smul.addr %s332, 8
        %s334 = smul.addr %s333, 4
        %s335 = scalar_lea.vmem %s0, %s334
      $region60: #{efficientnet_forward.6} parent=55 // pred_fallthru
        _
    $region56: #{efficientnet_forward.6} parent=5 // pred_fallthru
      _
    %p336 = scmp.le.s32.totalorder 1, %s17
    %p337 = scmp.lt.s32.totalorder %s17, 3
    %p338 = pnand %p336, %p337
    %p339 = pneg %p338
    // Predicated region
    $region61: #{efficientnet_forward.6} parent=5 // pred_check
      _
    $region62: #{efficientnet_forward.6} parent=5 // pred_check_branch
      %341 = sbr.rel (%p338) target = $region64
    $region63: #{efficientnet_forward.6} parent=5 // pred_region
      %s342 = ssub.s32 %s17, 1
      %p343 = scmp.lt.s32.totalorder %s22, 1
      %s344 = scalar_select %p343, %s22, 1
      %s345 = smul.addr %s344, 8
      %s346 = smul.addr %s345, 4
      %s347 = scalar_lea.vmem %s0, %s346
      %p348 = pneg %p43
      %p349 = pneg %p40
      %p350 = pneg %p64
      %p351 = pneg %p61
      %p352 = pneg %p85
      %p353 = pneg %p82
      %p354 = pneg %p106
      %p355 = pneg %p103
      %p356 = pneg %p127
      %p357 = pneg %p124
      %p358 = pneg %p148
      %p359 = pneg %p145
      %p360 = pneg %p169
      %p361 = pneg %p166
      %p362 = pneg %p190
      %p363 = pneg %p187
      %p364 = pneg %p211
      %p365 = pneg %p208
      %p366 = pneg %p232
      %p367 = pneg %p229
      %p368 = pneg %p253
      %p369 = pneg %p250
      %p370 = pneg %p279
      %p371 = pneg %p276
      %p372 = scmp.lt.s32.totalorder %s22, 1
      %s373 = scalar_select %p372, %s22, 1
      %s374 = smul.addr %s373, 8
      %s375 = smul.addr %s374, 4
      %s376 = scalar_lea.vmem %s11, %s375
      %p377 = scmp.lt.s32.totalorder %s22, 1
      %s378 = scalar_select %p377, %s22, 1
      %s379 = smul.addr %s378, 8
      %s380 = smul.addr %s379, 4
      %s381 = scalar_lea.vmem %s0, %s380
      %p382 = scmp.lt.s32.totalorder %s22, 1
      %s383 = scalar_select %p382, %s22, 1
      %s384 = smul.addr %s383, 8
      %s385 = smul.addr %s384, 4
      %s386 = scalar_lea.vmem %s11, %s385
      %v388 = vld [vmem:[%s381] sm:$0xf]
      %v389 = vld [vmem:[%s381 + $0x4] sm:$0xf]
      %v390 = vld [vmem:[%s381 + $0x8] sm:$0xf]
      %v391 = vld [vmem:[%s381 + $0xc] sm:$0xf]
      %v392 = vld [vmem:[%s381 + $0x10] sm:$0xf]
      %v393 = vld [vmem:[%s381 + $0x14] sm:$0xf]
      %v394 = vld [vmem:[%s381 + $0x18] sm:$0xf]
      %v395 = vld [vmem:[%s381 + $0x1c] sm:$0xf]
      %v396 = vld [vmem:[%s1] sm:$0xff]
      %v397 = vld [vmem:[%s1 + $0x8] sm:$0xff]
      %v398 = vld [vmem:[%s1 + $0x10] sm:$0xff]
      %v399 = vld [vmem:[%s1 + $0x18] sm:$0xff]
      %v400 = vld [vmem:[%s1 + $0x20] sm:$0xff]
      %v401 = vld [vmem:[%s1 + $0x28] sm:$0xff]
      %v402 = vld [vmem:[%s1 + $0x30] sm:$0xff]
      %v403 = vld [vmem:[%s1 + $0x38] sm:$0xff]
      %v404 = vld [vmem:[%s1 + $0x40] sm:$0xff]
      %v405 = vld [vmem:[%s1 + $0x48] sm:$0xff]
      %v406 = vld [vmem:[%s1 + $0x50] sm:$0xff]
      %v407 = vld [vmem:[%s1 + $0x58] sm:$0xff]
      %v408 = vld [vmem:[%s1 + $0x60] sm:$0xff]
      %v409 = vld [vmem:[%s1 + $0x68] sm:$0xff]
      %v410 = vld [vmem:[%s1 + $0x70] sm:$0xff]
      %v411 = vld [vmem:[%s1 + $0x78] sm:$0xff]
      %v412 = vld [vmem:[%s2] sm:$0x3]
      %v414 = vlaneseq
      %v415 = vshrl.u32 %v414, 7
      %v416 = vsub.s32 0, %v415
      %v417 = vrot.slane %v412, %v416
      %v418 = vlaneseq
      %v419 = vshrl.u32 %v418, 7
      %v420 = vsub.s32 1, %v419
      %v421 = vrot.slane %v412, %v420
      %v432 = vunpack.c.l.b16 %v388
      %v433 = vunpack.c.l.b16 %v389
      %v434 = vunpack.c.l.b16 %v390
      %v435 = vunpack.c.l.b16 %v391
      %v436 = vunpack.c.l.b16 %v392
      %v437 = vunpack.c.l.b16 %v393
      %v438 = vunpack.c.l.b16 %v394
      %v439 = vunpack.c.l.b16 %v395
      %v440 = vpack.c.b16 %v433, %v432
      %v441 = vpack.c.b16 %v435, %v434
      %v442 = vpack.c.b16 %v437, %v436
      %v443 = vpack.c.b16 %v439, %v438
      %v464 = vunpack.c.l.b16 %v396
      %v465 = vunpack.c.h.b16 %v396
      %v466 = vunpack.c.l.b16 %v397
      %v467 = vunpack.c.h.b16 %v397
      %v468 = vunpack.c.l.b16 %v398
      %v469 = vunpack.c.h.b16 %v398
      %v470 = vunpack.c.l.b16 %v399
      %v471 = vunpack.c.h.b16 %v399
      %v472 = vunpack.c.l.b16 %v400
      %v473 = vunpack.c.h.b16 %v400
      %v474 = vunpack.c.l.b16 %v401
      %v475 = vunpack.c.h.b16 %v401
      %v476 = vunpack.c.l.b16 %v402
      %v477 = vunpack.c.h.b16 %v402
      %v478 = vunpack.c.l.b16 %v403
      %v479 = vunpack.c.h.b16 %v403
      %v480 = vunpack.c.l.b16 %v404
      %v481 = vunpack.c.h.b16 %v404
      %v482 = vunpack.c.l.b16 %v405
      %v483 = vunpack.c.h.b16 %v405
      %v484 = vunpack.c.l.b16 %v406
      %v485 = vunpack.c.h.b16 %v406
      %v486 = vunpack.c.l.b16 %v407
      %v487 = vunpack.c.h.b16 %v407
      %v488 = vunpack.c.l.b16 %v408
      %v489 = vunpack.c.h.b16 %v408
      %v490 = vunpack.c.l.b16 %v409
      %v491 = vunpack.c.h.b16 %v409
      %v492 = vunpack.c.l.b16 %v410
      %v493 = vunpack.c.h.b16 %v410
      %v494 = vunpack.c.l.b16 %v411
      %v495 = vunpack.c.h.b16 %v411
      %v496 = vpack.c.b16 %v466, %v464
      %v497 = vpack.c.b16 %v467, %v465
      %v498 = vpack.c.b16 %v470, %v468
      %v499 = vpack.c.b16 %v471, %v469
      %v500 = vpack.c.b16 %v474, %v472
      %v501 = vpack.c.b16 %v475, %v473
      %v502 = vpack.c.b16 %v478, %v476
      %v503 = vpack.c.b16 %v479, %v477
      %v504 = vpack.c.b16 %v482, %v480
      %v505 = vpack.c.b16 %v483, %v481
      %v506 = vpack.c.b16 %v486, %v484
      %v507 = vpack.c.b16 %v487, %v485
      %v508 = vpack.c.b16 %v490, %v488
      %v509 = vpack.c.b16 %v491, %v489
      %v510 = vpack.c.b16 %v494, %v492
      %v511 = vpack.c.b16 %v495, %v493
      %528 = vmatprep.subr.bf16.mxu0 %v497
      %529 = vmatpush1.bf16.msra.mxu0 %v496
      %530 = vmatprep.subr.bf16.mxu0 %v499
      %531 = vmatpush1.bf16.msra.mxu0 %v498
      %532 = vmatprep.subr.bf16.mxu0 %v501
      %533 = vmatpush1.bf16.msra.mxu0 %v500
      %534 = vmatprep.subr.bf16.mxu0 %v503
      %535 = vmatpush1.bf16.msra.mxu0 %v502
      %536 = vmatprep.subr.bf16.mxu0 %v505
      %537 = vmatpush1.bf16.msra.mxu0 %v504
      %538 = vmatprep.subr.bf16.mxu0 %v507
      %539 = vmatpush1.bf16.msra.mxu0 %v506
      %540 = vmatprep.subr.bf16.mxu0 %v509
      %541 = vmatpush1.bf16.msra.mxu0 %v508
      %542 = vmatprep.subr.bf16.mxu0 %v511
      %543 = vmatpush1.bf16.msra.mxu0 %v510
      %544 = vmatprep.subr.bf16.mxu0 0
      %545 = vmatpush1.bf16.msra.mxu0 0
      %546 = vmatprep.subr.bf16.mxu0 0
      %547 = vmatpush1.bf16.msra.mxu0 0
      %548 = vmatprep.subr.bf16.mxu0 0
      %549 = vmatpush1.bf16.msra.mxu0 0
      %550 = vmatprep.subr.bf16.mxu0 0
      %551 = vmatpush1.bf16.msra.mxu0 0
      %552 = vmatprep.subr.bf16.mxu0 0
      %553 = vmatpush1.bf16.msra.mxu0 0
      %554 = vmatprep.subr.bf16.mxu0 0
      %555 = vmatpush1.bf16.msra.mxu0 0
      %556 = vmatprep.subr.bf16.mxu0 0
      %557 = vmatpush1.bf16.msra.mxu0 0
      %558 = vmatprep.subr.bf16.mxu0 0
      %559 = vmatpush1.bf16.msra.mxu0 0
      %560 = vmatprep.mubr.bf16.mxu0 0
      %561 = vmatmul.mubr.bf16.gmra.mrb[0].mxu0 %v440
      %v562 = vpop.f32.mrb[0].mxu0
      %v563 = vadd.f32 %v417, %v562
      %v564 = vpop.f32.mrb[0].mxu0
      %v565 = vadd.f32 %v421, %v564
      %v566 = vpop.f32.mrb[0].mxu0
      %v567 = vadd.f32 %v417, %v566
      %v568 = vpop.f32.mrb[0].mxu0
      %v569 = vadd.f32 %v421, %v568
      %570 = vmatprep.mubr.bf16.mxu0 0
      %571 = vmatmul.mubr.bf16.gmra.mrb[0].mxu0 %v441
      %v572 = vpop.f32.mrb[0].mxu0
      %v573 = vadd.f32 %v417, %v572
      %v574 = vpop.f32.mrb[0].mxu0
      %v575 = vadd.f32 %v421, %v574
      %v576 = vpop.f32.mrb[0].mxu0
      %v577 = vadd.f32 %v417, %v576
      %v578 = vpop.f32.mrb[0].mxu0
      %v579 = vadd.f32 %v421, %v578
      %580 = vmatprep.mubr.bf16.mxu0 0
      %581 = vmatmul.mubr.bf16.gmra.mrb[0].mxu0 %v442
      %v582 = vpop.f32.mrb[0].mxu0
      %v583 = vadd.f32 %v417, %v582
      %v584 = vpop.f32.mrb[0].mxu0
      %v585 = vadd.f32 %v421, %v584
      %v586 = vpop.f32.mrb[0].mxu0
      %v587 = vadd.f32 %v417, %v586
      %v588 = vpop.f32.mrb[0].mxu0
      %v589 = vadd.f32 %v421, %v588
      %590 = vmatprep.mubr.bf16.mxu0 0
      %591 = vmatmul.mubr.bf16.gmra.mrb[0].mxu0 %v443
      %v592 = vpop.f32.mrb[0].mxu0
      %v593 = vadd.f32 %v417, %v592
      %v594 = vpop.f32.mrb[0].mxu0
      %v595 = vadd.f32 %v421, %v594
      %v596 = vpop.f32.mrb[0].mxu0
      %v597 = vadd.f32 %v417, %v596
      %v598 = vpop.f32.mrb[0].mxu0
      %v599 = vadd.f32 %v421, %v598
      %600 = vdwg.mxu0
      %v601 = vxor.u32 %v563, 2147483648
      %v602 = vxor.u32 %v565, 2147483648
      %v603 = vxor.u32 %v567, 2147483648
      %v604 = vxor.u32 %v569, 2147483648
      %v605 = vxor.u32 %v573, 2147483648
      %v606 = vxor.u32 %v575, 2147483648
      %v607 = vxor.u32 %v577, 2147483648
      %v608 = vxor.u32 %v579, 2147483648
      %v609 = vxor.u32 %v583, 2147483648
      %v610 = vxor.u32 %v585, 2147483648
      %v611 = vxor.u32 %v587, 2147483648
      %v612 = vxor.u32 %v589, 2147483648
      %v613 = vxor.u32 %v593, 2147483648
      %v614 = vxor.u32 %v595, 2147483648
      %v615 = vxor.u32 %v597, 2147483648
      %v616 = vxor.u32 %v599, 2147483648
      %v617 = vmul.f32 %v601, 1.442695
      %v618 = vpow.pop %v617
      %v619 = vmul.f32 %v602, 1.442695
      %v620 = vpow.pop %v619
      %v621 = vmul.f32 %v603, 1.442695
      %v622 = vpow.pop %v621
      %v623 = vmul.f32 %v604, 1.442695
      %v624 = vpow.pop %v623
      %v625 = vmul.f32 %v605, 1.442695
      %v626 = vpow.pop %v625
      %v627 = vmul.f32 %v606, 1.442695
      %v628 = vpow.pop %v627
      %v629 = vmul.f32 %v607, 1.442695
      %v630 = vpow.pop %v629
      %v631 = vmul.f32 %v608, 1.442695
      %v632 = vpow.pop %v631
      %v633 = vmul.f32 %v609, 1.442695
      %v634 = vpow.pop %v633
      %v635 = vmul.f32 %v610, 1.442695
      %v636 = vpow.pop %v635
      %v637 = vmul.f32 %v611, 1.442695
      %v638 = vpow.pop %v637
      %v639 = vmul.f32 %v612, 1.442695
      %v640 = vpow.pop %v639
      %v641 = vmul.f32 %v613, 1.442695
      %v642 = vpow.pop %v641
      %v643 = vmul.f32 %v614, 1.442695
      %v644 = vpow.pop %v643
      %v645 = vmul.f32 %v615, 1.442695
      %v646 = vpow.pop %v645
      %v647 = vmul.f32 %v616, 1.442695
      %v648 = vpow.pop %v647
      %v649 = vadd.f32 %v618, 1.0
      %v650 = vadd.f32 %v620, 1.0
      %v651 = vadd.f32 %v622, 1.0
      %v652 = vadd.f32 %v624, 1.0
      %v653 = vadd.f32 %v626, 1.0
      %v654 = vadd.f32 %v628, 1.0
      %v655 = vadd.f32 %v630, 1.0
      %v656 = vadd.f32 %v632, 1.0
      %v657 = vadd.f32 %v634, 1.0
      %v658 = vadd.f32 %v636, 1.0
      %v659 = vadd.f32 %v638, 1.0
      %v660 = vadd.f32 %v640, 1.0
      %v661 = vadd.f32 %v642, 1.0
      %v662 = vadd.f32 %v644, 1.0
      %v663 = vadd.f32 %v646, 1.0
      %v664 = vadd.f32 %v648, 1.0
      %v665 = vrcp.pop %v649
      %v666 = vmul.f32 1.0, %v665
      %v667 = vrcp.pop %v650
      %v668 = vmul.f32 1.0, %v667
      %v669 = vrcp.pop %v651
      %v670 = vmul.f32 1.0, %v669
      %v671 = vrcp.pop %v652
      %v672 = vmul.f32 1.0, %v671
      %v673 = vrcp.pop %v653
      %v674 = vmul.f32 1.0, %v673
      %v675 = vrcp.pop %v654
      %v676 = vmul.f32 1.0, %v675
      %v677 = vrcp.pop %v655
      %v678 = vmul.f32 1.0, %v677
      %v679 = vrcp.pop %v656
      %v680 = vmul.f32 1.0, %v679
      %v681 = vrcp.pop %v657
      %v682 = vmul.f32 1.0, %v681
      %v683 = vrcp.pop %v658
      %v684 = vmul.f32 1.0, %v683
      %v685 = vrcp.pop %v659
      %v686 = vmul.f32 1.0, %v685
      %v687 = vrcp.pop %v660
      %v688 = vmul.f32 1.0, %v687
      %v689 = vrcp.pop %v661
      %v690 = vmul.f32 1.0, %v689
      %v691 = vrcp.pop %v662
      %v692 = vmul.f32 1.0, %v691
      %v693 = vrcp.pop %v663
      %v694 = vmul.f32 1.0, %v693
      %v695 = vrcp.pop %v664
      %v696 = vmul.f32 1.0, %v695
      %v697 = vmul.f32 %v563, %v666
      %v698 = vmul.f32 %v565, %v668
      %v699 = vmul.f32 %v567, %v670
      %v700 = vmul.f32 %v569, %v672
      %v701 = vmul.f32 %v573, %v674
      %v702 = vmul.f32 %v575, %v676
      %v703 = vmul.f32 %v577, %v678
      %v704 = vmul.f32 %v579, %v680
      %v705 = vmul.f32 %v583, %v682
      %v706 = vmul.f32 %v585, %v684
      %v707 = vmul.f32 %v587, %v686
      %v708 = vmul.f32 %v589, %v688
      %v709 = vmul.f32 %v593, %v690
      %v710 = vmul.f32 %v595, %v692
      %v711 = vmul.f32 %v597, %v694
      %v712 = vmul.f32 %v599, %v696
      %713 = vst [vmem:[#allocation2] sm:$0xff] 0.0
      %714 = vst [vmem:[#allocation2 + $0x8] sm:$0xff] 0.0
      %715 = vst [vmem:[#allocation2 + $0x10] sm:$0x3] 0.0
      %716 = vst [vmem:[#allocation2 + $0x18] sm:$0x3] 0.0
      %717 = vst [vmem:[#allocation2 + $0x20] sm:$0xff] 0.0
      %718 = vst [vmem:[#allocation2 + $0x28] sm:$0xff] 0.0
      %719 = vst [vmem:[#allocation2 + $0x30] sm:$0x3] 0.0
      %720 = vst [vmem:[#allocation2 + $0x38] sm:$0x3] 0.0
      %721 = vst [vmem:[#allocation2 + $0x40] sm:$0xff] 0.0
      %722 = vst [vmem:[#allocation2 + $0x48] sm:$0xff] 0.0
      %723 = vst [vmem:[#allocation2 + $0x50] sm:$0x3] 0.0
      %724 = vst [vmem:[#allocation2 + $0x58] sm:$0x3] 0.0
      %725 = vst [vmem:[#allocation2 + $0x60] sm:$0xff] 0.0
      %726 = vst [vmem:[#allocation2 + $0x68] sm:$0xff] 0.0
      %727 = vst [vmem:[#allocation2 + $0x70] sm:$0x3] 0.0
      %728 = vst [vmem:[#allocation2 + $0x78] sm:$0x3] 0.0
      %729 = vst [vmem:[#allocation2 + $0x80] sm:$0xff] 0.0
      %730 = vst [vmem:[#allocation2 + $0x88] sm:$0xff] 0.0
      %731 = vst [vmem:[#allocation2 + $0x90] sm:$0x3] 0.0
      %732 = vst [vmem:[#allocation2 + $0x98] sm:$0x3] 0.0
      %733 = vst [vmem:[#allocation2 + $0xa0] sm:$0xff] 0.0
      %734 = vst [vmem:[#allocation2 + $0xa8] sm:$0xff] 0.0
      %735 = vst [vmem:[#allocation2 + $0xb0] sm:$0x3] 0.0
      %736 = vst [vmem:[#allocation2 + $0xb8] sm:$0x3] 0.0
      %737 = vst [vmem:[#allocation2 + $0xc0] sm:$0xff] 0.0
      %738 = vst [vmem:[#allocation2 + $0xc8] sm:$0xff] 0.0
      %739 = vst [vmem:[#allocation2 + $0xd0] sm:$0x3] 0.0
      %740 = vst [vmem:[#allocation2 + $0xd8] sm:$0x3] 0.0
      %741 = vst [vmem:[#allocation2 + $0xe0] sm:$0xff] 0.0
      %742 = vst [vmem:[#allocation2 + $0xe8] sm:$0xff] 0.0
      %743 = vst [vmem:[#allocation2 + $0xf0] sm:$0x3] 0.0
      %744 = vst [vmem:[#allocation2 + $0xf8] sm:$0x3] 0.0
      %745 = vst [vmem:[#allocation2 + $0x100] sm:$0xff] 0.0
      %746 = vst [vmem:[#allocation2 + $0x108] sm:$0xff] 0.0
      %747 = vst [vmem:[#allocation2 + $0x110] sm:$0x3] 0.0
      %748 = vst [vmem:[#allocation2 + $0x118] sm:$0x3] 0.0
      %749 = vst [vmem:[#allocation2 + $0x120] sm:$0xff] 0.0
      %750 = vst [vmem:[#allocation2 + $0x128] sm:$0xff] 0.0
      %751 = vst [vmem:[#allocation2 + $0x130] sm:$0x3] 0.0
      %752 = vst [vmem:[#allocation2 + $0x138] sm:$0x3] 0.0
      %v769 = vrot.slane %v697, 7
      %v770 = vrot.slane %v698, 7
      %v771 = vrot.slane %v699, 7
      %v772 = vrot.slane %v700, 7
      %v773 = vrot.slane %v701, 7
      %v774 = vrot.slane %v702, 7
      %v775 = vrot.slane %v703, 7
      %v776 = vrot.slane %v704, 7
      %v777 = vrot.slane %v705, 7
      %v778 = vrot.slane %v706, 7
      %v779 = vrot.slane %v707, 7
      %v780 = vrot.slane %v708, 7
      %v781 = vrot.slane %v709, 7
      %v782 = vrot.slane %v710, 7
      %v783 = vrot.slane %v711, 7
      %v784 = vrot.slane %v712, 7
      %s801 = scalar_lea.vmem [#allocation2], 32
      %802 = vst [vmem:[%s801] sm:$0xfe] %v769
      %803 = vst [vmem:[%s801 + $0x8] sm:$0xfe] %v770
      %804 = vst [vmem:[%s801 + $0x10] sm:$0x1] %v769
      %805 = vst [vmem:[%s801 + $0x18] sm:$0x1] %v770
      %806 = vst [vmem:[%s801 + $0x20] sm:$0xfe] %v771
      %807 = vst [vmem:[%s801 + $0x28] sm:$0xfe] %v772
      %808 = vst [vmem:[%s801 + $0x30] sm:$0x1] %v771
      %809 = vst [vmem:[%s801 + $0x38] sm:$0x1] %v772
      %810 = vst [vmem:[%s801 + $0x40] sm:$0xfe] %v773
      %811 = vst [vmem:[%s801 + $0x48] sm:$0xfe] %v774
      %812 = vst [vmem:[%s801 + $0x50] sm:$0x1] %v773
      %813 = vst [vmem:[%s801 + $0x58] sm:$0x1] %v774
      %814 = vst [vmem:[%s801 + $0x60] sm:$0xfe] %v775
      %815 = vst [vmem:[%s801 + $0x68] sm:$0xfe] %v776
      %816 = vst [vmem:[%s801 + $0x70] sm:$0x1] %v775
      %817 = vst [vmem:[%s801 + $0x78] sm:$0x1] %v776
      %818 = vst [vmem:[%s801 + $0x80] sm:$0xfe] %v777
      %819 = vst [vmem:[%s801 + $0x88] sm:$0xfe] %v778
      %820 = vst [vmem:[%s801 + $0x90] sm:$0x1] %v777
      %821 = vst [vmem:[%s801 + $0x98] sm:$0x1] %v778
      %822 = vst [vmem:[%s801 + $0xa0] sm:$0xfe] %v779
      %823 = vst [vmem:[%s801 + $0xa8] sm:$0xfe] %v780
      %824 = vst [vmem:[%s801 + $0xb0] sm:$0x1] %v779
      %825 = vst [vmem:[%s801 + $0xb8] sm:$0x1] %v780
      %826 = vst [vmem:[%s801 + $0xc0] sm:$0xfe] %v781
      %827 = vst [vmem:[%s801 + $0xc8] sm:$0xfe] %v782
      %828 = vst [vmem:[%s801 + $0xd0] sm:$0x1] %v781
      %829 = vst [vmem:[%s801 + $0xd8] sm:$0x1] %v782
      %830 = vst [vmem:[%s801 + $0xe0] sm:$0xfe] %v783
      %831 = vst [vmem:[%s801 + $0xe8] sm:$0xfe] %v784
      %832 = vst [vmem:[%s801 + $0xf0] sm:$0x1] %v783
      %833 = vst [vmem:[%s801 + $0xf8] sm:$0x1] %v784
      %v834 = vld [vmem:[%s3] sm:$0xff]
      %v835 = vld [vmem:[%s3 + $0x8] sm:$0xff]
      %v836 = vld [vmem:[%s3 + $0x10] sm:$0x1]
      %v837 = vld [vmem:[%s3 + $0x18] sm:$0x1]
      %v838 = vld [vmem:[#allocation2] sm:$0xff]
      %v839 = vld [vmem:[#allocation2 + $0x8] sm:$0xff]
      %v840 = vld [vmem:[#allocation2 + $0x20] sm:$0xff]
      %v841 = vld [vmem:[#allocation2 + $0x28] sm:$0xff]
      %v842 = vld [vmem:[#allocation2 + $0x40] sm:$0xff]
      %v843 = vld [vmem:[#allocation2 + $0x48] sm:$0xff]
      %v844 = vld [vmem:[#allocation2 + $0x60] sm:$0xff]
      %v845 = vld [vmem:[#allocation2 + $0x68] sm:$0xff]
      %v846 = vld [vmem:[#allocation2 + $0x80] sm:$0xff]
      %v847 = vld [vmem:[#allocation2 + $0x88] sm:$0xff]
      %v848 = vld [vmem:[#allocation2 + $0xa0] sm:$0xff]
      %v849 = vld [vmem:[#allocation2 + $0xa8] sm:$0xff]
      %v850 = vld [vmem:[#allocation2 + $0xc0] sm:$0xff]
      %v851 = vld [vmem:[#allocation2 + $0xc8] sm:$0xff]
      %v852 = vld [vmem:[#allocation2 + $0xe0] sm:$0xff]
      %v853 = vld [vmem:[#allocation2 + $0xe8] sm:$0xff]
      %v854 = vlaneseq
      %v855 = vshrl.u32 %v854, 7
      %v856 = vsub.s32 0, %v855
      %v857 = vrot.slane %v834, %v856
      %v858 = vlaneseq
      %v859 = vshrl.u32 %v858, 7
      %v860 = vsub.s32 0, %v859
      %v861 = vrot.slane %v835, %v860
      %v862 = vmul.f32 %v838, %v857
      %v863 = vmul.f32 %v839, %v861
      %v864 = vmul.f32 %v840, %v857
      %v865 = vmul.f32 %v841, %v861
      %v866 = vmul.f32 %v842, %v857
      %v867 = vmul.f32 %v843, %v861
      %v868 = vmul.f32 %v844, %v857
      %v869 = vmul.f32 %v845, %v861
      %v870 = vmul.f32 %v846, %v857
      %v871 = vmul.f32 %v847, %v861
      %v872 = vmul.f32 %v848, %v857
      %v873 = vmul.f32 %v849, %v861
      %v874 = vmul.f32 %v850, %v857
      %v875 = vmul.f32 %v851, %v861
      %v876 = vmul.f32 %v852, %v857
      %v877 = vmul.f32 %v853, %v861
      %v878 = vadd.f32 %v862, 0.0
      %v879 = vadd.f32 %v863, 0.0
      %v880 = vadd.f32 %v864, 0.0
      %v881 = vadd.f32 %v865, 0.0
      %v882 = vadd.f32 %v866, 0.0
      %v883 = vadd.f32 %v867, 0.0
      %v884 = vadd.f32 %v868, 0.0
      %v885 = vadd.f32 %v869, 0.0
      %v886 = vadd.f32 %v870, 0.0
      %v887 = vadd.f32 %v871, 0.0
      %v888 = vadd.f32 %v872, 0.0
      %v889 = vadd.f32 %v873, 0.0
      %v890 = vadd.f32 %v874, 0.0
      %v891 = vadd.f32 %v875, 0.0
      %v892 = vadd.f32 %v876, 0.0
      %v893 = vadd.f32 %v877, 0.0
      %v894 = vld [vmem:[#allocation2] sm:$0xfe]
      %v895 = vld [vmem:[#allocation2 + $0x8] sm:$0xfe]
      %v896 = vld [vmem:[#allocation2 + $0x10] sm:$0x1]
      %v897 = vld [vmem:[#allocation2 + $0x18] sm:$0x1]
      %v898 = vld [vmem:[#allocation2 + $0x20] sm:$0xfe]
      %v899 = vld [vmem:[#allocation2 + $0x28] sm:$0xfe]
      %v900 = vld [vmem:[#allocation2 + $0x30] sm:$0x1]
      %v901 = vld [vmem:[#allocation2 + $0x38] sm:$0x1]
      %v902 = vld [vmem:[#allocation2 + $0x40] sm:$0xfe]
      %v903 = vld [vmem:[#allocation2 + $0x48] sm:$0xfe]
      %v904 = vld [vmem:[#allocation2 + $0x50] sm:$0x1]
      %v905 = vld [vmem:[#allocation2 + $0x58] sm:$0x1]
      %v906 = vld [vmem:[#allocation2 + $0x60] sm:$0xfe]
      %v907 = vld [vmem:[#allocation2 + $0x68] sm:$0xfe]
      %v908 = vld [vmem:[#allocation2 + $0x70] sm:$0x1]
      %v909 = vld [vmem:[#allocation2 + $0x78] sm:$0x1]
      %v910 = vld [vmem:[#allocation2 + $0x80] sm:$0xfe]
      %v911 = vld [vmem:[#allocation2 + $0x88] sm:$0xfe]
      %v912 = vld [vmem:[#allocation2 + $0x90] sm:$0x1]
      %v913 = vld [vmem:[#allocation2 + $0x98] sm:$0x1]
      %v914 = vld [vmem:[#allocation2 + $0xa0] sm:$0xfe]
      %v915 = vld [vmem:[#allocation2 + $0xa8] sm:$0xfe]
      %v916 = vld [vmem:[#allocation2 + $0xb0] sm:$0x1]
      %v917 = vld [vmem:[#allocation2 + $0xb8] sm:$0x1]
      %v918 = vld [vmem:[#allocation2 + $0xc0] sm:$0xfe]
      %v919 = vld [vmem:[#allocation2 + $0xc8] sm:$0xfe]
      %v920 = vld [vmem:[#allocation2 + $0xd0] sm:$0x1]
      %v921 = vld [vmem:[#allocation2 + $0xd8] sm:$0x1]
      %v922 = vld [vmem:[#allocation2 + $0xe0] sm:$0xfe]
      %v923 = vld [vmem:[#allocation2 + $0xe8] sm:$0xfe]
      %v924 = vld [vmem:[#allocation2 + $0xf0] sm:$0x1]
      %v925 = vld [vmem:[#allocation2 + $0xf8] sm:$0x1]
      %v926 = vlaneseq
      %v927 = vshrl.u32 %v926, 7
      %v928 = vsub.s32 1, %v927
      %v929 = vrot.slane %v834, %v928
      %v930 = vlaneseq
      %v931 = vshrl.u32 %v930, 7
      %v932 = vsub.s32 1, %v931
      %v933 = vrot.slane %v835, %v932
      %v934 = vmul.f32 %v894, %v929
      %v935 = vmul.f32 %v895, %v933
      %v936 = vmul.f32 %v896, %v929
      %v937 = vmul.f32 %v897, %v933
      %v938 = vmul.f32 %v898, %v929
      %v939 = vmul.f32 %v899, %v933
      %v940 = vmul.f32 %v900, %v929
      %v941 = vmul.f32 %v901, %v933
      %v942 = vmul.f32 %v902, %v929
      %v943 = vmul.f32 %v903, %v933
      %v944 = vmul.f32 %v904, %v929
      %v945 = vmul.f32 %v905, %v933
      %v946 = vmul.f32 %v906, %v929
      %v947 = vmul.f32 %v907, %v933
      %v948 = vmul.f32 %v908, %v929
      %v949 = vmul.f32 %v909, %v933
      %v950 = vmul.f32 %v910, %v929
      %v951 = vmul.f32 %v911, %v933
      %v952 = vmul.f32 %v912, %v929
      %v953 = vmul.f32 %v913, %v933
      %v954 = vmul.f32 %v914, %v929
      %v955 = vmul.f32 %v915, %v933
      %v956 = vmul.f32 %v916, %v929
      %v957 = vmul.f32 %v917, %v933
      %v958 = vmul.f32 %v918, %v929
      %v959 = vmul.f32 %v919, %v933
      %v960 = vmul.f32 %v920, %v929
      %v961 = vmul.f32 %v921, %v933
      %v962 = vmul.f32 %v922, %v929
      %v963 = vmul.f32 %v923, %v933
      %v964 = vmul.f32 %v924, %v929
      %v965 = vmul.f32 %v925, %v933
      %vm998 = vcmask 1046528
      %v999 = vrot.slane %v934, 1
      %v1000 = vrot.slane %v936, 1
      %v1001 = vsel %vm998, %v999, %v1000
      %v1002 = vrot.slane %v935, 1
      %v1003 = vrot.slane %v937, 1
      %v1004 = vsel %vm998, %v1002, %v1003
      %v1005 = vrot.slane %v938, 1
      %v1006 = vrot.slane %v940, 1
      %v1007 = vsel %vm998, %v1005, %v1006
      %v1008 = vrot.slane %v939, 1
      %v1009 = vrot.slane %v941, 1
      %v1010 = vsel %vm998, %v1008, %v1009
      %v1011 = vrot.slane %v942, 1
      %v1012 = vrot.slane %v944, 1
      %v1013 = vsel %vm998, %v1011, %v1012
      %v1014 = vrot.slane %v943, 1
      %v1015 = vrot.slane %v945, 1
      %v1016 = vsel %vm998, %v1014, %v1015
      %v1017 = vrot.slane %v946, 1
      %v1018 = vrot.slane %v948, 1
      %v1019 = vsel %vm998, %v1017, %v1018
      %v1020 = vrot.slane %v947, 1
      %v1021 = vrot.slane %v949, 1
      %v1022 = vsel %vm998, %v1020, %v1021
      %v1023 = vrot.slane %v950, 1
      %v1024 = vrot.slane %v952, 1
      %v1025 = vsel %vm998, %v1023, %v1024
      %v1026 = vrot.slane %v951, 1
      %v1027 = vrot.slane %v953, 1
      %v1028 = vsel %vm998, %v1026, %v1027
      %v1029 = vrot.slane %v954, 1
      %v1030 = vrot.slane %v956, 1
      %v1031 = vsel %vm998, %v1029, %v1030
      %v1032 = vrot.slane %v955, 1
      %v1033 = vrot.slane %v957, 1
      %v1034 = vsel %vm998, %v1032, %v1033
      %v1035 = vrot.slane %v958, 1
      %v1036 = vrot.slane %v960, 1
      %v1037 = vsel %vm998, %v1035, %v1036
      %v1038 = vrot.slane %v959, 1
      %v1039 = vrot.slane %v961, 1
      %v1040 = vsel %vm998, %v1038, %v1039
      %v1041 = vrot.slane %v962, 1
      %v1042 = vrot.slane %v964, 1
      %v1043 = vsel %vm998, %v1041, %v1042
      %v1044 = vrot.slane %v963, 1
      %v1045 = vrot.slane %v965, 1
      %v1046 = vsel %vm998, %v1044, %v1045
      %v1063 = vadd.f32 %v878, %v1001
      %v1064 = vadd.f32 %v879, %v1004
      %v1065 = vadd.f32 %v880, %v1007
      %v1066 = vadd.f32 %v881, %v1010
      %v1067 = vadd.f32 %v882, %v1013
      %v1068 = vadd.f32 %v883, %v1016
      %v1069 = vadd.f32 %v884, %v1019
      %v1070 = vadd.f32 %v885, %v1022
      %v1071 = vadd.f32 %v886, %v1025
      %v1072 = vadd.f32 %v887, %v1028
      %v1073 = vadd.f32 %v888, %v1031
      %v1074 = vadd.f32 %v889, %v1034
      %v1075 = vadd.f32 %v890, %v1037
      %v1076 = vadd.f32 %v891, %v1040
      %v1077 = vadd.f32 %v892, %v1043
      %v1078 = vadd.f32 %v893, %v1046
      %v1079 = vld [vmem:[#allocation2] sm:$0xfc]
      %v1080 = vld [vmem:[#allocation2 + $0x8] sm:$0xfc]
      %v1081 = vld [vmem:[#allocation2 + $0x10] sm:$0x3]
      %v1082 = vld [vmem:[#allocation2 + $0x18] sm:$0x3]
      %v1083 = vld [vmem:[#allocation2 + $0x20] sm:$0xfc]
      %v1084 = vld [vmem:[#allocation2 + $0x28] sm:$0xfc]
      %v1085 = vld [vmem:[#allocation2 + $0x30] sm:$0x3]
      %v1086 = vld [vmem:[#allocation2 + $0x38] sm:$0x3]
      %v1087 = vld [vmem:[#allocation2 + $0x40] sm:$0xfc]
      %v1088 = vld [vmem:[#allocation2 + $0x48] sm:$0xfc]
      %v1089 = vld [vmem:[#allocation2 + $0x50] sm:$0x3]
      %v1090 = vld [vmem:[#allocation2 + $0x58] sm:$0x3]
      %v1091 = vld [vmem:[#allocation2 + $0x60] sm:$0xfc]
      %v1092 = vld [vmem:[#allocation2 + $0x68] sm:$0xfc]
      %v1093 = vld [vmem:[#allocation2 + $0x70] sm:$0x3]
      %v1094 = vld [vmem:[#allocation2 + $0x78] sm:$0x3]
      %v1095 = vld [vmem:[#allocation2 + $0x80] sm:$0xfc]
      %v1096 = vld [vmem:[#allocation2 + $0x88] sm:$0xfc]
      %v1097 = vld [vmem:[#allocation2 + $0x90] sm:$0x3]
      %v1098 = vld [vmem:[#allocation2 + $0x98] sm:$0x3]
      %v1099 = vld [vmem:[#allocation2 + $0xa0] sm:$0xfc]
      %v1100 = vld [vmem:[#allocation2 + $0xa8] sm:$0xfc]
      %v1101 = vld [vmem:[#allocation2 + $0xb0] sm:$0x3]
      %v1102 = vld [vmem:[#allocation2 + $0xb8] sm:$0x3]
      %v1103 = vld [vmem:[#allocation2 + $0xc0] sm:$0xfc]
      %v1104 = vld [vmem:[#allocation2 + $0xc8] sm:$0xfc]
      %v1105 = vld [vmem:[#allocation2 + $0xd0] sm:$0x3]
      %v1106 = vld [vmem:[#allocation2 + $0xd8] sm:$0x3]
      %v1107 = vld [vmem:[#allocation2 + $0xe0] sm:$0xfc]
      %v1108 = vld [vmem:[#allocation2 + $0xe8] sm:$0xfc]
      %v1109 = vld [vmem:[#allocation2 + $0xf0] sm:$0x3]
      %v1110 = vld [vmem:[#allocation2 + $0xf8] sm:$0x3]
      %v1111 = vlaneseq
      %v1112 = vshrl.u32 %v1111, 7
      %v1113 = vsub.s32 2, %v1112
      %v1114 = vrot.slane %v834, %v1113
      %v1115 = vlaneseq
      %v1116 = vshrl.u32 %v1115, 7
      %v1117 = vsub.s32 2, %v1116
      %v1118 = vrot.slane %v835, %v1117
      %v1119 = vmul.f32 %v1079, %v1114
      %v1120 = vmul.f32 %v1080, %v1118
      %v1121 = vmul.f32 %v1081, %v1114
      %v1122 = vmul.f32 %v1082, %v1118
      %v1123 = vmul.f32 %v1083, %v1114
      %v1124 = vmul.f32 %v1084, %v1118
      %v1125 = vmul.f32 %v1085, %v1114
      %v1126 = vmul.f32 %v1086, %v1118
      %v1127 = vmul.f32 %v1087, %v1114
      %v1128 = vmul.f32 %v1088, %v1118
      %v1129 = vmul.f32 %v1089, %v1114
      %v1130 = vmul.f32 %v1090, %v1118
      %v1131 = vmul.f32 %v1091, %v1114
      %v1132 = vmul.f32 %v1092, %v1118
      %v1133 = vmul.f32 %v1093, %v1114
      %v1134 = vmul.f32 %v1094, %v1118
      %v1135 = vmul.f32 %v1095, %v1114
      %v1136 = vmul.f32 %v1096, %v1118
      %v1137 = vmul.f32 %v1097, %v1114
      %v1138 = vmul.f32 %v1098, %v1118
      %v1139 = vmul.f32 %v1099, %v1114
      %v1140 = vmul.f32 %v1100, %v1118
      %v1141 = vmul.f32 %v1101, %v1114
      %v1142 = vmul.f32 %v1102, %v1118
      %v1143 = vmul.f32 %v1103, %v1114
      %v1144 = vmul.f32 %v1104, %v1118
      %v1145 = vmul.f32 %v1105, %v1114
      %v1146 = vmul.f32 %v1106, %v1118
      %v1147 = vmul.f32 %v1107, %v1114
      %v1148 = vmul.f32 %v1108, %v1118
      %v1149 = vmul.f32 %v1109, %v1114
      %v1150 = vmul.f32 %v1110, %v1118
      %vm1183 = vcmask 1045504
      %v1184 = vrot.slane %v1119, 2
      %v1185 = vrot.slane %v1121, 2
      %v1186 = vsel %vm1183, %v1184, %v1185
      %v1187 = vrot.slane %v1120, 2
      %v1188 = vrot.slane %v1122, 2
      %v1189 = vsel %vm1183, %v1187, %v1188
      %v1190 = vrot.slane %v1123, 2
      %v1191 = vrot.slane %v1125, 2
      %v1192 = vsel %vm1183, %v1190, %v1191
      %v1193 = vrot.slane %v1124, 2
      %v1194 = vrot.slane %v1126, 2
      %v1195 = vsel %vm1183, %v1193, %v1194
      %v1196 = vrot.slane %v1127, 2
      %v1197 = vrot.slane %v1129, 2
      %v1198 = vsel %vm1183, %v1196, %v1197
      %v1199 = vrot.slane %v1128, 2
      %v1200 = vrot.slane %v1130, 2
      %v1201 = vsel %vm1183, %v1199, %v1200
      %v1202 = vrot.slane %v1131, 2
      %v1203 = vrot.slane %v1133, 2
      %v1204 = vsel %vm1183, %v1202, %v1203
      %v1205 = vrot.slane %v1132, 2
      %v1206 = vrot.slane %v1134, 2
      %v1207 = vsel %vm1183, %v1205, %v1206
      %v1208 = vrot.slane %v1135, 2
      %v1209 = vrot.slane %v1137, 2
      %v1210 = vsel %vm1183, %v1208, %v1209
      %v1211 = vrot.slane %v1136, 2
      %v1212 = vrot.slane %v1138, 2
      %v1213 = vsel %vm1183, %v1211, %v1212
      %v1214 = vrot.slane %v1139, 2
      %v1215 = vrot.slane %v1141, 2
      %v1216 = vsel %vm1183, %v1214, %v1215
      %v1217 = vrot.slane %v1140, 2
      %v1218 = vrot.slane %v1142, 2
      %v1219 = vsel %vm1183, %v1217, %v1218
      %v1220 = vrot.slane %v1143, 2
      %v1221 = vrot.slane %v1145, 2
      %v1222 = vsel %vm1183, %v1220, %v1221
      %v1223 = vrot.slane %v1144, 2
      %v1224 = vrot.slane %v1146, 2
      %v1225 = vsel %vm1183, %v1223, %v1224
      %v1226 = vrot.slane %v1147, 2
      %v1227 = vrot.slane %v1149, 2
      %v1228 = vsel %vm1183, %v1226, %v1227
      %v1229 = vrot.slane %v1148, 2
      %v1230 = vrot.slane %v1150, 2
      %v1231 = vsel %vm1183, %v1229, %v1230
      %v1248 = vadd.f32 %v1063, %v1186
      %v1249 = vadd.f32 %v1064, %v1189
      %v1250 = vadd.f32 %v1065, %v1192
      %v1251 = vadd.f32 %v1066, %v1195
      %v1252 = vadd.f32 %v1067, %v1198
      %v1253 = vadd.f32 %v1068, %v1201
      %v1254 = vadd.f32 %v1069, %v1204
      %v1255 = vadd.f32 %v1070, %v1207
      %v1256 = vadd.f32 %v1071, %v1210
      %v1257 = vadd.f32 %v1072, %v1213
      %v1258 = vadd.f32 %v1073, %v1216
      %v1259 = vadd.f32 %v1074, %v1219
      %v1260 = vadd.f32 %v1075, %v1222
      %v1261 = vadd.f32 %v1076, %v1225
      %v1262 = vadd.f32 %v1077, %v1228
      %v1263 = vadd.f32 %v1078, %v1231
      %v1264 = vld [vmem:[%s801] sm:$0xff]
      %v1265 = vld [vmem:[%s801 + $0x8] sm:$0xff]
      %v1266 = vld [vmem:[%s801 + $0x20] sm:$0xff]
      %v1267 = vld [vmem:[%s801 + $0x28] sm:$0xff]
      %v1268 = vld [vmem:[%s801 + $0x40] sm:$0xff]
      %v1269 = vld [vmem:[%s801 + $0x48] sm:$0xff]
      %v1270 = vld [vmem:[%s801 + $0x60] sm:$0xff]
      %v1271 = vld [vmem:[%s801 + $0x68] sm:$0xff]
      %v1272 = vld [vmem:[%s801 + $0x80] sm:$0xff]
      %v1273 = vld [vmem:[%s801 + $0x88] sm:$0xff]
      %v1274 = vld [vmem:[%s801 + $0xa0] sm:$0xff]
      %v1275 = vld [vmem:[%s801 + $0xa8] sm:$0xff]
      %v1276 = vld [vmem:[%s801 + $0xc0] sm:$0xff]
      %v1277 = vld [vmem:[%s801 + $0xc8] sm:$0xff]
      %v1278 = vld [vmem:[%s801 + $0xe0] sm:$0xff]
      %v1279 = vld [vmem:[%s801 + $0xe8] sm:$0xff]
      %v1280 = vlaneseq
      %v1281 = vshrl.u32 %v1280, 7
      %v1282 = vsub.s32 3, %v1281
      %v1283 = vrot.slane %v834, %v1282
      %v1284 = vlaneseq
      %v1285 = vshrl.u32 %v1284, 7
      %v1286 = vsub.s32 3, %v1285
      %v1287 = vrot.slane %v835, %v1286
      %v1288 = vmul.f32 %v1264, %v1283
      %v1289 = vmul.f32 %v1265, %v1287
      %v1290 = vmul.f32 %v1266, %v1283
      %v1291 = vmul.f32 %v1267, %v1287
      %v1292 = vmul.f32 %v1268, %v1283
      %v1293 = vmul.f32 %v1269, %v1287
      %v1294 = vmul.f32 %v1270, %v1283
      %v1295 = vmul.f32 %v1271, %v1287
      %v1296 = vmul.f32 %v1272, %v1283
      %v1297 = vmul.f32 %v1273, %v1287
      %v1298 = vmul.f32 %v1274, %v1283
      %v1299 = vmul.f32 %v1275, %v1287
      %v1300 = vmul.f32 %v1276, %v1283
      %v1301 = vmul.f32 %v1277, %v1287
      %v1302 = vmul.f32 %v1278, %v1283
      %v1303 = vmul.f32 %v1279, %v1287
      %v1304 = vadd.f32 %v1248, %v1288
      %v1305 = vadd.f32 %v1249, %v1289
      %v1306 = vadd.f32 %v1250, %v1290
      %v1307 = vadd.f32 %v1251, %v1291
      %v1308 = vadd.f32 %v1252, %v1292
      %v1309 = vadd.f32 %v1253, %v1293
      %v1310 = vadd.f32 %v1254, %v1294
      %v1311 = vadd.f32 %v1255, %v1295
      %v1312 = vadd.f32 %v1256, %v1296
      %v1313 = vadd.f32 %v1257, %v1297
      %v1314 = vadd.f32 %v1258, %v1298
      %v1315 = vadd.f32 %v1259, %v1299
      %v1316 = vadd.f32 %v1260, %v1300
      %v1317 = vadd.f32 %v1261, %v1301
      %v1318 = vadd.f32 %v1262, %v1302
      %v1319 = vadd.f32 %v1263, %v1303
      %v1320 = vld [vmem:[%s801] sm:$0xfe]
      %v1321 = vld [vmem:[%s801 + $0x8] sm:$0xfe]
      %v1322 = vld [vmem:[%s801 + $0x10] sm:$0x1]
      %v1323 = vld [vmem:[%s801 + $0x18] sm:$0x1]
      %v1324 = vld [vmem:[%s801 + $0x20] sm:$0xfe]
      %v1325 = vld [vmem:[%s801 + $0x28] sm:$0xfe]
      %v1326 = vld [vmem:[%s801 + $0x30] sm:$0x1]
      %v1327 = vld [vmem:[%s801 + $0x38] sm:$0x1]
      %v1328 = vld [vmem:[%s801 + $0x40] sm:$0xfe]
      %v1329 = vld [vmem:[%s801 + $0x48] sm:$0xfe]
      %v1330 = vld [vmem:[%s801 + $0x50] sm:$0x1]
      %v1331 = vld [vmem:[%s801 + $0x58] sm:$0x1]
      %v1332 = vld [vmem:[%s801 + $0x60] sm:$0xfe]
      %v1333 = vld [vmem:[%s801 + $0x68] sm:$0xfe]
      %v1334 = vld [vmem:[%s801 + $0x70] sm:$0x1]
      %v1335 = vld [vmem:[%s801 + $0x78] sm:$0x1]
      %v1336 = vld [vmem:[%s801 + $0x80] sm:$0xfe]
      %v1337 = vld [vmem:[%s801 + $0x88] sm:$0xfe]
      %v1338 = vld [vmem:[%s801 + $0x90] sm:$0x1]
      %v1339 = vld [vmem:[%s801 + $0x98] sm:$0x1]
      %v1340 = vld [vmem:[%s801 + $0xa0] sm:$0xfe]
      %v1341 = vld [vmem:[%s801 + $0xa8] sm:$0xfe]
      %v1342 = vld [vmem:[%s801 + $0xb0] sm:$0x1]
      %v1343 = vld [vmem:[%s801 + $0xb8] sm:$0x1]
      %v1344 = vld [vmem:[%s801 + $0xc0] sm:$0xfe]
      %v1345 = vld [vmem:[%s801 + $0xc8] sm:$0xfe]
      %v1346 = vld [vmem:[%s801 + $0xd0] sm:$0x1]
      %v1347 = vld [vmem:[%s801 + $0xd8] sm:$0x1]
      %v1348 = vld [vmem:[%s801 + $0xe0] sm:$0xfe]
      %v1349 = vld [vmem:[%s801 + $0xe8] sm:$0xfe]
      %v1350 = vld [vmem:[%s801 + $0xf0] sm:$0x1]
      %v1351 = vld [vmem:[%s801 + $0xf8] sm:$0x1]
      %v1352 = vlaneseq
      %v1353 = vshrl.u32 %v1352, 7
      %v1354 = vsub.s32 4, %v1353
      %v1355 = vrot.slane %v834, %v1354
      %v1356 = vlaneseq
      %v1357 = vshrl.u32 %v1356, 7
      %v1358 = vsub.s32 4, %v1357
      %v1359 = vrot.slane %v835, %v1358
      %v1360 = vmul.f32 %v1320, %v1355
      %v1361 = vmul.f32 %v1321, %v1359
      %v1362 = vmul.f32 %v1322, %v1355
      %v1363 = vmul.f32 %v1323, %v1359
      %v1364 = vmul.f32 %v1324, %v1355
      %v1365 = vmul.f32 %v1325, %v1359
      %v1366 = vmul.f32 %v1326, %v1355
      %v1367 = vmul.f32 %v1327, %v1359
      %v1368 = vmul.f32 %v1328, %v1355
      %v1369 = vmul.f32 %v1329, %v1359
      %v1370 = vmul.f32 %v1330, %v1355
      %v1371 = vmul.f32 %v1331, %v1359
      %v1372 = vmul.f32 %v1332, %v1355
      %v1373 = vmul.f32 %v1333, %v1359
      %v1374 = vmul.f32 %v1334, %v1355
      %v1375 = vmul.f32 %v1335, %v1359
      %v1376 = vmul.f32 %v1336, %v1355
      %v1377 = vmul.f32 %v1337, %v1359
      %v1378 = vmul.f32 %v1338, %v1355
      %v1379 = vmul.f32 %v1339, %v1359
      %v1380 = vmul.f32 %v1340, %v1355
      %v1381 = vmul.f32 %v1341, %v1359
      %v1382 = vmul.f32 %v1342, %v1355
      %v1383 = vmul.f32 %v1343, %v1359
      %v1384 = vmul.f32 %v1344, %v1355
      %v1385 = vmul.f32 %v1345, %v1359
      %v1386 = vmul.f32 %v1346, %v1355
      %v1387 = vmul.f32 %v1347, %v1359
      %v1388 = vmul.f32 %v1348, %v1355
      %v1389 = vmul.f32 %v1349, %v1359
      %v1390 = vmul.f32 %v1350, %v1355
      %v1391 = vmul.f32 %v1351, %v1359
      %v1424 = vrot.slane %v1360, 1
      %v1425 = vrot.slane %v1362, 1
      %v1426 = vsel %vm998, %v1424, %v1425
      %v1427 = vrot.slane %v1361, 1
      %v1428 = vrot.slane %v1363, 1
      %v1429 = vsel %vm998, %v1427, %v1428
      %v1430 = vrot.slane %v1364, 1
      %v1431 = vrot.slane %v1366, 1
      %v1432 = vsel %vm998, %v1430, %v1431
      %v1433 = vrot.slane %v1365, 1
      %v1434 = vrot.slane %v1367, 1
      %v1435 = vsel %vm998, %v1433, %v1434
      %v1436 = vrot.slane %v1368, 1
      %v1437 = vrot.slane %v1370, 1
      %v1438 = vsel %vm998, %v1436, %v1437
      %v1439 = vrot.slane %v1369, 1
      %v1440 = vrot.slane %v1371, 1
      %v1441 = vsel %vm998, %v1439, %v1440
      %v1442 = vrot.slane %v1372, 1
      %v1443 = vrot.slane %v1374, 1
      %v1444 = vsel %vm998, %v1442, %v1443
      %v1445 = vrot.slane %v1373, 1
      %v1446 = vrot.slane %v1375, 1
      %v1447 = vsel %vm998, %v1445, %v1446
      %v1448 = vrot.slane %v1376, 1
      %v1449 = vrot.slane %v1378, 1
      %v1450 = vsel %vm998, %v1448, %v1449
      %v1451 = vrot.slane %v1377, 1
      %v1452 = vrot.slane %v1379, 1
      %v1453 = vsel %vm998, %v1451, %v1452
      %v1454 = vrot.slane %v1380, 1
      %v1455 = vrot.slane %v1382, 1
      %v1456 = vsel %vm998, %v1454, %v1455
      %v1457 = vrot.slane %v1381, 1
      %v1458 = vrot.slane %v1383, 1
      %v1459 = vsel %vm998, %v1457, %v1458
      %v1460 = vrot.slane %v1384, 1
      %v1461 = vrot.slane %v1386, 1
      %v1462 = vsel %vm998, %v1460, %v1461
      %v1463 = vrot.slane %v1385, 1
      %v1464 = vrot.slane %v1387, 1
      %v1465 = vsel %vm998, %v1463, %v1464
      %v1466 = vrot.slane %v1388, 1
      %v1467 = vrot.slane %v1390, 1
      %v1468 = vsel %vm998, %v1466, %v1467
      %v1469 = vrot.slane %v1389, 1
      %v1470 = vrot.slane %v1391, 1
      %v1471 = vsel %vm998, %v1469, %v1470
      %v1488 = vadd.f32 %v1304, %v1426
      %v1489 = vadd.f32 %v1305, %v1429
      %v1490 = vadd.f32 %v1306, %v1432
      %v1491 = vadd.f32 %v1307, %v1435
      %v1492 = vadd.f32 %v1308, %v1438
      %v1493 = vadd.f32 %v1309, %v1441
      %v1494 = vadd.f32 %v1310, %v1444
      %v1495 = vadd.f32 %v1311, %v1447
      %v1496 = vadd.f32 %v1312, %v1450
      %v1497 = vadd.f32 %v1313, %v1453
      %v1498 = vadd.f32 %v1314, %v1456
      %v1499 = vadd.f32 %v1315, %v1459
      %v1500 = vadd.f32 %v1316, %v1462
      %v1501 = vadd.f32 %v1317, %v1465
      %v1502 = vadd.f32 %v1318, %v1468
      %v1503 = vadd.f32 %v1319, %v1471
      %v1504 = vld [vmem:[%s801] sm:$0xfc]
      %v1505 = vld [vmem:[%s801 + $0x8] sm:$0xfc]
      %v1506 = vld [vmem:[%s801 + $0x10] sm:$0x3]
      %v1507 = vld [vmem:[%s801 + $0x18] sm:$0x3]
      %v1508 = vld [vmem:[%s801 + $0x20] sm:$0xfc]
      %v1509 = vld [vmem:[%s801 + $0x28] sm:$0xfc]
      %v1510 = vld [vmem:[%s801 + $0x30] sm:$0x3]
      %v1511 = vld [vmem:[%s801 + $0x38] sm:$0x3]
      %v1512 = vld [vmem:[%s801 + $0x40] sm:$0xfc]
      %v1513 = vld [vmem:[%s801 + $0x48] sm:$0xfc]
      %v1514 = vld [vmem:[%s801 + $0x50] sm:$0x3]
      %v1515 = vld [vmem:[%s801 + $0x58] sm:$0x3]
      %v1516 = vld [vmem:[%s801 + $0x60] sm:$0xfc]
      %v1517 = vld [vmem:[%s801 + $0x68] sm:$0xfc]
      %v1518 = vld [vmem:[%s801 + $0x70] sm:$0x3]
      %v1519 = vld [vmem:[%s801 + $0x78] sm:$0x3]
      %v1520 = vld [vmem:[%s801 + $0x80] sm:$0xfc]
      %v1521 = vld [vmem:[%s801 + $0x88] sm:$0xfc]
      %v1522 = vld [vmem:[%s801 + $0x90] sm:$0x3]
      %v1523 = vld [vmem:[%s801 + $0x98] sm:$0x3]
      %v1524 = vld [vmem:[%s801 + $0xa0] sm:$0xfc]
      %v1525 = vld [vmem:[%s801 + $0xa8] sm:$0xfc]
      %v1526 = vld [vmem:[%s801 + $0xb0] sm:$0x3]
      %v1527 = vld [vmem:[%s801 + $0xb8] sm:$0x3]
      %v1528 = vld [vmem:[%s801 + $0xc0] sm:$0xfc]
      %v1529 = vld [vmem:[%s801 + $0xc8] sm:$0xfc]
      %v1530 = vld [vmem:[%s801 + $0xd0] sm:$0x3]
      %v1531 = vld [vmem:[%s801 + $0xd8] sm:$0x3]
      %v1532 = vld [vmem:[%s801 + $0xe0] sm:$0xfc]
      %v1533 = vld [vmem:[%s801 + $0xe8] sm:$0xfc]
      %v1534 = vld [vmem:[%s801 + $0xf0] sm:$0x3]
      %v1535 = vld [vmem:[%s801 + $0xf8] sm:$0x3]
      %v1536 = vlaneseq
      %v1537 = vshrl.u32 %v1536, 7
      %v1538 = vsub.s32 5, %v1537
      %v1539 = vrot.slane %v834, %v1538
      %v1540 = vlaneseq
      %v1541 = vshrl.u32 %v1540, 7
      %v1542 = vsub.s32 5, %v1541
      %v1543 = vrot.slane %v835, %v1542
      %v1544 = vmul.f32 %v1504, %v1539
      %v1545 = vmul.f32 %v1505, %v1543
      %v1546 = vmul.f32 %v1506, %v1539
      %v1547 = vmul.f32 %v1507, %v1543
      %v1548 = vmul.f32 %v1508, %v1539
      %v1549 = vmul.f32 %v1509, %v1543
      %v1550 = vmul.f32 %v1510, %v1539
      %v1551 = vmul.f32 %v1511, %v1543
      %v1552 = vmul.f32 %v1512, %v1539
      %v1553 = vmul.f32 %v1513, %v1543
      %v1554 = vmul.f32 %v1514, %v1539
      %v1555 = vmul.f32 %v1515, %v1543
      %v1556 = vmul.f32 %v1516, %v1539
      %v1557 = vmul.f32 %v1517, %v1543
      %v1558 = vmul.f32 %v1518, %v1539
      %v1559 = vmul.f32 %v1519, %v1543
      %v1560 = vmul.f32 %v1520, %v1539
      %v1561 = vmul.f32 %v1521, %v1543
      %v1562 = vmul.f32 %v1522, %v1539
      %v1563 = vmul.f32 %v1523, %v1543
      %v1564 = vmul.f32 %v1524, %v1539
      %v1565 = vmul.f32 %v1525, %v1543
      %v1566 = vmul.f32 %v1526, %v1539
      %v1567 = vmul.f32 %v1527, %v1543
      %v1568 = vmul.f32 %v1528, %v1539
      %v1569 = vmul.f32 %v1529, %v1543
      %v1570 = vmul.f32 %v1530, %v1539
      %v1571 = vmul.f32 %v1531, %v1543
      %v1572 = vmul.f32 %v1532, %v1539
      %v1573 = vmul.f32 %v1533, %v1543
      %v1574 = vmul.f32 %v1534, %v1539
      %v1575 = vmul.f32 %v1535, %v1543
      %v1608 = vrot.slane %v1544, 2
      %v1609 = vrot.slane %v1546, 2
      %v1610 = vsel %vm1183, %v1608, %v1609
      %v1611 = vrot.slane %v1545, 2
      %v1612 = vrot.slane %v1547, 2
      %v1613 = vsel %vm1183, %v1611, %v1612
      %v1614 = vrot.slane %v1548, 2
      %v1615 = vrot.slane %v1550, 2
      %v1616 = vsel %vm1183, %v1614, %v1615
      %v1617 = vrot.slane %v1549, 2
      %v1618 = vrot.slane %v1551, 2
      %v1619 = vsel %vm1183, %v1617, %v1618
      %v1620 = vrot.slane %v1552, 2
      %v1621 = vrot.slane %v1554, 2
      %v1622 = vsel %vm1183, %v1620, %v1621
      %v1623 = vrot.slane %v1553, 2
      %v1624 = vrot.slane %v1555, 2
      %v1625 = vsel %vm1183, %v1623, %v1624
      %v1626 = vrot.slane %v1556, 2
      %v1627 = vrot.slane %v1558, 2
      %v1628 = vsel %vm1183, %v1626, %v1627
      %v1629 = vrot.slane %v1557, 2
      %v1630 = vrot.slane %v1559, 2
      %v1631 = vsel %vm1183, %v1629, %v1630
      %v1632 = vrot.slane %v1560, 2
      %v1633 = vrot.slane %v1562, 2
      %v1634 = vsel %vm1183, %v1632, %v1633
      %v1635 = vrot.slane %v1561, 2
      %v1636 = vrot.slane %v1563, 2
      %v1637 = vsel %vm1183, %v1635, %v1636
      %v1638 = vrot.slane %v1564, 2
      %v1639 = vrot.slane %v1566, 2
      %v1640 = vsel %vm1183, %v1638, %v1639
      %v1641 = vrot.slane %v1565, 2
      %v1642 = vrot.slane %v1567, 2
      %v1643 = vsel %vm1183, %v1641, %v1642
      %v1644 = vrot.slane %v1568, 2
      %v1645 = vrot.slane %v1570, 2
      %v1646 = vsel %vm1183, %v1644, %v1645
      %v1647 = vrot.slane %v1569, 2
      %v1648 = vrot.slane %v1571, 2
      %v1649 = vsel %vm1183, %v1647, %v1648
      %v1650 = vrot.slane %v1572, 2
      %v1651 = vrot.slane %v1574, 2
      %v1652 = vsel %vm1183, %v1650, %v1651
      %v1653 = vrot.slane %v1573, 2
      %v1654 = vrot.slane %v1575, 2
      %v1655 = vsel %vm1183, %v1653, %v1654
      %v1672 = vadd.f32 %v1488, %v1610
      %v1673 = vadd.f32 %v1489, %v1613
      %v1674 = vadd.f32 %v1490, %v1616
      %v1675 = vadd.f32 %v1491, %v1619
      %v1676 = vadd.f32 %v1492, %v1622
      %v1677 = vadd.f32 %v1493, %v1625
      %v1678 = vadd.f32 %v1494, %v1628
      %v1679 = vadd.f32 %v1495, %v1631
      %v1680 = vadd.f32 %v1496, %v1634
      %v1681 = vadd.f32 %v1497, %v1637
      %v1682 = vadd.f32 %v1498, %v1640
      %v1683 = vadd.f32 %v1499, %v1643
      %v1684 = vadd.f32 %v1500, %v1646
      %v1685 = vadd.f32 %v1501, %v1649
      %v1686 = vadd.f32 %v1502, %v1652
      %v1687 = vadd.f32 %v1503, %v1655
      %s1688 = scalar_lea.vmem [#allocation2], 64
      %v1689 = vld [vmem:[%s1688] sm:$0xff]
      %v1690 = vld [vmem:[%s1688 + $0x8] sm:$0xff]
      %v1691 = vld [vmem:[%s1688 + $0x20] sm:$0xff]
      %v1692 = vld [vmem:[%s1688 + $0x28] sm:$0xff]
      %v1693 = vld [vmem:[%s1688 + $0x40] sm:$0xff]
      %v1694 = vld [vmem:[%s1688 + $0x48] sm:$0xff]
      %v1695 = vld [vmem:[%s1688 + $0x60] sm:$0xff]
      %v1696 = vld [vmem:[%s1688 + $0x68] sm:$0xff]
      %v1697 = vld [vmem:[%s1688 + $0x80] sm:$0xff]
      %v1698 = vld [vmem:[%s1688 + $0x88] sm:$0xff]
      %v1699 = vld [vmem:[%s1688 + $0xa0] sm:$0xff]
      %v1700 = vld [vmem:[%s1688 + $0xa8] sm:$0xff]
      %v1701 = vld [vmem:[%s1688 + $0xc0] sm:$0xff]
      %v1702 = vld [vmem:[%s1688 + $0xc8] sm:$0xff]
      %v1703 = vld [vmem:[%s1688 + $0xe0] sm:$0xff]
      %v1704 = vld [vmem:[%s1688 + $0xe8] sm:$0xff]
      %v1705 = vlaneseq
      %v1706 = vshrl.u32 %v1705, 7
      %v1707 = vsub.s32 6, %v1706
      %v1708 = vrot.slane %v834, %v1707
      %v1709 = vlaneseq
      %v1710 = vshrl.u32 %v1709, 7
      %v1711 = vsub.s32 6, %v1710
      %v1712 = vrot.slane %v835, %v1711
      %v1713 = vmul.f32 %v1689, %v1708
      %v1714 = vmul.f32 %v1690, %v1712
      %v1715 = vmul.f32 %v1691, %v1708
      %v1716 = vmul.f32 %v1692, %v1712
      %v1717 = vmul.f32 %v1693, %v1708
      %v1718 = vmul.f32 %v1694, %v1712
      %v1719 = vmul.f32 %v1695, %v1708
      %v1720 = vmul.f32 %v1696, %v1712
      %v1721 = vmul.f32 %v1697, %v1708
      %v1722 = vmul.f32 %v1698, %v1712
      %v1723 = vmul.f32 %v1699, %v1708
      %v1724 = vmul.f32 %v1700, %v1712
      %v1725 = vmul.f32 %v1701, %v1708
      %v1726 = vmul.f32 %v1702, %v1712
      %v1727 = vmul.f32 %v1703, %v1708
      %v1728 = vmul.f32 %v1704, %v1712
      %v1729 = vadd.f32 %v1672, %v1713
      %v1730 = vadd.f32 %v1673, %v1714
      %v1731 = vadd.f32 %v1674, %v1715
      %v1732 = vadd.f32 %v1675, %v1716
      %v1733 = vadd.f32 %v1676, %v1717
      %v1734 = vadd.f32 %v1677, %v1718
      %v1735 = vadd.f32 %v1678, %v1719
      %v1736 = vadd.f32 %v1679, %v1720
      %v1737 = vadd.f32 %v1680, %v1721
      %v1738 = vadd.f32 %v1681, %v1722
      %v1739 = vadd.f32 %v1682, %v1723
      %v1740 = vadd.f32 %v1683, %v1724
      %v1741 = vadd.f32 %v1684, %v1725
      %v1742 = vadd.f32 %v1685, %v1726
      %v1743 = vadd.f32 %v1686, %v1727
      %v1744 = vadd.f32 %v1687, %v1728
      %v1745 = vld [vmem:[%s1688] sm:$0xfe]
      %v1746 = vld [vmem:[%s1688 + $0x8] sm:$0xfe]
      %v1747 = vld [vmem:[%s1688 + $0x10] sm:$0x1]
      %v1748 = vld [vmem:[%s1688 + $0x18] sm:$0x1]
      %v1749 = vld [vmem:[%s1688 + $0x20] sm:$0xfe]
      %v1750 = vld [vmem:[%s1688 + $0x28] sm:$0xfe]
      %v1751 = vld [vmem:[%s1688 + $0x30] sm:$0x1]
      %v1752 = vld [vmem:[%s1688 + $0x38] sm:$0x1]
      %v1753 = vld [vmem:[%s1688 + $0x40] sm:$0xfe]
      %v1754 = vld [vmem:[%s1688 + $0x48] sm:$0xfe]
      %v1755 = vld [vmem:[%s1688 + $0x50] sm:$0x1]
      %v1756 = vld [vmem:[%s1688 + $0x58] sm:$0x1]
      %v1757 = vld [vmem:[%s1688 + $0x60] sm:$0xfe]
      %v1758 = vld [vmem:[%s1688 + $0x68] sm:$0xfe]
      %v1759 = vld [vmem:[%s1688 + $0x70] sm:$0x1]
      %v1760 = vld [vmem:[%s1688 + $0x78] sm:$0x1]
      %v1761 = vld [vmem:[%s1688 + $0x80] sm:$0xfe]
      %v1762 = vld [vmem:[%s1688 + $0x88] sm:$0xfe]
      %v1763 = vld [vmem:[%s1688 + $0x90] sm:$0x1]
      %v1764 = vld [vmem:[%s1688 + $0x98] sm:$0x1]
      %v1765 = vld [vmem:[%s1688 + $0xa0] sm:$0xfe]
      %v1766 = vld [vmem:[%s1688 + $0xa8] sm:$0xfe]
      %v1767 = vld [vmem:[%s1688 + $0xb0] sm:$0x1]
      %v1768 = vld [vmem:[%s1688 + $0xb8] sm:$0x1]
      %v1769 = vld [vmem:[%s1688 + $0xc0] sm:$0xfe]
      %v1770 = vld [vmem:[%s1688 + $0xc8] sm:$0xfe]
      %v1771 = vld [vmem:[%s1688 + $0xd0] sm:$0x1]
      %v1772 = vld [vmem:[%s1688 + $0xd8] sm:$0x1]
      %v1773 = vld [vmem:[%s1688 + $0xe0] sm:$0xfe]
      %v1774 = vld [vmem:[%s1688 + $0xe8] sm:$0xfe]
      %v1775 = vld [vmem:[%s1688 + $0xf0] sm:$0x1]
      %v1776 = vld [vmem:[%s1688 + $0xf8] sm:$0x1]
      %v1777 = vlaneseq
      %v1778 = vshrl.u32 %v1777, 7
      %v1779 = vsub.s32 7, %v1778
      %v1780 = vrot.slane %v834, %v1779
      %v1781 = vlaneseq
      %v1782 = vshrl.u32 %v1781, 7
      %v1783 = vsub.s32 7, %v1782
      %v1784 = vrot.slane %v835, %v1783
      %v1785 = vmul.f32 %v1745, %v1780
      %v1786 = vmul.f32 %v1746, %v1784
      %v1787 = vmul.f32 %v1747, %v1780
      %v1788 = vmul.f32 %v1748, %v1784
      %v1789 = vmul.f32 %v1749, %v1780
      %v1790 = vmul.f32 %v1750, %v1784
      %v1791 = vmul.f32 %v1751, %v1780
      %v1792 = vmul.f32 %v1752, %v1784
      %v1793 = vmul.f32 %v1753, %v1780
      %v1794 = vmul.f32 %v1754, %v1784
      %v1795 = vmul.f32 %v1755, %v1780
      %v1796 = vmul.f32 %v1756, %v1784
      %v1797 = vmul.f32 %v1757, %v1780
      %v1798 = vmul.f32 %v1758, %v1784
      %v1799 = vmul.f32 %v1759, %v1780
      %v1800 = vmul.f32 %v1760, %v1784
      %v1801 = vmul.f32 %v1761, %v1780
      %v1802 = vmul.f32 %v1762, %v1784
      %v1803 = vmul.f32 %v1763, %v1780
      %v1804 = vmul.f32 %v1764, %v1784
      %v1805 = vmul.f32 %v1765, %v1780
      %v1806 = vmul.f32 %v1766, %v1784
      %v1807 = vmul.f32 %v1767, %v1780
      %v1808 = vmul.f32 %v1768, %v1784
      %v1809 = vmul.f32 %v1769, %v1780
      %v1810 = vmul.f32 %v1770, %v1784
      %v1811 = vmul.f32 %v1771, %v1780
      %v1812 = vmul.f32 %v1772, %v1784
      %v1813 = vmul.f32 %v1773, %v1780
      %v1814 = vmul.f32 %v1774, %v1784
      %v1815 = vmul.f32 %v1775, %v1780
      %v1816 = vmul.f32 %v1776, %v1784
      %v1849 = vrot.slane %v1785, 1
      %v1850 = vrot.slane %v1787, 1
      %v1851 = vsel %vm998, %v1849, %v1850
      %v1852 = vrot.slane %v1786, 1
      %v1853 = vrot.slane %v1788, 1
      %v1854 = vsel %vm998, %v1852, %v1853
      %v1855 = vrot.slane %v1789, 1
      %v1856 = vrot.slane %v1791, 1
      %v1857 = vsel %vm998, %v1855, %v1856
      %v1858 = vrot.slane %v1790, 1
      %v1859 = vrot.slane %v1792, 1
      %v1860 = vsel %vm998, %v1858, %v1859
      %v1861 = vrot.slane %v1793, 1
      %v1862 = vrot.slane %v1795, 1
      %v1863 = vsel %vm998, %v1861, %v1862
      %v1864 = vrot.slane %v1794, 1
      %v1865 = vrot.slane %v1796, 1
      %v1866 = vsel %vm998, %v1864, %v1865
      %v1867 = vrot.slane %v1797, 1
      %v1868 = vrot.slane %v1799, 1
      %v1869 = vsel %vm998, %v1867, %v1868
      %v1870 = vrot.slane %v1798, 1
      %v1871 = vrot.slane %v1800, 1
      %v1872 = vsel %vm998, %v1870, %v1871
      %v1873 = vrot.slane %v1801, 1
      %v1874 = vrot.slane %v1803, 1
      %v1875 = vsel %vm998, %v1873, %v1874
      %v1876 = vrot.slane %v1802, 1
      %v1877 = vrot.slane %v1804, 1
      %v1878 = vsel %vm998, %v1876, %v1877
      %v1879 = vrot.slane %v1805, 1
      %v1880 = vrot.slane %v1807, 1
      %v1881 = vsel %vm998, %v1879, %v1880
      %v1882 = vrot.slane %v1806, 1
      %v1883 = vrot.slane %v1808, 1
      %v1884 = vsel %vm998, %v1882, %v1883
      %v1885 = vrot.slane %v1809, 1
      %v1886 = vrot.slane %v1811, 1
      %v1887 = vsel %vm998, %v1885, %v1886
      %v1888 = vrot.slane %v1810, 1
      %v1889 = vrot.slane %v1812, 1
      %v1890 = vsel %vm998, %v1888, %v1889
      %v1891 = vrot.slane %v1813, 1
      %v1892 = vrot.slane %v1815, 1
      %v1893 = vsel %vm998, %v1891, %v1892
      %v1894 = vrot.slane %v1814, 1
      %v1895 = vrot.slane %v1816, 1
      %v1896 = vsel %vm998, %v1894, %v1895
      %v1913 = vadd.f32 %v1729, %v1851
      %v1914 = vadd.f32 %v1730, %v1854
      %v1915 = vadd.f32 %v1731, %v1857
      %v1916 = vadd.f32 %v1732, %v1860
      %v1917 = vadd.f32 %v1733, %v1863
      %v1918 = vadd.f32 %v1734, %v1866
      %v1919 = vadd.f32 %v1735, %v1869
      %v1920 = vadd.f32 %v1736, %v1872
      %v1921 = vadd.f32 %v1737, %v1875
      %v1922 = vadd.f32 %v1738, %v1878
      %v1923 = vadd.f32 %v1739, %v1881
      %v1924 = vadd.f32 %v1740, %v1884
      %v1925 = vadd.f32 %v1741, %v1887
      %v1926 = vadd.f32 %v1742, %v1890
      %v1927 = vadd.f32 %v1743, %v1893
      %v1928 = vadd.f32 %v1744, %v1896
      %v1929 = vld [vmem:[%s1688] sm:$0xfc]
      %v1930 = vld [vmem:[%s1688 + $0x8] sm:$0xfc]
      %v1931 = vld [vmem:[%s1688 + $0x10] sm:$0x3]
      %v1932 = vld [vmem:[%s1688 + $0x18] sm:$0x3]
      %v1933 = vld [vmem:[%s1688 + $0x20] sm:$0xfc]
      %v1934 = vld [vmem:[%s1688 + $0x28] sm:$0xfc]
      %v1935 = vld [vmem:[%s1688 + $0x30] sm:$0x3]
      %v1936 = vld [vmem:[%s1688 + $0x38] sm:$0x3]
      %v1937 = vld [vmem:[%s1688 + $0x40] sm:$0xfc]
      %v1938 = vld [vmem:[%s1688 + $0x48] sm:$0xfc]
      %v1939 = vld [vmem:[%s1688 + $0x50] sm:$0x3]
      %v1940 = vld [vmem:[%s1688 + $0x58] sm:$0x3]
      %v1941 = vld [vmem:[%s1688 + $0x60] sm:$0xfc]
      %v1942 = vld [vmem:[%s1688 + $0x68] sm:$0xfc]
      %v1943 = vld [vmem:[%s1688 + $0x70] sm:$0x3]
      %v1944 = vld [vmem:[%s1688 + $0x78] sm:$0x3]
      %v1945 = vld [vmem:[%s1688 + $0x80] sm:$0xfc]
      %v1946 = vld [vmem:[%s1688 + $0x88] sm:$0xfc]
      %v1947 = vld [vmem:[%s1688 + $0x90] sm:$0x3]
      %v1948 = vld [vmem:[%s1688 + $0x98] sm:$0x3]
      %v1949 = vld [vmem:[%s1688 + $0xa0] sm:$0xfc]
      %v1950 = vld [vmem:[%s1688 + $0xa8] sm:$0xfc]
      %v1951 = vld [vmem:[%s1688 + $0xb0] sm:$0x3]
      %v1952 = vld [vmem:[%s1688 + $0xb8] sm:$0x3]
      %v1953 = vld [vmem:[%s1688 + $0xc0] sm:$0xfc]
      %v1954 = vld [vmem:[%s1688 + $0xc8] sm:$0xfc]
      %v1955 = vld [vmem:[%s1688 + $0xd0] sm:$0x3]
      %v1956 = vld [vmem:[%s1688 + $0xd8] sm:$0x3]
      %v1957 = vld [vmem:[%s1688 + $0xe0] sm:$0xfc]
      %v1958 = vld [vmem:[%s1688 + $0xe8] sm:$0xfc]
      %v1959 = vld [vmem:[%s1688 + $0xf0] sm:$0x3]
      %v1960 = vld [vmem:[%s1688 + $0xf8] sm:$0x3]
      %v1961 = vlaneseq
      %v1962 = vshrl.u32 %v1961, 7
      %v1963 = vsub.s32 0, %v1962
      %v1964 = vrot.slane %v836, %v1963
      %v1965 = vlaneseq
      %v1966 = vshrl.u32 %v1965, 7
      %v1967 = vsub.s32 0, %v1966
      %v1968 = vrot.slane %v837, %v1967
      %v1969 = vmul.f32 %v1929, %v1964
      %v1970 = vmul.f32 %v1930, %v1968
      %v1971 = vmul.f32 %v1931, %v1964
      %v1972 = vmul.f32 %v1932, %v1968
      %v1973 = vmul.f32 %v1933, %v1964
      %v1974 = vmul.f32 %v1934, %v1968
      %v1975 = vmul.f32 %v1935, %v1964
      %v1976 = vmul.f32 %v1936, %v1968
      %v1977 = vmul.f32 %v1937, %v1964
      %v1978 = vmul.f32 %v1938, %v1968
      %v1979 = vmul.f32 %v1939, %v1964
      %v1980 = vmul.f32 %v1940, %v1968
      %v1981 = vmul.f32 %v1941, %v1964
      %v1982 = vmul.f32 %v1942, %v1968
      %v1983 = vmul.f32 %v1943, %v1964
      %v1984 = vmul.f32 %v1944, %v1968
      %v1985 = vmul.f32 %v1945, %v1964
      %v1986 = vmul.f32 %v1946, %v1968
      %v1987 = vmul.f32 %v1947, %v1964
      %v1988 = vmul.f32 %v1948, %v1968
      %v1989 = vmul.f32 %v1949, %v1964
      %v1990 = vmul.f32 %v1950, %v1968
      %v1991 = vmul.f32 %v1951, %v1964
      %v1992 = vmul.f32 %v1952, %v1968
      %v1993 = vmul.f32 %v1953, %v1964
      %v1994 = vmul.f32 %v1954, %v1968
      %v1995 = vmul.f32 %v1955, %v1964
      %v1996 = vmul.f32 %v1956, %v1968
      %v1997 = vmul.f32 %v1957, %v1964
      %v1998 = vmul.f32 %v1958, %v1968
      %v1999 = vmul.f32 %v1959, %v1964
      %v2000 = vmul.f32 %v1960, %v1968
      %v2033 = vrot.slane %v1969, 2
      %v2034 = vrot.slane %v1971, 2
      %v2035 = vsel %vm1183, %v2033, %v2034
      %v2036 = vrot.slane %v1970, 2
      %v2037 = vrot.slane %v1972, 2
      %v2038 = vsel %vm1183, %v2036, %v2037
      %v2039 = vrot.slane %v1973, 2
      %v2040 = vrot.slane %v1975, 2
      %v2041 = vsel %vm1183, %v2039, %v2040
      %v2042 = vrot.slane %v1974, 2
      %v2043 = vrot.slane %v1976, 2
      %v2044 = vsel %vm1183, %v2042, %v2043
      %v2045 = vrot.slane %v1977, 2
      %v2046 = vrot.slane %v1979, 2
      %v2047 = vsel %vm1183, %v2045, %v2046
      %v2048 = vrot.slane %v1978, 2
      %v2049 = vrot.slane %v1980, 2
      %v2050 = vsel %vm1183, %v2048, %v2049
      %v2051 = vrot.slane %v1981, 2
      %v2052 = vrot.slane %v1983, 2
      %v2053 = vsel %vm1183, %v2051, %v2052
      %v2054 = vrot.slane %v1982, 2
      %v2055 = vrot.slane %v1984, 2
      %v2056 = vsel %vm1183, %v2054, %v2055
      %v2057 = vrot.slane %v1985, 2
      %v2058 = vrot.slane %v1987, 2
      %v2059 = vsel %vm1183, %v2057, %v2058
      %v2060 = vrot.slane %v1986, 2
      %v2061 = vrot.slane %v1988, 2
      %v2062 = vsel %vm1183, %v2060, %v2061
      %v2063 = vrot.slane %v1989, 2
      %v2064 = vrot.slane %v1991, 2
      %v2065 = vsel %vm1183, %v2063, %v2064
      %v2066 = vrot.slane %v1990, 2
      %v2067 = vrot.slane %v1992, 2
      %v2068 = vsel %vm1183, %v2066, %v2067
      %v2069 = vrot.slane %v1993, 2
      %v2070 = vrot.slane %v1995, 2
      %v2071 = vsel %vm1183, %v2069, %v2070
      %v2072 = vrot.slane %v1994, 2
      %v2073 = vrot.slane %v1996, 2
      %v2074 = vsel %vm1183, %v2072, %v2073
      %v2075 = vrot.slane %v1997, 2
      %v2076 = vrot.slane %v1999, 2
      %v2077 = vsel %vm1183, %v2075, %v2076
      %v2078 = vrot.slane %v1998, 2
      %v2079 = vrot.slane %v2000, 2
      %v2080 = vsel %vm1183, %v2078, %v2079
      %v2097 = vadd.f32 %v1913, %v2035
      %v2098 = vadd.f32 %v1914, %v2038
      %v2099 = vadd.f32 %v1915, %v2041
      %v2100 = vadd.f32 %v1916, %v2044
      %v2101 = vadd.f32 %v1917, %v2047
      %v2102 = vadd.f32 %v1918, %v2050
      %v2103 = vadd.f32 %v1919, %v2053
      %v2104 = vadd.f32 %v1920, %v2056
      %v2105 = vadd.f32 %v1921, %v2059
      %v2106 = vadd.f32 %v1922, %v2062
      %v2107 = vadd.f32 %v1923, %v2065
      %v2108 = vadd.f32 %v1924, %v2068
      %v2109 = vadd.f32 %v1925, %v2071
      %v2110 = vadd.f32 %v1926, %v2074
      %v2111 = vadd.f32 %v1927, %v2077
      %v2112 = vadd.f32 %v1928, %v2080
      %v2113 = vld [vmem:[%s4] sm:$0x3]
      %v2115 = vlaneseq
      %v2116 = vshrl.u32 %v2115, 7
      %v2117 = vsub.s32 0, %v2116
      %v2118 = vrot.slane %v2113, %v2117
      %v2119 = vlaneseq
      %v2120 = vshrl.u32 %v2119, 7
      %v2121 = vsub.s32 1, %v2120
      %v2122 = vrot.slane %v2113, %v2121
      %v2125 = vadd.f32 %v2097, %v2118
      %v2126 = vadd.f32 %v2098, %v2122
      %v2127 = vadd.f32 %v2099, %v2118
      %v2128 = vadd.f32 %v2100, %v2122
      %v2129 = vadd.f32 %v2101, %v2118
      %v2130 = vadd.f32 %v2102, %v2122
      %v2131 = vadd.f32 %v2103, %v2118
      %v2132 = vadd.f32 %v2104, %v2122
      %v2133 = vadd.f32 %v2105, %v2118
      %v2134 = vadd.f32 %v2106, %v2122
      %v2135 = vadd.f32 %v2107, %v2118
      %v2136 = vadd.f32 %v2108, %v2122
      %v2137 = vadd.f32 %v2109, %v2118
      %v2138 = vadd.f32 %v2110, %v2122
      %v2139 = vadd.f32 %v2111, %v2118
      %v2140 = vadd.f32 %v2112, %v2122
      %v2141 = vxor.u32 %v2125, 2147483648
      %v2142 = vxor.u32 %v2126, 2147483648
      %v2143 = vxor.u32 %v2127, 2147483648
      %v2144 = vxor.u32 %v2128, 2147483648
      %v2145 = vxor.u32 %v2129, 2147483648
      %v2146 = vxor.u32 %v2130, 2147483648
      %v2147 = vxor.u32 %v2131, 2147483648
      %v2148 = vxor.u32 %v2132, 2147483648
      %v2149 = vxor.u32 %v2133, 2147483648
      %v2150 = vxor.u32 %v2134, 2147483648
      %v2151 = vxor.u32 %v2135, 2147483648
      %v2152 = vxor.u32 %v2136, 2147483648
      %v2153 = vxor.u32 %v2137, 2147483648
      %v2154 = vxor.u32 %v2138, 2147483648
      %v2155 = vxor.u32 %v2139, 2147483648
      %v2156 = vxor.u32 %v2140, 2147483648
      %v2157 = vmul.f32 %v2141, 1.442695
      %v2158 = vpow.pop %v2157
      %v2159 = vmul.f32 %v2142, 1.442695
      %v2160 = vpow.pop %v2159
      %v2161 = vmul.f32 %v2143, 1.442695
      %v2162 = vpow.pop %v2161
      %v2163 = vmul.f32 %v2144, 1.442695
      %v2164 = vpow.pop %v2163
      %v2165 = vmul.f32 %v2145, 1.442695
      %v2166 = vpow.pop %v2165
      %v2167 = vmul.f32 %v2146, 1.442695
      %v2168 = vpow.pop %v2167
      %v2169 = vmul.f32 %v2147, 1.442695
      %v2170 = vpow.pop %v2169
      %v2171 = vmul.f32 %v2148, 1.442695
      %v2172 = vpow.pop %v2171
      %v2173 = vmul.f32 %v2149, 1.442695
      %v2174 = vpow.pop %v2173
      %v2175 = vmul.f32 %v2150, 1.442695
      %v2176 = vpow.pop %v2175
      %v2177 = vmul.f32 %v2151, 1.442695
      %v2178 = vpow.pop %v2177
      %v2179 = vmul.f32 %v2152, 1.442695
      %v2180 = vpow.pop %v2179
      %v2181 = vmul.f32 %v2153, 1.442695
      %v2182 = vpow.pop %v2181
      %v2183 = vmul.f32 %v2154, 1.442695
      %v2184 = vpow.pop %v2183
      %v2185 = vmul.f32 %v2155, 1.442695
      %v2186 = vpow.pop %v2185
      %v2187 = vmul.f32 %v2156, 1.442695
      %v2188 = vpow.pop %v2187
      %v2189 = vadd.f32 %v2158, 1.0
      %v2190 = vadd.f32 %v2160, 1.0
      %v2191 = vadd.f32 %v2162, 1.0
      %v2192 = vadd.f32 %v2164, 1.0
      %v2193 = vadd.f32 %v2166, 1.0
      %v2194 = vadd.f32 %v2168, 1.0
      %v2195 = vadd.f32 %v2170, 1.0
      %v2196 = vadd.f32 %v2172, 1.0
      %v2197 = vadd.f32 %v2174, 1.0
      %v2198 = vadd.f32 %v2176, 1.0
      %v2199 = vadd.f32 %v2178, 1.0
      %v2200 = vadd.f32 %v2180, 1.0
      %v2201 = vadd.f32 %v2182, 1.0
      %v2202 = vadd.f32 %v2184, 1.0
      %v2203 = vadd.f32 %v2186, 1.0
      %v2204 = vadd.f32 %v2188, 1.0
      %v2205 = vrcp.pop %v2189
      %v2206 = vmul.f32 1.0, %v2205
      %v2207 = vrcp.pop %v2190
      %v2208 = vmul.f32 1.0, %v2207
      %v2209 = vrcp.pop %v2191
      %v2210 = vmul.f32 1.0, %v2209
      %v2211 = vrcp.pop %v2192
      %v2212 = vmul.f32 1.0, %v2211
      %v2213 = vrcp.pop %v2193
      %v2214 = vmul.f32 1.0, %v2213
      %v2215 = vrcp.pop %v2194
      %v2216 = vmul.f32 1.0, %v2215
      %v2217 = vrcp.pop %v2195
      %v2218 = vmul.f32 1.0, %v2217
      %v2219 = vrcp.pop %v2196
      %v2220 = vmul.f32 1.0, %v2219
      %v2221 = vrcp.pop %v2197
      %v2222 = vmul.f32 1.0, %v2221
      %v2223 = vrcp.pop %v2198
      %v2224 = vmul.f32 1.0, %v2223
      %v2225 = vrcp.pop %v2199
      %v2226 = vmul.f32 1.0, %v2225
      %v2227 = vrcp.pop %v2200
      %v2228 = vmul.f32 1.0, %v2227
      %v2229 = vrcp.pop %v2201
      %v2230 = vmul.f32 1.0, %v2229
      %v2231 = vrcp.pop %v2202
      %v2232 = vmul.f32 1.0, %v2231
      %v2233 = vrcp.pop %v2203
      %v2234 = vmul.f32 1.0, %v2233
      %v2235 = vrcp.pop %v2204
      %v2236 = vmul.f32 1.0, %v2235
      %v2237 = vmul.f32 %v2125, %v2206
      %v2238 = vmul.f32 %v2126, %v2208
      %v2239 = vmul.f32 %v2127, %v2210
      %v2240 = vmul.f32 %v2128, %v2212
      %v2241 = vmul.f32 %v2129, %v2214
      %v2242 = vmul.f32 %v2130, %v2216
      %v2243 = vmul.f32 %v2131, %v2218
      %v2244 = vmul.f32 %v2132, %v2220
      %v2245 = vmul.f32 %v2133, %v2222
      %v2246 = vmul.f32 %v2134, %v2224
      %v2247 = vmul.f32 %v2135, %v2226
      %v2248 = vmul.f32 %v2136, %v2228
      %v2249 = vmul.f32 %v2137, %v2230
      %v2250 = vmul.f32 %v2138, %v2232
      %v2251 = vmul.f32 %v2139, %v2234
      %v2252 = vmul.f32 %v2140, %v2236
      %v2253 = vadd.f32 %v2237, %v2239
      %v2254 = vadd.f32 %v2253, %v2241
      %v2255 = vadd.f32 %v2254, %v2243
      %v2256 = vadd.f32 %v2255, %v2245
      %v2257 = vadd.f32 %v2256, %v2247
      %v2258 = vadd.f32 %v2257, %v2249
      %v2259 = vadd.f32 %v2258, %v2251
      %v2260 = vrot.slane %v2259, 4
      %v2261 = vadd.f32 %v2259, %v2260
      %v2262 = vrot.slane %v2261, 2
      %v2263 = vadd.f32 %v2261, %v2262
      %v2264 = vrot.slane %v2263, 1
      %v2265 = vadd.f32 %v2263, %v2264
      %v2266 = vadd.f32 %v2238, %v2240
      %v2267 = vadd.f32 %v2266, %v2242
      %v2268 = vadd.f32 %v2267, %v2244
      %v2269 = vadd.f32 %v2268, %v2246
      %v2270 = vadd.f32 %v2269, %v2248
      %v2271 = vadd.f32 %v2270, %v2250
      %v2272 = vadd.f32 %v2271, %v2252
      %v2273 = vrot.slane %v2272, 4
      %v2274 = vadd.f32 %v2272, %v2273
      %v2275 = vrot.slane %v2274, 2
      %v2276 = vadd.f32 %v2274, %v2275
      %v2277 = vrot.slane %v2276, 1
      %v2278 = vadd.f32 %v2276, %v2277
      %v2279 = vrcp.pop 64.0
      %v2280 = vmul.f32 %v2265, %v2279
      %v2281 = vmul.f32 %v2278, %v2279
      %v2282 = vld [vmem:[%s5] sm:$0xff]
      %v2283 = vld [vmem:[%s5 + $0x8] sm:$0xff]
      %v2284 = vld [vmem:[%s5 + $0x10] sm:$0xff]
      %v2285 = vld [vmem:[%s5 + $0x18] sm:$0xff]
      %v2286 = vld [vmem:[%s5 + $0x20] sm:$0xff]
      %v2287 = vld [vmem:[%s5 + $0x28] sm:$0xff]
      %v2288 = vld [vmem:[%s5 + $0x30] sm:$0xff]
      %v2289 = vld [vmem:[%s5 + $0x38] sm:$0xff]
      %v2290 = vld [vmem:[%s5 + $0x40] sm:$0xff]
      %v2291 = vld [vmem:[%s5 + $0x48] sm:$0xff]
      %v2292 = vld [vmem:[%s5 + $0x50] sm:$0xff]
      %v2293 = vld [vmem:[%s5 + $0x58] sm:$0xff]
      %v2294 = vld [vmem:[%s5 + $0x60] sm:$0xff]
      %v2295 = vld [vmem:[%s5 + $0x68] sm:$0xff]
      %v2296 = vld [vmem:[%s5 + $0x70] sm:$0xff]
      %v2297 = vld [vmem:[%s5 + $0x78] sm:$0xff]
      %v2298 = vld [vmem:[%s5 + $0x80] sm:$0xff]
      %v2299 = vld [vmem:[%s5 + $0x88] sm:$0xff]
      %v2300 = vld [vmem:[%s5 + $0x90] sm:$0xff]
      %v2301 = vld [vmem:[%s5 + $0x98] sm:$0xff]
      %v2302 = vld [vmem:[%s5 + $0xa0] sm:$0xff]
      %v2303 = vld [vmem:[%s5 + $0xa8] sm:$0xff]
      %v2304 = vld [vmem:[%s5 + $0xb0] sm:$0xff]
      %v2305 = vld [vmem:[%s5 + $0xb8] sm:$0xff]
      %v2306 = vld [vmem:[%s5 + $0xc0] sm:$0xff]
      %v2307 = vld [vmem:[%s5 + $0xc8] sm:$0xff]
      %v2308 = vld [vmem:[%s5 + $0xd0] sm:$0xff]
      %v2309 = vld [vmem:[%s5 + $0xd8] sm:$0xff]
      %v2310 = vld [vmem:[%s5 + $0xe0] sm:$0xff]
      %v2311 = vld [vmem:[%s5 + $0xe8] sm:$0xff]
      %v2312 = vld [vmem:[%s5 + $0xf0] sm:$0xff]
      %v2313 = vld [vmem:[%s5 + $0xf8] sm:$0xff]
      %v2314 = vld [vmem:[%s6] sm:$0x1]
      %2315 = vmatprep.subr.mxu0 0.0
      %2316 = vmatpush1.msra.mxu0 %v2282
      %2317 = vmatprep.subr.mxu0 0.0
      %2318 = vmatpush1.msra.mxu0 %v2283
      %2319 = vmatprep.subr.mxu0 0.0
      %2320 = vmatpush1.msra.mxu0 %v2284
      %2321 = vmatprep.subr.mxu0 0.0
      %2322 = vmatpush1.msra.mxu0 %v2285
      %2323 = vmatprep.subr.mxu0 0.0
      %2324 = vmatpush1.msra.mxu0 %v2286
      %2325 = vmatprep.subr.mxu0 0.0
      %2326 = vmatpush1.msra.mxu0 %v2287
      %2327 = vmatprep.subr.mxu0 0.0
      %2328 = vmatpush1.msra.mxu0 %v2288
      %2329 = vmatprep.subr.mxu0 0.0
      %2330 = vmatpush1.msra.mxu0 %v2289
      %2331 = vmatprep.subr.mxu0 0.0
      %2332 = vmatpush1.msra.mxu0 %v2290
      %2333 = vmatprep.subr.mxu0 0.0
      %2334 = vmatpush1.msra.mxu0 %v2291
      %2335 = vmatprep.subr.mxu0 0.0
      %2336 = vmatpush1.msra.mxu0 %v2292
      %2337 = vmatprep.subr.mxu0 0.0
      %2338 = vmatpush1.msra.mxu0 %v2293
      %2339 = vmatprep.subr.mxu0 0.0
      %2340 = vmatpush1.msra.mxu0 %v2294
      %2341 = vmatprep.subr.mxu0 0.0
      %2342 = vmatpush1.msra.mxu0 %v2295
      %2343 = vmatprep.subr.mxu0 0.0
      %2344 = vmatpush1.msra.mxu0 %v2296
      %2345 = vmatprep.subr.mxu0 0.0
      %2346 = vmatpush1.msra.mxu0 %v2297
      %2347 = vmatprep.subr.mxu0 0.0
      %2348 = vmatpush1.msra.mxu0 %v2298
      %2349 = vmatprep.subr.mxu0 0.0
      %2350 = vmatpush1.msra.mxu0 %v2299
      %2351 = vmatprep.subr.mxu0 0.0
      %2352 = vmatpush1.msra.mxu0 %v2300
      %2353 = vmatprep.subr.mxu0 0.0
      %2354 = vmatpush1.msra.mxu0 %v2301
      %2355 = vmatprep.subr.mxu0 0.0
      %2356 = vmatpush1.msra.mxu0 %v2302
      %2357 = vmatprep.subr.mxu0 0.0
      %2358 = vmatpush1.msra.mxu0 %v2303
      %2359 = vmatprep.subr.mxu0 0.0
      %2360 = vmatpush1.msra.mxu0 %v2304
      %2361 = vmatprep.subr.mxu0 0.0
      %2362 = vmatpush1.msra.mxu0 %v2305
      %2363 = vmatprep.subr.mxu0 0.0
      %2364 = vmatpush1.msra.mxu0 %v2306
      %2365 = vmatprep.subr.mxu0 0.0
      %2366 = vmatpush1.msra.mxu0 %v2307
      %2367 = vmatprep.subr.mxu0 0.0
      %2368 = vmatpush1.msra.mxu0 %v2308
      %2369 = vmatprep.subr.mxu0 0.0
      %2370 = vmatpush1.msra.mxu0 %v2309
      %2371 = vmatprep.subr.mxu0 0.0
      %2372 = vmatpush1.msra.mxu0 %v2310
      %2373 = vmatprep.subr.mxu0 0.0
      %2374 = vmatpush1.msra.mxu0 %v2311
      %2375 = vmatprep.subr.mxu0 0.0
      %2376 = vmatpush1.msra.mxu0 %v2312
      %2377 = vmatprep.subr.mxu0 0.0
      %2378 = vmatpush1.msra.mxu0 %v2313
      %2379 = vmatprep.mubr.f32.mxu0 %v2281
      %2380 = vmatmul.mubr.f32.gmra.mrb[0].mxu0 %v2280
      %v2381 = vpop.f32.mrb[0].mxu0
      %v2382 = vadd.f32 %v2314, %v2381
      %v2383 = vpop.f32.mrb[0].mxu0
      %2384 = vdwg.mxu0
      %v2385 = vxor.u32 %v2382, 2147483648
      %v2386 = vmul.f32 %v2385, 1.442695
      %v2387 = vpow.pop %v2386
      %v2388 = vadd.f32 %v2387, 1.0
      %v2389 = vrcp.pop %v2388
      %v2390 = vmul.f32 1.0, %v2389
      %v2391 = vmul.f32 %v2382, %v2390
      %v2392 = vld [vmem:[%s7] sm:$0xff]
      %v2393 = vld [vmem:[%s7 + $0x8] sm:$0xff]
      %v2394 = vld [vmem:[%s7 + $0x10] sm:$0xff]
      %v2395 = vld [vmem:[%s7 + $0x18] sm:$0xff]
      %v2396 = vld [vmem:[%s7 + $0x20] sm:$0xff]
      %v2397 = vld [vmem:[%s7 + $0x28] sm:$0xff]
      %v2398 = vld [vmem:[%s7 + $0x30] sm:$0xff]
      %v2399 = vld [vmem:[%s7 + $0x38] sm:$0xff]
      %v2400 = vld [vmem:[%s8] sm:$0x3]
      %v2402 = vlaneseq
      %v2403 = vshrl.u32 %v2402, 7
      %v2404 = vsub.s32 0, %v2403
      %v2405 = vrot.slane %v2400, %v2404
      %v2406 = vlaneseq
      %v2407 = vshrl.u32 %v2406, 7
      %v2408 = vsub.s32 1, %v2407
      %v2409 = vrot.slane %v2400, %v2408
      %vm2412 = vcmask 261120
      %v2414 = vsel %vm2412, %v2391, 0
      %2416 = vmatprep.subr.mxu0 %v2393
      %2417 = vmatpush1.msra.mxu0 %v2392
      %2418 = vmatprep.subr.mxu0 %v2395
      %2419 = vmatpush1.msra.mxu0 %v2394
      %2420 = vmatprep.subr.mxu0 %v2397
      %2421 = vmatpush1.msra.mxu0 %v2396
      %2422 = vmatprep.subr.mxu0 %v2399
      %2423 = vmatpush1.msra.mxu0 %v2398
      %2424 = vmatprep.subr.mxu0 0.0
      %2425 = vmatpush1.msra.mxu0 0.0
      %2426 = vmatprep.subr.mxu0 0.0
      %2427 = vmatpush1.msra.mxu0 0.0
      %2428 = vmatprep.subr.mxu0 0.0
      %2429 = vmatpush1.msra.mxu0 0.0
      %2430 = vmatprep.subr.mxu0 0.0
      %2431 = vmatpush1.msra.mxu0 0.0
      %2432 = vmatprep.subr.mxu0 0.0
      %2433 = vmatpush1.msra.mxu0 0.0
      %2434 = vmatprep.subr.mxu0 0.0
      %2435 = vmatpush1.msra.mxu0 0.0
      %2436 = vmatprep.subr.mxu0 0.0
      %2437 = vmatpush1.msra.mxu0 0.0
      %2438 = vmatprep.subr.mxu0 0.0
      %2439 = vmatpush1.msra.mxu0 0.0
      %2440 = vmatprep.subr.mxu0 0.0
      %2441 = vmatpush1.msra.mxu0 0.0
      %2442 = vmatprep.subr.mxu0 0.0
      %2443 = vmatpush1.msra.mxu0 0.0
      %2444 = vmatprep.subr.mxu0 0.0
      %2445 = vmatpush1.msra.mxu0 0.0
      %2446 = vmatprep.subr.mxu0 0.0
      %2447 = vmatpush1.msra.mxu0 0.0
      %2448 = vmatprep.subr.mxu0 0.0
      %2449 = vmatpush1.msra.mxu0 0.0
      %2450 = vmatprep.subr.mxu0 0.0
      %2451 = vmatpush1.msra.mxu0 0.0
      %2452 = vmatprep.subr.mxu0 0.0
      %2453 = vmatpush1.msra.mxu0 0.0
      %2454 = vmatprep.subr.mxu0 0.0
      %2455 = vmatpush1.msra.mxu0 0.0
      %2456 = vmatprep.subr.mxu0 0.0
      %2457 = vmatpush1.msra.mxu0 0.0
      %2458 = vmatprep.subr.mxu0 0.0
      %2459 = vmatpush1.msra.mxu0 0.0
      %2460 = vmatprep.subr.mxu0 0.0
      %2461 = vmatpush1.msra.mxu0 0.0
      %2462 = vmatprep.subr.mxu0 0.0
      %2463 = vmatpush1.msra.mxu0 0.0
      %2464 = vmatprep.subr.mxu0 0.0
      %2465 = vmatpush1.msra.mxu0 0.0
      %2466 = vmatprep.subr.mxu0 0.0
      %2467 = vmatpush1.msra.mxu0 0.0
      %2468 = vmatprep.subr.mxu0 0.0
      %2469 = vmatpush1.msra.mxu0 0.0
      %2470 = vmatprep.subr.mxu0 0.0
      %2471 = vmatpush1.msra.mxu0 0.0
      %2472 = vmatprep.subr.mxu0 0.0
      %2473 = vmatpush1.msra.mxu0 0.0
      %2474 = vmatprep.subr.mxu0 0.0
      %2475 = vmatpush1.msra.mxu0 0.0
      %2476 = vmatprep.subr.mxu0 0.0
      %2477 = vmatpush1.msra.mxu0 0.0
      %2478 = vmatprep.subr.mxu0 0.0
      %2479 = vmatpush1.msra.mxu0 0.0
      %2480 = vmatprep.mubr.f32.mxu0 0.0
      %2481 = vmatmul.mubr.f32.gmra.mrb[0].mxu0 %v2414
      %v2482 = vpop.f32.mrb[0].mxu0
      %v2483 = vadd.f32 %v2405, %v2482
      %v2484 = vpop.f32.mrb[0].mxu0
      %v2485 = vadd.f32 %v2409, %v2484
      %2486 = vdwg.mxu0
      %v2487 = vxor.u32 %v2483, 2147483648
      %v2488 = vxor.u32 %v2485, 2147483648
      %v2489 = vmul.f32 %v2487, 1.442695
      %v2490 = vpow.pop %v2489
      %v2491 = vmul.f32 %v2488, 1.442695
      %v2492 = vpow.pop %v2491
      %v2493 = vadd.f32 %v2490, 1.0
      %v2494 = vadd.f32 %v2492, 1.0
      %v2495 = vrcp.pop %v2493
      %v2496 = vmul.f32 1.0, %v2495
      %v2497 = vrcp.pop %v2494
      %v2498 = vmul.f32 1.0, %v2497
      %v2499 = vlaneseq
      %v2500 = vshrl.u32 %v2499, 7
      %v2501 = vsub.s32 0, %v2500
      %v2502 = vrot.slane %v2496, %v2501
      %v2503 = vlaneseq
      %v2504 = vshrl.u32 %v2503, 7
      %v2505 = vsub.s32 0, %v2504
      %v2506 = vrot.slane %v2498, %v2505
      %v2507 = vmul.f32 %v2237, %v2502
      %v2508 = vmul.f32 %v2238, %v2506
      %v2509 = vmul.f32 %v2239, %v2502
      %v2510 = vmul.f32 %v2240, %v2506
      %v2511 = vmul.f32 %v2241, %v2502
      %v2512 = vmul.f32 %v2242, %v2506
      %v2513 = vmul.f32 %v2243, %v2502
      %v2514 = vmul.f32 %v2244, %v2506
      %v2515 = vmul.f32 %v2245, %v2502
      %v2516 = vmul.f32 %v2246, %v2506
      %v2517 = vmul.f32 %v2247, %v2502
      %v2518 = vmul.f32 %v2248, %v2506
      %v2519 = vmul.f32 %v2249, %v2502
      %v2520 = vmul.f32 %v2250, %v2506
      %v2521 = vmul.f32 %v2251, %v2502
      %v2522 = vmul.f32 %v2252, %v2506
      %v2523 = vpack.c.bf16 %v2509, %v2507
      %v2524 = vpack.c.bf16 %v2510, %v2508
      %v2525 = vpack.c.bf16 %v2513, %v2511
      %v2526 = vpack.c.bf16 %v2514, %v2512
      %v2527 = vpack.c.bf16 %v2517, %v2515
      %v2528 = vpack.c.bf16 %v2518, %v2516
      %v2529 = vpack.c.bf16 %v2521, %v2519
      %v2530 = vpack.c.bf16 %v2522, %v2520
      %v2531 = vld [vmem:[%s9] sm:$0xf]
      %v2532 = vld [vmem:[%s9 + $0x4] sm:$0xf]
      %v2533 = vld [vmem:[%s9 + $0x8] sm:$0xf]
      %v2534 = vld [vmem:[%s9 + $0xc] sm:$0xf]
      %v2535 = vld [vmem:[%s9 + $0x10] sm:$0xf]
      %v2536 = vld [vmem:[%s9 + $0x14] sm:$0xf]
      %v2537 = vld [vmem:[%s9 + $0x18] sm:$0xf]
      %v2538 = vld [vmem:[%s9 + $0x1c] sm:$0xf]
      %v2539 = vld [vmem:[%s9 + $0x20] sm:$0xf]
      %v2540 = vld [vmem:[%s9 + $0x24] sm:$0xf]
      %v2541 = vld [vmem:[%s9 + $0x28] sm:$0xf]
      %v2542 = vld [vmem:[%s9 + $0x2c] sm:$0xf]
      %v2543 = vld [vmem:[%s9 + $0x30] sm:$0xf]
      %v2544 = vld [vmem:[%s9 + $0x34] sm:$0xf]
      %v2545 = vld [vmem:[%s9 + $0x38] sm:$0xf]
      %v2546 = vld [vmem:[%s9 + $0x3c] sm:$0xf]
      %v2547 = vld [vmem:[%s9 + $0x40] sm:$0xf]
      %v2548 = vld [vmem:[%s9 + $0x44] sm:$0xf]
      %v2549 = vld [vmem:[%s9 + $0x48] sm:$0xf]
      %v2550 = vld [vmem:[%s9 + $0x4c] sm:$0xf]
      %v2551 = vld [vmem:[%s9 + $0x50] sm:$0xf]
      %v2552 = vld [vmem:[%s9 + $0x54] sm:$0xf]
      %v2553 = vld [vmem:[%s9 + $0x58] sm:$0xf]
      %v2554 = vld [vmem:[%s9 + $0x5c] sm:$0xf]
      %v2555 = vld [vmem:[%s9 + $0x60] sm:$0xf]
      %v2556 = vld [vmem:[%s9 + $0x64] sm:$0xf]
      %v2557 = vld [vmem:[%s9 + $0x68] sm:$0xf]
      %v2558 = vld [vmem:[%s9 + $0x6c] sm:$0xf]
      %v2559 = vld [vmem:[%s9 + $0x70] sm:$0xf]
      %v2560 = vld [vmem:[%s9 + $0x74] sm:$0xf]
      %v2561 = vld [vmem:[%s9 + $0x78] sm:$0xf]
      %v2562 = vld [vmem:[%s9 + $0x7c] sm:$0xf]
      %v2563 = vld [vmem:[%s10] sm:$0x1]
      %v2565 = vlaneseq
      %v2566 = vshrl.u32 %v2565, 7
      %v2567 = vsub.s32 0, %v2566
      %v2568 = vrot.slane %v2563, %v2567
      %v2602 = vunpack.c.l.b16 %v2531
      %v2603 = vunpack.c.l.b16 %v2532
      %v2604 = vunpack.c.l.b16 %v2533
      %v2605 = vunpack.c.l.b16 %v2534
      %v2606 = vunpack.c.l.b16 %v2535
      %v2607 = vunpack.c.l.b16 %v2536
      %v2608 = vunpack.c.l.b16 %v2537
      %v2609 = vunpack.c.l.b16 %v2538
      %v2610 = vunpack.c.l.b16 %v2539
      %v2611 = vunpack.c.l.b16 %v2540
      %v2612 = vunpack.c.l.b16 %v2541
      %v2613 = vunpack.c.l.b16 %v2542
      %v2614 = vunpack.c.l.b16 %v2543
      %v2615 = vunpack.c.l.b16 %v2544
      %v2616 = vunpack.c.l.b16 %v2545
      %v2617 = vunpack.c.l.b16 %v2546
      %v2618 = vunpack.c.l.b16 %v2547
      %v2619 = vunpack.c.l.b16 %v2548
      %v2620 = vunpack.c.l.b16 %v2549
      %v2621 = vunpack.c.l.b16 %v2550
      %v2622 = vunpack.c.l.b16 %v2551
      %v2623 = vunpack.c.l.b16 %v2552
      %v2624 = vunpack.c.l.b16 %v2553
      %v2625 = vunpack.c.l.b16 %v2554
      %v2626 = vunpack.c.l.b16 %v2555
      %v2627 = vunpack.c.l.b16 %v2556
      %v2628 = vunpack.c.l.b16 %v2557
      %v2629 = vunpack.c.l.b16 %v2558
      %v2630 = vunpack.c.l.b16 %v2559
      %v2631 = vunpack.c.l.b16 %v2560
      %v2632 = vunpack.c.l.b16 %v2561
      %v2633 = vunpack.c.l.b16 %v2562
      %v2634 = vpack.c.b16 %v2603, %v2602
      %v2635 = vpack.c.b16 %v2605, %v2604
      %v2636 = vpack.c.b16 %v2607, %v2606
      %v2637 = vpack.c.b16 %v2609, %v2608
      %v2638 = vpack.c.b16 %v2611, %v2610
      %v2639 = vpack.c.b16 %v2613, %v2612
      %v2640 = vpack.c.b16 %v2615, %v2614
      %v2641 = vpack.c.b16 %v2617, %v2616
      %v2642 = vpack.c.b16 %v2619, %v2618
      %v2643 = vpack.c.b16 %v2621, %v2620
      %v2644 = vpack.c.b16 %v2623, %v2622
      %v2645 = vpack.c.b16 %v2625, %v2624
      %v2646 = vpack.c.b16 %v2627, %v2626
      %v2647 = vpack.c.b16 %v2629, %v2628
      %v2648 = vpack.c.b16 %v2631, %v2630
      %v2649 = vpack.c.b16 %v2633, %v2632
      %2666 = vmatprep.subr.bf16.mxu0 0
      %2667 = vmatpush1.bf16.msra.mxu0 %v2634
      %2668 = vmatprep.subr.bf16.mxu0 0
      %2669 = vmatpush1.bf16.msra.mxu0 %v2635
      %2670 = vmatprep.subr.bf16.mxu0 0
      %2671 = vmatpush1.bf16.msra.mxu0 %v2636
      %2672 = vmatprep.subr.bf16.mxu0 0
      %2673 = vmatpush1.bf16.msra.mxu0 %v2637
      %2674 = vmatprep.subr.bf16.mxu0 0
      %2675 = vmatpush1.bf16.msra.mxu0 %v2638
      %2676 = vmatprep.subr.bf16.mxu0 0
      %2677 = vmatpush1.bf16.msra.mxu0 %v2639
      %2678 = vmatprep.subr.bf16.mxu0 0
      %2679 = vmatpush1.bf16.msra.mxu0 %v2640
      %2680 = vmatprep.subr.bf16.mxu0 0
      %2681 = vmatpush1.bf16.msra.mxu0 %v2641
      %2682 = vmatprep.subr.bf16.mxu0 0
      %2683 = vmatpush1.bf16.msra.mxu0 %v2642
      %2684 = vmatprep.subr.bf16.mxu0 0
      %2685 = vmatpush1.bf16.msra.mxu0 %v2643
      %2686 = vmatprep.subr.bf16.mxu0 0
      %2687 = vmatpush1.bf16.msra.mxu0 %v2644
      %2688 = vmatprep.subr.bf16.mxu0 0
      %2689 = vmatpush1.bf16.msra.mxu0 %v2645
      %2690 = vmatprep.subr.bf16.mxu0 0
      %2691 = vmatpush1.bf16.msra.mxu0 %v2646
      %2692 = vmatprep.subr.bf16.mxu0 0
      %2693 = vmatpush1.bf16.msra.mxu0 %v2647
      %2694 = vmatprep.subr.bf16.mxu0 0
      %2695 = vmatpush1.bf16.msra.mxu0 %v2648
      %2696 = vmatprep.subr.bf16.mxu0 0
      %2697 = vmatpush1.bf16.msra.mxu0 %v2649
      %2698 = vmatprep.mubr.bf16.mxu0 %v2524
      %2699 = vmatmul.mubr.bf16.gmra.mrb[0].mxu0 %v2523
      %v2700 = vpop.f32.mrb[0].mxu0
      %v2701 = vadd.f32 %v2568, %v2700
      %v2702 = vpop.f32.mrb[0].mxu0
      %v2703 = vpop.f32.mrb[0].mxu0
      %v2704 = vadd.f32 %v2568, %v2703
      %v2705 = vpop.f32.mrb[0].mxu0
      %2706 = vmatprep.mubr.bf16.mxu0 %v2526
      %2707 = vmatmul.mubr.bf16.gmra.mrb[0].mxu0 %v2525
      %v2708 = vpop.f32.mrb[0].mxu0
      %v2709 = vadd.f32 %v2568, %v2708
      %v2710 = vpop.f32.mrb[0].mxu0
      %v2711 = vpop.f32.mrb[0].mxu0
      %v2712 = vadd.f32 %v2568, %v2711
      %v2713 = vpop.f32.mrb[0].mxu0
      %2714 = vmatprep.mubr.bf16.mxu0 %v2528
      %2715 = vmatmul.mubr.bf16.gmra.mrb[0].mxu0 %v2527
      %v2716 = vpop.f32.mrb[0].mxu0
      %v2717 = vadd.f32 %v2568, %v2716
      %v2718 = vpop.f32.mrb[0].mxu0
      %v2719 = vpop.f32.mrb[0].mxu0
      %v2720 = vadd.f32 %v2568, %v2719
      %v2721 = vpop.f32.mrb[0].mxu0
      %2722 = vmatprep.mubr.bf16.mxu0 %v2530
      %2723 = vmatmul.mubr.bf16.gmra.mrb[0].mxu0 %v2529
      %v2724 = vpop.f32.mrb[0].mxu0
      %v2725 = vadd.f32 %v2568, %v2724
      %v2726 = vpop.f32.mrb[0].mxu0
      %v2727 = vpop.f32.mrb[0].mxu0
      %v2728 = vadd.f32 %v2568, %v2727
      %v2729 = vpop.f32.mrb[0].mxu0
      %2730 = vdwg.mxu0
      %v2731 = vunpack.c.l.bf16 %v388
      %v2732 = vunpack.c.l.bf16 %v389
      %v2733 = vunpack.c.l.bf16 %v390
      %v2734 = vunpack.c.l.bf16 %v391
      %v2735 = vunpack.c.l.bf16 %v392
      %v2736 = vunpack.c.l.bf16 %v393
      %v2737 = vunpack.c.l.bf16 %v394
      %v2738 = vunpack.c.l.bf16 %v395
      %v2739 = vadd.f32 %v2701, %v2731
      %v2740 = vadd.f32 %v2704, %v2732
      %v2741 = vadd.f32 %v2709, %v2733
      %v2742 = vadd.f32 %v2712, %v2734
      %v2743 = vadd.f32 %v2717, %v2735
      %v2744 = vadd.f32 %v2720, %v2736
      %v2745 = vadd.f32 %v2725, %v2737
      %v2746 = vadd.f32 %v2728, %v2738
      %v2747 = vpack.c.bf16 %v2739, %v2739
      %v2748 = vpack.c.bf16 %v2740, %v2740
      %v2749 = vpack.c.bf16 %v2741, %v2741
      %v2750 = vpack.c.bf16 %v2742, %v2742
      %v2751 = vpack.c.bf16 %v2743, %v2743
      %v2752 = vpack.c.bf16 %v2744, %v2744
      %v2753 = vpack.c.bf16 %v2745, %v2745
      %v2754 = vpack.c.bf16 %v2746, %v2746
      %2755 = vst [vmem:[%s386] sm:$0xf] %v2747
      %2756 = vst [vmem:[%s386 + $0x4] sm:$0xf] %v2748
      %2757 = vst [vmem:[%s386 + $0x8] sm:$0xf] %v2749
      %2758 = vst [vmem:[%s386 + $0xc] sm:$0xf] %v2750
      %2759 = vst [vmem:[%s386 + $0x10] sm:$0xf] %v2751
      %2760 = vst [vmem:[%s386 + $0x14] sm:$0xf] %v2752
      %2761 = vst [vmem:[%s386 + $0x18] sm:$0xf] %v2753
      %2762 = vst [vmem:[%s386 + $0x1c] sm:$0xf] %v2754
      %p2763 = scmp.lt.s32.totalorder %s22, 1
      %s2764 = scalar_select %p2763, %s22, 1
      %s2765 = smul.addr %s2764, 8
      %s2766 = smul.addr %s2765, 4
      %s2767 = scalar_lea.vmem %s11, %s2766
      // Predicated region
      $region65: #{efficientnet_forward.6} parent=63 // pred_check
        %p2768 = pneg %p276
      $region66: #{efficientnet_forward.6} parent=63 // pred_check_branch
        %2770 = sbr.rel (%p2768) target = $region68
      $region67: #{efficientnet_forward.6} parent=63 // pred_region
        _
      $region68: #{efficientnet_forward.6} parent=63 // pred_fallthru
        _
    $region64: #{efficientnet_forward.6} parent=5 // pred_fallthru
      _
    %p2771 = scmp.le.s32.totalorder 2, %s17
    // Predicated region
    $region69: #{efficientnet_forward.6} parent=5 // pred_check
      %p2772 = pneg %p2771
    $region70: #{efficientnet_forward.6} parent=5 // pred_check_branch
      %2774 = sbr.rel (%p2772) target = $region72
    $region71: #{efficientnet_forward.6} parent=5 // pred_region
      %s2775 = ssub.s32 %s17, 2
      // Predicated region
      $region73: #{efficientnet_forward.6} parent=71 // pred_check
        %p2776 = pneg %p282
      $region74: #{efficientnet_forward.6} parent=71 // pred_check_branch
        %2778 = sbr.rel (%p2776) target = $region76
      $region75: #{efficientnet_forward.6} parent=71 // pred_region
        %p2779 = scmp.lt.s32.totalorder %s23, 1
        %s2780 = scalar_select %p2779, %s23, 1
        %s2781 = smul.addr %s2780, 8
        %s2782 = smul.addr %s2781, 4
        %s2783 = scalar_lea.vmem %s11, %s2782
      $region76: #{efficientnet_forward.6} parent=71 // pred_fallthru
        _
    $region72: #{efficientnet_forward.6} parent=5 // pred_fallthru
      _
  $region6: #{efficientnet_forward.6} parent=0 // loop_footer
    %s21 = sadd.s32 1, %s17
  $region7: #{efficientnet_forward.6} parent=0 // loop_footer_branch
    %16 = sbr.rel target = $region3
  $region8: #{efficientnet_forward.6} parent=0 // loop_exit
    _

// kernel: efficientnet_forward.8
$region0: #{efficientnet_forward.8}
  #allocation0 [shape = 'u32[]', space=smem, size = 0x4, offset = 0x4, fixed_abs, tag = 'smem constant byte address 0x4 - core index']
  #allocation1 [shape = 'u32[144,128]{1,0:T(1,128)}', space=vmem, size = 0x12000, scoped, tag = 'internal scratch']
  %s0 = inlined_call_operand.vmem [shape: bf16[128,128], index: 0, kind: input, shape index: {}]
  %s1 = inlined_call_operand.vmem [shape: bf16[128,1280], index: 1, kind: input, shape index: {}]
  %s2 = inlined_call_operand.vmem [shape: f32[1,1280], index: 2, kind: input, shape index: {}]
  %s3 = inlined_call_operand.vmem [shape: bf16[128,1280], index: 3, kind: output, shape index: {}]
  %s4 = sld [smem:[#allocation0]]
  $region22: #{efficientnet_forward.8} parent=0
    _
  %s6 = ssub.s32 1, %s4
  %s7 = scalar_select 0, %s6, %s4
  // Predicated region
  $region2: #{efficientnet_forward.8} parent=0 // pred_check
    _
  $region3: #{efficientnet_forward.8} parent=0 // pred_check_branch
    %9 = sbr.rel (0) target = $region5
  $region4: #{efficientnet_forward.8} parent=0 // pred_region
    _
  $region5: #{efficientnet_forward.8} parent=0 // pred_fallthru
    _
  // Predicated region
  $region6: #{efficientnet_forward.8} parent=0 // pred_check
    _
  $region7: #{efficientnet_forward.8} parent=0 // pred_check_branch
    %11 = sbr.rel (0) target = $region9
  $region8: #{efficientnet_forward.8} parent=0 // pred_region
    _
  $region9: #{efficientnet_forward.8} parent=0 // pred_fallthru
    _
  // Predicated region
  $region10: #{efficientnet_forward.8} parent=0 // pred_check
    _
  $region11: #{efficientnet_forward.8} parent=0 // pred_check_branch
    %13 = sbr.rel (0) target = $region13
  $region12: #{efficientnet_forward.8} parent=0 // pred_region
    _
  $region13: #{efficientnet_forward.8} parent=0 // pred_fallthru
    _
  %v15 = vld [vmem:[%s0] sm:$0xf]
  %v16 = vld [vmem:[%s0 + $0x4] sm:$0xf]
  %v17 = vld [vmem:[%s0 + $0x8] sm:$0xf]
  %v18 = vld [vmem:[%s0 + $0xc] sm:$0xf]
  %v19 = vld [vmem:[%s0 + $0x10] sm:$0xf]
  %v20 = vld [vmem:[%s0 + $0x14] sm:$0xf]
  %v21 = vld [vmem:[%s0 + $0x18] sm:$0xf]
  %v22 = vld [vmem:[%s0 + $0x1c] sm:$0xf]
  %v23 = vld [vmem:[%s0 + $0x20] sm:$0xf]
  %v24 = vld [vmem:[%s0 + $0x24] sm:$0xf]
  %v25 = vld [vmem:[%s0 + $0x28] sm:$0xf]
  %v26 = vld [vmem:[%s0 + $0x2c] sm:$0xf]
  %v27 = vld [vmem:[%s0 + $0x30] sm:$0xf]
  %v28 = vld [vmem:[%s0 + $0x34] sm:$0xf]
  %v29 = vld [vmem:[%s0 + $0x38] sm:$0xf]
  %v30 = vld [vmem:[%s0 + $0x3c] sm:$0xf]
  %v31 = vld [vmem:[%s1] sm:$0xff]
  %v32 = vld [vmem:[%s1 + $0x8] sm:$0xff]
  %v33 = vld [vmem:[%s1 + $0x10] sm:$0xff]
  %v34 = vld [vmem:[%s1 + $0x18] sm:$0xff]
  %v35 = vld [vmem:[%s1 + $0x20] sm:$0xff]
  %v36 = vld [vmem:[%s1 + $0x28] sm:$0xff]
  %v37 = vld [vmem:[%s1 + $0x30] sm:$0xff]
  %v38 = vld [vmem:[%s1 + $0x38] sm:$0xff]
  %v39 = vld [vmem:[%s1 + $0x40] sm:$0xff]
  %v40 = vld [vmem:[%s1 + $0x48] sm:$0xff]
  %v41 = vld [vmem:[%s1 + $0x50] sm:$0xff]
  %v42 = vld [vmem:[%s1 + $0x58] sm:$0xff]
  %v43 = vld [vmem:[%s1 + $0x60] sm:$0xff]
  %v44 = vld [vmem:[%s1 + $0x68] sm:$0xff]
  %v45 = vld [vmem:[%s1 + $0x70] sm:$0xff]
  %v46 = vld [vmem:[%s1 + $0x78] sm:$0xff]
  %v47 = vld [vmem:[%s1 + $0x80] sm:$0xff]
  %v48 = vld [vmem:[%s1 + $0x88] sm:$0xff]
  %v49 = vld [vmem:[%s1 + $0x90] sm:$0xff]
  %v50 = vld [vmem:[%s1 + $0x98] sm:$0xff]
  %v51 = vld [vmem:[%s1 + $0xa0] sm:$0xff]
  %v52 = vld [vmem:[%s1 + $0xa8] sm:$0xff]
  %v53 = vld [vmem:[%s1 + $0xb0] sm:$0xff]
  %v54 = vld [vmem:[%s1 + $0xb8] sm:$0xff]
  %v55 = vld [vmem:[%s1 + $0xc0] sm:$0xff]
  %v56 = vld [vmem:[%s1 + $0xc8] sm:$0xff]
  %v57 = vld [vmem:[%s1 + $0xd0] sm:$0xff]
  %v58 = vld [vmem:[%s1 + $0xd8] sm:$0xff]
  %v59 = vld [vmem:[%s1 + $0xe0] sm:$0xff]
  %v60 = vld [vmem:[%s1 + $0xe8] sm:$0xff]
  %v61 = vld [vmem:[%s1 + $0xf0] sm:$0xff]
  %v62 = vld [vmem:[%s1 + $0xf8] sm:$0xff]
  %v63 = vld [vmem:[%s1 + $0x100] sm:$0xff]
  %v64 = vld [vmem:[%s1 + $0x108] sm:$0xff]
  %v65 = vld [vmem:[%s1 + $0x110] sm:$0xff]
  %v66 = vld [vmem:[%s1 + $0x118] sm:$0xff]
  %v67 = vld [vmem:[%s1 + $0x120] sm:$0xff]
  %v68 = vld [vmem:[%s1 + $0x128] sm:$0xff]
  %v69 = vld [vmem:[%s1 + $0x130] sm:$0xff]
  %v70 = vld [vmem:[%s1 + $0x138] sm:$0xff]
  %v71 = vld [vmem:[%s1 + $0x140] sm:$0xff]
  %v72 = vld [vmem:[%s1 + $0x148] sm:$0xff]
  %v73 = vld [vmem:[%s1 + $0x150] sm:$0xff]
  %v74 = vld [vmem:[%s1 + $0x158] sm:$0xff]
  %v75 = vld [vmem:[%s1 + $0x160] sm:$0xff]
  %v76 = vld [vmem:[%s1 + $0x168] sm:$0xff]
  %v77 = vld [vmem:[%s1 + $0x170] sm:$0xff]
  %v78 = vld [vmem:[%s1 + $0x178] sm:$0xff]
  %v79 = vld [vmem:[%s1 + $0x180] sm:$0xff]
  %v80 = vld [vmem:[%s1 + $0x188] sm:$0xff]
  %v81 = vld [vmem:[%s1 + $0x190] sm:$0xff]
  %v82 = vld [vmem:[%s1 + $0x198] sm:$0xff]
  %v83 = vld [vmem:[%s1 + $0x1a0] sm:$0xff]
  %v84 = vld [vmem:[%s1 + $0x1a8] sm:$0xff]
  %v85 = vld [vmem:[%s1 + $0x1b0] sm:$0xff]
  %v86 = vld [vmem:[%s1 + $0x1b8] sm:$0xff]
  %v87 = vld [vmem:[%s1 + $0x1c0] sm:$0xff]
  %v88 = vld [vmem:[%s1 + $0x1c8] sm:$0xff]
  %v89 = vld [vmem:[%s1 + $0x1d0] sm:$0xff]
  %v90 = vld [vmem:[%s1 + $0x1d8] sm:$0xff]
  %v91 = vld [vmem:[%s1 + $0x1e0] sm:$0xff]
  %v92 = vld [vmem:[%s1 + $0x1e8] sm:$0xff]
  %v93 = vld [vmem:[%s1 + $0x1f0] sm:$0xff]
  %v94 = vld [vmem:[%s1 + $0x1f8] sm:$0xff]
  %v95 = vld [vmem:[%s1 + $0x200] sm:$0xff]
  %v96 = vld [vmem:[%s1 + $0x208] sm:$0xff]
  %v97 = vld [vmem:[%s1 + $0x210] sm:$0xff]
  %v98 = vld [vmem:[%s1 + $0x218] sm:$0xff]
  %v99 = vld [vmem:[%s1 + $0x220] sm:$0xff]
  %v100 = vld [vmem:[%s1 + $0x228] sm:$0xff]
  %v101 = vld [vmem:[%s1 + $0x230] sm:$0xff]
  %v102 = vld [vmem:[%s1 + $0x238] sm:$0xff]
  %v103 = vld [vmem:[%s1 + $0x240] sm:$0xff]
  %v104 = vld [vmem:[%s1 + $0x248] sm:$0xff]
  %v105 = vld [vmem:[%s1 + $0x250] sm:$0xff]
  %v106 = vld [vmem:[%s1 + $0x258] sm:$0xff]
  %v107 = vld [vmem:[%s1 + $0x260] sm:$0xff]
  %v108 = vld [vmem:[%s1 + $0x268] sm:$0xff]
  %v109 = vld [vmem:[%s1 + $0x270] sm:$0xff]
  %v110 = vld [vmem:[%s1 + $0x278] sm:$0xff]
  %v111 = vld [vmem:[%s2] sm:$0xff]
  %v112 = vld [vmem:[%s2 + $0x8] sm:$0x3]
  %v115 = vlaneseq
  %v116 = vshrl.u32 %v115, 7
  %v117 = vsub.s32 0, %v116
  %v118 = vrot.slane %v111, %v117
  %v119 = vlaneseq
  %v120 = vshrl.u32 %v119, 7
  %v121 = vsub.s32 1, %v120
  %v122 = vrot.slane %v111, %v121
  %v123 = vlaneseq
  %v124 = vshrl.u32 %v123, 7
  %v125 = vsub.s32 2, %v124
  %v126 = vrot.slane %v111, %v125
  %v127 = vlaneseq
  %v128 = vshrl.u32 %v127, 7
  %v129 = vsub.s32 3, %v128
  %v130 = vrot.slane %v111, %v129
  %v131 = vlaneseq
  %v132 = vshrl.u32 %v131, 7
  %v133 = vsub.s32 4, %v132
  %v134 = vrot.slane %v111, %v133
  %v135 = vlaneseq
  %v136 = vshrl.u32 %v135, 7
  %v137 = vsub.s32 5, %v136
  %v138 = vrot.slane %v111, %v137
  %v139 = vlaneseq
  %v140 = vshrl.u32 %v139, 7
  %v141 = vsub.s32 6, %v140
  %v142 = vrot.slane %v111, %v141
  %v143 = vlaneseq
  %v144 = vshrl.u32 %v143, 7
  %v145 = vsub.s32 7, %v144
  %v146 = vrot.slane %v111, %v145
  %v147 = vlaneseq
  %v148 = vshrl.u32 %v147, 7
  %v149 = vsub.s32 0, %v148
  %v150 = vrot.slane %v112, %v149
  %v151 = vlaneseq
  %v152 = vshrl.u32 %v151, 7
  %v153 = vsub.s32 1, %v152
  %v154 = vrot.slane %v112, %v153
  %v181 = vunpack.c.l.b16 %v15
  %v182 = vunpack.c.l.b16 %v16
  %v183 = vunpack.c.l.b16 %v17
  %v184 = vunpack.c.l.b16 %v18
  %v185 = vunpack.c.l.b16 %v19
  %v186 = vunpack.c.l.b16 %v20
  %v187 = vunpack.c.l.b16 %v21
  %v188 = vunpack.c.l.b16 %v22
  %v189 = vunpack.c.l.b16 %v23
  %v190 = vunpack.c.l.b16 %v24
  %v191 = vunpack.c.l.b16 %v25
  %v192 = vunpack.c.l.b16 %v26
  %v193 = vunpack.c.l.b16 %v27
  %v194 = vunpack.c.l.b16 %v28
  %v195 = vunpack.c.l.b16 %v29
  %v196 = vunpack.c.l.b16 %v30
  %v197 = vpack.c.b16 %v182, %v181
  %v198 = vpack.c.b16 %v184, %v183
  %v199 = vpack.c.b16 %v186, %v185
  %v200 = vpack.c.b16 %v188, %v187
  %v201 = vpack.c.b16 %v190, %v189
  %v202 = vpack.c.b16 %v192, %v191
  %v203 = vpack.c.b16 %v194, %v193
  %v204 = vpack.c.b16 %v196, %v195
  %v293 = vunpack.c.l.b16 %v31
  %v294 = vunpack.c.h.b16 %v31
  %v295 = vunpack.c.l.b16 %v32
  %v296 = vunpack.c.h.b16 %v32
  %v297 = vunpack.c.l.b16 %v33
  %v298 = vunpack.c.h.b16 %v33
  %v299 = vunpack.c.l.b16 %v34
  %v300 = vunpack.c.h.b16 %v34
  %v301 = vunpack.c.l.b16 %v35
  %v302 = vunpack.c.h.b16 %v35
  %v303 = vunpack.c.l.b16 %v36
  %v304 = vunpack.c.h.b16 %v36
  %v305 = vunpack.c.l.b16 %v37
  %v306 = vunpack.c.h.b16 %v37
  %v307 = vunpack.c.l.b16 %v38
  %v308 = vunpack.c.h.b16 %v38
  %v309 = vunpack.c.l.b16 %v39
  %v310 = vunpack.c.h.b16 %v39
  %v311 = vunpack.c.l.b16 %v40
  %v312 = vunpack.c.h.b16 %v40
  %v313 = vunpack.c.l.b16 %v41
  %v314 = vunpack.c.h.b16 %v41
  %v315 = vunpack.c.l.b16 %v42
  %v316 = vunpack.c.h.b16 %v42
  %v317 = vunpack.c.l.b16 %v43
  %v318 = vunpack.c.h.b16 %v43
  %v319 = vunpack.c.l.b16 %v44
  %v320 = vunpack.c.h.b16 %v44
  %v321 = vunpack.c.l.b16 %v45
  %v322 = vunpack.c.h.b16 %v45
  %v323 = vunpack.c.l.b16 %v46
  %v324 = vunpack.c.h.b16 %v46
  %v325 = vunpack.c.l.b16 %v47
  %v326 = vunpack.c.h.b16 %v47
  %v327 = vunpack.c.l.b16 %v48
  %v328 = vunpack.c.h.b16 %v48
  %v329 = vunpack.c.l.b16 %v49
  %v330 = vunpack.c.h.b16 %v49
  %v331 = vunpack.c.l.b16 %v50
  %v332 = vunpack.c.h.b16 %v50
  %v333 = vunpack.c.l.b16 %v51
  %v334 = vunpack.c.h.b16 %v51
  %v335 = vunpack.c.l.b16 %v52
  %v336 = vunpack.c.h.b16 %v52
  %v337 = vunpack.c.l.b16 %v53
  %v338 = vunpack.c.h.b16 %v53
  %v339 = vunpack.c.l.b16 %v54
  %v340 = vunpack.c.h.b16 %v54
  %v341 = vunpack.c.l.b16 %v55
  %v342 = vunpack.c.h.b16 %v55
  %v343 = vunpack.c.l.b16 %v56
  %v344 = vunpack.c.h.b16 %v56
  %v345 = vunpack.c.l.b16 %v57
  %v346 = vunpack.c.h.b16 %v57
  %v347 = vunpack.c.l.b16 %v58
  %v348 = vunpack.c.h.b16 %v58
  %v349 = vunpack.c.l.b16 %v59
  %v350 = vunpack.c.h.b16 %v59
  %v351 = vunpack.c.l.b16 %v60
  %v352 = vunpack.c.h.b16 %v60
  %v353 = vunpack.c.l.b16 %v61
  %v354 = vunpack.c.h.b16 %v61
  %v355 = vunpack.c.l.b16 %v62
  %v356 = vunpack.c.h.b16 %v62
  %v357 = vunpack.c.l.b16 %v63
  %v358 = vunpack.c.h.b16 %v63
  %v359 = vunpack.c.l.b16 %v64
  %v360 = vunpack.c.h.b16 %v64
  %v361 = vunpack.c.l.b16 %v65
  %v362 = vunpack.c.h.b16 %v65
  %v363 = vunpack.c.l.b16 %v66
  %v364 = vunpack.c.h.b16 %v66
  %v365 = vunpack.c.l.b16 %v67
  %v366 = vunpack.c.h.b16 %v67
  %v367 = vunpack.c.l.b16 %v68
  %v368 = vunpack.c.h.b16 %v68
  %v369 = vunpack.c.l.b16 %v69
  %v370 = vunpack.c.h.b16 %v69
  %v371 = vunpack.c.l.b16 %v70
  %v372 = vunpack.c.h.b16 %v70
  %v373 = vunpack.c.l.b16 %v71
  %v374 = vunpack.c.h.b16 %v71
  %v375 = vunpack.c.l.b16 %v72
  %v376 = vunpack.c.h.b16 %v72
  %v377 = vunpack.c.l.b16 %v73
  %v378 = vunpack.c.h.b16 %v73
  %v379 = vunpack.c.l.b16 %v74
  %v380 = vunpack.c.h.b16 %v74
  %v381 = vunpack.c.l.b16 %v75
  %v382 = vunpack.c.h.b16 %v75
  %v383 = vunpack.c.l.b16 %v76
  %v384 = vunpack.c.h.b16 %v76
  %v385 = vunpack.c.l.b16 %v77
  %v386 = vunpack.c.h.b16 %v77
  %v387 = vunpack.c.l.b16 %v78
  %v388 = vunpack.c.h.b16 %v78
  %v389 = vunpack.c.l.b16 %v79
  %v390 = vunpack.c.h.b16 %v79
  %v391 = vunpack.c.l.b16 %v80
  %v392 = vunpack.c.h.b16 %v80
  %v393 = vunpack.c.l.b16 %v81
  %v394 = vunpack.c.h.b16 %v81
  %v395 = vunpack.c.l.b16 %v82
  %v396 = vunpack.c.h.b16 %v82
  %v397 = vunpack.c.l.b16 %v83
  %v398 = vunpack.c.h.b16 %v83
  %v399 = vunpack.c.l.b16 %v84
  %v400 = vunpack.c.h.b16 %v84
  %v401 = vunpack.c.l.b16 %v85
  %v402 = vunpack.c.h.b16 %v85
  %v403 = vunpack.c.l.b16 %v86
  %v404 = vunpack.c.h.b16 %v86
  %v405 = vunpack.c.l.b16 %v87
  %v406 = vunpack.c.h.b16 %v87
  %v407 = vunpack.c.l.b16 %v88
  %v408 = vunpack.c.h.b16 %v88
  %v409 = vunpack.c.l.b16 %v89
  %v410 = vunpack.c.h.b16 %v89
  %v411 = vunpack.c.l.b16 %v90
  %v412 = vunpack.c.h.b16 %v90
  %v413 = vunpack.c.l.b16 %v91
  %v414 = vunpack.c.h.b16 %v91
  %v415 = vunpack.c.l.b16 %v92
  %v416 = vunpack.c.h.b16 %v92
  %v417 = vunpack.c.l.b16 %v93
  %v418 = vunpack.c.h.b16 %v93
  %v419 = vunpack.c.l.b16 %v94
  %v420 = vunpack.c.h.b16 %v94
  %v421 = vunpack.c.l.b16 %v95
  %v422 = vunpack.c.h.b16 %v95
  %v423 = vunpack.c.l.b16 %v96
  %v424 = vunpack.c.h.b16 %v96
  %v425 = vunpack.c.l.b16 %v97
  %v426 = vunpack.c.h.b16 %v97
  %v427 = vunpack.c.l.b16 %v98
  %v428 = vunpack.c.h.b16 %v98
  %v429 = vunpack.c.l.b16 %v99
  %v430 = vunpack.c.h.b16 %v99
  %v431 = vunpack.c.l.b16 %v100
  %v432 = vunpack.c.h.b16 %v100
  %v433 = vunpack.c.l.b16 %v101
  %v434 = vunpack.c.h.b16 %v101
  %v435 = vunpack.c.l.b16 %v102
  %v436 = vunpack.c.h.b16 %v102
  %v437 = vunpack.c.l.b16 %v103
  %v438 = vunpack.c.h.b16 %v103
  %v439 = vunpack.c.l.b16 %v104
  %v440 = vunpack.c.h.b16 %v104
  %v441 = vunpack.c.l.b16 %v105
  %v442 = vunpack.c.h.b16 %v105
  %v443 = vunpack.c.l.b16 %v106
  %v444 = vunpack.c.h.b16 %v106
  %v445 = vunpack.c.l.b16 %v107
  %v446 = vunpack.c.h.b16 %v107
  %v447 = vunpack.c.l.b16 %v108
  %v448 = vunpack.c.h.b16 %v108
  %v449 = vunpack.c.l.b16 %v109
  %v450 = vunpack.c.h.b16 %v109
  %v451 = vunpack.c.l.b16 %v110
  %v452 = vunpack.c.h.b16 %v110
  %v453 = vpack.c.b16 %v303, %v293
  %v454 = vpack.c.b16 %v304, %v294
  %v455 = vpack.c.b16 %v305, %v295
  %v456 = vpack.c.b16 %v306, %v296
  %v457 = vpack.c.b16 %v307, %v297
  %v458 = vpack.c.b16 %v308, %v298
  %v459 = vpack.c.b16 %v309, %v299
  %v460 = vpack.c.b16 %v310, %v300
  %v461 = vpack.c.b16 %v311, %v301
  %v462 = vpack.c.b16 %v312, %v302
  %v463 = vpack.c.b16 %v323, %v313
  %v464 = vpack.c.b16 %v324, %v314
  %v465 = vpack.c.b16 %v325, %v315
  %v466 = vpack.c.b16 %v326, %v316
  %v467 = vpack.c.b16 %v327, %v317
  %v468 = vpack.c.b16 %v328, %v318
  %v469 = vpack.c.b16 %v329, %v319
  %v470 = vpack.c.b16 %v330, %v320
  %v471 = vpack.c.b16 %v331, %v321
  %v472 = vpack.c.b16 %v332, %v322
  %v473 = vpack.c.b16 %v343, %v333
  %v474 = vpack.c.b16 %v344, %v334
  %v475 = vpack.c.b16 %v345, %v335
  %v476 = vpack.c.b16 %v346, %v336
  %v477 = vpack.c.b16 %v347, %v337
  %v478 = vpack.c.b16 %v348, %v338
  %v479 = vpack.c.b16 %v349, %v339
  %v480 = vpack.c.b16 %v350, %v340
  %v481 = vpack.c.b16 %v351, %v341
  %v482 = vpack.c.b16 %v352, %v342
  %v483 = vpack.c.b16 %v363, %v353
  %v484 = vpack.c.b16 %v364, %v354
  %v485 = vpack.c.b16 %v365, %v355
  %v486 = vpack.c.b16 %v366, %v356
  %v487 = vpack.c.b16 %v367, %v357
  %v488 = vpack.c.b16 %v368, %v358
  %v489 = vpack.c.b16 %v369, %v359
  %v490 = vpack.c.b16 %v370, %v360
  %v491 = vpack.c.b16 %v371, %v361
  %v492 = vpack.c.b16 %v372, %v362
  %v493 = vpack.c.b16 %v383, %v373
  %v494 = vpack.c.b16 %v384, %v374
  %v495 = vpack.c.b16 %v385, %v375
  %v496 = vpack.c.b16 %v386, %v376
  %v497 = vpack.c.b16 %v387, %v377
  %v498 = vpack.c.b16 %v388, %v378
  %v499 = vpack.c.b16 %v389, %v379
  %v500 = vpack.c.b16 %v390, %v380
  %v501 = vpack.c.b16 %v391, %v381
  %v502 = vpack.c.b16 %v392, %v382
  %v503 = vpack.c.b16 %v403, %v393
  %v504 = vpack.c.b16 %v404, %v394
  %v505 = vpack.c.b16 %v405, %v395
  %v506 = vpack.c.b16 %v406, %v396
  %v507 = vpack.c.b16 %v407, %v397
  %v508 = vpack.c.b16 %v408, %v398
  %v509 = vpack.c.b16 %v409, %v399
  %v510 = vpack.c.b16 %v410, %v400
  %v511 = vpack.c.b16 %v411, %v401
  %v512 = vpack.c.b16 %v412, %v402
  %v513 = vpack.c.b16 %v423, %v413
  %v514 = vpack.c.b16 %v424, %v414
  %v515 = vpack.c.b16 %v425, %v415
  %v516 = vpack.c.b16 %v426, %v416
  %v517 = vpack.c.b16 %v427, %v417
  %v518 = vpack.c.b16 %v428, %v418
  %v519 = vpack.c.b16 %v429, %v419
  %v520 = vpack.c.b16 %v430, %v420
  %v521 = vpack.c.b16 %v431, %v421
  %v522 = vpack.c.b16 %v432, %v422
  %v523 = vpack.c.b16 %v443, %v433
  %v524 = vpack.c.b16 %v444, %v434
  %v525 = vpack.c.b16 %v445, %v435
  %v526 = vpack.c.b16 %v446, %v436
  %v527 = vpack.c.b16 %v447, %v437
  %v528 = vpack.c.b16 %v448, %v438
  %v529 = vpack.c.b16 %v449, %v439
  %v530 = vpack.c.b16 %v450, %v440
  %v531 = vpack.c.b16 %v451, %v441
  %v532 = vpack.c.b16 %v452, %v442
  %613 = vmatprep.subr.bf16.mxu0 %v454
  %614 = vmatpush1.bf16.msra.mxu0 %v453
  %615 = vmatprep.subr.bf16.mxu0 %v464
  %616 = vmatpush1.bf16.msra.mxu0 %v463
  %617 = vmatprep.subr.bf16.mxu0 %v474
  %618 = vmatpush1.bf16.msra.mxu0 %v473
  %619 = vmatprep.subr.bf16.mxu0 %v484
  %620 = vmatpush1.bf16.msra.mxu0 %v483
  %621 = vmatprep.subr.bf16.mxu0 %v494
  %622 = vmatpush1.bf16.msra.mxu0 %v493
  %623 = vmatprep.subr.bf16.mxu0 %v504
  %624 = vmatpush1.bf16.msra.mxu0 %v503
  %625 = vmatprep.subr.bf16.mxu0 %v514
  %626 = vmatpush1.bf16.msra.mxu0 %v513
  %627 = vmatprep.subr.bf16.mxu0 %v524
  %628 = vmatpush1.bf16.msra.mxu0 %v523
  %629 = vmatprep.subr.bf16.mxu0 0
  %630 = vmatpush1.bf16.msra.mxu0 0
  %631 = vmatprep.subr.bf16.mxu0 0
  %632 = vmatpush1.bf16.msra.mxu0 0
  %633 = vmatprep.subr.bf16.mxu0 0
  %634 = vmatpush1.bf16.msra.mxu0 0
  %635 = vmatprep.subr.bf16.mxu0 0
  %636 = vmatpush1.bf16.msra.mxu0 0
  %637 = vmatprep.subr.bf16.mxu0 0
  %638 = vmatpush1.bf16.msra.mxu0 0
  %639 = vmatprep.subr.bf16.mxu0 0
  %640 = vmatpush1.bf16.msra.mxu0 0
  %641 = vmatprep.subr.bf16.mxu0 0
  %642 = vmatpush1.bf16.msra.mxu0 0
  %643 = vmatprep.subr.bf16.mxu0 0
  %644 = vmatpush1.bf16.msra.mxu0 0
  %645 = vmatprep.mubr.bf16.mxu0 0
  %646 = vmatmul.mubr.bf16.gmra.mrb[0].mxu0 %v197
  %v647 = vpop.f32.mrb[0].mxu0
  %v648 = vadd.f32 %v118, %v647
  %v649 = vpop.f32.mrb[0].mxu0
  %v650 = vadd.f32 %v122, %v649
  %v651 = vpop.f32.mrb[0].mxu0
  %v652 = vadd.f32 %v118, %v651
  %v653 = vpop.f32.mrb[0].mxu0
  %v654 = vadd.f32 %v122, %v653
  %655 = vmatprep.mubr.bf16.mxu0 0
  %656 = vmatmul.mubr.bf16.gmra.mrb[0].mxu0 %v198
  %v657 = vpop.f32.mrb[0].mxu0
  %v658 = vadd.f32 %v118, %v657
  %v659 = vpop.f32.mrb[0].mxu0
  %v660 = vadd.f32 %v122, %v659
  %v661 = vpop.f32.mrb[0].mxu0
  %v662 = vadd.f32 %v118, %v661
  %v663 = vpop.f32.mrb[0].mxu0
  %v664 = vadd.f32 %v122, %v663
  %665 = vmatprep.mubr.bf16.mxu0 0
  %666 = vmatmul.mubr.bf16.gmra.mrb[0].mxu0 %v199
  %v667 = vpop.f32.mrb[0].mxu0
  %v668 = vadd.f32 %v118, %v667
  %v669 = vpop.f32.mrb[0].mxu0
  %v670 = vadd.f32 %v122, %v669
  %v671 = vpop.f32.mrb[0].mxu0
  %v672 = vadd.f32 %v118, %v671
  %v673 = vpop.f32.mrb[0].mxu0
  %v674 = vadd.f32 %v122, %v673
  %675 = vmatprep.mubr.bf16.mxu0 0
  %676 = vmatmul.mubr.bf16.gmra.mrb[0].mxu0 %v200
  %v677 = vpop.f32.mrb[0].mxu0
  %v678 = vadd.f32 %v118, %v677
  %v679 = vpop.f32.mrb[0].mxu0
  %v680 = vadd.f32 %v122, %v679
  %v681 = vpop.f32.mrb[0].mxu0
  %v682 = vadd.f32 %v118, %v681
  %v683 = vpop.f32.mrb[0].mxu0
  %v684 = vadd.f32 %v122, %v683
  %685 = vmatprep.mubr.bf16.mxu0 0
  %686 = vmatmul.mubr.bf16.gmra.mrb[0].mxu0 %v201
  %v687 = vpop.f32.mrb[0].mxu0
  %v688 = vadd.f32 %v118, %v687
  %v689 = vpop.f32.mrb[0].mxu0
  %v690 = vadd.f32 %v122, %v689
  %v691 = vpop.f32.mrb[0].mxu0
  %v692 = vadd.f32 %v118, %v691
  %v693 = vpop.f32.mrb[0].mxu0
  %v694 = vadd.f32 %v122, %v693
  %695 = vmatprep.mubr.bf16.mxu0 0
  %696 = vmatmul.mubr.bf16.gmra.mrb[0].mxu0 %v202
  %v697 = vpop.f32.mrb[0].mxu0
  %v698 = vadd.f32 %v118, %v697
  %v699 = vpop.f32.mrb[0].mxu0
  %v700 = vadd.f32 %v122, %v699
  %v701 = vpop.f32.mrb[0].mxu0
  %v702 = vadd.f32 %v118, %v701
  %v703 = vpop.f32.mrb[0].mxu0
  %v704 = vadd.f32 %v122, %v703
  %705 = vmatprep.mubr.bf16.mxu0 0
  %706 = vmatmul.mubr.bf16.gmra.mrb[0].mxu0 %v203
  %v707 = vpop.f32.mrb[0].mxu0
  %v708 = vadd.f32 %v118, %v707
  %v709 = vpop.f32.mrb[0].mxu0
  %v710 = vadd.f32 %v122, %v709
  %v711 = vpop.f32.mrb[0].mxu0
  %v712 = vadd.f32 %v118, %v711
  %v713 = vpop.f32.mrb[0].mxu0
  %v714 = vadd.f32 %v122, %v713
  %715 = vmatprep.mubr.bf16.mxu0 0
  %716 = vmatmul.mubr.bf16.gmra.mrb[0].mxu0 %v204
  %v717 = vpop.f32.mrb[0].mxu0
  %v718 = vadd.f32 %v118, %v717
  %v719 = vpop.f32.mrb[0].mxu0
  %v720 = vadd.f32 %v122, %v719
  %v721 = vpop.f32.mrb[0].mxu0
  %v722 = vadd.f32 %v118, %v721
  %v723 = vpop.f32.mrb[0].mxu0
  %v724 = vadd.f32 %v122, %v723
  %725 = vdwg.mxu0
  %726 = vmatprep.subr.bf16.mxu0 %v456
  %727 = vmatpush1.bf16.msra.mxu0 %v455
  %728 = vmatprep.subr.bf16.mxu0 %v466
  %729 = vmatpush1.bf16.msra.mxu0 %v465
  %730 = vmatprep.subr.bf16.mxu0 %v476
  %731 = vmatpush1.bf16.msra.mxu0 %v475
  %732 = vmatprep.subr.bf16.mxu0 %v486
  %733 = vmatpush1.bf16.msra.mxu0 %v485
  %734 = vmatprep.subr.bf16.mxu0 %v496
  %735 = vmatpush1.bf16.msra.mxu0 %v495
  %736 = vmatprep.subr.bf16.mxu0 %v506
  %737 = vmatpush1.bf16.msra.mxu0 %v505
  %738 = vmatprep.subr.bf16.mxu0 %v516
  %739 = vmatpush1.bf16.msra.mxu0 %v515
  %740 = vmatprep.subr.bf16.mxu0 %v526
  %741 = vmatpush1.bf16.msra.mxu0 %v525
  %742 = vmatprep.subr.bf16.mxu0 0
  %743 = vmatpush1.bf16.msra.mxu0 0
  %744 = vmatprep.subr.bf16.mxu0 0
  %745 = vmatpush1.bf16.msra.mxu0 0
  %746 = vmatprep.subr.bf16.mxu0 0
  %747 = vmatpush1.bf16.msra.mxu0 0
  %748 = vmatprep.subr.bf16.mxu0 0
  %749 = vmatpush1.bf16.msra.mxu0 0
  %750 = vmatprep.subr.bf16.mxu0 0
  %751 = vmatpush1.bf16.msra.mxu0 0
  %752 = vmatprep.subr.bf16.mxu0 0
  %753 = vmatpush1.bf16.msra.mxu0 0
  %754 = vmatprep.subr.bf16.mxu0 0
  %755 = vmatpush1.bf16.msra.mxu0 0
  %756 = vmatprep.subr.bf16.mxu0 0
  %757 = vmatpush1.bf16.msra.mxu0 0
  %758 = vmatprep.mubr.bf16.mxu0 0
  %759 = vmatmul.mubr.bf16.gmra.mrb[0].mxu0 %v197
  %v760 = vpop.f32.mrb[0].mxu0
  %v761 = vadd.f32 %v126, %v760
  %v762 = vpop.f32.mrb[0].mxu0
  %v763 = vadd.f32 %v130, %v762
  %v764 = vpop.f32.mrb[0].mxu0
  %v765 = vadd.f32 %v126, %v764
  %v766 = vpop.f32.mrb[0].mxu0
  %v767 = vadd.f32 %v130, %v766
  %768 = vmatprep.mubr.bf16.mxu0 0
  %769 = vmatmul.mubr.bf16.gmra.mrb[0].mxu0 %v198
  %v770 = vpop.f32.mrb[0].mxu0
  %v771 = vadd.f32 %v126, %v770
  %v772 = vpop.f32.mrb[0].mxu0
  %v773 = vadd.f32 %v130, %v772
  %v774 = vpop.f32.mrb[0].mxu0
  %v775 = vadd.f32 %v126, %v774
  %v776 = vpop.f32.mrb[0].mxu0
  %v777 = vadd.f32 %v130, %v776
  %778 = vmatprep.mubr.bf16.mxu0 0
  %779 = vmatmul.mubr.bf16.gmra.mrb[0].mxu0 %v199
  %v780 = vpop.f32.mrb[0].mxu0
  %v781 = vadd.f32 %v126, %v780
  %v782 = vpop.f32.mrb[0].mxu0
  %v783 = vadd.f32 %v130, %v782
  %v784 = vpop.f32.mrb[0].mxu0
  %v785 = vadd.f32 %v126, %v784
  %v786 = vpop.f32.mrb[0].mxu0
  %v787 = vadd.f32 %v130, %v786
  %788 = vmatprep.mubr.bf16.mxu0 0
  %789 = vmatmul.mubr.bf16.gmra.mrb[0].mxu0 %v200
  %v790 = vpop.f32.mrb[0].mxu0
  %v791 = vadd.f32 %v126, %v790
  %v792 = vpop.f32.mrb[0].mxu0
  %v793 = vadd.f32 %v130, %v792
  %v794 = vpop.f32.mrb[0].mxu0
  %v795 = vadd.f32 %v126, %v794
  %v796 = vpop.f32.mrb[0].mxu0
  %v797 = vadd.f32 %v130, %v796
  %798 = vmatprep.mubr.bf16.mxu0 0
  %799 = vmatmul.mubr.bf16.gmra.mrb[0].mxu0 %v201
  %v800 = vpop.f32.mrb[0].mxu0
  %v801 = vadd.f32 %v126, %v800
  %v802 = vpop.f32.mrb[0].mxu0
  %v803 = vadd.f32 %v130, %v802
  %v804 = vpop.f32.mrb[0].mxu0
  %v805 = vadd.f32 %v126, %v804
  %v806 = vpop.f32.mrb[0].mxu0
  %v807 = vadd.f32 %v130, %v806
  %808 = vmatprep.mubr.bf16.mxu0 0
  %809 = vmatmul.mubr.bf16.gmra.mrb[0].mxu0 %v202
  %v810 = vpop.f32.mrb[0].mxu0
  %v811 = vadd.f32 %v126, %v810
  %v812 = vpop.f32.mrb[0].mxu0
  %v813 = vadd.f32 %v130, %v812
  %v814 = vpop.f32.mrb[0].mxu0
  %v815 = vadd.f32 %v126, %v814
  %v816 = vpop.f32.mrb[0].mxu0
  %v817 = vadd.f32 %v130, %v816
  %818 = vmatprep.mubr.bf16.mxu0 0
  %819 = vmatmul.mubr.bf16.gmra.mrb[0].mxu0 %v203
  %v820 = vpop.f32.mrb[0].mxu0
  %v821 = vadd.f32 %v126, %v820
  %v822 = vpop.f32.mrb[0].mxu0
  %v823 = vadd.f32 %v130, %v822
  %v824 = vpop.f32.mrb[0].mxu0
  %v825 = vadd.f32 %v126, %v824
  %v826 = vpop.f32.mrb[0].mxu0
  %v827 = vadd.f32 %v130, %v826
  %828 = vmatprep.mubr.bf16.mxu0 0
  %829 = vmatmul.mubr.bf16.gmra.mrb[0].mxu0 %v204
  %v830 = vpop.f32.mrb[0].mxu0
  %v831 = vadd.f32 %v126, %v830
  %v832 = vpop.f32.mrb[0].mxu0
  %v833 = vadd.f32 %v130, %v832
  %v834 = vpop.f32.mrb[0].mxu0
  %v835 = vadd.f32 %v126, %v834
  %v836 = vpop.f32.mrb[0].mxu0
  %v837 = vadd.f32 %v130, %v836
  %838 = vdwg.mxu0
  %839 = vmatprep.subr.bf16.mxu0 %v458
  %840 = vmatpush1.bf16.msra.mxu0 %v457
  %841 = vmatprep.subr.bf16.mxu0 %v468
  %842 = vmatpush1.bf16.msra.mxu0 %v467
  %843 = vmatprep.subr.bf16.mxu0 %v478
  %844 = vmatpush1.bf16.msra.mxu0 %v477
  %845 = vmatprep.subr.bf16.mxu0 %v488
  %846 = vmatpush1.bf16.msra.mxu0 %v487
  %847 = vmatprep.subr.bf16.mxu0 %v498
  %848 = vmatpush1.bf16.msra.mxu0 %v497
  %849 = vmatprep.subr.bf16.mxu0 %v508
  %850 = vmatpush1.bf16.msra.mxu0 %v507
  %851 = vmatprep.subr.bf16.mxu0 %v518
  %852 = vmatpush1.bf16.msra.mxu0 %v517
  %853 = vmatprep.subr.bf16.mxu0 %v528
  %854 = vmatpush1.bf16.msra.mxu0 %v527
  %855 = vmatprep.subr.bf16.mxu0 0
  %856 = vmatpush1.bf16.msra.mxu0 0
  %857 = vmatprep.subr.bf16.mxu0 0
  %858 = vmatpush1.bf16.msra.mxu0 0
  %859 = vmatprep.subr.bf16.mxu0 0
  %860 = vmatpush1.bf16.msra.mxu0 0
  %861 = vmatprep.subr.bf16.mxu0 0
  %862 = vmatpush1.bf16.msra.mxu0 0
  %863 = vmatprep.subr.bf16.mxu0 0
  %864 = vmatpush1.bf16.msra.mxu0 0
  %865 = vmatprep.subr.bf16.mxu0 0
  %866 = vmatpush1.bf16.msra.mxu0 0
  %867 = vmatprep.subr.bf16.mxu0 0
  %868 = vmatpush1.bf16.msra.mxu0 0
  %869 = vmatprep.subr.bf16.mxu0 0
  %870 = vmatpush1.bf16.msra.mxu0 0
  %871 = vmatprep.mubr.bf16.mxu0 0
  %872 = vmatmul.mubr.bf16.gmra.mrb[0].mxu0 %v197
  %v873 = vpop.f32.mrb[0].mxu0
  %v874 = vadd.f32 %v134, %v873
  %v875 = vpop.f32.mrb[0].mxu0
  %v876 = vadd.f32 %v138, %v875
  %v877 = vpop.f32.mrb[0].mxu0
  %v878 = vadd.f32 %v134, %v877
  %v879 = vpop.f32.mrb[0].mxu0
  %v880 = vadd.f32 %v138, %v879
  %881 = vmatprep.mubr.bf16.mxu0 0
  %882 = vmatmul.mubr.bf16.gmra.mrb[0].mxu0 %v198
  %v883 = vpop.f32.mrb[0].mxu0
  %v884 = vadd.f32 %v134, %v883
  %v885 = vpop.f32.mrb[0].mxu0
  %v886 = vadd.f32 %v138, %v885
  %v887 = vpop.f32.mrb[0].mxu0
  %v888 = vadd.f32 %v134, %v887
  %v889 = vpop.f32.mrb[0].mxu0
  %v890 = vadd.f32 %v138, %v889
  %891 = vmatprep.mubr.bf16.mxu0 0
  %892 = vmatmul.mubr.bf16.gmra.mrb[0].mxu0 %v199
  %v893 = vpop.f32.mrb[0].mxu0
  %v894 = vadd.f32 %v134, %v893
  %v895 = vpop.f32.mrb[0].mxu0
  %v896 = vadd.f32 %v138, %v895
  %v897 = vpop.f32.mrb[0].mxu0
  %v898 = vadd.f32 %v134, %v897
  %v899 = vpop.f32.mrb[0].mxu0
  %v900 = vadd.f32 %v138, %v899
  %901 = vmatprep.mubr.bf16.mxu0 0
  %902 = vmatmul.mubr.bf16.gmra.mrb[0].mxu0 %v200
  %v903 = vpop.f32.mrb[0].mxu0
  %v904 = vadd.f32 %v134, %v903
  %v905 = vpop.f32.mrb[0].mxu0
  %v906 = vadd.f32 %v138, %v905
  %v907 = vpop.f32.mrb[0].mxu0
  %v908 = vadd.f32 %v134, %v907
  %v909 = vpop.f32.mrb[0].mxu0
  %v910 = vadd.f32 %v138, %v909
  %911 = vmatprep.mubr.bf16.mxu0 0
  %912 = vmatmul.mubr.bf16.gmra.mrb[0].mxu0 %v201
  %v913 = vpop.f32.mrb[0].mxu0
  %v914 = vadd.f32 %v134, %v913
  %v915 = vpop.f32.mrb[0].mxu0
  %v916 = vadd.f32 %v138, %v915
  %v917 = vpop.f32.mrb[0].mxu0
  %v918 = vadd.f32 %v134, %v917
  %v919 = vpop.f32.mrb[0].mxu0
  %v920 = vadd.f32 %v138, %v919
  %921 = vmatprep.mubr.bf16.mxu0 0
  %922 = vmatmul.mubr.bf16.gmra.mrb[0].mxu0 %v202
  %v923 = vpop.f32.mrb[0].mxu0
  %v924 = vadd.f32 %v134, %v923
  %v925 = vpop.f32.mrb[0].mxu0
  %v926 = vadd.f32 %v138, %v925
  %v927 = vpop.f32.mrb[0].mxu0
  %v928 = vadd.f32 %v134, %v927
  %v929 = vpop.f32.mrb[0].mxu0
  %v930 = vadd.f32 %v138, %v929
  %931 = vmatprep.mubr.bf16.mxu0 0
  %932 = vmatmul.mubr.bf16.gmra.mrb[0].mxu0 %v203
  %v933 = vpop.f32.mrb[0].mxu0
  %v934 = vadd.f32 %v134, %v933
  %v935 = vpop.f32.mrb[0].mxu0
  %v936 = vadd.f32 %v138, %v935
  %v937 = vpop.f32.mrb[0].mxu0
  %v938 = vadd.f32 %v134, %v937
  %v939 = vpop.f32.mrb[0].mxu0
  %v940 = vadd.f32 %v138, %v939
  %941 = vmatprep.mubr.bf16.mxu0 0
  %942 = vmatmul.mubr.bf16.gmra.mrb[0].mxu0 %v204
  %v943 = vpop.f32.mrb[0].mxu0
  %v944 = vadd.f32 %v134, %v943
  %v945 = vpop.f32.mrb[0].mxu0
  %v946 = vadd.f32 %v138, %v945
  %v947 = vpop.f32.mrb[0].mxu0
  %v948 = vadd.f32 %v134, %v947
  %v949 = vpop.f32.mrb[0].mxu0
  %v950 = vadd.f32 %v138, %v949
  %951 = vdwg.mxu0
  %952 = vmatprep.subr.bf16.mxu0 %v460
  %953 = vmatpush1.bf16.msra.mxu0 %v459
  %954 = vmatprep.subr.bf16.mxu0 %v470
  %955 = vmatpush1.bf16.msra.mxu0 %v469
  %956 = vmatprep.subr.bf16.mxu0 %v480
  %957 = vmatpush1.bf16.msra.mxu0 %v479
  %958 = vmatprep.subr.bf16.mxu0 %v490
  %959 = vmatpush1.bf16.msra.mxu0 %v489
  %960 = vmatprep.subr.bf16.mxu0 %v500
  %961 = vmatpush1.bf16.msra.mxu0 %v499
  %962 = vmatprep.subr.bf16.mxu0 %v510
  %963 = vmatpush1.bf16.msra.mxu0 %v509
  %964 = vmatprep.subr.bf16.mxu0 %v520
  %965 = vmatpush1.bf16.msra.mxu0 %v519
  %966 = vmatprep.subr.bf16.mxu0 %v530
  %967 = vmatpush1.bf16.msra.mxu0 %v529
  %968 = vmatprep.subr.bf16.mxu0 0
  %969 = vmatpush1.bf16.msra.mxu0 0
  %970 = vmatprep.subr.bf16.mxu0 0
  %971 = vmatpush1.bf16.msra.mxu0 0
  %972 = vmatprep.subr.bf16.mxu0 0
  %973 = vmatpush1.bf16.msra.mxu0 0
  %974 = vmatprep.subr.bf16.mxu0 0
  %975 = vmatpush1.bf16.msra.mxu0 0
  %976 = vmatprep.subr.bf16.mxu0 0
  %977 = vmatpush1.bf16.msra.mxu0 0
  %978 = vmatprep.subr.bf16.mxu0 0
  %979 = vmatpush1.bf16.msra.mxu0 0
  %980 = vmatprep.subr.bf16.mxu0 0
  %981 = vmatpush1.bf16.msra.mxu0 0
  %982 = vmatprep.subr.bf16.mxu0 0
  %983 = vmatpush1.bf16.msra.mxu0 0
  %984 = vmatprep.mubr.bf16.mxu0 0
  %985 = vmatmul.mubr.bf16.gmra.mrb[0].mxu0 %v197
  %v986 = vpop.f32.mrb[0].mxu0
  %v987 = vadd.f32 %v142, %v986
  %v988 = vpop.f32.mrb[0].mxu0
  %v989 = vadd.f32 %v146, %v988
  %v990 = vpop.f32.mrb[0].mxu0
  %v991 = vadd.f32 %v142, %v990
  %v992 = vpop.f32.mrb[0].mxu0
  %v993 = vadd.f32 %v146, %v992
  %994 = vmatprep.mubr.bf16.mxu0 0
  %995 = vmatmul.mubr.bf16.gmra.mrb[0].mxu0 %v198
  %v996 = vpop.f32.mrb[0].mxu0
  %v997 = vadd.f32 %v142, %v996
  %v998 = vpop.f32.mrb[0].mxu0
  %v999 = vadd.f32 %v146, %v998
  %v1000 = vpop.f32.mrb[0].mxu0
  %v1001 = vadd.f32 %v142, %v1000
  %v1002 = vpop.f32.mrb[0].mxu0
  %v1003 = vadd.f32 %v146, %v1002
  %1004 = vmatprep.mubr.bf16.mxu0 0
  %1005 = vmatmul.mubr.bf16.gmra.mrb[0].mxu0 %v199
  %v1006 = vpop.f32.mrb[0].mxu0
  %v1007 = vadd.f32 %v142, %v1006
  %v1008 = vpop.f32.mrb[0].mxu0
  %v1009 = vadd.f32 %v146, %v1008
  %v1010 = vpop.f32.mrb[0].mxu0
  %v1011 = vadd.f32 %v142, %v1010
  %v1012 = vpop.f32.mrb[0].mxu0
  %v1013 = vadd.f32 %v146, %v1012
  %1014 = vmatprep.mubr.bf16.mxu0 0
  %1015 = vmatmul.mubr.bf16.gmra.mrb[0].mxu0 %v200
  %v1016 = vpop.f32.mrb[0].mxu0
  %v1017 = vadd.f32 %v142, %v1016
  %v1018 = vpop.f32.mrb[0].mxu0
  %v1019 = vadd.f32 %v146, %v1018
  %v1020 = vpop.f32.mrb[0].mxu0
  %v1021 = vadd.f32 %v142, %v1020
  %v1022 = vpop.f32.mrb[0].mxu0
  %v1023 = vadd.f32 %v146, %v1022
  %1024 = vmatprep.mubr.bf16.mxu0 0
  %1025 = vmatmul.mubr.bf16.gmra.mrb[0].mxu0 %v201
  %v1026 = vpop.f32.mrb[0].mxu0
  %v1027 = vadd.f32 %v142, %v1026
  %v1028 = vpop.f32.mrb[0].mxu0
  %v1029 = vadd.f32 %v146, %v1028
  %v1030 = vpop.f32.mrb[0].mxu0
  %v1031 = vadd.f32 %v142, %v1030
  %v1032 = vpop.f32.mrb[0].mxu0
  %v1033 = vadd.f32 %v146, %v1032
  %1034 = vmatprep.mubr.bf16.mxu0 0
  %1035 = vmatmul.mubr.bf16.gmra.mrb[0].mxu0 %v202
  %v1036 = vpop.f32.mrb[0].mxu0
  %v1037 = vadd.f32 %v142, %v1036
  %v1038 = vpop.f32.mrb[0].mxu0
  %v1039 = vadd.f32 %v146, %v1038
  %v1040 = vpop.f32.mrb[0].mxu0
  %v1041 = vadd.f32 %v142, %v1040
  %v1042 = vpop.f32.mrb[0].mxu0
  %v1043 = vadd.f32 %v146, %v1042
  %1044 = vmatprep.mubr.bf16.mxu0 0
  %1045 = vmatmul.mubr.bf16.gmra.mrb[0].mxu0 %v203
  %v1046 = vpop.f32.mrb[0].mxu0
  %v1047 = vadd.f32 %v142, %v1046
  %v1048 = vpop.f32.mrb[0].mxu0
  %v1049 = vadd.f32 %v146, %v1048
  %v1050 = vpop.f32.mrb[0].mxu0
  %v1051 = vadd.f32 %v142, %v1050
  %v1052 = vpop.f32.mrb[0].mxu0
  %v1053 = vadd.f32 %v146, %v1052
  %1054 = vmatprep.mubr.bf16.mxu0 0
  %1055 = vmatmul.mubr.bf16.gmra.mrb[0].mxu0 %v204
  %v1056 = vpop.f32.mrb[0].mxu0
  %v1057 = vadd.f32 %v142, %v1056
  %v1058 = vpop.f32.mrb[0].mxu0
  %v1059 = vadd.f32 %v146, %v1058
  %v1060 = vpop.f32.mrb[0].mxu0
  %v1061 = vadd.f32 %v142, %v1060
  %v1062 = vpop.f32.mrb[0].mxu0
  %v1063 = vadd.f32 %v146, %v1062
  %1064 = vdwg.mxu0
  %1065 = vmatprep.subr.bf16.mxu0 %v462
  %1066 = vmatpush1.bf16.msra.mxu0 %v461
  %1067 = vmatprep.subr.bf16.mxu0 %v472
  %1068 = vmatpush1.bf16.msra.mxu0 %v471
  %1069 = vmatprep.subr.bf16.mxu0 %v482
  %1070 = vmatpush1.bf16.msra.mxu0 %v481
  %1071 = vmatprep.subr.bf16.mxu0 %v492
  %1072 = vmatpush1.bf16.msra.mxu0 %v491
  %1073 = vmatprep.subr.bf16.mxu0 %v502
  %1074 = vmatpush1.bf16.msra.mxu0 %v501
  %1075 = vmatprep.subr.bf16.mxu0 %v512
  %1076 = vmatpush1.bf16.msra.mxu0 %v511
  %1077 = vmatprep.subr.bf16.mxu0 %v522
  %1078 = vmatpush1.bf16.msra.mxu0 %v521
  %1079 = vmatprep.subr.bf16.mxu0 %v532
  %1080 = vmatpush1.bf16.msra.mxu0 %v531
  %1081 = vmatprep.subr.bf16.mxu0 0
  %1082 = vmatpush1.bf16.msra.mxu0 0
  %1083 = vmatprep.subr.bf16.mxu0 0
  %1084 = vmatpush1.bf16.msra.mxu0 0
  %1085 = vmatprep.subr.bf16.mxu0 0
  %1086 = vmatpush1.bf16.msra.mxu0 0
  %1087 = vmatprep.subr.bf16.mxu0 0
  %1088 = vmatpush1.bf16.msra.mxu0 0
  %1089 = vmatprep.subr.bf16.mxu0 0
  %1090 = vmatpush1.bf16.msra.mxu0 0
  %1091 = vmatprep.subr.bf16.mxu0 0
  %1092 = vmatpush1.bf16.msra.mxu0 0
  %1093 = vmatprep.subr.bf16.mxu0 0
  %1094 = vmatpush1.bf16.msra.mxu0 0
  %1095 = vmatprep.subr.bf16.mxu0 0
  %1096 = vmatpush1.bf16.msra.mxu0 0
  %1097 = vmatprep.mubr.bf16.mxu0 0
  %1098 = vmatmul.mubr.bf16.gmra.mrb[0].mxu0 %v197
  %v1099 = vpop.f32.mrb[0].mxu0
  %v1100 = vadd.f32 %v150, %v1099
  %v1101 = vpop.f32.mrb[0].mxu0
  %v1102 = vadd.f32 %v154, %v1101
  %v1103 = vpop.f32.mrb[0].mxu0
  %v1104 = vadd.f32 %v150, %v1103
  %v1105 = vpop.f32.mrb[0].mxu0
  %v1106 = vadd.f32 %v154, %v1105
  %1107 = vmatprep.mubr.bf16.mxu0 0
  %1108 = vmatmul.mubr.bf16.gmra.mrb[0].mxu0 %v198
  %v1109 = vpop.f32.mrb[0].mxu0
  %v1110 = vadd.f32 %v150, %v1109
  %v1111 = vpop.f32.mrb[0].mxu0
  %v1112 = vadd.f32 %v154, %v1111
  %v1113 = vpop.f32.mrb[0].mxu0
  %v1114 = vadd.f32 %v150, %v1113
  %v1115 = vpop.f32.mrb[0].mxu0
  %v1116 = vadd.f32 %v154, %v1115
  %1117 = vmatprep.mubr.bf16.mxu0 0
  %1118 = vmatmul.mubr.bf16.gmra.mrb[0].mxu0 %v199
  %v1119 = vpop.f32.mrb[0].mxu0
  %v1120 = vadd.f32 %v150, %v1119
  %v1121 = vpop.f32.mrb[0].mxu0
  %v1122 = vadd.f32 %v154, %v1121
  %v1123 = vpop.f32.mrb[0].mxu0
  %v1124 = vadd.f32 %v150, %v1123
  %v1125 = vpop.f32.mrb[0].mxu0
  %v1126 = vadd.f32 %v154, %v1125
  %1127 = vmatprep.mubr.bf16.mxu0 0
  %1128 = vmatmul.mubr.bf16.gmra.mrb[0].mxu0 %v200
  %v1129 = vpop.f32.mrb[0].mxu0
  %v1130 = vadd.f32 %v150, %v1129
  %v1131 = vpop.f32.mrb[0].mxu0
  %v1132 = vadd.f32 %v154, %v1131
  %v1133 = vpop.f32.mrb[0].mxu0
  %v1134 = vadd.f32 %v150, %v1133
  %v1135 = vpop.f32.mrb[0].mxu0
  %v1136 = vadd.f32 %v154, %v1135
  %1137 = vmatprep.mubr.bf16.mxu0 0
  %1138 = vmatmul.mubr.bf16.gmra.mrb[0].mxu0 %v201
  %v1139 = vpop.f32.mrb[0].mxu0
  %v1140 = vadd.f32 %v150, %v1139
  %v1141 = vpop.f32.mrb[0].mxu0
  %v1142 = vadd.f32 %v154, %v1141
  %v1143 = vpop.f32.mrb[0].mxu0
  %v1144 = vadd.f32 %v150, %v1143
  %v1145 = vpop.f32.mrb[0].mxu0
  %v1146 = vadd.f32 %v154, %v1145
  %1147 = vmatprep.mubr.bf16.mxu0 0
  %1148 = vmatmul.mubr.bf16.gmra.mrb[0].mxu0 %v202
  %v1149 = vpop.f32.mrb[0].mxu0
  %v1150 = vadd.f32 %v150, %v1149
  %v1151 = vpop.f32.mrb[0].mxu0
  %v1152 = vadd.f32 %v154, %v1151
  %v1153 = vpop.f32.mrb[0].mxu0
  %v1154 = vadd.f32 %v150, %v1153
  %v1155 = vpop.f32.mrb[0].mxu0
  %v1156 = vadd.f32 %v154, %v1155
  %1157 = vmatprep.mubr.bf16.mxu0 0
  %1158 = vmatmul.mubr.bf16.gmra.mrb[0].mxu0 %v203
  %v1159 = vpop.f32.mrb[0].mxu0
  %v1160 = vadd.f32 %v150, %v1159
  %v1161 = vpop.f32.mrb[0].mxu0
  %v1162 = vadd.f32 %v154, %v1161
  %v1163 = vpop.f32.mrb[0].mxu0
  %v1164 = vadd.f32 %v150, %v1163
  %v1165 = vpop.f32.mrb[0].mxu0
  %v1166 = vadd.f32 %v154, %v1165
  %1167 = vmatprep.mubr.bf16.mxu0 0
  %1168 = vmatmul.mubr.bf16.gmra.mrb[0].mxu0 %v204
  %v1169 = vpop.f32.mrb[0].mxu0
  %v1170 = vadd.f32 %v150, %v1169
  %v1171 = vpop.f32.mrb[0].mxu0
  %v1172 = vadd.f32 %v154, %v1171
  %v1173 = vpop.f32.mrb[0].mxu0
  %v1174 = vadd.f32 %v150, %v1173
  %v1175 = vpop.f32.mrb[0].mxu0
  %v1176 = vadd.f32 %v154, %v1175
  %1177 = vdwg.mxu0
  %v1178 = vxor.u32 %v648, 2147483648
  %v1179 = vxor.u32 %v650, 2147483648
  %v1180 = vxor.u32 %v761, 2147483648
  %v1181 = vxor.u32 %v763, 2147483648
  %v1182 = vxor.u32 %v874, 2147483648
  %v1183 = vxor.u32 %v876, 2147483648
  %v1184 = vxor.u32 %v987, 2147483648
  %v1185 = vxor.u32 %v989, 2147483648
  %v1186 = vxor.u32 %v1100, 2147483648
  %v1187 = vxor.u32 %v1102, 2147483648
  %v1188 = vxor.u32 %v652, 2147483648
  %v1189 = vxor.u32 %v654, 2147483648
  %v1190 = vxor.u32 %v765, 2147483648
  %v1191 = vxor.u32 %v767, 2147483648
  %v1192 = vxor.u32 %v878, 2147483648
  %v1193 = vxor.u32 %v880, 2147483648
  %v1194 = vxor.u32 %v991, 2147483648
  %v1195 = vxor.u32 %v993, 2147483648
  %v1196 = vxor.u32 %v1104, 2147483648
  %v1197 = vxor.u32 %v1106, 2147483648
  %v1198 = vxor.u32 %v658, 2147483648
  %v1199 = vxor.u32 %v660, 2147483648
  %v1200 = vxor.u32 %v771, 2147483648
  %v1201 = vxor.u32 %v773, 2147483648
  %v1202 = vxor.u32 %v884, 2147483648
  %v1203 = vxor.u32 %v886, 2147483648
  %v1204 = vxor.u32 %v997, 2147483648
  %v1205 = vxor.u32 %v999, 2147483648
  %v1206 = vxor.u32 %v1110, 2147483648
  %v1207 = vxor.u32 %v1112, 2147483648
  %v1208 = vxor.u32 %v662, 2147483648
  %v1209 = vxor.u32 %v664, 2147483648
  %v1210 = vxor.u32 %v775, 2147483648
  %v1211 = vxor.u32 %v777, 2147483648
  %v1212 = vxor.u32 %v888, 2147483648
  %v1213 = vxor.u32 %v890, 2147483648
  %v1214 = vxor.u32 %v1001, 2147483648
  %v1215 = vxor.u32 %v1003, 2147483648
  %v1216 = vxor.u32 %v1114, 2147483648
  %v1217 = vxor.u32 %v1116, 2147483648
  %v1218 = vxor.u32 %v668, 2147483648
  %v1219 = vxor.u32 %v670, 2147483648
  %v1220 = vxor.u32 %v781, 2147483648
  %v1221 = vxor.u32 %v783, 2147483648
  %v1222 = vxor.u32 %v894, 2147483648
  %v1223 = vxor.u32 %v896, 2147483648
  %v1224 = vxor.u32 %v1007, 2147483648
  %v1225 = vxor.u32 %v1009, 2147483648
  %v1226 = vxor.u32 %v1120, 2147483648
  %v1227 = vxor.u32 %v1122, 2147483648
  %v1228 = vxor.u32 %v672, 2147483648
  %v1229 = vxor.u32 %v674, 2147483648
  %v1230 = vxor.u32 %v785, 2147483648
  %v1231 = vxor.u32 %v787, 2147483648
  %v1232 = vxor.u32 %v898, 2147483648
  %v1233 = vxor.u32 %v900, 2147483648
  %v1234 = vxor.u32 %v1011, 2147483648
  %v1235 = vxor.u32 %v1013, 2147483648
  %v1236 = vxor.u32 %v1124, 2147483648
  %v1237 = vxor.u32 %v1126, 2147483648
  %v1238 = vxor.u32 %v678, 2147483648
  %v1239 = vxor.u32 %v680, 2147483648
  %v1240 = vxor.u32 %v791, 2147483648
  %v1241 = vxor.u32 %v793, 2147483648
  %v1242 = vxor.u32 %v904, 2147483648
  %v1243 = vxor.u32 %v906, 2147483648
  %v1244 = vxor.u32 %v1017, 2147483648
  %v1245 = vxor.u32 %v1019, 2147483648
  %v1246 = vxor.u32 %v1130, 2147483648
  %v1247 = vxor.u32 %v1132, 2147483648
  %v1248 = vxor.u32 %v682, 2147483648
  %v1249 = vxor.u32 %v684, 2147483648
  %v1250 = vxor.u32 %v795, 2147483648
  %v1251 = vxor.u32 %v797, 2147483648
  %v1252 = vxor.u32 %v908, 2147483648
  %v1253 = vxor.u32 %v910, 2147483648
  %v1254 = vxor.u32 %v1021, 2147483648
  %v1255 = vxor.u32 %v1023, 2147483648
  %v1256 = vxor.u32 %v1134, 2147483648
  %v1257 = vxor.u32 %v1136, 2147483648
  %v1258 = vxor.u32 %v688, 2147483648
  %v1259 = vxor.u32 %v690, 2147483648
  %v1260 = vxor.u32 %v801, 2147483648
  %v1261 = vxor.u32 %v803, 2147483648
  %v1262 = vxor.u32 %v914, 2147483648
  %v1263 = vxor.u32 %v916, 2147483648
  %v1264 = vxor.u32 %v1027, 2147483648
  %v1265 = vxor.u32 %v1029, 2147483648
  %v1266 = vxor.u32 %v1140, 2147483648
  %v1267 = vxor.u32 %v1142, 2147483648
  %v1268 = vxor.u32 %v692, 2147483648
  %v1269 = vxor.u32 %v694, 2147483648
  %v1270 = vxor.u32 %v805, 2147483648
  %v1271 = vxor.u32 %v807, 2147483648
  %v1272 = vxor.u32 %v918, 2147483648
  %v1273 = vxor.u32 %v920, 2147483648
  %v1274 = vxor.u32 %v1031, 2147483648
  %v1275 = vxor.u32 %v1033, 2147483648
  %v1276 = vxor.u32 %v1144, 2147483648
  %v1277 = vxor.u32 %v1146, 2147483648
  %v1278 = vxor.u32 %v698, 2147483648
  %v1279 = vxor.u32 %v700, 2147483648
  %v1280 = vxor.u32 %v811, 2147483648
  %v1281 = vxor.u32 %v813, 2147483648
  %v1282 = vxor.u32 %v924, 2147483648
  %v1283 = vxor.u32 %v926, 2147483648
  %v1284 = vxor.u32 %v1037, 2147483648
  %v1285 = vxor.u32 %v1039, 2147483648
  %v1286 = vxor.u32 %v1150, 2147483648
  %v1287 = vxor.u32 %v1152, 2147483648
  %v1288 = vxor.u32 %v702, 2147483648
  %v1289 = vxor.u32 %v704, 2147483648
  %v1290 = vxor.u32 %v815, 2147483648
  %v1291 = vxor.u32 %v817, 2147483648
  %v1292 = vxor.u32 %v928, 2147483648
  %v1293 = vxor.u32 %v930, 2147483648
  %v1294 = vxor.u32 %v1041, 2147483648
  %v1295 = vxor.u32 %v1043, 2147483648
  %v1296 = vxor.u32 %v1154, 2147483648
  %v1297 = vxor.u32 %v1156, 2147483648
  %v1298 = vxor.u32 %v708, 2147483648
  %v1299 = vxor.u32 %v710, 2147483648
  %v1300 = vxor.u32 %v821, 2147483648
  %v1301 = vxor.u32 %v823, 2147483648
  %v1302 = vxor.u32 %v934, 2147483648
  %v1303 = vxor.u32 %v936, 2147483648
  %v1304 = vxor.u32 %v1047, 2147483648
  %v1305 = vxor.u32 %v1049, 2147483648
  %v1306 = vxor.u32 %v1160, 2147483648
  %v1307 = vxor.u32 %v1162, 2147483648
  %v1308 = vxor.u32 %v712, 2147483648
  %v1309 = vxor.u32 %v714, 2147483648
  %v1310 = vxor.u32 %v825, 2147483648
  %v1311 = vxor.u32 %v827, 2147483648
  %v1312 = vxor.u32 %v938, 2147483648
  %v1313 = vxor.u32 %v940, 2147483648
  %v1314 = vxor.u32 %v1051, 2147483648
  %v1315 = vxor.u32 %v1053, 2147483648
  %v1316 = vxor.u32 %v1164, 2147483648
  %v1317 = vxor.u32 %v1166, 2147483648
  %v1318 = vxor.u32 %v718, 2147483648
  %v1319 = vxor.u32 %v720, 2147483648
  %v1320 = vxor.u32 %v831, 2147483648
  %v1321 = vxor.u32 %v833, 2147483648
  %v1322 = vxor.u32 %v944, 2147483648
  %v1323 = vxor.u32 %v946, 2147483648
  %v1324 = vxor.u32 %v1057, 2147483648
  %v1325 = vxor.u32 %v1059, 2147483648
  %v1326 = vxor.u32 %v1170, 2147483648
  %v1327 = vxor.u32 %v1172, 2147483648
  %v1328 = vxor.u32 %v722, 2147483648
  %v1329 = vxor.u32 %v724, 2147483648
  %v1330 = vxor.u32 %v835, 2147483648
  %v1331 = vxor.u32 %v837, 2147483648
  %v1332 = vxor.u32 %v948, 2147483648
  %v1333 = vxor.u32 %v950, 2147483648
  %v1334 = vxor.u32 %v1061, 2147483648
  %v1335 = vxor.u32 %v1063, 2147483648
  %v1336 = vxor.u32 %v1174, 2147483648
  %v1337 = vxor.u32 %v1176, 2147483648
  %v1338 = vmul.f32 %v1178, 1.442695
  %v1339 = vpow.pop %v1338
  %v1340 = vmul.f32 %v1179, 1.442695
  %v1341 = vpow.pop %v1340
  %v1342 = vmul.f32 %v1180, 1.442695
  %v1343 = vpow.pop %v1342
  %v1344 = vmul.f32 %v1181, 1.442695
  %v1345 = vpow.pop %v1344
  %v1346 = vmul.f32 %v1182, 1.442695
  %v1347 = vpow.pop %v1346
  %v1348 = vmul.f32 %v1183, 1.442695
  %v1349 = vpow.pop %v1348
  %v1350 = vmul.f32 %v1184, 1.442695
  %v1351 = vpow.pop %v1350
  %v1352 = vmul.f32 %v1185, 1.442695
  %v1353 = vpow.pop %v1352
  %v1354 = vmul.f32 %v1186, 1.442695
  %v1355 = vpow.pop %v1354
  %v1356 = vmul.f32 %v1187, 1.442695
  %v1357 = vpow.pop %v1356
  %v1358 = vmul.f32 %v1188, 1.442695
  %v1359 = vpow.pop %v1358
  %v1360 = vmul.f32 %v1189, 1.442695
  %v1361 = vpow.pop %v1360
  %v1362 = vmul.f32 %v1190, 1.442695
  %v1363 = vpow.pop %v1362
  %v1364 = vmul.f32 %v1191, 1.442695
  %v1365 = vpow.pop %v1364
  %v1366 = vmul.f32 %v1192, 1.442695
  %v1367 = vpow.pop %v1366
  %v1368 = vmul.f32 %v1193, 1.442695
  %v1369 = vpow.pop %v1368
  %v1370 = vmul.f32 %v1194, 1.442695
  %v1371 = vpow.pop %v1370
  %v1372 = vmul.f32 %v1195, 1.442695
  %v1373 = vpow.pop %v1372
  %v1374 = vmul.f32 %v1196, 1.442695
  %v1375 = vpow.pop %v1374
  %v1376 = vmul.f32 %v1197, 1.442695
  %v1377 = vpow.pop %v1376
  %v1378 = vmul.f32 %v1198, 1.442695
  %v1379 = vpow.pop %v1378
  %v1380 = vmul.f32 %v1199, 1.442695
  %v1381 = vpow.pop %v1380
  %v1382 = vmul.f32 %v1200, 1.442695
  %v1383 = vpow.pop %v1382
  %v1384 = vmul.f32 %v1201, 1.442695
  %v1385 = vpow.pop %v1384
  %v1386 = vmul.f32 %v1202, 1.442695
  %v1387 = vpow.pop %v1386
  %v1388 = vmul.f32 %v1203, 1.442695
  %v1389 = vpow.pop %v1388
  %v1390 = vmul.f32 %v1204, 1.442695
  %v1391 = vpow.pop %v1390
  %v1392 = vmul.f32 %v1205, 1.442695
  %v1393 = vpow.pop %v1392
  %v1394 = vmul.f32 %v1206, 1.442695
  %v1395 = vpow.pop %v1394
  %v1396 = vmul.f32 %v1207, 1.442695
  %v1397 = vpow.pop %v1396
  %v1398 = vmul.f32 %v1208, 1.442695
  %v1399 = vpow.pop %v1398
  %v1400 = vmul.f32 %v1209, 1.442695
  %v1401 = vpow.pop %v1400
  %v1402 = vmul.f32 %v1210, 1.442695
  %v1403 = vpow.pop %v1402
  %v1404 = vmul.f32 %v1211, 1.442695
  %v1405 = vpow.pop %v1404
  %v1406 = vmul.f32 %v1212, 1.442695
  %v1407 = vpow.pop %v1406
  %v1408 = vmul.f32 %v1213, 1.442695
  %v1409 = vpow.pop %v1408
  %v1410 = vmul.f32 %v1214, 1.442695
  %v1411 = vpow.pop %v1410
  %v1412 = vmul.f32 %v1215, 1.442695
  %v1413 = vpow.pop %v1412
  %v1414 = vmul.f32 %v1216, 1.442695
  %v1415 = vpow.pop %v1414
  %v1416 = vmul.f32 %v1217, 1.442695
  %v1417 = vpow.pop %v1416
  %v1418 = vmul.f32 %v1218, 1.442695
  %v1419 = vpow.pop %v1418
  %v1420 = vmul.f32 %v1219, 1.442695
  %v1421 = vpow.pop %v1420
  %v1422 = vmul.f32 %v1220, 1.442695
  %v1423 = vpow.pop %v1422
  %v1424 = vmul.f32 %v1221, 1.442695
  %v1425 = vpow.pop %v1424
  %v1426 = vmul.f32 %v1222, 1.442695
  %v1427 = vpow.pop %v1426
  %v1428 = vmul.f32 %v1223, 1.442695
  %v1429 = vpow.pop %v1428
  %v1430 = vmul.f32 %v1224, 1.442695
  %v1431 = vpow.pop %v1430
  %v1432 = vmul.f32 %v1225, 1.442695
  %v1433 = vpow.pop %v1432
  %v1434 = vmul.f32 %v1226, 1.442695
  %v1435 = vpow.pop %v1434
  %v1436 = vmul.f32 %v1227, 1.442695
  %v1437 = vpow.pop %v1436
  %v1438 = vmul.f32 %v1228, 1.442695
  %v1439 = vpow.pop %v1438
  %v1440 = vmul.f32 %v1229, 1.442695
  %v1441 = vpow.pop %v1440
  %v1442 = vmul.f32 %v1230, 1.442695
  %v1443 = vpow.pop %v1442
  %v1444 = vmul.f32 %v1231, 1.442695
  %v1445 = vpow.pop %v1444
  %v1446 = vmul.f32 %v1232, 1.442695
  %v1447 = vpow.pop %v1446
  %v1448 = vmul.f32 %v1233, 1.442695
  %v1449 = vpow.pop %v1448
  %v1450 = vmul.f32 %v1234, 1.442695
  %v1451 = vpow.pop %v1450
  %v1452 = vmul.f32 %v1235, 1.442695
  %v1453 = vpow.pop %v1452
  %v1454 = vmul.f32 %v1236, 1.442695
  %v1455 = vpow.pop %v1454
  %v1456 = vmul.f32 %v1237, 1.442695
  %v1457 = vpow.pop %v1456
  %v1458 = vmul.f32 %v1238, 1.442695
  %v1459 = vpow.pop %v1458
  %v1460 = vmul.f32 %v1239, 1.442695
  %v1461 = vpow.pop %v1460
  %v1462 = vmul.f32 %v1240, 1.442695
  %v1463 = vpow.pop %v1462
  %v1464 = vmul.f32 %v1241, 1.442695
  %v1465 = vpow.pop %v1464
  %v1466 = vmul.f32 %v1242, 1.442695
  %v1467 = vpow.pop %v1466
  %v1468 = vmul.f32 %v1243, 1.442695
  %v1469 = vpow.pop %v1468
  %v1470 = vmul.f32 %v1244, 1.442695
  %v1471 = vpow.pop %v1470
  %v1472 = vmul.f32 %v1245, 1.442695
  %v1473 = vpow.pop %v1472
  %v1474 = vmul.f32 %v1246, 1.442695
  %v1475 = vpow.pop %v1474
  %v1476 = vmul.f32 %v1247, 1.442695
  %v1477 = vpow.pop %v1476
  %v1478 = vmul.f32 %v1248, 1.442695
  %v1479 = vpow.pop %v1478
  %v1480 = vmul.f32 %v1249, 1.442695
  %v1481 = vpow.pop %v1480
  %v1482 = vmul.f32 %v1250, 1.442695
  %v1483 = vpow.pop %v1482
  %v1484 = vmul.f32 %v1251, 1.442695
  %v1485 = vpow.pop %v1484
  %v1486 = vmul.f32 %v1252, 1.442695
  %v1487 = vpow.pop %v1486
  %v1488 = vmul.f32 %v1253, 1.442695
  %v1489 = vpow.pop %v1488
  %v1490 = vmul.f32 %v1254, 1.442695
  %v1491 = vpow.pop %v1490
  %v1492 = vmul.f32 %v1255, 1.442695
  %v1493 = vpow.pop %v1492
  %v1494 = vmul.f32 %v1256, 1.442695
  %v1495 = vpow.pop %v1494
  %v1496 = vmul.f32 %v1257, 1.442695
  %v1497 = vpow.pop %v1496
  %v1498 = vmul.f32 %v1258, 1.442695
  %v1499 = vpow.pop %v1498
  %v1500 = vmul.f32 %v1259, 1.442695
  %v1501 = vpow.pop %v1500
  %v1502 = vmul.f32 %v1260, 1.442695
  %v1503 = vpow.pop %v1502
  %v1504 = vmul.f32 %v1261, 1.442695
  %v1505 = vpow.pop %v1504
  %v1506 = vmul.f32 %v1262, 1.442695
  %v1507 = vpow.pop %v1506
  %v1508 = vmul.f32 %v1263, 1.442695
  %v1509 = vpow.pop %v1508
  %v1510 = vmul.f32 %v1264, 1.442695
  %v1511 = vpow.pop %v1510
  %v1512 = vmul.f32 %v1265, 1.442695
  %v1513 = vpow.pop %v1512
  %v1514 = vmul.f32 %v1266, 1.442695
  %v1515 = vpow.pop %v1514
  %v1516 = vmul.f32 %v1267, 1.442695
  %v1517 = vpow.pop %v1516
  %v1518 = vmul.f32 %v1268, 1.442695
  %v1519 = vpow.pop %v1518
  %v1520 = vmul.f32 %v1269, 1.442695
  %v1521 = vpow.pop %v1520
  %v1522 = vmul.f32 %v1270, 1.442695
  %v1523 = vpow.pop %v1522
  %v1524 = vmul.f32 %v1271, 1.442695
  %v1525 = vpow.pop %v1524
  %v1526 = vmul.f32 %v1272, 1.442695
  %v1527 = vpow.pop %v1526
  %v1528 = vmul.f32 %v1273, 1.442695
  %v1529 = vpow.pop %v1528
  %v1530 = vmul.f32 %v1274, 1.442695
  %v1531 = vpow.pop %v1530
  %v1532 = vmul.f32 %v1275, 1.442695
  %v1533 = vpow.pop %v1532
  %v1534 = vmul.f32 %v1276, 1.442695
  %v1535 = vpow.pop %v1534
  %v1536 = vmul.f32 %v1277, 1.442695
  %v1537 = vpow.pop %v1536
  %v1538 = vmul.f32 %v1278, 1.442695
  %v1539 = vpow.pop %v1538
  %v1540 = vmul.f32 %v1279, 1.442695
  %v1541 = vpow.pop %v1540
  %v1542 = vmul.f32 %v1280, 1.442695
  %v1543 = vpow.pop %v1542
  %v1544 = vmul.f32 %v1281, 1.442695
  %v1545 = vpow.pop %v1544
  %v1546 = vmul.f32 %v1282, 1.442695
  %v1547 = vpow.pop %v1546
  %v1548 = vmul.f32 %v1283, 1.442695
  %v1549 = vpow.pop %v1548
  %v1550 = vmul.f32 %v1284, 1.442695
  %v1551 = vpow.pop %v1550
  %v1552 = vmul.f32 %v1285, 1.442695
  %v1553 = vpow.pop %v1552
  %v1554 = vmul.f32 %v1286, 1.442695
  %v1555 = vpow.pop %v1554
  %v1556 = vmul.f32 %v1287, 1.442695
  %v1557 = vpow.pop %v1556
  %v1558 = vmul.f32 %v1288, 1.442695
  %v1559 = vpow.pop %v1558
  %v1560 = vmul.f32 %v1289, 1.442695
  %v1561 = vpow.pop %v1560
  %v1562 = vmul.f32 %v1290, 1.442695
  %v1563 = vpow.pop %v1562
  %v1564 = vmul.f32 %v1291, 1.442695
  %v1565 = vpow.pop %v1564
  %v1566 = vmul.f32 %v1292, 1.442695
  %v1567 = vpow.pop %v1566
  %v1568 = vmul.f32 %v1293, 1.442695
  %v1569 = vpow.pop %v1568
  %v1570 = vmul.f32 %v1294, 1.442695
  %v1571 = vpow.pop %v1570
  %v1572 = vmul.f32 %v1295, 1.442695
  %v1573 = vpow.pop %v1572
  %v1574 = vmul.f32 %v1296, 1.442695
  %v1575 = vpow.pop %v1574
  %v1576 = vmul.f32 %v1297, 1.442695
  %v1577 = vpow.pop %v1576
  %v1578 = vmul.f32 %v1298, 1.442695
  %v1579 = vpow.pop %v1578
  %v1580 = vmul.f32 %v1299, 1.442695
  %v1581 = vpow.pop %v1580
  %v1582 = vmul.f32 %v1300, 1.442695
  %v1583 = vpow.pop %v1582
  %v1584 = vmul.f32 %v1301, 1.442695
  %v1585 = vpow.pop %v1584
  %v1586 = vmul.f32 %v1302, 1.442695
  %v1587 = vpow.pop %v1586
  %v1588 = vmul.f32 %v1303, 1.442695
  %v1589 = vpow.pop %v1588
  %v1590 = vmul.f32 %v1304, 1.442695
  %v1591 = vpow.pop %v1590
  %v1592 = vmul.f32 %v1305, 1.442695
  %v1593 = vpow.pop %v1592
  %v1594 = vmul.f32 %v1306, 1.442695
  %v1595 = vpow.pop %v1594
  %v1596 = vmul.f32 %v1307, 1.442695
  %v1597 = vpow.pop %v1596
  %v1598 = vmul.f32 %v1308, 1.442695
  %v1599 = vpow.pop %v1598
  %v1600 = vmul.f32 %v1309, 1.442695
  %v1601 = vpow.pop %v1600
  %v1602 = vmul.f32 %v1310, 1.442695
  %v1603 = vpow.pop %v1602
  %v1604 = vmul.f32 %v1311, 1.442695
  %v1605 = vpow.pop %v1604
  %v1606 = vmul.f32 %v1312, 1.442695
  %v1607 = vpow.pop %v1606
  %v1608 = vmul.f32 %v1313, 1.442695
  %v1609 = vpow.pop %v1608
  %v1610 = vmul.f32 %v1314, 1.442695
  %v1611 = vpow.pop %v1610
  %v1612 = vmul.f32 %v1315, 1.442695
  %v1613 = vpow.pop %v1612
  %v1614 = vmul.f32 %v1316, 1.442695
  %v1615 = vpow.pop %v1614
  %v1616 = vmul.f32 %v1317, 1.442695
  %v1617 = vpow.pop %v1616
  %v1618 = vmul.f32 %v1318, 1.442695
  %v1619 = vpow.pop %v1618
  %v1620 = vmul.f32 %v1319, 1.442695
  %v1621 = vpow.pop %v1620
  %v1622 = vmul.f32 %v1320, 1.442695
  %v1623 = vpow.pop %v1622
  %v1624 = vmul.f32 %v1321, 1.442695
  %v1625 = vpow.pop %v1624
  %v1626 = vmul.f32 %v1322, 1.442695
  %v1627 = vpow.pop %v1626
  %v1628 = vmul.f32 %v1323, 1.442695
  %v1629 = vpow.pop %v1628
  %v1630 = vmul.f32 %v1324, 1.442695
  %v1631 = vpow.pop %v1630
  %v1632 = vmul.f32 %v1325, 1.442695
  %v1633 = vpow.pop %v1632
  %v1634 = vmul.f32 %v1326, 1.442695
  %v1635 = vpow.pop %v1634
  %v1636 = vmul.f32 %v1327, 1.442695
  %v1637 = vpow.pop %v1636
  %v1638 = vmul.f32 %v1328, 1.442695
  %v1639 = vpow.pop %v1638
  %v1640 = vmul.f32 %v1329, 1.442695
  %v1641 = vpow.pop %v1640
  %v1642 = vmul.f32 %v1330, 1.442695
  %v1643 = vpow.pop %v1642
  %v1644 = vmul.f32 %v1331, 1.442695
  %v1645 = vpow.pop %v1644
  %v1646 = vmul.f32 %v1332, 1.442695
  %v1647 = vpow.pop %v1646
  %v1648 = vmul.f32 %v1333, 1.442695
  %v1649 = vpow.pop %v1648
  %v1650 = vmul.f32 %v1334, 1.442695
  %v1651 = vpow.pop %v1650
  %v1652 = vmul.f32 %v1335, 1.442695
  %v1653 = vpow.pop %v1652
  %v1654 = vmul.f32 %v1336, 1.442695
  %v1655 = vpow.pop %v1654
  %v1656 = vmul.f32 %v1337, 1.442695
  %v1657 = vpow.pop %v1656
  %v1658 = vadd.f32 %v1339, 1.0
  %v1659 = vadd.f32 %v1341, 1.0
  %v1660 = vadd.f32 %v1343, 1.0
  %v1661 = vadd.f32 %v1345, 1.0
  %v1662 = vadd.f32 %v1347, 1.0
  %v1663 = vadd.f32 %v1349, 1.0
  %v1664 = vadd.f32 %v1351, 1.0
  %v1665 = vadd.f32 %v1353, 1.0
  %v1666 = vadd.f32 %v1355, 1.0
  %v1667 = vadd.f32 %v1357, 1.0
  %v1668 = vadd.f32 %v1359, 1.0
  %v1669 = vadd.f32 %v1361, 1.0
  %v1670 = vadd.f32 %v1363, 1.0
  %v1671 = vadd.f32 %v1365, 1.0
  %v1672 = vadd.f32 %v1367, 1.0
  %v1673 = vadd.f32 %v1369, 1.0
  %v1674 = vadd.f32 %v1371, 1.0
  %v1675 = vadd.f32 %v1373, 1.0
  %v1676 = vadd.f32 %v1375, 1.0
  %v1677 = vadd.f32 %v1377, 1.0
  %v1678 = vadd.f32 %v1379, 1.0
  %v1679 = vadd.f32 %v1381, 1.0
  %v1680 = vadd.f32 %v1383, 1.0
  %v1681 = vadd.f32 %v1385, 1.0
  %v1682 = vadd.f32 %v1387, 1.0
  %v1683 = vadd.f32 %v1389, 1.0
  %v1684 = vadd.f32 %v1391, 1.0
  %v1685 = vadd.f32 %v1393, 1.0
  %v1686 = vadd.f32 %v1395, 1.0
  %v1687 = vadd.f32 %v1397, 1.0
  %v1688 = vadd.f32 %v1399, 1.0
  %v1689 = vadd.f32 %v1401, 1.0
  %v1690 = vadd.f32 %v1403, 1.0
  %v1691 = vadd.f32 %v1405, 1.0
  %v1692 = vadd.f32 %v1407, 1.0
  %v1693 = vadd.f32 %v1409, 1.0
  %v1694 = vadd.f32 %v1411, 1.0
  %v1695 = vadd.f32 %v1413, 1.0
  %v1696 = vadd.f32 %v1415, 1.0
  %v1697 = vadd.f32 %v1417, 1.0
  %v1698 = vadd.f32 %v1419, 1.0
  %v1699 = vadd.f32 %v1421, 1.0
  %v1700 = vadd.f32 %v1423, 1.0
  %v1701 = vadd.f32 %v1425, 1.0
  %v1702 = vadd.f32 %v1427, 1.0
  %v1703 = vadd.f32 %v1429, 1.0
  %v1704 = vadd.f32 %v1431, 1.0
  %v1705 = vadd.f32 %v1433, 1.0
  %v1706 = vadd.f32 %v1435, 1.0
  %v1707 = vadd.f32 %v1437, 1.0
  %v1708 = vadd.f32 %v1439, 1.0
  %v1709 = vadd.f32 %v1441, 1.0
  %v1710 = vadd.f32 %v1443, 1.0
  %v1711 = vadd.f32 %v1445, 1.0
  %v1712 = vadd.f32 %v1447, 1.0
  %v1713 = vadd.f32 %v1449, 1.0
  %v1714 = vadd.f32 %v1451, 1.0
  %v1715 = vadd.f32 %v1453, 1.0
  %v1716 = vadd.f32 %v1455, 1.0
  %v1717 = vadd.f32 %v1457, 1.0
  %v1718 = vadd.f32 %v1459, 1.0
  %v1719 = vadd.f32 %v1461, 1.0
  %v1720 = vadd.f32 %v1463, 1.0
  %v1721 = vadd.f32 %v1465, 1.0
  %v1722 = vadd.f32 %v1467, 1.0
  %v1723 = vadd.f32 %v1469, 1.0
  %v1724 = vadd.f32 %v1471, 1.0
  %v1725 = vadd.f32 %v1473, 1.0
  %v1726 = vadd.f32 %v1475, 1.0
  %v1727 = vadd.f32 %v1477, 1.0
  %v1728 = vadd.f32 %v1479, 1.0
  %v1729 = vadd.f32 %v1481, 1.0
  %v1730 = vadd.f32 %v1483, 1.0
  %v1731 = vadd.f32 %v1485, 1.0
  %v1732 = vadd.f32 %v1487, 1.0
  %v1733 = vadd.f32 %v1489, 1.0
  %v1734 = vadd.f32 %v1491, 1.0
  %v1735 = vadd.f32 %v1493, 1.0
  %v1736 = vadd.f32 %v1495, 1.0
  %v1737 = vadd.f32 %v1497, 1.0
  %v1738 = vadd.f32 %v1499, 1.0
  %v1739 = vadd.f32 %v1501, 1.0
  %v1740 = vadd.f32 %v1503, 1.0
  %v1741 = vadd.f32 %v1505, 1.0
  %v1742 = vadd.f32 %v1507, 1.0
  %v1743 = vadd.f32 %v1509, 1.0
  %v1744 = vadd.f32 %v1511, 1.0
  %v1745 = vadd.f32 %v1513, 1.0
  %v1746 = vadd.f32 %v1515, 1.0
  %v1747 = vadd.f32 %v1517, 1.0
  %v1748 = vadd.f32 %v1519, 1.0
  %v1749 = vadd.f32 %v1521, 1.0
  %v1750 = vadd.f32 %v1523, 1.0
  %v1751 = vadd.f32 %v1525, 1.0
  %v1752 = vadd.f32 %v1527, 1.0
  %v1753 = vadd.f32 %v1529, 1.0
  %v1754 = vadd.f32 %v1531, 1.0
  %v1755 = vadd.f32 %v1533, 1.0
  %v1756 = vadd.f32 %v1535, 1.0
  %v1757 = vadd.f32 %v1537, 1.0
  %v1758 = vadd.f32 %v1539, 1.0
  %v1759 = vadd.f32 %v1541, 1.0
  %v1760 = vadd.f32 %v1543, 1.0
  %v1761 = vadd.f32 %v1545, 1.0
  %v1762 = vadd.f32 %v1547, 1.0
  %v1763 = vadd.f32 %v1549, 1.0
  %v1764 = vadd.f32 %v1551, 1.0
  %v1765 = vadd.f32 %v1553, 1.0
  %v1766 = vadd.f32 %v1555, 1.0
  %v1767 = vadd.f32 %v1557, 1.0
  %v1768 = vadd.f32 %v1559, 1.0
  %v1769 = vadd.f32 %v1561, 1.0
  %v1770 = vadd.f32 %v1563, 1.0
  %v1771 = vadd.f32 %v1565, 1.0
  %v1772 = vadd.f32 %v1567, 1.0
  %v1773 = vadd.f32 %v1569, 1.0
  %v1774 = vadd.f32 %v1571, 1.0
  %v1775 = vadd.f32 %v1573, 1.0
  %v1776 = vadd.f32 %v1575, 1.0
  %v1777 = vadd.f32 %v1577, 1.0
  %v1778 = vadd.f32 %v1579, 1.0
  %v1779 = vadd.f32 %v1581, 1.0
  %v1780 = vadd.f32 %v1583, 1.0
  %v1781 = vadd.f32 %v1585, 1.0
  %v1782 = vadd.f32 %v1587, 1.0
  %v1783 = vadd.f32 %v1589, 1.0
  %v1784 = vadd.f32 %v1591, 1.0
  %v1785 = vadd.f32 %v1593, 1.0
  %v1786 = vadd.f32 %v1595, 1.0
  %v1787 = vadd.f32 %v1597, 1.0
  %v1788 = vadd.f32 %v1599, 1.0
  %v1789 = vadd.f32 %v1601, 1.0
  %v1790 = vadd.f32 %v1603, 1.0
  %v1791 = vadd.f32 %v1605, 1.0
  %v1792 = vadd.f32 %v1607, 1.0
  %v1793 = vadd.f32 %v1609, 1.0
  %v1794 = vadd.f32 %v1611, 1.0
  %v1795 = vadd.f32 %v1613, 1.0
  %v1796 = vadd.f32 %v1615, 1.0
  %v1797 = vadd.f32 %v1617, 1.0
  %v1798 = vadd.f32 %v1619, 1.0
  %v1799 = vadd.f32 %v1621, 1.0
  %v1800 = vadd.f32 %v1623, 1.0
  %v1801 = vadd.f32 %v1625, 1.0
  %v1802 = vadd.f32 %v1627, 1.0
  %v1803 = vadd.f32 %v1629, 1.0
  %v1804 = vadd.f32 %v1631, 1.0
  %v1805 = vadd.f32 %v1633, 1.0
  %v1806 = vadd.f32 %v1635, 1.0
  %v1807 = vadd.f32 %v1637, 1.0
  %v1808 = vadd.f32 %v1639, 1.0
  %v1809 = vadd.f32 %v1641, 1.0
  %v1810 = vadd.f32 %v1643, 1.0
  %v1811 = vadd.f32 %v1645, 1.0
  %v1812 = vadd.f32 %v1647, 1.0
  %v1813 = vadd.f32 %v1649, 1.0
  %v1814 = vadd.f32 %v1651, 1.0
  %v1815 = vadd.f32 %v1653, 1.0
  %v1816 = vadd.f32 %v1655, 1.0
  %v1817 = vadd.f32 %v1657, 1.0
  %v1818 = vrcp.pop %v1658
  %v1819 = vmul.f32 1.0, %v1818
  %v1820 = vrcp.pop %v1659
  %v1821 = vmul.f32 1.0, %v1820
  %v1822 = vrcp.pop %v1660
  %v1823 = vmul.f32 1.0, %v1822
  %v1824 = vrcp.pop %v1661
  %v1825 = vmul.f32 1.0, %v1824
  %v1826 = vrcp.pop %v1662
  %v1827 = vmul.f32 1.0, %v1826
  %v1828 = vrcp.pop %v1663
  %v1829 = vmul.f32 1.0, %v1828
  %v1830 = vrcp.pop %v1664
  %v1831 = vmul.f32 1.0, %v1830
  %v1832 = vrcp.pop %v1665
  %v1833 = vmul.f32 1.0, %v1832
  %v1834 = vrcp.pop %v1666
  %v1835 = vmul.f32 1.0, %v1834
  %v1836 = vrcp.pop %v1667
  %v1837 = vmul.f32 1.0, %v1836
  %v1838 = vrcp.pop %v1668
  %v1839 = vmul.f32 1.0, %v1838
  %v1840 = vrcp.pop %v1669
  %v1841 = vmul.f32 1.0, %v1840
  %v1842 = vrcp.pop %v1670
  %v1843 = vmul.f32 1.0, %v1842
  %v1844 = vrcp.pop %v1671
  %v1845 = vmul.f32 1.0, %v1844
  %v1846 = vrcp.pop %v1672
  %v1847 = vmul.f32 1.0, %v1846
  %v1848 = vrcp.pop %v1673
  %v1849 = vmul.f32 1.0, %v1848
  %v1850 = vrcp.pop %v1674
  %v1851 = vmul.f32 1.0, %v1850
  %v1852 = vrcp.pop %v1675
  %v1853 = vmul.f32 1.0, %v1852
  %v1854 = vrcp.pop %v1676
  %v1855 = vmul.f32 1.0, %v1854
  %v1856 = vrcp.pop %v1677
  %v1857 = vmul.f32 1.0, %v1856
  %v1858 = vrcp.pop %v1678
  %v1859 = vmul.f32 1.0, %v1858
  %v1860 = vrcp.pop %v1679
  %v1861 = vmul.f32 1.0, %v1860
  %v1862 = vrcp.pop %v1680
  %v1863 = vmul.f32 1.0, %v1862
  %v1864 = vrcp.pop %v1681
  %v1865 = vmul.f32 1.0, %v1864
  %v1866 = vrcp.pop %v1682
  %v1867 = vmul.f32 1.0, %v1866
  %v1868 = vrcp.pop %v1683
  %v1869 = vmul.f32 1.0, %v1868
  %v1870 = vrcp.pop %v1684
  %v1871 = vmul.f32 1.0, %v1870
  %v1872 = vrcp.pop %v1685
  %v1873 = vmul.f32 1.0, %v1872
  %v1874 = vrcp.pop %v1686
  %v1875 = vmul.f32 1.0, %v1874
  %v1876 = vrcp.pop %v1687
  %v1877 = vmul.f32 1.0, %v1876
  %v1878 = vrcp.pop %v1688
  %v1879 = vmul.f32 1.0, %v1878
  %v1880 = vrcp.pop %v1689
  %v1881 = vmul.f32 1.0, %v1880
  %v1882 = vrcp.pop %v1690
  %v1883 = vmul.f32 1.0, %v1882
  %v1884 = vrcp.pop %v1691
  %v1885 = vmul.f32 1.0, %v1884
  %v1886 = vrcp.pop %v1692
  %v1887 = vmul.f32 1.0, %v1886
  %v1888 = vrcp.pop %v1693
  %v1889 = vmul.f32 1.0, %v1888
  %v1890 = vrcp.pop %v1694
  %v1891 = vmul.f32 1.0, %v1890
  %v1892 = vrcp.pop %v1695
  %v1893 = vmul.f32 1.0, %v1892
  %v1894 = vrcp.pop %v1696
  %v1895 = vmul.f32 1.0, %v1894
  %v1896 = vrcp.pop %v1697
  %v1897 = vmul.f32 1.0, %v1896
  %v1898 = vrcp.pop %v1698
  %v1899 = vmul.f32 1.0, %v1898
  %v1900 = vrcp.pop %v1699
  %v1901 = vmul.f32 1.0, %v1900
  %v1902 = vrcp.pop %v1700
  %v1903 = vmul.f32 1.0, %v1902
  %v1904 = vrcp.pop %v1701
  %v1905 = vmul.f32 1.0, %v1904
  %v1906 = vrcp.pop %v1702
  %v1907 = vmul.f32 1.0, %v1906
  %v1908 = vrcp.pop %v1703
  %v1909 = vmul.f32 1.0, %v1908
  %v1910 = vrcp.pop %v1704
  %v1911 = vmul.f32 1.0, %v1910
  %v1912 = vrcp.pop %v1705
  %v1913 = vmul.f32 1.0, %v1912
  %v1914 = vrcp.pop %v1706
  %v1915 = vmul.f32 1.0, %v1914
  %v1916 = vrcp.pop %v1707
  %v1917 = vmul.f32 1.0, %v1916
  %v1918 = vrcp.pop %v1708
  %v1919 = vmul.f32 1.0, %v1918
  %v1920 = vrcp.pop %v1709
  %v1921 = vmul.f32 1.0, %v1920
  %v1922 = vrcp.pop %v1710
  %v1923 = vmul.f32 1.0, %v1922
  %v1924 = vrcp.pop %v1711
  %v1925 = vmul.f32 1.0, %v1924
  %v1926 = vrcp.pop %v1712
  %v1927 = vmul.f32 1.0, %v1926
  %v1928 = vrcp.pop %v1713
  %v1929 = vmul.f32 1.0, %v1928
  %v1930 = vrcp.pop %v1714
  %v1931 = vmul.f32 1.0, %v1930
  %v1932 = vrcp.pop %v1715
  %v1933 = vmul.f32 1.0, %v1932
  %v1934 = vrcp.pop %v1716
  %v1935 = vmul.f32 1.0, %v1934
  %v1936 = vrcp.pop %v1717
  %v1937 = vmul.f32 1.0, %v1936
  %v1938 = vrcp.pop %v1718
  %v1939 = vmul.f32 1.0, %v1938
  %v1940 = vrcp.pop %v1719
  %v1941 = vmul.f32 1.0, %v1940
  %v1942 = vrcp.pop %v1720
  %v1943 = vmul.f32 1.0, %v1942
  %v1944 = vrcp.pop %v1721
  %v1945 = vmul.f32 1.0, %v1944
  %v1946 = vrcp.pop %v1722
  %v1947 = vmul.f32 1.0, %v1946
  %v1948 = vrcp.pop %v1723
  %v1949 = vmul.f32 1.0, %v1948
  %v1950 = vrcp.pop %v1724
  %v1951 = vmul.f32 1.0, %v1950
  %v1952 = vrcp.pop %v1725
  %v1953 = vmul.f32 1.0, %v1952
  %v1954 = vrcp.pop %v1726
  %v1955 = vmul.f32 1.0, %v1954
  %v1956 = vrcp.pop %v1727
  %v1957 = vmul.f32 1.0, %v1956
  %v1958 = vrcp.pop %v1728
  %v1959 = vmul.f32 1.0, %v1958
  %v1960 = vrcp.pop %v1729
  %v1961 = vmul.f32 1.0, %v1960
  %v1962 = vrcp.pop %v1730
  %v1963 = vmul.f32 1.0, %v1962
  %v1964 = vrcp.pop %v1731
  %v1965 = vmul.f32 1.0, %v1964
  %v1966 = vrcp.pop %v1732
  %v1967 = vmul.f32 1.0, %v1966
  %v1968 = vrcp.pop %v1733
  %v1969 = vmul.f32 1.0, %v1968
  %v1970 = vrcp.pop %v1734
  %v1971 = vmul.f32 1.0, %v1970
  %v1972 = vrcp.pop %v1735
  %v1973 = vmul.f32 1.0, %v1972
  %v1974 = vrcp.pop %v1736
  %v1975 = vmul.f32 1.0, %v1974
  %v1976 = vrcp.pop %v1737
  %v1977 = vmul.f32 1.0, %v1976
  %v1978 = vrcp.pop %v1738
  %v1979 = vmul.f32 1.0, %v1978
  %v1980 = vrcp.pop %v1739
  %v1981 = vmul.f32 1.0, %v1980
  %v1982 = vrcp.pop %v1740
  %v1983 = vmul.f32 1.0, %v1982
  %v1984 = vrcp.pop %v1741
  %v1985 = vmul.f32 1.0, %v1984
  %v1986 = vrcp.pop %v1742
  %v1987 = vmul.f32 1.0, %v1986
  %v1988 = vrcp.pop %v1743
  %v1989 = vmul.f32 1.0, %v1988
  %v1990 = vrcp.pop %v1744
  %v1991 = vmul.f32 1.0, %v1990
  %v1992 = vrcp.pop %v1745
  %v1993 = vmul.f32 1.0, %v1992
  %v1994 = vrcp.pop %v1746
  %v1995 = vmul.f32 1.0, %v1994
  %v1996 = vrcp.pop %v1747
  %v1997 = vmul.f32 1.0, %v1996
  %v1998 = vrcp.pop %v1748
  %v1999 = vmul.f32 1.0, %v1998
  %v2000 = vrcp.pop %v1749
  %v2001 = vmul.f32 1.0, %v2000
  %v2002 = vrcp.pop %v1750
  %v2003 = vmul.f32 1.0, %v2002
  %v2004 = vrcp.pop %v1751
  %v2005 = vmul.f32 1.0, %v2004
  %v2006 = vrcp.pop %v1752
  %v2007 = vmul.f32 1.0, %v2006
  %v2008 = vrcp.pop %v1753
  %v2009 = vmul.f32 1.0, %v2008
  %v2010 = vrcp.pop %v1754
  %v2011 = vmul.f32 1.0, %v2010
  %v2012 = vrcp.pop %v1755
  %v2013 = vmul.f32 1.0, %v2012
  %v2014 = vrcp.pop %v1756
  %v2015 = vmul.f32 1.0, %v2014
  %v2016 = vrcp.pop %v1757
  %v2017 = vmul.f32 1.0, %v2016
  %v2018 = vrcp.pop %v1758
  %v2019 = vmul.f32 1.0, %v2018
  %v2020 = vrcp.pop %v1759
  %v2021 = vmul.f32 1.0, %v2020
  %v2022 = vrcp.pop %v1760
  %v2023 = vmul.f32 1.0, %v2022
  %v2024 = vrcp.pop %v1761
  %v2025 = vmul.f32 1.0, %v2024
  %v2026 = vrcp.pop %v1762
  %v2027 = vmul.f32 1.0, %v2026
  %v2028 = vrcp.pop %v1763
  %v2029 = vmul.f32 1.0, %v2028
  %v2030 = vrcp.pop %v1764
  %v2031 = vmul.f32 1.0, %v2030
  %v2032 = vrcp.pop %v1765
  %v2033 = vmul.f32 1.0, %v2032
  %v2034 = vrcp.pop %v1766
  %v2035 = vmul.f32 1.0, %v2034
  %v2036 = vrcp.pop %v1767
  %v2037 = vmul.f32 1.0, %v2036
  %v2038 = vrcp.pop %v1768
  %v2039 = vmul.f32 1.0, %v2038
  %v2040 = vrcp.pop %v1769
  %v2041 = vmul.f32 1.0, %v2040
  %v2042 = vrcp.pop %v1770
  %v2043 = vmul.f32 1.0, %v2042
  %v2044 = vrcp.pop %v1771
  %v2045 = vmul.f32 1.0, %v2044
  %v2046 = vrcp.pop %v1772
  %v2047 = vmul.f32 1.0, %v2046
  %v2048 = vrcp.pop %v1773
  %v2049 = vmul.f32 1.0, %v2048
  %v2050 = vrcp.pop %v1774
  %v2051 = vmul.f32 1.0, %v2050
  %v2052 = vrcp.pop %v1775
  %v2053 = vmul.f32 1.0, %v2052
  %v2054 = vrcp.pop %v1776
  %v2055 = vmul.f32 1.0, %v2054
  %v2056 = vrcp.pop %v1777
  %v2057 = vmul.f32 1.0, %v2056
  %v2058 = vrcp.pop %v1778
  %v2059 = vmul.f32 1.0, %v2058
  %v2060 = vrcp.pop %v1779
  %v2061 = vmul.f32 1.0, %v2060
  %v2062 = vrcp.pop %v1780
  %v2063 = vmul.f32 1.0, %v2062
  %v2064 = vrcp.pop %v1781
  %v2065 = vmul.f32 1.0, %v2064
  %v2066 = vrcp.pop %v1782
  %v2067 = vmul.f32 1.0, %v2066
  %v2068 = vrcp.pop %v1783
  %v2069 = vmul.f32 1.0, %v2068
  %v2070 = vrcp.pop %v1784
  %v2071 = vmul.f32 1.0, %v2070
  %v2072 = vrcp.pop %v1785
  %v2073 = vmul.f32 1.0, %v2072
  %v2074 = vrcp.pop %v1786
  %v2075 = vmul.f32 1.0, %v2074
  %v2076 = vrcp.pop %v1787
  %v2077 = vmul.f32 1.0, %v2076
  %v2078 = vrcp.pop %v1788
  %v2079 = vmul.f32 1.0, %v2078
  %v2080 = vrcp.pop %v1789
  %v2081 = vmul.f32 1.0, %v2080
  %v2082 = vrcp.pop %v1790
  %v2083 = vmul.f32 1.0, %v2082
  %v2084 = vrcp.pop %v1791
  %v2085 = vmul.f32 1.0, %v2084
  %v2086 = vrcp.pop %v1792
  %v2087 = vmul.f32 1.0, %v2086
  %v2088 = vrcp.pop %v1793
  %v2089 = vmul.f32 1.0, %v2088
  %v2090 = vrcp.pop %v1794
  %v2091 = vmul.f32 1.0, %v2090
  %v2092 = vrcp.pop %v1795
  %v2093 = vmul.f32 1.0, %v2092
  %v2094 = vrcp.pop %v1796
  %v2095 = vmul.f32 1.0, %v2094
  %v2096 = vrcp.pop %v1797
  %v2097 = vmul.f32 1.0, %v2096
  %v2098 = vrcp.pop %v1798
  %v2099 = vmul.f32 1.0, %v2098
  %v2100 = vrcp.pop %v1799
  %v2101 = vmul.f32 1.0, %v2100
  %v2102 = vrcp.pop %v1800
  %v2103 = vmul.f32 1.0, %v2102
  %v2104 = vrcp.pop %v1801
  %v2105 = vmul.f32 1.0, %v2104
  %v2106 = vrcp.pop %v1802
  %v2107 = vmul.f32 1.0, %v2106
  %v2108 = vrcp.pop %v1803
  %v2109 = vmul.f32 1.0, %v2108
  %v2110 = vrcp.pop %v1804
  %v2111 = vmul.f32 1.0, %v2110
  %v2112 = vrcp.pop %v1805
  %v2113 = vmul.f32 1.0, %v2112
  %v2114 = vrcp.pop %v1806
  %v2115 = vmul.f32 1.0, %v2114
  %v2116 = vrcp.pop %v1807
  %v2117 = vmul.f32 1.0, %v2116
  %v2118 = vrcp.pop %v1808
  %v2119 = vmul.f32 1.0, %v2118
  %v2120 = vrcp.pop %v1809
  %v2121 = vmul.f32 1.0, %v2120
  %v2122 = vrcp.pop %v1810
  %v2123 = vmul.f32 1.0, %v2122
  %v2124 = vrcp.pop %v1811
  %v2125 = vmul.f32 1.0, %v2124
  %v2126 = vrcp.pop %v1812
  %v2127 = vmul.f32 1.0, %v2126
  %v2128 = vrcp.pop %v1813
  %v2129 = vmul.f32 1.0, %v2128
  %v2130 = vrcp.pop %v1814
  %v2131 = vmul.f32 1.0, %v2130
  %v2132 = vrcp.pop %v1815
  %v2133 = vmul.f32 1.0, %v2132
  %v2134 = vrcp.pop %v1816
  %v2135 = vmul.f32 1.0, %v2134
  %v2136 = vrcp.pop %v1817
  %v2137 = vmul.f32 1.0, %v2136
  %v2138 = vmul.f32 %v648, %v1819
  %v2139 = vmul.f32 %v650, %v1821
  %v2140 = vmul.f32 %v761, %v1823
  %v2141 = vmul.f32 %v763, %v1825
  %v2142 = vmul.f32 %v874, %v1827
  %v2143 = vmul.f32 %v876, %v1829
  %v2144 = vmul.f32 %v987, %v1831
  %v2145 = vmul.f32 %v989, %v1833
  %v2146 = vmul.f32 %v1100, %v1835
  %v2147 = vmul.f32 %v1102, %v1837
  %v2148 = vmul.f32 %v652, %v1839
  %v2149 = vmul.f32 %v654, %v1841
  %v2150 = vmul.f32 %v765, %v1843
  %v2151 = vmul.f32 %v767, %v1845
  %v2152 = vmul.f32 %v878, %v1847
  %v2153 = vmul.f32 %v880, %v1849
  %v2154 = vmul.f32 %v991, %v1851
  %v2155 = vmul.f32 %v993, %v1853
  %v2156 = vmul.f32 %v1104, %v1855
  %v2157 = vmul.f32 %v1106, %v1857
  %v2158 = vmul.f32 %v658, %v1859
  %v2159 = vmul.f32 %v660, %v1861
  %v2160 = vmul.f32 %v771, %v1863
  %v2161 = vmul.f32 %v773, %v1865
  %v2162 = vmul.f32 %v884, %v1867
  %v2163 = vmul.f32 %v886, %v1869
  %v2164 = vmul.f32 %v997, %v1871
  %v2165 = vmul.f32 %v999, %v1873
  %v2166 = vmul.f32 %v1110, %v1875
  %v2167 = vmul.f32 %v1112, %v1877
  %v2168 = vmul.f32 %v662, %v1879
  %v2169 = vmul.f32 %v664, %v1881
  %v2170 = vmul.f32 %v775, %v1883
  %v2171 = vmul.f32 %v777, %v1885
  %v2172 = vmul.f32 %v888, %v1887
  %v2173 = vmul.f32 %v890, %v1889
  %v2174 = vmul.f32 %v1001, %v1891
  %v2175 = vmul.f32 %v1003, %v1893
  %v2176 = vmul.f32 %v1114, %v1895
  %v2177 = vmul.f32 %v1116, %v1897
  %v2178 = vmul.f32 %v668, %v1899
  %v2179 = vmul.f32 %v670, %v1901
  %v2180 = vmul.f32 %v781, %v1903
  %v2181 = vmul.f32 %v783, %v1905
  %v2182 = vmul.f32 %v894, %v1907
  %v2183 = vmul.f32 %v896, %v1909
  %v2184 = vmul.f32 %v1007, %v1911
  %v2185 = vmul.f32 %v1009, %v1913
  %v2186 = vmul.f32 %v1120, %v1915
  %v2187 = vmul.f32 %v1122, %v1917
  %v2188 = vmul.f32 %v672, %v1919
  %v2189 = vmul.f32 %v674, %v1921
  %v2190 = vmul.f32 %v785, %v1923
  %v2191 = vmul.f32 %v787, %v1925
  %v2192 = vmul.f32 %v898, %v1927
  %v2193 = vmul.f32 %v900, %v1929
  %v2194 = vmul.f32 %v1011, %v1931
  %v2195 = vmul.f32 %v1013, %v1933
  %v2196 = vmul.f32 %v1124, %v1935
  %v2197 = vmul.f32 %v1126, %v1937
  %v2198 = vmul.f32 %v678, %v1939
  %v2199 = vmul.f32 %v680, %v1941
  %v2200 = vmul.f32 %v791, %v1943
  %v2201 = vmul.f32 %v793, %v1945
  %v2202 = vmul.f32 %v904, %v1947
  %v2203 = vmul.f32 %v906, %v1949
  %v2204 = vmul.f32 %v1017, %v1951
  %v2205 = vmul.f32 %v1019, %v1953
  %v2206 = vmul.f32 %v1130, %v1955
  %v2207 = vmul.f32 %v1132, %v1957
  %v2208 = vmul.f32 %v682, %v1959
  %v2209 = vmul.f32 %v684, %v1961
  %v2210 = vmul.f32 %v795, %v1963
  %v2211 = vmul.f32 %v797, %v1965
  %v2212 = vmul.f32 %v908, %v1967
  %v2213 = vmul.f32 %v910, %v1969
  %v2214 = vmul.f32 %v1021, %v1971
  %v2215 = vmul.f32 %v1023, %v1973
  %v2216 = vmul.f32 %v1134, %v1975
  %v2217 = vmul.f32 %v1136, %v1977
  %v2218 = vmul.f32 %v688, %v1979
  %v2219 = vmul.f32 %v690, %v1981
  %v2220 = vmul.f32 %v801, %v1983
  %v2221 = vmul.f32 %v803, %v1985
  %v2222 = vmul.f32 %v914, %v1987
  %v2223 = vmul.f32 %v916, %v1989
  %v2224 = vmul.f32 %v1027, %v1991
  %v2225 = vmul.f32 %v1029, %v1993
  %v2226 = vmul.f32 %v1140, %v1995
  %v2227 = vmul.f32 %v1142, %v1997
  %v2228 = vmul.f32 %v692, %v1999
  %v2229 = vmul.f32 %v694, %v2001
  %v2230 = vmul.f32 %v805, %v2003
  %v2231 = vmul.f32 %v807, %v2005
  %v2232 = vmul.f32 %v918, %v2007
  %v2233 = vmul.f32 %v920, %v2009
  %v2234 = vmul.f32 %v1031, %v2011
  %v2235 = vmul.f32 %v1033, %v2013
  %v2236 = vmul.f32 %v1144, %v2015
  %v2237 = vmul.f32 %v1146, %v2017
  %v2238 = vmul.f32 %v698, %v2019
  %v2239 = vmul.f32 %v700, %v2021
  %v2240 = vmul.f32 %v811, %v2023
  %v2241 = vmul.f32 %v813, %v2025
  %v2242 = vmul.f32 %v924, %v2027
  %v2243 = vmul.f32 %v926, %v2029
  %v2244 = vmul.f32 %v1037, %v2031
  %v2245 = vmul.f32 %v1039, %v2033
  %v2246 = vmul.f32 %v1150, %v2035
  %v2247 = vmul.f32 %v1152, %v2037
  %v2248 = vmul.f32 %v702, %v2039
  %v2249 = vmul.f32 %v704, %v2041
  %v2250 = vmul.f32 %v815, %v2043
  %v2251 = vmul.f32 %v817, %v2045
  %v2252 = vmul.f32 %v928, %v2047
  %v2253 = vmul.f32 %v930, %v2049
  %v2254 = vmul.f32 %v1041, %v2051
  %v2255 = vmul.f32 %v1043, %v2053
  %v2256 = vmul.f32 %v1154, %v2055
  %v2257 = vmul.f32 %v1156, %v2057
  %v2258 = vmul.f32 %v708, %v2059
  %v2259 = vmul.f32 %v710, %v2061
  %v2260 = vmul.f32 %v821, %v2063
  %v2261 = vmul.f32 %v823, %v2065
  %v2262 = vmul.f32 %v934, %v2067
  %v2263 = vmul.f32 %v936, %v2069
  %v2264 = vmul.f32 %v1047, %v2071
  %v2265 = vmul.f32 %v1049, %v2073
  %v2266 = vmul.f32 %v1160, %v2075
  %v2267 = vmul.f32 %v1162, %v2077
  %v2268 = vmul.f32 %v712, %v2079
  %v2269 = vmul.f32 %v714, %v2081
  %v2270 = vmul.f32 %v825, %v2083
  %v2271 = vmul.f32 %v827, %v2085
  %v2272 = vmul.f32 %v938, %v2087
  %v2273 = vmul.f32 %v940, %v2089
  %v2274 = vmul.f32 %v1051, %v2091
  %v2275 = vmul.f32 %v1053, %v2093
  %v2276 = vmul.f32 %v1164, %v2095
  %v2277 = vmul.f32 %v1166, %v2097
  %v2278 = vmul.f32 %v718, %v2099
  %v2279 = vmul.f32 %v720, %v2101
  %v2280 = vmul.f32 %v831, %v2103
  %v2281 = vmul.f32 %v833, %v2105
  %v2282 = vmul.f32 %v944, %v2107
  %v2283 = vmul.f32 %v946, %v2109
  %v2284 = vmul.f32 %v1057, %v2111
  %v2285 = vmul.f32 %v1059, %v2113
  %v2286 = vmul.f32 %v1170, %v2115
  %v2287 = vmul.f32 %v1172, %v2117
  %v2288 = vmul.f32 %v722, %v2119
  %v2289 = vmul.f32 %v724, %v2121
  %v2290 = vmul.f32 %v835, %v2123
  %v2291 = vmul.f32 %v837, %v2125
  %v2292 = vmul.f32 %v948, %v2127
  %v2293 = vmul.f32 %v950, %v2129
  %v2294 = vmul.f32 %v1061, %v2131
  %v2295 = vmul.f32 %v1063, %v2133
  %v2296 = vmul.f32 %v1174, %v2135
  %v2297 = vmul.f32 %v1176, %v2137
  %v2298 = vpack.c.bf16 %v2148, %v2138
  %v2299 = vpack.c.bf16 %v2149, %v2139
  %v2300 = vpack.c.bf16 %v2150, %v2140
  %v2301 = vpack.c.bf16 %v2151, %v2141
  %v2302 = vpack.c.bf16 %v2152, %v2142
  %v2303 = vpack.c.bf16 %v2153, %v2143
  %v2304 = vpack.c.bf16 %v2154, %v2144
  %v2305 = vpack.c.bf16 %v2155, %v2145
  %v2306 = vpack.c.bf16 %v2156, %v2146
  %v2307 = vpack.c.bf16 %v2157, %v2147
  %v2308 = vpack.c.bf16 %v2168, %v2158
  %v2309 = vpack.c.bf16 %v2169, %v2159
  %v2310 = vpack.c.bf16 %v2170, %v2160
  %v2311 = vpack.c.bf16 %v2171, %v2161
  %v2312 = vpack.c.bf16 %v2172, %v2162
  %v2313 = vpack.c.bf16 %v2173, %v2163
  %v2314 = vpack.c.bf16 %v2174, %v2164
  %v2315 = vpack.c.bf16 %v2175, %v2165
  %v2316 = vpack.c.bf16 %v2176, %v2166
  %v2317 = vpack.c.bf16 %v2177, %v2167
  %v2318 = vpack.c.bf16 %v2188, %v2178
  %v2319 = vpack.c.bf16 %v2189, %v2179
  %v2320 = vpack.c.bf16 %v2190, %v2180
  %v2321 = vpack.c.bf16 %v2191, %v2181
  %v2322 = vpack.c.bf16 %v2192, %v2182
  %v2323 = vpack.c.bf16 %v2193, %v2183
  %v2324 = vpack.c.bf16 %v2194, %v2184
  %v2325 = vpack.c.bf16 %v2195, %v2185
  %v2326 = vpack.c.bf16 %v2196, %v2186
  %v2327 = vpack.c.bf16 %v2197, %v2187
  %v2328 = vpack.c.bf16 %v2208, %v2198
  %v2329 = vpack.c.bf16 %v2209, %v2199
  %v2330 = vpack.c.bf16 %v2210, %v2200
  %v2331 = vpack.c.bf16 %v2211, %v2201
  %v2332 = vpack.c.bf16 %v2212, %v2202
  %v2333 = vpack.c.bf16 %v2213, %v2203
  %v2334 = vpack.c.bf16 %v2214, %v2204
  %v2335 = vpack.c.bf16 %v2215, %v2205
  %v2336 = vpack.c.bf16 %v2216, %v2206
  %v2337 = vpack.c.bf16 %v2217, %v2207
  %v2338 = vpack.c.bf16 %v2228, %v2218
  %v2339 = vpack.c.bf16 %v2229, %v2219
  %v2340 = vpack.c.bf16 %v2230, %v2220
  %v2341 = vpack.c.bf16 %v2231, %v2221
  %v2342 = vpack.c.bf16 %v2232, %v2222
  %v2343 = vpack.c.bf16 %v2233, %v2223
  %v2344 = vpack.c.bf16 %v2234, %v2224
  %v2345 = vpack.c.bf16 %v2235, %v2225
  %v2346 = vpack.c.bf16 %v2236, %v2226
  %v2347 = vpack.c.bf16 %v2237, %v2227
  %v2348 = vpack.c.bf16 %v2248, %v2238
  %v2349 = vpack.c.bf16 %v2249, %v2239
  %v2350 = vpack.c.bf16 %v2250, %v2240
  %v2351 = vpack.c.bf16 %v2251, %v2241
  %v2352 = vpack.c.bf16 %v2252, %v2242
  %v2353 = vpack.c.bf16 %v2253, %v2243
  %v2354 = vpack.c.bf16 %v2254, %v2244
  %v2355 = vpack.c.bf16 %v2255, %v2245
  %v2356 = vpack.c.bf16 %v2256, %v2246
  %v2357 = vpack.c.bf16 %v2257, %v2247
  %v2358 = vpack.c.bf16 %v2268, %v2258
  %v2359 = vpack.c.bf16 %v2269, %v2259
  %v2360 = vpack.c.bf16 %v2270, %v2260
  %v2361 = vpack.c.bf16 %v2271, %v2261
  %v2362 = vpack.c.bf16 %v2272, %v2262
  %v2363 = vpack.c.bf16 %v2273, %v2263
  %v2364 = vpack.c.bf16 %v2274, %v2264
  %v2365 = vpack.c.bf16 %v2275, %v2265
  %v2366 = vpack.c.bf16 %v2276, %v2266
  %v2367 = vpack.c.bf16 %v2277, %v2267
  %v2368 = vpack.c.bf16 %v2288, %v2278
  %v2369 = vpack.c.bf16 %v2289, %v2279
  %v2370 = vpack.c.bf16 %v2290, %v2280
  %v2371 = vpack.c.bf16 %v2291, %v2281
  %v2372 = vpack.c.bf16 %v2292, %v2282
  %v2373 = vpack.c.bf16 %v2293, %v2283
  %v2374 = vpack.c.bf16 %v2294, %v2284
  %v2375 = vpack.c.bf16 %v2295, %v2285
  %v2376 = vpack.c.bf16 %v2296, %v2286
  %v2377 = vpack.c.bf16 %v2297, %v2287
  %v2458 = vunpack.c.l.b16 %v2298
  %v2459 = vunpack.c.l.b16 %v2299
  %v2460 = vunpack.c.l.b16 %v2300
  %v2461 = vunpack.c.l.b16 %v2301
  %v2462 = vunpack.c.l.b16 %v2302
  %v2463 = vunpack.c.l.b16 %v2303
  %v2464 = vunpack.c.l.b16 %v2304
  %v2465 = vunpack.c.l.b16 %v2305
  %v2466 = vunpack.c.l.b16 %v2306
  %v2467 = vunpack.c.l.b16 %v2307
  %v2468 = vunpack.c.h.b16 %v2298
  %v2469 = vunpack.c.h.b16 %v2299
  %v2470 = vunpack.c.h.b16 %v2300
  %v2471 = vunpack.c.h.b16 %v2301
  %v2472 = vunpack.c.h.b16 %v2302
  %v2473 = vunpack.c.h.b16 %v2303
  %v2474 = vunpack.c.h.b16 %v2304
  %v2475 = vunpack.c.h.b16 %v2305
  %v2476 = vunpack.c.h.b16 %v2306
  %v2477 = vunpack.c.h.b16 %v2307
  %v2478 = vunpack.c.l.b16 %v2308
  %v2479 = vunpack.c.l.b16 %v2309
  %v2480 = vunpack.c.l.b16 %v2310
  %v2481 = vunpack.c.l.b16 %v2311
  %v2482 = vunpack.c.l.b16 %v2312
  %v2483 = vunpack.c.l.b16 %v2313
  %v2484 = vunpack.c.l.b16 %v2314
  %v2485 = vunpack.c.l.b16 %v2315
  %v2486 = vunpack.c.l.b16 %v2316
  %v2487 = vunpack.c.l.b16 %v2317
  %v2488 = vunpack.c.h.b16 %v2308
  %v2489 = vunpack.c.h.b16 %v2309
  %v2490 = vunpack.c.h.b16 %v2310
  %v2491 = vunpack.c.h.b16 %v2311
  %v2492 = vunpack.c.h.b16 %v2312
  %v2493 = vunpack.c.h.b16 %v2313
  %v2494 = vunpack.c.h.b16 %v2314
  %v2495 = vunpack.c.h.b16 %v2315
  %v2496 = vunpack.c.h.b16 %v2316
  %v2497 = vunpack.c.h.b16 %v2317
  %v2498 = vunpack.c.l.b16 %v2318
  %v2499 = vunpack.c.l.b16 %v2319
  %v2500 = vunpack.c.l.b16 %v2320
  %v2501 = vunpack.c.l.b16 %v2321
  %v2502 = vunpack.c.l.b16 %v2322
  %v2503 = vunpack.c.l.b16 %v2323
  %v2504 = vunpack.c.l.b16 %v2324
  %v2505 = vunpack.c.l.b16 %v2325
  %v2506 = vunpack.c.l.b16 %v2326
  %v2507 = vunpack.c.l.b16 %v2327
  %v2508 = vunpack.c.h.b16 %v2318
  %v2509 = vunpack.c.h.b16 %v2319
  %v2510 = vunpack.c.h.b16 %v2320
  %v2511 = vunpack.c.h.b16 %v2321
  %v2512 = vunpack.c.h.b16 %v2322
  %v2513 = vunpack.c.h.b16 %v2323
  %v2514 = vunpack.c.h.b16 %v2324
  %v2515 = vunpack.c.h.b16 %v2325
  %v2516 = vunpack.c.h.b16 %v2326
  %v2517 = vunpack.c.h.b16 %v2327
  %v2518 = vunpack.c.l.b16 %v2328
  %v2519 = vunpack.c.l.b16 %v2329
  %v2520 = vunpack.c.l.b16 %v2330
  %v2521 = vunpack.c.l.b16 %v2331
  %v2522 = vunpack.c.l.b16 %v2332
  %v2523 = vunpack.c.l.b16 %v2333
  %v2524 = vunpack.c.l.b16 %v2334
  %v2525 = vunpack.c.l.b16 %v2335
  %v2526 = vunpack.c.l.b16 %v2336
  %v2527 = vunpack.c.l.b16 %v2337
  %v2528 = vunpack.c.h.b16 %v2328
  %v2529 = vunpack.c.h.b16 %v2329
  %v2530 = vunpack.c.h.b16 %v2330
  %v2531 = vunpack.c.h.b16 %v2331
  %v2532 = vunpack.c.h.b16 %v2332
  %v2533 = vunpack.c.h.b16 %v2333
  %v2534 = vunpack.c.h.b16 %v2334
  %v2535 = vunpack.c.h.b16 %v2335
  %v2536 = vunpack.c.h.b16 %v2336
  %v2537 = vunpack.c.h.b16 %v2337
  %v2538 = vunpack.c.l.b16 %v2338
  %v2539 = vunpack.c.l.b16 %v2339
  %v2540 = vunpack.c.l.b16 %v2340
  %v2541 = vunpack.c.l.b16 %v2341
  %v2542 = vunpack.c.l.b16 %v2342
  %v2543 = vunpack.c.l.b16 %v2343
  %v2544 = vunpack.c.l.b16 %v2344
  %v2545 = vunpack.c.l.b16 %v2345
  %v2546 = vunpack.c.l.b16 %v2346
  %v2547 = vunpack.c.l.b16 %v2347
  %v2548 = vunpack.c.h.b16 %v2338
  %v2549 = vunpack.c.h.b16 %v2339
  %v2550 = vunpack.c.h.b16 %v2340
  %v2551 = vunpack.c.h.b16 %v2341
  %v2552 = vunpack.c.h.b16 %v2342
  %v2553 = vunpack.c.h.b16 %v2343
  %v2554 = vunpack.c.h.b16 %v2344
  %v2555 = vunpack.c.h.b16 %v2345
  %v2556 = vunpack.c.h.b16 %v2346
  %v2557 = vunpack.c.h.b16 %v2347
  %v2558 = vunpack.c.l.b16 %v2348
  %v2559 = vunpack.c.l.b16 %v2349
  %v2560 = vunpack.c.l.b16 %v2350
  %v2561 = vunpack.c.l.b16 %v2351
  %v2562 = vunpack.c.l.b16 %v2352
  %v2563 = vunpack.c.l.b16 %v2353
  %v2564 = vunpack.c.l.b16 %v2354
  %v2565 = vunpack.c.l.b16 %v2355
  %v2566 = vunpack.c.l.b16 %v2356
  %v2567 = vunpack.c.l.b16 %v2357
  %v2568 = vunpack.c.h.b16 %v2348
  %v2569 = vunpack.c.h.b16 %v2349
  %v2570 = vunpack.c.h.b16 %v2350
  %v2571 = vunpack.c.h.b16 %v2351
  %v2572 = vunpack.c.h.b16 %v2352
  %v2573 = vunpack.c.h.b16 %v2353
  %v2574 = vunpack.c.h.b16 %v2354
  %v2575 = vunpack.c.h.b16 %v2355
  %v2576 = vunpack.c.h.b16 %v2356
  %v2577 = vunpack.c.h.b16 %v2357
  %v2578 = vunpack.c.l.b16 %v2358
  %v2579 = vunpack.c.l.b16 %v2359
  %v2580 = vunpack.c.l.b16 %v2360
  %v2581 = vunpack.c.l.b16 %v2361
  %v2582 = vunpack.c.l.b16 %v2362
  %v2583 = vunpack.c.l.b16 %v2363
  %v2584 = vunpack.c.l.b16 %v2364
  %v2585 = vunpack.c.l.b16 %v2365
  %v2586 = vunpack.c.l.b16 %v2366
  %v2587 = vunpack.c.l.b16 %v2367
  %v2588 = vunpack.c.h.b16 %v2358
  %v2589 = vunpack.c.h.b16 %v2359
  %v2590 = vunpack.c.h.b16 %v2360
  %v2591 = vunpack.c.h.b16 %v2361
  %v2592 = vunpack.c.h.b16 %v2362
  %v2593 = vunpack.c.h.b16 %v2363
  %v2594 = vunpack.c.h.b16 %v2364
  %v2595 = vunpack.c.h.b16 %v2365
  %v2596 = vunpack.c.h.b16 %v2366
  %v2597 = vunpack.c.h.b16 %v2367
  %v2598 = vunpack.c.l.b16 %v2368
  %v2599 = vunpack.c.l.b16 %v2369
  %v2600 = vunpack.c.l.b16 %v2370
  %v2601 = vunpack.c.l.b16 %v2371
  %v2602 = vunpack.c.l.b16 %v2372
  %v2603 = vunpack.c.l.b16 %v2373
  %v2604 = vunpack.c.l.b16 %v2374
  %v2605 = vunpack.c.l.b16 %v2375
  %v2606 = vunpack.c.l.b16 %v2376
  %v2607 = vunpack.c.l.b16 %v2377
  %v2608 = vunpack.c.h.b16 %v2368
  %v2609 = vunpack.c.h.b16 %v2369
  %v2610 = vunpack.c.h.b16 %v2370
  %v2611 = vunpack.c.h.b16 %v2371
  %v2612 = vunpack.c.h.b16 %v2372
  %v2613 = vunpack.c.h.b16 %v2373
  %v2614 = vunpack.c.h.b16 %v2374
  %v2615 = vunpack.c.h.b16 %v2375
  %v2616 = vunpack.c.h.b16 %v2376
  %v2617 = vunpack.c.h.b16 %v2377
  %v2618 = vpack.c.b16 %v2459, %v2458
  %v2619 = vpack.c.b16 %v2461, %v2460
  %v2620 = vpack.c.b16 %v2463, %v2462
  %v2621 = vpack.c.b16 %v2465, %v2464
  %v2622 = vpack.c.b16 %v2467, %v2466
  %v2623 = vpack.c.b16 %v2469, %v2468
  %v2624 = vpack.c.b16 %v2471, %v2470
  %v2625 = vpack.c.b16 %v2473, %v2472
  %v2626 = vpack.c.b16 %v2475, %v2474
  %v2627 = vpack.c.b16 %v2477, %v2476
  %v2628 = vpack.c.b16 %v2479, %v2478
  %v2629 = vpack.c.b16 %v2481, %v2480
  %v2630 = vpack.c.b16 %v2483, %v2482
  %v2631 = vpack.c.b16 %v2485, %v2484
  %v2632 = vpack.c.b16 %v2487, %v2486
  %v2633 = vpack.c.b16 %v2489, %v2488
  %v2634 = vpack.c.b16 %v2491, %v2490
  %v2635 = vpack.c.b16 %v2493, %v2492
  %v2636 = vpack.c.b16 %v2495, %v2494
  %v2637 = vpack.c.b16 %v2497, %v2496
  %v2638 = vpack.c.b16 %v2499, %v2498
  %v2639 = vpack.c.b16 %v2501, %v2500
  %v2640 = vpack.c.b16 %v2503, %v2502
  %v2641 = vpack.c.b16 %v2505, %v2504
  %v2642 = vpack.c.b16 %v2507, %v2506
  %v2643 = vpack.c.b16 %v2509, %v2508
  %v2644 = vpack.c.b16 %v2511, %v2510
  %v2645 = vpack.c.b16 %v2513, %v2512
  %v2646 = vpack.c.b16 %v2515, %v2514
  %v2647 = vpack.c.b16 %v2517, %v2516
  %v2648 = vpack.c.b16 %v2519, %v2518
  %v2649 = vpack.c.b16 %v2521, %v2520
  %v2650 = vpack.c.b16 %v2523, %v2522
  %v2651 = vpack.c.b16 %v2525, %v2524
  %v2652 = vpack.c.b16 %v2527, %v2526
  %v2653 = vpack.c.b16 %v2529, %v2528
  %v2654 = vpack.c.b16 %v2531, %v2530
  %v2655 = vpack.c.b16 %v2533, %v2532
  %v2656 = vpack.c.b16 %v2535, %v2534
  %v2657 = vpack.c.b16 %v2537, %v2536
  %v2658 = vpack.c.b16 %v2539, %v2538
  %v2659 = vpack.c.b16 %v2541, %v2540
  %v2660 = vpack.c.b16 %v2543, %v2542
  %v2661 = vpack.c.b16 %v2545, %v2544
  %v2662 = vpack.c.b16 %v2547, %v2546
  %v2663 = vpack.c.b16 %v2549, %v2548
  %v2664 = vpack.c.b16 %v2551, %v2550
  %v2665 = vpack.c.b16 %v2553, %v2552
  %v2666 = vpack.c.b16 %v2555, %v2554
  %v2667 = vpack.c.b16 %v2557, %v2556
  %v2668 = vpack.c.b16 %v2559, %v2558
  %v2669 = vpack.c.b16 %v2561, %v2560
  %v2670 = vpack.c.b16 %v2563, %v2562
  %v2671 = vpack.c.b16 %v2565, %v2564
  %v2672 = vpack.c.b16 %v2567, %v2566
  %v2673 = vpack.c.b16 %v2569, %v2568
  %v2674 = vpack.c.b16 %v2571, %v2570
  %v2675 = vpack.c.b16 %v2573, %v2572
  %v2676 = vpack.c.b16 %v2575, %v2574
  %v2677 = vpack.c.b16 %v2577, %v2576
  %v2678 = vpack.c.b16 %v2579, %v2578
  %v2679 = vpack.c.b16 %v2581, %v2580
  %v2680 = vpack.c.b16 %v2583, %v2582
  %v2681 = vpack.c.b16 %v2585, %v2584
  %v2682 = vpack.c.b16 %v2587, %v2586
  %v2683 = vpack.c.b16 %v2589, %v2588
  %v2684 = vpack.c.b16 %v2591, %v2590
  %v2685 = vpack.c.b16 %v2593, %v2592
  %v2686 = vpack.c.b16 %v2595, %v2594
  %v2687 = vpack.c.b16 %v2597, %v2596
  %v2688 = vpack.c.b16 %v2599, %v2598
  %v2689 = vpack.c.b16 %v2601, %v2600
  %v2690 = vpack.c.b16 %v2603, %v2602
  %v2691 = vpack.c.b16 %v2605, %v2604
  %v2692 = vpack.c.b16 %v2607, %v2606
  %v2693 = vpack.c.b16 %v2609, %v2608
  %v2694 = vpack.c.b16 %v2611, %v2610
  %v2695 = vpack.c.b16 %v2613, %v2612
  %v2696 = vpack.c.b16 %v2615, %v2614
  %v2697 = vpack.c.b16 %v2617, %v2616
  %2778 = vst [vmem:[%s3] sm:$0xff] %v2618
  %2779 = vst [vmem:[%s3 + $0x8] sm:$0xff] %v2619
  %2780 = vst [vmem:[%s3 + $0x10] sm:$0xff] %v2620
  %2781 = vst [vmem:[%s3 + $0x18] sm:$0xff] %v2621
  %2782 = vst [vmem:[%s3 + $0x20] sm:$0xff] %v2622
  %2783 = vst [vmem:[%s3 + $0x28] sm:$0xff] %v2623
  %2784 = vst [vmem:[%s3 + $0x30] sm:$0xff] %v2624
  %2785 = vst [vmem:[%s3 + $0x38] sm:$0xff] %v2625
  %2786 = vst [vmem:[%s3 + $0x40] sm:$0xff] %v2626
  %2787 = vst [vmem:[%s3 + $0x48] sm:$0xff] %v2627
  %2788 = vst [vmem:[%s3 + $0x50] sm:$0xff] %v2628
  %2789 = vst [vmem:[%s3 + $0x58] sm:$0xff] %v2629
  %2790 = vst [vmem:[%s3 + $0x60] sm:$0xff] %v2630
  %2791 = vst [vmem:[%s3 + $0x68] sm:$0xff] %v2631
  %2792 = vst [vmem:[%s3 + $0x70] sm:$0xff] %v2632
  %2793 = vst [vmem:[%s3 + $0x78] sm:$0xff] %v2633
  %2794 = vst [vmem:[%s3 + $0x80] sm:$0xff] %v2634
  %2795 = vst [vmem:[%s3 + $0x88] sm:$0xff] %v2635
  %2796 = vst [vmem:[%s3 + $0x90] sm:$0xff] %v2636
  %2797 = vst [vmem:[%s3 + $0x98] sm:$0xff] %v2637
  %2798 = vst [vmem:[%s3 + $0xa0] sm:$0xff] %v2638
  %2799 = vst [vmem:[%s3 + $0xa8] sm:$0xff] %v2639
  %2800 = vst [vmem:[%s3 + $0xb0] sm:$0xff] %v2640
  %2801 = vst [vmem:[%s3 + $0xb8] sm:$0xff] %v2641
  %2802 = vst [vmem:[%s3 + $0xc0] sm:$0xff] %v2642
  %2803 = vst [vmem:[%s3 + $0xc8] sm:$0xff] %v2643
  %2804 = vst [vmem:[%s3 + $0xd0] sm:$0xff] %v2644
  %2805 = vst [vmem:[%s3 + $0xd8] sm:$0xff] %v2645
  %2806 = vst [vmem:[%s3 + $0xe0] sm:$0xff] %v2646
  %2807 = vst [vmem:[%s3 + $0xe8] sm:$0xff] %v2647
  %2808 = vst [vmem:[%s3 + $0xf0] sm:$0xff] %v2648
  %2809 = vst [vmem:[%s3 + $0xf8] sm:$0xff] %v2649
  %2810 = vst [vmem:[%s3 + $0x100] sm:$0xff] %v2650
  %2811 = vst [vmem:[%s3 + $0x108] sm:$0xff] %v2651
  %2812 = vst [vmem:[%s3 + $0x110] sm:$0xff] %v2652
  %2813 = vst [vmem:[%s3 + $0x118] sm:$0xff] %v2653
  %2814 = vst [vmem:[%s3 + $0x120] sm:$0xff] %v2654
  %2815 = vst [vmem:[%s3 + $0x128] sm:$0xff] %v2655
  %2816 = vst [vmem:[%s3 + $0x130] sm:$0xff] %v2656
  %2817 = vst [vmem:[%s3 + $0x138] sm:$0xff] %v2657
  %2818 = vst [vmem:[%s3 + $0x140] sm:$0xff] %v2658
  %2819 = vst [vmem:[%s3 + $0x148] sm:$0xff] %v2659
  %2820 = vst [vmem:[%s3 + $0x150] sm:$0xff] %v2660
  %2821 = vst [vmem:[%s3 + $0x158] sm:$0xff] %v2661
  %2822 = vst [vmem:[%s3 + $0x160] sm:$0xff] %v2662
  %2823 = vst [vmem:[%s3 + $0x168] sm:$0xff] %v2663
  %2824 = vst [vmem:[%s3 + $0x170] sm:$0xff] %v2664
  %2825 = vst [vmem:[%s3 + $0x178] sm:$0xff] %v2665
  %2826 = vst [vmem:[%s3 + $0x180] sm:$0xff] %v2666
  %2827 = vst [vmem:[%s3 + $0x188] sm:$0xff] %v2667
  %2828 = vst [vmem:[%s3 + $0x190] sm:$0xff] %v2668
  %2829 = vst [vmem:[%s3 + $0x198] sm:$0xff] %v2669
  %2830 = vst [vmem:[%s3 + $0x1a0] sm:$0xff] %v2670
  %2831 = vst [vmem:[%s3 + $0x1a8] sm:$0xff] %v2671
  %2832 = vst [vmem:[%s3 + $0x1b0] sm:$0xff] %v2672
  %2833 = vst [vmem:[%s3 + $0x1b8] sm:$0xff] %v2673
  %2834 = vst [vmem:[%s3 + $0x1c0] sm:$0xff] %v2674
  %2835 = vst [vmem:[%s3 + $0x1c8] sm:$0xff] %v2675
  %2836 = vst [vmem:[%s3 + $0x1d0] sm:$0xff] %v2676
  %2837 = vst [vmem:[%s3 + $0x1d8] sm:$0xff] %v2677
  %2838 = vst [vmem:[%s3 + $0x1e0] sm:$0xff] %v2678
  %2839 = vst [vmem:[%s3 + $0x1e8] sm:$0xff] %v2679
  %2840 = vst [vmem:[%s3 + $0x1f0] sm:$0xff] %v2680
  %2841 = vst [vmem:[%s3 + $0x1f8] sm:$0xff] %v2681
  %2842 = vst [vmem:[%s3 + $0x200] sm:$0xff] %v2682
  %2843 = vst [vmem:[%s3 + $0x208] sm:$0xff] %v2683
  %2844 = vst [vmem:[%s3 + $0x210] sm:$0xff] %v2684
  %2845 = vst [vmem:[%s3 + $0x218] sm:$0xff] %v2685
  %2846 = vst [vmem:[%s3 + $0x220] sm:$0xff] %v2686
  %2847 = vst [vmem:[%s3 + $0x228] sm:$0xff] %v2687
  %2848 = vst [vmem:[%s3 + $0x230] sm:$0xff] %v2688
  %2849 = vst [vmem:[%s3 + $0x238] sm:$0xff] %v2689
  %2850 = vst [vmem:[%s3 + $0x240] sm:$0xff] %v2690
  %2851 = vst [vmem:[%s3 + $0x248] sm:$0xff] %v2691
  %2852 = vst [vmem:[%s3 + $0x250] sm:$0xff] %v2692
  %2853 = vst [vmem:[%s3 + $0x258] sm:$0xff] %v2693
  %2854 = vst [vmem:[%s3 + $0x260] sm:$0xff] %v2694
  %2855 = vst [vmem:[%s3 + $0x268] sm:$0xff] %v2695
  %2856 = vst [vmem:[%s3 + $0x270] sm:$0xff] %v2696
  %2857 = vst [vmem:[%s3 + $0x278] sm:$0xff] %v2697
  // Predicated region
  $region14: #{efficientnet_forward.8} parent=0 // pred_check
    _
  $region15: #{efficientnet_forward.8} parent=0 // pred_check_branch
    %2859 = sbr.rel (0) target = $region17
  $region16: #{efficientnet_forward.8} parent=0 // pred_region
    _
  $region17: #{efficientnet_forward.8} parent=0 // pred_fallthru
    _
  // Predicated region
  $region18: #{efficientnet_forward.8} parent=0 // pred_check
    _
  $region19: #{efficientnet_forward.8} parent=0 // pred_check_branch
    %2861 = sbr.rel (0) target = $region21
  $region20: #{efficientnet_forward.8} parent=0 // pred_region
    _
  $region21: #{efficientnet_forward.8} parent=0 // pred_fallthru
    _

</llo_original>
